<compile_context>
chip_gen: v6e
topology: v6e:2x2x1
jax: 0.10.0
libtpu: 0.0.40
codegen_flags: <defaults>
</compile_context>

<pallas_src>
import numpy as np
import jax
import jax.numpy as jnp
from jax import lax
from jax.experimental import pallas as pl
from jax.experimental.pallas import tpu as pltpu

EPS = 1e-5
LANE = 128


def _round_up(x, m):
    return (x + m - 1) // m * m


# Static dest/src ranges for a 3x3 pad=1 conv tap offset k in {0,1,2}.
def _tap3(k, n):
    if k == 0:
        return 1, n, 0          # dest rows [1, n)   <- src rows [0, n-1)
    if k == 1:
        return 0, n, 0          # dest rows [0, n)   <- src rows [0, n)
    return 0, n - 1, 1          # dest rows [0, n-1) <- src rows [1, n)


# Static dest/src ranges + parity-slab selector for a 4x4 stride=2 pad=1 conv
# tap offset k in {0,1,2,3} (operating on parity slabs of the unpadded input).
def _tap4(k, n):
    if k == 0:
        return 1, n, 0, True    # odd-parity slab, shifted
    if k == 1:
        return 0, n, 0, False   # even-parity slab
    if k == 2:
        return 0, n, 0, True    # odd-parity slab
    return 0, n - 1, 1, False   # even-parity slab, shifted


# ----------------------------- Pallas kernels ------------------------------

def conv1_stats_kernel(x_ref, w1_ref, b1_ref, h1_ref, psum_ref, psq_ref, col_ref):
    """conv1(3x3,pad1)+bias+ReLU for one image via a single K-folded MXU matmul.
    Emits the unpadded activation and per-image BN1 partial sum / sum-of-squares."""
    _, H, W, Ci = x_ref.shape
    Cp = h1_ref.shape[3]
    cdt = w1_ref.dtype

    for ky in range(3):
        y0, y1, sy = _tap3(ky, H)
        for kx in range(3):
            x0, x1, sx = _tap3(kx, W)
            t = ky * 3 + kx
            lo, hi = t * Ci, (t + 1) * Ci
            # zero the (tiny) halo strips of this tap every step: conv zero
            # padding, and safe under megacore grid sharding.
            if ky == 0:
                col_ref[0:1, :, lo:hi] = jnp.zeros((1, W, Ci), jnp.float32)
            if ky == 2:
                col_ref[H - 1:H, :, lo:hi] = jnp.zeros((1, W, Ci), jnp.float32)
            if kx == 0:
                col_ref[:, 0:1, lo:hi] = jnp.zeros((H, 1, Ci), jnp.float32)
            if kx == 2:
                col_ref[:, W - 1:W, lo:hi] = jnp.zeros((H, 1, Ci), jnp.float32)
            ylen, xlen = y1 - y0, x1 - x0
            col_ref[y0:y1, x0:x1, lo:hi] = (
                x_ref[0, sy:sy + ylen, sx:sx + xlen, :].astype(jnp.float32))

    h = jnp.dot(col_ref[...].reshape(H * W, 9 * Ci).astype(cdt), w1_ref[...],
                preferred_element_type=jnp.float32) + b1_ref[...]
    h = jnp.maximum(h, 0.0)
    h1_ref[...] = h.reshape(1, H, W, Cp).astype(h1_ref.dtype)
    psum_ref[0] = jnp.sum(h, axis=0, keepdims=True)
    psq_ref[0] = jnp.sum(h * h, axis=0, keepdims=True)


def bn1_conv2_stats_kernel(h1_ref, ps1_ref, pq1_ref, temb_ref, g1_ref, be1_ref,
                           w2_ref, b2_ref, h2_ref, psum_ref, psq_ref,
                           hn_ref, col_ref):
    """BN1 (global batch stats) + time-embedding shift, then conv2(3x3,pad1)+bias+ReLU
    as one K-folded matmul; emits the unpadded activation and BN2 partials."""
    _, H, W, Cp = h1_ref.shape
    cdt = w2_ref.dtype

    inv_m = 1.0 / (ps1_ref.shape[0] * H * W)
    mean = jnp.sum(ps1_ref[...], axis=0) * inv_m                      # (1, Cp)
    var = jnp.maximum(jnp.sum(pq1_ref[...], axis=0) * inv_m - mean * mean, 0.0)
    scale = g1_ref[...] * lax.rsqrt(var + EPS)
    shift = be1_ref[...] - mean * scale + temb_ref[0]                 # includes temb

    # normalized conv2 input (the zero padding of the *normalized* activation is
    # represented by the pre-zeroed halo strips of the im2col buffer below).
    hn_ref[...] = h1_ref[0].astype(jnp.float32) * scale + shift

    for ky in range(3):
        y0, y1, sy = _tap3(ky, H)
        for kx in range(3):
            x0, x1, sx = _tap3(kx, W)
            t = ky * 3 + kx
            lo, hi = t * Cp, (t + 1) * Cp
            if ky == 0:
                col_ref[0:1, :, lo:hi] = jnp.zeros((1, W, Cp), jnp.float32)
            if ky == 2:
                col_ref[H - 1:H, :, lo:hi] = jnp.zeros((1, W, Cp), jnp.float32)
            if kx == 0:
                col_ref[:, 0:1, lo:hi] = jnp.zeros((H, 1, Cp), jnp.float32)
            if kx == 2:
                col_ref[:, W - 1:W, lo:hi] = jnp.zeros((H, 1, Cp), jnp.float32)
            ylen, xlen = y1 - y0, x1 - x0
            col_ref[y0:y1, x0:x1, lo:hi] = hn_ref[sy:sy + ylen, sx:sx + xlen, :]

    h = jnp.dot(col_ref[...].reshape(H * W, 9 * Cp).astype(cdt), w2_ref[...],
                preferred_element_type=jnp.float32) + b2_ref[...]
    h = jnp.maximum(h, 0.0)
    h2_ref[...] = h.reshape(1, H, W, Cp).astype(h2_ref.dtype)
    psum_ref[0] = jnp.sum(h, axis=0, keepdims=True)
    psq_ref[0] = jnp.sum(h * h, axis=0, keepdims=True)


def bn2_transform_kernel(h2r_ref, ps2_ref, pq2_ref, g2_ref, be2_ref,
                         w3_ref, b3_ref, y_ref, plane_ref, col_ref):
    """BN2 then transform = Conv2d(out,out,4,stride=2,pad=1) as one K=16*Cp matmul.
    Input is h2 reshaped (1, Ho, 2, Wo, 2*Cp) so column parity sits in the lane
    dim and every tap is a contiguous slice of a parity plane."""
    _, Ho, _, Wo, C2 = h2r_ref.shape
    Cp = C2 // 2
    cdt = w3_ref.dtype

    inv_m = 1.0 / (ps2_ref.shape[0] * (2 * Ho) * (2 * Wo))
    mean = jnp.sum(ps2_ref[...], axis=0) * inv_m
    var = jnp.maximum(jnp.sum(pq2_ref[...], axis=0) * inv_m - mean * mean, 0.0)
    scale = g2_ref[...] * lax.rsqrt(var + EPS)
    shift = be2_ref[...] - mean * scale

    v = h2r_ref[0].astype(jnp.float32)                  # (Ho, 2, Wo, 2*Cp)
    ve, vo = v[:, 0], v[:, 1]                           # even / odd rows
    # parity planes of the normalized activation:
    #   [0]=even rows/even cols  [1]=even/odd  [2]=odd/even  [3]=odd/odd
    plane_ref[0] = ve[:, :, :Cp] * scale + shift
    plane_ref[1] = ve[:, :, Cp:] * scale + shift
    plane_ref[2] = vo[:, :, :Cp] * scale + shift
    plane_ref[3] = vo[:, :, Cp:] * scale + shift

    for ky in range(4):
        y0, y1, sy, row_odd = _tap4(ky, Ho)
        for kx in range(4):
            x0, x1, sx, col_odd = _tap4(kx, Wo)
            t = ky * 4 + kx
            lo, hi = t * Cp, (t + 1) * Cp
            slab = 2 * int(row_odd) + int(col_odd)
            if ky == 0:
                col_ref[0:1, :, lo:hi] = jnp.zeros((1, Wo, Cp), jnp.float32)
            if ky == 3:
                col_ref[Ho - 1:Ho, :, lo:hi] = jnp.zeros((1, Wo, Cp), jnp.float32)
            if kx == 0:
                col_ref[:, 0:1, lo:hi] = jnp.zeros((Ho, 1, Cp), jnp.float32)
            if kx == 3:
                col_ref[:, Wo - 1:Wo, lo:hi] = jnp.zeros((Ho, 1, Cp), jnp.float32)
            ylen, xlen = y1 - y0, x1 - x0
            col_ref[y0:y1, x0:x1, lo:hi] = (
                plane_ref[slab, sy:sy + ylen, sx:sx + xlen, :])

    y = jnp.dot(col_ref[...].reshape(Ho * Wo, 16 * Cp).astype(cdt), w3_ref[...],
                preferred_element_type=jnp.float32) + b3_ref[...]
    y_ref[...] = y.reshape(1, Ho, Wo, Cp)


# ------------------------------ wrapper glue --------------------------------

def block_forward(x_nchw, t, P, compute_dtype=jnp.bfloat16):
    """Block (up=False) forward. x: NCHW, t: (N, time_emb_dim).

    compute_dtype: dtype of the MXU operands (weights + im2col patches); f32
    accumulation, BN and elementwise math regardless. bf16 (default) is the
    MXU-native path on v5e/v6e/v7x; pass jnp.float32 for bit-tight checks."""
    N, Cin, H, W = x_nchw.shape
    assert H % 2 == 0 and W % 2 == 0, "stride-2 transform expects even H, W"
    Cout = P["b1"].shape[-1]
    Cp = _round_up(Cout, LANE)                # lane-dense internal channel width
    Cip = _round_up(Cin, LANE)
    Ho, Wo = H // 2, W // 2
    cdt = compute_dtype

    cparams = pltpu.CompilerParams(
        dimension_semantics=("parallel",),    # batch grid shards across cores
        vmem_limit_bytes=48 * 1024 * 1024)    # headroom on v7x's 64 MiB VMEM

    # NCHW -> NHWC + zero channel pad (pure layout glue; padded channels stay 0).
    x = jnp.transpose(x_nchw, (0, 2, 3, 1)).astype(jnp.float32)
    x = jnp.pad(x, ((0, 0), (0, 0), (0, 0), (0, Cip - Cin)))

    def pad_out(a):
        return jnp.pad(a, [(0, 0)] * (a.ndim - 1) + [(0, Cp - a.shape[-1])])

    # K-folded (taps packed into the contraction dim) bf16 weights.
    w1 = jnp.pad(P["w1"], ((0, 0), (0, 0), (0, Cip - Cin), (0, Cp - Cout)))
    w1 = w1.reshape(9 * Cip, Cp).astype(cdt)
    w2 = jnp.pad(P["w2"], ((0, 0), (0, 0), (0, Cp - Cout), (0, Cp - Cout)))
    w2 = w2.reshape(9 * Cp, Cp).astype(cdt)
    w3 = jnp.pad(P["w3"], ((0, 0), (0, 0), (0, Cp - Cout), (0, Cp - Cout)))
    w3 = w3.reshape(16 * Cp, Cp).astype(cdt)
    b1, b2, b3 = pad_out(P["b1"]), pad_out(P["b2"]), pad_out(P["b3"])
    g1, be1 = pad_out(P["g1"]), pad_out(P["be1"])
    g2, be2 = pad_out(P["g2"]), pad_out(P["be2"])

    # time embedding: relu(t @ wt + bt) -- tiny, plain JAX (no kernel launch),
    # folded into the BN1 shift inside the conv2 kernel.
    wt, bt = pad_out(P["wt"]), pad_out(P["bt"])
    temb = jnp.maximum(t.astype(jnp.float32) @ wt + bt, 0.0).reshape(N, 1, Cp)

    # ---- conv1 + ReLU + BN1 partial statistics (grid over batch) ----
    h1, ps1, pq1 = pl.pallas_call(
        conv1_stats_kernel,
        grid=(N,),
        in_specs=[
            pl.BlockSpec((1, H, W, Cip), lambda n: (n, 0, 0, 0)),
            pl.BlockSpec((9 * Cip, Cp), lambda n: (0, 0)),
            pl.BlockSpec((1, Cp), lambda n: (0, 0)),
        ],
        out_specs=(
            pl.BlockSpec((1, H, W, Cp), lambda n: (n, 0, 0, 0)),
            pl.BlockSpec((1, 1, Cp), lambda n: (n, 0, 0)),
            pl.BlockSpec((1, 1, Cp), lambda n: (n, 0, 0)),
        ),
        out_shape=(
            jax.ShapeDtypeStruct((N, H, W, Cp), cdt),
            jax.ShapeDtypeStruct((N, 1, Cp), jnp.float32),
            jax.ShapeDtypeStruct((N, 1, Cp), jnp.float32),
        ),
        scratch_shapes=[pltpu.VMEM((H, W, 9 * Cip), jnp.float32)],
        compiler_params=cparams,
    )(x, w1, b1)

    # ---- BN1 apply + temb + conv2 + ReLU + BN2 partials (grid over batch) ----
    h2, ps2, pq2 = pl.pallas_call(
        bn1_conv2_stats_kernel,
        grid=(N,),
        in_specs=[
            pl.BlockSpec((1, H, W, Cp), lambda n: (n, 0, 0, 0)),
            pl.BlockSpec((N, 1, Cp), lambda n: (0, 0, 0)),
            pl.BlockSpec((N, 1, Cp), lambda n: (0, 0, 0)),
            pl.BlockSpec((1, 1, Cp), lambda n: (n, 0, 0)),
            pl.BlockSpec((1, Cp), lambda n: (0, 0)),
            pl.BlockSpec((1, Cp), lambda n: (0, 0)),
            pl.BlockSpec((9 * Cp, Cp), lambda n: (0, 0)),
            pl.BlockSpec((1, Cp), lambda n: (0, 0)),
        ],
        out_specs=(
            pl.BlockSpec((1, H, W, Cp), lambda n: (n, 0, 0, 0)),
            pl.BlockSpec((1, 1, Cp), lambda n: (n, 0, 0)),
            pl.BlockSpec((1, 1, Cp), lambda n: (n, 0, 0)),
        ),
        out_shape=(
            jax.ShapeDtypeStruct((N, H, W, Cp), cdt),
            jax.ShapeDtypeStruct((N, 1, Cp), jnp.float32),
            jax.ShapeDtypeStruct((N, 1, Cp), jnp.float32),
        ),
        scratch_shapes=[pltpu.VMEM((H, W, Cp), jnp.float32),
                        pltpu.VMEM((H, W, 9 * Cp), jnp.float32)],
        compiler_params=cparams,
    )(h1, ps1, pq1, temb, g1, be1, w2, b2)

    # Contiguity-preserving reshape exposing row/col parity (column parity lands
    # in the lane dim) so the stride-2 transform needs no strided access.
    h2r = h2.reshape(N, Ho, 2, Wo, 2 * Cp)

    # ---- BN2 apply + transform = Conv2d(out_ch, out_ch, 4, stride=2, pad=1) ----
    y = pl.pallas_call(
        bn2_transform_kernel,
        grid=(N,),
        in_specs=[
            pl.BlockSpec((1, Ho, 2, Wo, 2 * Cp), lambda n: (n, 0, 0, 0, 0)),
            pl.BlockSpec((N, 1, Cp), lambda n: (0, 0, 0)),
            pl.BlockSpec((N, 1, Cp), lambda n: (0, 0, 0)),
            pl.BlockSpec((1, Cp), lambda n: (0, 0)),
            pl.BlockSpec((1, Cp), lambda n: (0, 0)),
            pl.BlockSpec((16 * Cp, Cp), lambda n: (0, 0)),
            pl.BlockSpec((1, Cp), lambda n: (0, 0)),
        ],
        out_specs=pl.BlockSpec((1, Ho, Wo, Cp), lambda n: (n, 0, 0, 0)),
        out_shape=jax.ShapeDtypeStruct((N, Ho, Wo, Cp), jnp.float32),
        scratch_shapes=[pltpu.VMEM((4, Ho, Wo, Cp), jnp.float32),
                        pltpu.VMEM((Ho, Wo, 16 * Cp), jnp.float32)],
        compiler_params=cparams,
    )(h2r, ps2, pq2, g2, be2, w3, b3)

    y = y[:, :, :, :Cout]                            # drop channel padding
    return jnp.transpose(y, (0, 3, 1, 2))            # NHWC -> NCHW


# --------------------------- pure-JAX reference ------------------------------

def _conv_ref(x, w, b, stride, pad):
    y = jax.lax.conv_general_dilated(
        x, w, window_strides=(stride, stride),
        padding=((pad, pad), (pad, pad)),
        dimension_numbers=("NHWC", "HWIO", "NHWC"))
    return y + b


def _bn_ref(h, g, be):
    m = jnp.mean(h, axis=(0, 1, 2), keepdims=True)
    v = jnp.mean((h - m) ** 2, axis=(0, 1, 2), keepdims=True)
    return (h - m) * jax.lax.rsqrt(v + EPS) * g + be


def block_forward_ref(x_nchw, t, P):
    x = jnp.transpose(x_nchw, (0, 2, 3, 1)).astype(jnp.float32)
    h = _bn_ref(jnp.maximum(_conv_ref(x, P["w1"], P["b1"], 1, 1), 0.0), P["g1"], P["be1"])
    temb = jnp.maximum(t @ P["wt"] + P["bt"], 0.0)
    h = h + temb[:, None, None, :]
    h = _bn_ref(jnp.maximum(_conv_ref(h, P["w2"], P["b2"], 1, 1), 0.0), P["g2"], P["be2"])
    y = _conv_ref(h, P["w3"], P["b3"], 2, 1)
    return jnp.transpose(y, (0, 3, 1, 2))


# ------------------------------ params init ---------------------------------

def init_params(key, in_ch, out_ch, time_emb_dim):
    ks = jax.random.split(key, 12)

    def u(k, shape, fan_in):
        b = 1.0 / np.sqrt(fan_in)
        return jax.random.uniform(k, shape, jnp.float32, -b, b)

    return dict(
        wt=u(ks[0], (time_emb_dim, out_ch), time_emb_dim),
        bt=u(ks[1], (1, out_ch), time_emb_dim),
        w1=u(ks[2], (3, 3, in_ch, out_ch), 9 * in_ch),     # HWIO
        b1=u(ks[3], (1, out_ch), 9 * in_ch),
        w2=u(ks[4], (3, 3, out_ch, out_ch), 9 * out_ch),
        b2=u(ks[5], (1, out_ch), 9 * out_ch),
        w3=u(ks[6], (4, 4, out_ch, out_ch), 16 * out_ch),  # transform (down)
        b3=u(ks[7], (1, out_ch), 16 * out_ch),
        g1=1.0 + 0.1 * jax.random.normal(ks[8], (1, out_ch), jnp.float32),
        be1=0.1 * jax.random.normal(ks[9], (1, out_ch), jnp.float32),
        g2=1.0 + 0.1 * jax.random.normal(ks[10], (1, out_ch), jnp.float32),
        be2=0.1 * jax.random.normal(ks[11], (1, out_ch), jnp.float32),
    )


if __name__ == "__main__":
    key = jax.random.PRNGKey(0)
    k_x, k_t, k_p = jax.random.split(key, 3)

    N, in_ch, out_ch, H, W, tdim = 2, 4, 8, 16, 16, 32
    x = jax.random.normal(k_x, (N, in_ch, H, W), jnp.float32)   # NCHW like PyTorch
    t = jax.random.normal(k_t, (N, tdim), jnp.float32)
    P = init_params(k_p, in_ch, out_ch, tdim)

    out = jax.jit(block_forward)(x, t, P)                       # bf16 MXU operands
    out = jax.block_until_ready(out)

    ref = block_forward_ref(x, t, P)
    assert out.shape == (N, out_ch, H // 2, W // 2), out.shape
    err = float(jnp.max(jnp.abs(out - ref)))
    scale = float(jnp.max(jnp.abs(ref))) + 1.0
    assert err <= 3e-2 * scale, f"mismatch: max abs err {err} (scale {scale})"
    print("KERNEL_OK")
</pallas_src>

<mosaic_0001>
module attributes {stable_mosaic.version = 11 : i64} {
  func.func @conv1_stats_kernel(%arg0: i32, %arg1: memref<1x16x16x128xf32, #tpu.memory_space<vmem>>, %arg2: memref<1152x128xbf16, #tpu.memory_space<vmem>>, %arg3: memref<1x128xf32, #tpu.memory_space<vmem>>, %arg4: memref<1x16x16x128xbf16, #tpu.memory_space<vmem>>, %arg5: memref<1x1x128xf32, #tpu.memory_space<vmem>>, %arg6: memref<1x1x128xf32, #tpu.memory_space<vmem>>, %arg7: memref<16x16x1152xf32, #tpu.memory_space<vmem>>) attributes {dimension_semantics = [#tpu.dimension_semantics<parallel>], iteration_bounds = array<i64: 2>, scalar_prefetch = 0 : i64, scratch_operands = 1 : i64, tpu.core_type = #tpu.core_type<tc>, window_params = [{transform_indices = @transform_0, window_bounds = array<i64: 1, 16, 16, 128>}, {pipeline_mode = #tpu.pipeline_mode<synchronous>, transform_indices = @transform_1, window_bounds = array<i64: 1152, 128>}, {pipeline_mode = #tpu.pipeline_mode<synchronous>, transform_indices = @transform_2, window_bounds = array<i64: 1, 128>}, {transform_indices = @transform_3, window_bounds = array<i64: 1, 16, 16, 128>}, {transform_indices = @transform_4, window_bounds = array<i64: 1, 1, 128>}, {transform_indices = @transform_5, window_bounds = array<i64: 1, 1, 128>}]} {
    %cst = arith.constant 0.000000e+00 : f32
    %0 = vector.broadcast %cst : f32 to vector<1x16x128xf32>
    %c0 = arith.constant 0 : index
    %c0_0 = arith.constant 0 : index
    %c0_1 = arith.constant 0 : index
    %1 = vector.load %arg7[%c0, %c0_0, %c0_1] : memref<16x16x1152xf32, #tpu.memory_space<vmem>>, vector<1x16x128xf32>
    tpu.vector_store %arg7[%c0, %c0_0, %c0_1], %0 {strides = array<i32>} : memref<16x16x1152xf32, #tpu.memory_space<vmem>>, vector<1x16x128xf32>,
    %cst_2 = arith.constant 0.000000e+00 : f32
    %2 = vector.broadcast %cst_2 : f32 to vector<16x1x128xf32>
    %c0_3 = arith.constant 0 : index
    %c0_4 = arith.constant 0 : index
    %c0_5 = arith.constant 0 : index
    %3 = vector.load %arg7[%c0_3, %c0_4, %c0_5] : memref<16x16x1152xf32, #tpu.memory_space<vmem>>, vector<16x1x128xf32>
    tpu.vector_store %arg7[%c0_3, %c0_4, %c0_5], %2 {strides = array<i32>} : memref<16x16x1152xf32, #tpu.memory_space<vmem>>, vector<16x1x128xf32>,
    %c0_6 = arith.constant 0 : index
    %c0_7 = arith.constant 0 : index
    %c0_8 = arith.constant 0 : index
    %c0_9 = arith.constant 0 : index
    %4 = vector.load %arg1[%c0_6, %c0_7, %c0_8, %c0_9] : memref<1x16x16x128xf32, #tpu.memory_space<vmem>>, vector<1x15x15x128xf32>
    %5 = vector.shape_cast %4 : vector<1x15x15x128xf32> to vector<15x15x128xf32>
    %c1 = arith.constant 1 : index
    %c1_10 = arith.constant 1 : index
    %c0_11 = arith.constant 0 : index
    %6 = vector.load %arg7[%c1, %c1_10, %c0_11] : memref<16x16x1152xf32, #tpu.memory_space<vmem>>, vector<15x15x128xf32>
    tpu.vector_store %arg7[%c1, %c1_10, %c0_11], %5 {strides = array<i32>} : memref<16x16x1152xf32, #tpu.memory_space<vmem>>, vector<15x15x128xf32>,
    %cst_12 = arith.constant 0.000000e+00 : f32
    %7 = vector.broadcast %cst_12 : f32 to vector<1x16x128xf32>
    %c0_13 = arith.constant 0 : index
    %c0_14 = arith.constant 0 : index
    %c128 = arith.constant 128 : index
    %8 = vector.load %arg7[%c0_13, %c0_14, %c128] : memref<16x16x1152xf32, #tpu.memory_space<vmem>>, vector<1x16x128xf32>
    tpu.vector_store %arg7[%c0_13, %c0_14, %c128], %7 {strides = array<i32>} : memref<16x16x1152xf32, #tpu.memory_space<vmem>>, vector<1x16x128xf32>,
    %c0_15 = arith.constant 0 : index
    %c0_16 = arith.constant 0 : index
    %c0_17 = arith.constant 0 : index
    %c0_18 = arith.constant 0 : index
    %9 = vector.load %arg1[%c0_15, %c0_16, %c0_17, %c0_18] : memref<1x16x16x128xf32, #tpu.memory_space<vmem>>, vector<1x15x16x128xf32>
    %10 = vector.shape_cast %9 : vector<1x15x16x128xf32> to vector<15x16x128xf32>
    %c1_19 = arith.constant 1 : index
    %c0_20 = arith.constant 0 : index
    %c128_21 = arith.constant 128 : index
    %11 = vector.load %arg7[%c1_19, %c0_20, %c128_21] : memref<16x16x1152xf32, #tpu.memory_space<vmem>>, vector<15x16x128xf32>
    tpu.vector_store %arg7[%c1_19, %c0_20, %c128_21], %10 {strides = array<i32>} : memref<16x16x1152xf32, #tpu.memory_space<vmem>>, vector<15x16x128xf32>,
    %cst_22 = arith.constant 0.000000e+00 : f32
    %12 = vector.broadcast %cst_22 : f32 to vector<1x16x128xf32>
    %c0_23 = arith.constant 0 : index
    %c0_24 = arith.constant 0 : index
    %c256 = arith.constant 256 : index
    %13 = vector.load %arg7[%c0_23, %c0_24, %c256] : memref<16x16x1152xf32, #tpu.memory_space<vmem>>, vector<1x16x128xf32>
    tpu.vector_store %arg7[%c0_23, %c0_24, %c256], %12 {strides = array<i32>} : memref<16x16x1152xf32, #tpu.memory_space<vmem>>, vector<1x16x128xf32>,
    %cst_25 = arith.constant 0.000000e+00 : f32
    %14 = vector.broadcast %cst_25 : f32 to vector<16x1x128xf32>
    %c0_26 = arith.constant 0 : index
    %c15 = arith.constant 15 : index
    %c256_27 = arith.constant 256 : index
    %15 = vector.load %arg7[%c0_26, %c15, %c256_27] : memref<16x16x1152xf32, #tpu.memory_space<vmem>>, vector<16x1x128xf32>
    tpu.vector_store %arg7[%c0_26, %c15, %c256_27], %14 {strides = array<i32>} : memref<16x16x1152xf32, #tpu.memory_space<vmem>>, vector<16x1x128xf32>,
    %c0_28 = arith.constant 0 : index
    %c0_29 = arith.constant 0 : index
    %c1_30 = arith.constant 1 : index
    %c0_31 = arith.constant 0 : index
    %16 = vector.load %arg1[%c0_28, %c0_29, %c1_30, %c0_31] : memref<1x16x16x128xf32, #tpu.memory_space<vmem>>, vector<1x15x15x128xf32>
    %17 = vector.shape_cast %16 : vector<1x15x15x128xf32> to vector<15x15x128xf32>
    %c1_32 = arith.constant 1 : index
    %c0_33 = arith.constant 0 : index
    %c256_34 = arith.constant 256 : index
    %18 = vector.load %arg7[%c1_32, %c0_33, %c256_34] : memref<16x16x1152xf32, #tpu.memory_space<vmem>>, vector<15x15x128xf32>
    tpu.vector_store %arg7[%c1_32, %c0_33, %c256_34], %17 {strides = array<i32>} : memref<16x16x1152xf32, #tpu.memory_space<vmem>>, vector<15x15x128xf32>,
    %cst_35 = arith.constant 0.000000e+00 : f32
    %19 = vector.broadcast %cst_35 : f32 to vector<16x1x128xf32>
    %c0_36 = arith.constant 0 : index
    %c0_37 = arith.constant 0 : index
    %c384 = arith.constant 384 : index
    %20 = vector.load %arg7[%c0_36, %c0_37, %c384] : memref<16x16x1152xf32, #tpu.memory_space<vmem>>, vector<16x1x128xf32>
    tpu.vector_store %arg7[%c0_36, %c0_37, %c384], %19 {strides = array<i32>} : memref<16x16x1152xf32, #tpu.memory_space<vmem>>, vector<16x1x128xf32>,
    %c0_38 = arith.constant 0 : index
    %c0_39 = arith.constant 0 : index
    %c0_40 = arith.constant 0 : index
    %c0_41 = arith.constant 0 : index
    %21 = vector.load %arg1[%c0_38, %c0_39, %c0_40, %c0_41] : memref<1x16x16x128xf32, #tpu.memory_space<vmem>>, vector<1x16x15x128xf32>
    %22 = vector.shape_cast %21 : vector<1x16x15x128xf32> to vector<16x15x128xf32>
    %c0_42 = arith.constant 0 : index
    %c1_43 = arith.constant 1 : index
    %c384_44 = arith.constant 384 : index
    %23 = vector.load %arg7[%c0_42, %c1_43, %c384_44] : memref<16x16x1152xf32, #tpu.memory_space<vmem>>, vector<16x15x128xf32>
    tpu.vector_store %arg7[%c0_42, %c1_43, %c384_44], %22 {strides = array<i32>} : memref<16x16x1152xf32, #tpu.memory_space<vmem>>, vector<16x15x128xf32>,
    %c0_45 = arith.constant 0 : index
    %c0_46 = arith.constant 0 : index
    %c0_47 = arith.constant 0 : index
    %c0_48 = arith.constant 0 : index
    %24 = vector.load %arg1[%c0_45, %c0_46, %c0_47, %c0_48] : memref<1x16x16x128xf32, #tpu.memory_space<vmem>>, vector<1x16x16x128xf32>
    %25 = vector.shape_cast %24 : vector<1x16x16x128xf32> to vector<16x16x128xf32>
    %c0_49 = arith.constant 0 : index
    %c0_50 = arith.constant 0 : index
    %c512 = arith.constant 512 : index
    %26 = vector.load %arg7[%c0_49, %c0_50, %c512] : memref<16x16x1152xf32, #tpu.memory_space<vmem>>, vector<16x16x128xf32>
    tpu.vector_store %arg7[%c0_49, %c0_50, %c512], %25 {strides = array<i32>} : memref<16x16x1152xf32, #tpu.memory_space<vmem>>, vector<16x16x128xf32>,
    %cst_51 = arith.constant 0.000000e+00 : f32
    %27 = vector.broadcast %cst_51 : f32 to vector<16x1x128xf32>
    %c0_52 = arith.constant 0 : index
    %c15_53 = arith.constant 15 : index
    %c640 = arith.constant 640 : index
    %28 = vector.load %arg7[%c0_52, %c15_53, %c640] : memref<16x16x1152xf32, #tpu.memory_space<vmem>>, vector<16x1x128xf32>
    tpu.vector_store %arg7[%c0_52, %c15_53, %c640], %27 {strides = array<i32>} : memref<16x16x1152xf32, #tpu.memory_space<vmem>>, vector<16x1x128xf32>,
    %c0_54 = arith.constant 0 : index
    %c0_55 = arith.constant 0 : index
    %c1_56 = arith.constant 1 : index
    %c0_57 = arith.constant 0 : index
    %29 = vector.load %arg1[%c0_54, %c0_55, %c1_56, %c0_57] : memref<1x16x16x128xf32, #tpu.memory_space<vmem>>, vector<1x16x15x128xf32>
    %30 = vector.shape_cast %29 : vector<1x16x15x128xf32> to vector<16x15x128xf32>
    %c0_58 = arith.constant 0 : index
    %c0_59 = arith.constant 0 : index
    %c640_60 = arith.constant 640 : index
    %31 = vector.load %arg7[%c0_58, %c0_59, %c640_60] : memref<16x16x1152xf32, #tpu.memory_space<vmem>>, vector<16x15x128xf32>
    tpu.vector_store %arg7[%c0_58, %c0_59, %c640_60], %30 {strides = array<i32>} : memref<16x16x1152xf32, #tpu.memory_space<vmem>>, vector<16x15x128xf32>,
    %cst_61 = arith.constant 0.000000e+00 : f32
    %32 = vector.broadcast %cst_61 : f32 to vector<1x16x128xf32>
    %c15_62 = arith.constant 15 : index
    %c0_63 = arith.constant 0 : index
    %c768 = arith.constant 768 : index
    %33 = vector.load %arg7[%c15_62, %c0_63, %c768] : memref<16x16x1152xf32, #tpu.memory_space<vmem>>, vector<1x16x128xf32>
    tpu.vector_store %arg7[%c15_62, %c0_63, %c768], %32 {strides = array<i32>} : memref<16x16x1152xf32, #tpu.memory_space<vmem>>, vector<1x16x128xf32>,
    %cst_64 = arith.constant 0.000000e+00 : f32
    %34 = vector.broadcast %cst_64 : f32 to vector<16x1x128xf32>
    %c0_65 = arith.constant 0 : index
    %c0_66 = arith.constant 0 : index
    %c768_67 = arith.constant 768 : index
    %35 = vector.load %arg7[%c0_65, %c0_66, %c768_67] : memref<16x16x1152xf32, #tpu.memory_space<vmem>>, vector<16x1x128xf32>
    tpu.vector_store %arg7[%c0_65, %c0_66, %c768_67], %34 {strides = array<i32>} : memref<16x16x1152xf32, #tpu.memory_space<vmem>>, vector<16x1x128xf32>,
    %c0_68 = arith.constant 0 : index
    %c1_69 = arith.constant 1 : index
    %c0_70 = arith.constant 0 : index
    %c0_71 = arith.constant 0 : index
    %36 = vector.load %arg1[%c0_68, %c1_69, %c0_70, %c0_71] : memref<1x16x16x128xf32, #tpu.memory_space<vmem>>, vector<1x15x15x128xf32>
    %37 = vector.shape_cast %36 : vector<1x15x15x128xf32> to vector<15x15x128xf32>
    %c0_72 = arith.constant 0 : index
    %c1_73 = arith.constant 1 : index
    %c768_74 = arith.constant 768 : index
    %38 = vector.load %arg7[%c0_72, %c1_73, %c768_74] : memref<16x16x1152xf32, #tpu.memory_space<vmem>>, vector<15x15x128xf32>
    tpu.vector_store %arg7[%c0_72, %c1_73, %c768_74], %37 {strides = array<i32>} : memref<16x16x1152xf32, #tpu.memory_space<vmem>>, vector<15x15x128xf32>,
    %cst_75 = arith.constant 0.000000e+00 : f32
    %39 = vector.broadcast %cst_75 : f32 to vector<1x16x128xf32>
    %c15_76 = arith.constant 15 : index
    %c0_77 = arith.constant 0 : index
    %c896 = arith.constant 896 : index
    %40 = vector.load %arg7[%c15_76, %c0_77, %c896] : memref<16x16x1152xf32, #tpu.memory_space<vmem>>, vector<1x16x128xf32>
    tpu.vector_store %arg7[%c15_76, %c0_77, %c896], %39 {strides = array<i32>} : memref<16x16x1152xf32, #tpu.memory_space<vmem>>, vector<1x16x128xf32>,
    %c0_78 = arith.constant 0 : index
    %c1_79 = arith.constant 1 : index
    %c0_80 = arith.constant 0 : index
    %c0_81 = arith.constant 0 : index
    %41 = vector.load %arg1[%c0_78, %c1_79, %c0_80, %c0_81] : memref<1x16x16x128xf32, #tpu.memory_space<vmem>>, vector<1x15x16x128xf32>
    %42 = vector.shape_cast %41 : vector<1x15x16x128xf32> to vector<15x16x128xf32>
    %c0_82 = arith.constant 0 : index
    %c0_83 = arith.constant 0 : index
    %c896_84 = arith.constant 896 : index
    %43 = vector.load %arg7[%c0_82, %c0_83, %c896_84] : memref<16x16x1152xf32, #tpu.memory_space<vmem>>, vector<15x16x128xf32>
    tpu.vector_store %arg7[%c0_82, %c0_83, %c896_84], %42 {strides = array<i32>} : memref<16x16x1152xf32, #tpu.memory_space<vmem>>, vector<15x16x128xf32>,
    %cst_85 = arith.constant 0.000000e+00 : f32
    %44 = vector.broadcast %cst_85 : f32 to vector<1x16x128xf32>
    %c15_86 = arith.constant 15 : index
    %c0_87 = arith.constant 0 : index
    %c1024 = arith.constant 1024 : index
    %45 = vector.load %arg7[%c15_86, %c0_87, %c1024] : memref<16x16x1152xf32, #tpu.memory_space<vmem>>, vector<1x16x128xf32>
    tpu.vector_store %arg7[%c15_86, %c0_87, %c1024], %44 {strides = array<i32>} : memref<16x16x1152xf32, #tpu.memory_space<vmem>>, vector<1x16x128xf32>,
    %cst_88 = arith.constant 0.000000e+00 : f32
    %46 = vector.broadcast %cst_88 : f32 to vector<16x1x128xf32>
    %c0_89 = arith.constant 0 : index
    %c15_90 = arith.constant 15 : index
    %c1024_91 = arith.constant 1024 : index
    %47 = vector.load %arg7[%c0_89, %c15_90, %c1024_91] : memref<16x16x1152xf32, #tpu.memory_space<vmem>>, vector<16x1x128xf32>
    tpu.vector_store %arg7[%c0_89, %c15_90, %c1024_91], %46 {strides = array<i32>} : memref<16x16x1152xf32, #tpu.memory_space<vmem>>, vector<16x1x128xf32>,
    %c0_92 = arith.constant 0 : index
    %c1_93 = arith.constant 1 : index
    %c1_94 = arith.constant 1 : index
    %c0_95 = arith.constant 0 : index
    %48 = vector.load %arg1[%c0_92, %c1_93, %c1_94, %c0_95] : memref<1x16x16x128xf32, #tpu.memory_space<vmem>>, vector<1x15x15x128xf32>
    %49 = vector.shape_cast %48 : vector<1x15x15x128xf32> to vector<15x15x128xf32>
    %c0_96 = arith.constant 0 : index
    %c0_97 = arith.constant 0 : index
    %c1024_98 = arith.constant 1024 : index
    %50 = vector.load %arg7[%c0_96, %c0_97, %c1024_98] : memref<16x16x1152xf32, #tpu.memory_space<vmem>>, vector<15x15x128xf32>
    tpu.vector_store %arg7[%c0_96, %c0_97, %c1024_98], %49 {strides = array<i32>} : memref<16x16x1152xf32, #tpu.memory_space<vmem>>, vector<15x15x128xf32>,
    %c0_99 = arith.constant 0 : index
    %c0_100 = arith.constant 0 : index
    %c0_101 = arith.constant 0 : index
    %51 = vector.load %arg7[%c0_99, %c0_100, %c0_101] : memref<16x16x1152xf32, #tpu.memory_space<vmem>>, vector<16x16x1152xf32>
    %52 = vector.shape_cast %51 : vector<16x16x1152xf32> to vector<256x1152xf32>
    %53 = arith.truncf %52 : vector<256x1152xf32> to vector<256x1152xbf16>
    %c0_102 = arith.constant 0 : index
    %c0_103 = arith.constant 0 : index
    %54 = vector.load %arg2[%c0_102, %c0_103] : memref<1152x128xbf16, #tpu.memory_space<vmem>>, vector<1152x128xbf16>
    %cst_104 = arith.constant dense<0.000000e+00> : vector<256x128xf32>
    %55 = tpu.matmul %53, %54, %cst_104 {dimension_numbers = #tpu.dot_dimension_numbers<[1], [0], [0], [1], [0, 0, 1, 1], [], []>} : vector<256x1152xbf16>, vector<1152x128xbf16>, vector<256x128xf32> -> vector<256x128xf32>
    %c0_105 = arith.constant 0 : index
    %c0_106 = arith.constant 0 : index
    %56 = vector.load %arg3[%c0_105, %c0_106] : memref<1x128xf32, #tpu.memory_space<vmem>>, vector<1x128xf32>
    %57 = vector.broadcast %56 : vector<1x128xf32> to vector<256x128xf32>
    %58 = arith.addf %55, %57 : vector<256x128xf32>
    %cst_107 = arith.constant 0.000000e+00 : f32
    %59 = vector.broadcast %cst_107 : f32 to vector<256x128xf32>
    %60 = arith.maximumf %58, %59 : vector<256x128xf32>
    %61 = vector.shape_cast %60 : vector<256x128xf32> to vector<1x16x16x128xf32>
    %62 = arith.truncf %61 : vector<1x16x16x128xf32> to vector<1x16x16x128xbf16>
    %c0_108 = arith.constant 0 : index
    %c0_109 = arith.constant 0 : index
    %c0_110 = arith.constant 0 : index
    %c0_111 = arith.constant 0 : index
    %63 = vector.load %arg4[%c0_108, %c0_109, %c0_110, %c0_111] : memref<1x16x16x128xbf16, #tpu.memory_space<vmem>>, vector<1x16x16x128xbf16>
    tpu.vector_store %arg4[%c0_108, %c0_109, %c0_110, %c0_111], %62 {strides = array<i32>} : memref<1x16x16x128xbf16, #tpu.memory_space<vmem>>, vector<1x16x16x128xbf16>,
    %cst_112 = arith.constant dense<0.000000e+00> : vector<128xf32>
    %64 = vector.multi_reduction <add>, %60, %cst_112 [0] : vector<256x128xf32> to vector<128xf32>
    %65 = vector.shape_cast %64 : vector<128xf32> to vector<1x128xf32>
    %c0_113 = arith.constant 0 : index
    %c0_114 = arith.constant 0 : index
    %c0_115 = arith.constant 0 : index
    %66 = vector.load %arg5[%c0_113, %c0_114, %c0_115] : memref<1x1x128xf32, #tpu.memory_space<vmem>>, vector<1x1x128xf32>
    %67 = vector.shape_cast %66 : vector<1x1x128xf32> to vector<1x128xf32>
    %68 = vector.shape_cast %65 : vector<1x128xf32> to vector<1x1x128xf32>
    tpu.vector_store %arg5[%c0_113, %c0_114, %c0_115], %68 {strides = array<i32>} : memref<1x1x128xf32, #tpu.memory_space<vmem>>, vector<1x1x128xf32>,
    %69 = arith.mulf %60, %60 : vector<256x128xf32>
    %cst_116 = arith.constant dense<0.000000e+00> : vector<128xf32>
    %70 = vector.multi_reduction <add>, %69, %cst_116 [0] : vector<256x128xf32> to vector<128xf32>
    %71 = vector.shape_cast %70 : vector<128xf32> to vector<1x128xf32>
    %c0_117 = arith.constant 0 : index
    %c0_118 = arith.constant 0 : index
    %c0_119 = arith.constant 0 : index
    %72 = vector.load %arg6[%c0_117, %c0_118, %c0_119] : memref<1x1x128xf32, #tpu.memory_space<vmem>>, vector<1x1x128xf32>
    %73 = vector.shape_cast %72 : vector<1x1x128xf32> to vector<1x128xf32>
    %74 = vector.shape_cast %71 : vector<1x128xf32> to vector<1x1x128xf32>
    tpu.vector_store %arg6[%c0_117, %c0_118, %c0_119], %74 {strides = array<i32>} : memref<1x1x128xf32, #tpu.memory_space<vmem>>, vector<1x1x128xf32>,
    return
  }
  func.func @transform_0(%arg0: i32) -> (i32, i32, i32, i32) {
    %c0_i32 = arith.constant 0 : i32
    %c0_i32_0 = arith.constant 0 : i32
    %c0_i32_1 = arith.constant 0 : i32
    %c0_i32_2 = arith.constant 0 : i32
    return %arg0, %c0_i32, %c0_i32_0, %c0_i32_1 : i32, i32, i32, i32
  }
  func.func @transform_1(%arg0: i32) -> (i32, i32) {
    %c0_i32 = arith.constant 0 : i32
    %c0_i32_0 = arith.constant 0 : i32
    %c0_i32_1 = arith.constant 0 : i32
    return %c0_i32, %c0_i32_0 : i32, i32
  }
  func.func @transform_2(%arg0: i32) -> (i32, i32) {
    %c0_i32 = arith.constant 0 : i32
    %c0_i32_0 = arith.constant 0 : i32
    %c0_i32_1 = arith.constant 0 : i32
    return %c0_i32, %c0_i32_0 : i32, i32
  }
  func.func @transform_3(%arg0: i32) -> (i32, i32, i32, i32) {
    %c0_i32 = arith.constant 0 : i32
    %c0_i32_0 = arith.constant 0 : i32
    %c0_i32_1 = arith.constant 0 : i32
    %c0_i32_2 = arith.constant 0 : i32
    return %arg0, %c0_i32, %c0_i32_0, %c0_i32_1 : i32, i32, i32, i32
  }
  func.func @transform_4(%arg0: i32) -> (i32, i32, i32) {
    %c0_i32 = arith.constant 0 : i32
    %c0_i32_0 = arith.constant 0 : i32
    %c0_i32_1 = arith.constant 0 : i32
    return %arg0, %c0_i32, %c0_i32_0 : i32, i32, i32
  }
  func.func @transform_5(%arg0: i32) -> (i32, i32, i32) {
    %c0_i32 = arith.constant 0 : i32
    %c0_i32_0 = arith.constant 0 : i32
    %c0_i32_1 = arith.constant 0 : i32
    return %arg0, %c0_i32, %c0_i32_0 : i32, i32, i32
  }
}

module attributes {stable_mosaic.version = 11 : i64} {
  func.func @bn1_conv2_stats_kernel(%arg0: i32, %arg1: memref<1x16x16x128xbf16, #tpu.memory_space<vmem>>, %arg2: memref<2x1x128xf32, #tpu.memory_space<vmem>>, %arg3: memref<2x1x128xf32, #tpu.memory_space<vmem>>, %arg4: memref<1x1x128xf32, #tpu.memory_space<vmem>>, %arg5: memref<1x128xf32, #tpu.memory_space<vmem>>, %arg6: memref<1x128xf32, #tpu.memory_space<vmem>>, %arg7: memref<1152x128xbf16, #tpu.memory_space<vmem>>, %arg8: memref<1x128xf32, #tpu.memory_space<vmem>>, %arg9: memref<1x16x16x128xbf16, #tpu.memory_space<vmem>>, %arg10: memref<1x1x128xf32, #tpu.memory_space<vmem>>, %arg11: memref<1x1x128xf32, #tpu.memory_space<vmem>>, %arg12: memref<16x16x128xf32, #tpu.memory_space<vmem>>, %arg13: memref<16x16x1152xf32, #tpu.memory_space<vmem>>) attributes {dimension_semantics = [#tpu.dimension_semantics<parallel>], iteration_bounds = array<i64: 2>, scalar_prefetch = 0 : i64, scratch_operands = 2 : i64, tpu.core_type = #tpu.core_type<tc>, window_params = [{transform_indices = @transform_0, window_bounds = array<i64: 1, 16, 16, 128>}, {pipeline_mode = #tpu.pipeline_mode<synchronous>, transform_indices = @transform_1, window_bounds = array<i64: 2, 1, 128>}, {pipeline_mode = #tpu.pipeline_mode<synchronous>, transform_indices = @transform_2, window_bounds = array<i64: 2, 1, 128>}, {transform_indices = @transform_3, window_bounds = array<i64: 1, 1, 128>}, {pipeline_mode = #tpu.pipeline_mode<synchronous>, transform_indices = @transform_4, window_bounds = array<i64: 1, 128>}, {pipeline_mode = #tpu.pipeline_mode<synchronous>, transform_indices = @transform_5, window_bounds = array<i64: 1, 128>}, {pipeline_mode = #tpu.pipeline_mode<synchronous>, transform_indices = @transform_6, window_bounds = array<i64: 1152, 128>}, {pipeline_mode = #tpu.pipeline_mode<synchronous>, transform_indices = @transform_7, window_bounds = array<i64: 1, 128>}, {transform_indices = @transform_8, window_bounds = array<i64: 1, 16, 16, 128>}, {transform_indices = @transform_9, window_bounds = array<i64: 1, 1, 128>}, {transform_indices = @transform_10, window_bounds = array<i64: 1, 1, 128>}]} {
    %c0 = arith.constant 0 : index
    %c0_0 = arith.constant 0 : index
    %c0_1 = arith.constant 0 : index
    %0 = vector.load %arg2[%c0, %c0_0, %c0_1] : memref<2x1x128xf32, #tpu.memory_space<vmem>>, vector<2x1x128xf32>
    %cst = arith.constant dense<0.000000e+00> : vector<1x128xf32>
    %1 = vector.multi_reduction <add>, %0, %cst [0] : vector<2x1x128xf32> to vector<1x128xf32>
    %cst_2 = arith.constant 0.001953125 : f32
    %2 = vector.broadcast %cst_2 : f32 to vector<1x128xf32>
    %3 = arith.mulf %1, %2 : vector<1x128xf32>
    %c0_3 = arith.constant 0 : index
    %c0_4 = arith.constant 0 : index
    %c0_5 = arith.constant 0 : index
    %4 = vector.load %arg3[%c0_3, %c0_4, %c0_5] : memref<2x1x128xf32, #tpu.memory_space<vmem>>, vector<2x1x128xf32>
    %cst_6 = arith.constant dense<0.000000e+00> : vector<1x128xf32>
    %5 = vector.multi_reduction <add>, %4, %cst_6 [0] : vector<2x1x128xf32> to vector<1x128xf32>
    %cst_7 = arith.constant 0.001953125 : f32
    %6 = vector.broadcast %cst_7 : f32 to vector<1x128xf32>
    %7 = arith.mulf %5, %6 : vector<1x128xf32>
    %8 = arith.mulf %3, %3 : vector<1x128xf32>
    %9 = arith.subf %7, %8 : vector<1x128xf32>
    %cst_8 = arith.constant 0.000000e+00 : f32
    %10 = vector.broadcast %cst_8 : f32 to vector<1x128xf32>
    %11 = arith.maximumf %9, %10 : vector<1x128xf32>
    %c0_9 = arith.constant 0 : index
    %c0_10 = arith.constant 0 : index
    %12 = vector.load %arg5[%c0_9, %c0_10] : memref<1x128xf32, #tpu.memory_space<vmem>>, vector<1x128xf32>
    %cst_11 = arith.constant 9.99999974E-6 : f32
    %13 = vector.broadcast %cst_11 : f32 to vector<1x128xf32>
    %14 = arith.addf %11, %13 : vector<1x128xf32>
    %15 = math.rsqrt %14 : vector<1x128xf32>
    %16 = arith.mulf %12, %15 : vector<1x128xf32>
    %c0_12 = arith.constant 0 : index
    %c0_13 = arith.constant 0 : index
    %17 = vector.load %arg6[%c0_12, %c0_13] : memref<1x128xf32, #tpu.memory_space<vmem>>, vector<1x128xf32>
    %18 = arith.mulf %3, %16 : vector<1x128xf32>
    %19 = arith.subf %17, %18 : vector<1x128xf32>
    %c0_14 = arith.constant 0 : index
    %c0_15 = arith.constant 0 : index
    %c0_16 = arith.constant 0 : index
    %20 = vector.load %arg4[%c0_14, %c0_15, %c0_16] : memref<1x1x128xf32, #tpu.memory_space<vmem>>, vector<1x1x128xf32>
    %21 = vector.shape_cast %20 : vector<1x1x128xf32> to vector<1x128xf32>
    %22 = arith.addf %19, %21 : vector<1x128xf32>
    %c0_17 = arith.constant 0 : index
    %c0_18 = arith.constant 0 : index
    %c0_19 = arith.constant 0 : index
    %c0_20 = arith.constant 0 : index
    %23 = vector.load %arg1[%c0_17, %c0_18, %c0_19, %c0_20] : memref<1x16x16x128xbf16, #tpu.memory_space<vmem>>, vector<1x16x16x128xbf16>
    %24 = vector.shape_cast %23 : vector<1x16x16x128xbf16> to vector<16x16x128xbf16>
    %25 = arith.extf %24 : vector<16x16x128xbf16> to vector<16x16x128xf32>
    %26 = vector.shape_cast %16 : vector<1x128xf32> to vector<1x1x128xf32>
    %27 = vector.broadcast %26 : vector<1x1x128xf32> to vector<16x16x128xf32>
    %28 = arith.mulf %25, %27 : vector<16x16x128xf32>
    %29 = vector.shape_cast %22 : vector<1x128xf32> to vector<1x1x128xf32>
    %30 = vector.broadcast %29 : vector<1x1x128xf32> to vector<16x16x128xf32>
    %31 = arith.addf %28, %30 : vector<16x16x128xf32>
    %c0_21 = arith.constant 0 : index
    %c0_22 = arith.constant 0 : index
    %c0_23 = arith.constant 0 : index
    %32 = vector.load %arg12[%c0_21, %c0_22, %c0_23] : memref<16x16x128xf32, #tpu.memory_space<vmem>>, vector<16x16x128xf32>
    tpu.vector_store %arg12[%c0_21, %c0_22, %c0_23], %31 {strides = array<i32>} : memref<16x16x128xf32, #tpu.memory_space<vmem>>, vector<16x16x128xf32>,
    %cst_24 = arith.constant 0.000000e+00 : f32
    %33 = vector.broadcast %cst_24 : f32 to vector<1x16x128xf32>
    %c0_25 = arith.constant 0 : index
    %c0_26 = arith.constant 0 : index
    %c0_27 = arith.constant 0 : index
    %34 = vector.load %arg13[%c0_25, %c0_26, %c0_27] : memref<16x16x1152xf32, #tpu.memory_space<vmem>>, vector<1x16x128xf32>
    tpu.vector_store %arg13[%c0_25, %c0_26, %c0_27], %33 {strides = array<i32>} : memref<16x16x1152xf32, #tpu.memory_space<vmem>>, vector<1x16x128xf32>,
    %cst_28 = arith.constant 0.000000e+00 : f32
    %35 = vector.broadcast %cst_28 : f32 to vector<16x1x128xf32>
    %c0_29 = arith.constant 0 : index
    %c0_30 = arith.constant 0 : index
    %c0_31 = arith.constant 0 : index
    %36 = vector.load %arg13[%c0_29, %c0_30, %c0_31] : memref<16x16x1152xf32, #tpu.memory_space<vmem>>, vector<16x1x128xf32>
    tpu.vector_store %arg13[%c0_29, %c0_30, %c0_31], %35 {strides = array<i32>} : memref<16x16x1152xf32, #tpu.memory_space<vmem>>, vector<16x1x128xf32>,
    %c0_32 = arith.constant 0 : index
    %c0_33 = arith.constant 0 : index
    %c0_34 = arith.constant 0 : index
    %37 = vector.load %arg12[%c0_32, %c0_33, %c0_34] : memref<16x16x128xf32, #tpu.memory_space<vmem>>, vector<15x15x128xf32>
    %c1 = arith.constant 1 : index
    %c1_35 = arith.constant 1 : index
    %c0_36 = arith.constant 0 : index
    %38 = vector.load %arg13[%c1, %c1_35, %c0_36] : memref<16x16x1152xf32, #tpu.memory_space<vmem>>, vector<15x15x128xf32>
    tpu.vector_store %arg13[%c1, %c1_35, %c0_36], %37 {strides = array<i32>} : memref<16x16x1152xf32, #tpu.memory_space<vmem>>, vector<15x15x128xf32>,
    %cst_37 = arith.constant 0.000000e+00 : f32
    %39 = vector.broadcast %cst_37 : f32 to vector<1x16x128xf32>
    %c0_38 = arith.constant 0 : index
    %c0_39 = arith.constant 0 : index
    %c128 = arith.constant 128 : index
    %40 = vector.load %arg13[%c0_38, %c0_39, %c128] : memref<16x16x1152xf32, #tpu.memory_space<vmem>>, vector<1x16x128xf32>
    tpu.vector_store %arg13[%c0_38, %c0_39, %c128], %39 {strides = array<i32>} : memref<16x16x1152xf32, #tpu.memory_space<vmem>>, vector<1x16x128xf32>,
    %c0_40 = arith.constant 0 : index
    %c0_41 = arith.constant 0 : index
    %c0_42 = arith.constant 0 : index
    %41 = vector.load %arg12[%c0_40, %c0_41, %c0_42] : memref<16x16x128xf32, #tpu.memory_space<vmem>>, vector<15x16x128xf32>
    %c1_43 = arith.constant 1 : index
    %c0_44 = arith.constant 0 : index
    %c128_45 = arith.constant 128 : index
    %42 = vector.load %arg13[%c1_43, %c0_44, %c128_45] : memref<16x16x1152xf32, #tpu.memory_space<vmem>>, vector<15x16x128xf32>
    tpu.vector_store %arg13[%c1_43, %c0_44, %c128_45], %41 {strides = array<i32>} : memref<16x16x1152xf32, #tpu.memory_space<vmem>>, vector<15x16x128xf32>,
    %cst_46 = arith.constant 0.000000e+00 : f32
    %43 = vector.broadcast %cst_46 : f32 to vector<1x16x128xf32>
    %c0_47 = arith.constant 0 : index
    %c0_48 = arith.constant 0 : index
    %c256 = arith.constant 256 : index
    %44 = vector.load %arg13[%c0_47, %c0_48, %c256] : memref<16x16x1152xf32, #tpu.memory_space<vmem>>, vector<1x16x128xf32>
    tpu.vector_store %arg13[%c0_47, %c0_48, %c256], %43 {strides = array<i32>} : memref<16x16x1152xf32, #tpu.memory_space<vmem>>, vector<1x16x128xf32>,
    %cst_49 = arith.constant 0.000000e+00 : f32
    %45 = vector.broadcast %cst_49 : f32 to vector<16x1x128xf32>
    %c0_50 = arith.constant 0 : index
    %c15 = arith.constant 15 : index
    %c256_51 = arith.constant 256 : index
    %46 = vector.load %arg13[%c0_50, %c15, %c256_51] : memref<16x16x1152xf32, #tpu.memory_space<vmem>>, vector<16x1x128xf32>
    tpu.vector_store %arg13[%c0_50, %c15, %c256_51], %45 {strides = array<i32>} : memref<16x16x1152xf32, #tpu.memory_space<vmem>>, vector<16x1x128xf32>,
    %c0_52 = arith.constant 0 : index
    %c1_53 = arith.constant 1 : index
    %c0_54 = arith.constant 0 : index
    %47 = vector.load %arg12[%c0_52, %c1_53, %c0_54] : memref<16x16x128xf32, #tpu.memory_space<vmem>>, vector<15x15x128xf32>
    %c1_55 = arith.constant 1 : index
    %c0_56 = arith.constant 0 : index
    %c256_57 = arith.constant 256 : index
    %48 = vector.load %arg13[%c1_55, %c0_56, %c256_57] : memref<16x16x1152xf32, #tpu.memory_space<vmem>>, vector<15x15x128xf32>
    tpu.vector_store %arg13[%c1_55, %c0_56, %c256_57], %47 {strides = array<i32>} : memref<16x16x1152xf32, #tpu.memory_space<vmem>>, vector<15x15x128xf32>,
    %cst_58 = arith.constant 0.000000e+00 : f32
    %49 = vector.broadcast %cst_58 : f32 to vector<16x1x128xf32>
    %c0_59 = arith.constant 0 : index
    %c0_60 = arith.constant 0 : index
    %c384 = arith.constant 384 : index
    %50 = vector.load %arg13[%c0_59, %c0_60, %c384] : memref<16x16x1152xf32, #tpu.memory_space<vmem>>, vector<16x1x128xf32>
    tpu.vector_store %arg13[%c0_59, %c0_60, %c384], %49 {strides = array<i32>} : memref<16x16x1152xf32, #tpu.memory_space<vmem>>, vector<16x1x128xf32>,
    %c0_61 = arith.constant 0 : index
    %c0_62 = arith.constant 0 : index
    %c0_63 = arith.constant 0 : index
    %51 = vector.load %arg12[%c0_61, %c0_62, %c0_63] : memref<16x16x128xf32, #tpu.memory_space<vmem>>, vector<16x15x128xf32>
    %c0_64 = arith.constant 0 : index
    %c1_65 = arith.constant 1 : index
    %c384_66 = arith.constant 384 : index
    %52 = vector.load %arg13[%c0_64, %c1_65, %c384_66] : memref<16x16x1152xf32, #tpu.memory_space<vmem>>, vector<16x15x128xf32>
    tpu.vector_store %arg13[%c0_64, %c1_65, %c384_66], %51 {strides = array<i32>} : memref<16x16x1152xf32, #tpu.memory_space<vmem>>, vector<16x15x128xf32>,
    %c0_67 = arith.constant 0 : index
    %c0_68 = arith.constant 0 : index
    %c0_69 = arith.constant 0 : index
    %53 = vector.load %arg12[%c0_67, %c0_68, %c0_69] : memref<16x16x128xf32, #tpu.memory_space<vmem>>, vector<16x16x128xf32>
    %c0_70 = arith.constant 0 : index
    %c0_71 = arith.constant 0 : index
    %c512 = arith.constant 512 : index
    %54 = vector.load %arg13[%c0_70, %c0_71, %c512] : memref<16x16x1152xf32, #tpu.memory_space<vmem>>, vector<16x16x128xf32>
    tpu.vector_store %arg13[%c0_70, %c0_71, %c512], %53 {strides = array<i32>} : memref<16x16x1152xf32, #tpu.memory_space<vmem>>, vector<16x16x128xf32>,
    %cst_72 = arith.constant 0.000000e+00 : f32
    %55 = vector.broadcast %cst_72 : f32 to vector<16x1x128xf32>
    %c0_73 = arith.constant 0 : index
    %c15_74 = arith.constant 15 : index
    %c640 = arith.constant 640 : index
    %56 = vector.load %arg13[%c0_73, %c15_74, %c640] : memref<16x16x1152xf32, #tpu.memory_space<vmem>>, vector<16x1x128xf32>
    tpu.vector_store %arg13[%c0_73, %c15_74, %c640], %55 {strides = array<i32>} : memref<16x16x1152xf32, #tpu.memory_space<vmem>>, vector<16x1x128xf32>,
    %c0_75 = arith.constant 0 : index
    %c1_76 = arith.constant 1 : index
    %c0_77 = arith.constant 0 : index
    %57 = vector.load %arg12[%c0_75, %c1_76, %c0_77] : memref<16x16x128xf32, #tpu.memory_space<vmem>>, vector<16x15x128xf32>
    %c0_78 = arith.constant 0 : index
    %c0_79 = arith.constant 0 : index
    %c640_80 = arith.constant 640 : index
    %58 = vector.load %arg13[%c0_78, %c0_79, %c640_80] : memref<16x16x1152xf32, #tpu.memory_space<vmem>>, vector<16x15x128xf32>
    tpu.vector_store %arg13[%c0_78, %c0_79, %c640_80], %57 {strides = array<i32>} : memref<16x16x1152xf32, #tpu.memory_space<vmem>>, vector<16x15x128xf32>,
    %cst_81 = arith.constant 0.000000e+00 : f32
    %59 = vector.broadcast %cst_81 : f32 to vector<1x16x128xf32>
    %c15_82 = arith.constant 15 : index
    %c0_83 = arith.constant 0 : index
    %c768 = arith.constant 768 : index
    %60 = vector.load %arg13[%c15_82, %c0_83, %c768] : memref<16x16x1152xf32, #tpu.memory_space<vmem>>, vector<1x16x128xf32>
    tpu.vector_store %arg13[%c15_82, %c0_83, %c768], %59 {strides = array<i32>} : memref<16x16x1152xf32, #tpu.memory_space<vmem>>, vector<1x16x128xf32>,
    %cst_84 = arith.constant 0.000000e+00 : f32
    %61 = vector.broadcast %cst_84 : f32 to vector<16x1x128xf32>
    %c0_85 = arith.constant 0 : index
    %c0_86 = arith.constant 0 : index
    %c768_87 = arith.constant 768 : index
    %62 = vector.load %arg13[%c0_85, %c0_86, %c768_87] : memref<16x16x1152xf32, #tpu.memory_space<vmem>>, vector<16x1x128xf32>
    tpu.vector_store %arg13[%c0_85, %c0_86, %c768_87], %61 {strides = array<i32>} : memref<16x16x1152xf32, #tpu.memory_space<vmem>>, vector<16x1x128xf32>,
    %c1_88 = arith.constant 1 : index
    %c0_89 = arith.constant 0 : index
    %c0_90 = arith.constant 0 : index
    %63 = vector.load %arg12[%c1_88, %c0_89, %c0_90] : memref<16x16x128xf32, #tpu.memory_space<vmem>>, vector<15x15x128xf32>
    %c0_91 = arith.constant 0 : index
    %c1_92 = arith.constant 1 : index
    %c768_93 = arith.constant 768 : index
    %64 = vector.load %arg13[%c0_91, %c1_92, %c768_93] : memref<16x16x1152xf32, #tpu.memory_space<vmem>>, vector<15x15x128xf32>
    tpu.vector_store %arg13[%c0_91, %c1_92, %c768_93], %63 {strides = array<i32>} : memref<16x16x1152xf32, #tpu.memory_space<vmem>>, vector<15x15x128xf32>,
    %cst_94 = arith.constant 0.000000e+00 : f32
    %65 = vector.broadcast %cst_94 : f32 to vector<1x16x128xf32>
    %c15_95 = arith.constant 15 : index
    %c0_96 = arith.constant 0 : index
    %c896 = arith.constant 896 : index
    %66 = vector.load %arg13[%c15_95, %c0_96, %c896] : memref<16x16x1152xf32, #tpu.memory_space<vmem>>, vector<1x16x128xf32>
    tpu.vector_store %arg13[%c15_95, %c0_96, %c896], %65 {strides = array<i32>} : memref<16x16x1152xf32, #tpu.memory_space<vmem>>, vector<1x16x128xf32>,
    %c1_97 = arith.constant 1 : index
    %c0_98 = arith.constant 0 : index
    %c0_99 = arith.constant 0 : index
    %67 = vector.load %arg12[%c1_97, %c0_98, %c0_99] : memref<16x16x128xf32, #tpu.memory_space<vmem>>, vector<15x16x128xf32>
    %c0_100 = arith.constant 0 : index
    %c0_101 = arith.constant 0 : index
    %c896_102 = arith.constant 896 : index
    %68 = vector.load %arg13[%c0_100, %c0_101, %c896_102] : memref<16x16x1152xf32, #tpu.memory_space<vmem>>, vector<15x16x128xf32>
    tpu.vector_store %arg13[%c0_100, %c0_101, %c896_102], %67 {strides = array<i32>} : memref<16x16x1152xf32, #tpu.memory_space<vmem>>, vector<15x16x128xf32>,
    %cst_103 = arith.constant 0.000000e+00 : f32
    %69 = vector.broadcast %cst_103 : f32 to vector<1x16x128xf32>
    %c15_104 = arith.constant 15 : index
    %c0_105 = arith.constant 0 : index
    %c1024 = arith.constant 1024 : index
    %70 = vector.load %arg13[%c15_104, %c0_105, %c1024] : memref<16x16x1152xf32, #tpu.memory_space<vmem>>, vector<1x16x128xf32>
    tpu.vector_store %arg13[%c15_104, %c0_105, %c1024], %69 {strides = array<i32>} : memref<16x16x1152xf32, #tpu.memory_space<vmem>>, vector<1x16x128xf32>,
    %cst_106 = arith.constant 0.000000e+00 : f32
    %71 = vector.broadcast %cst_106 : f32 to vector<16x1x128xf32>
    %c0_107 = arith.constant 0 : index
    %c15_108 = arith.constant 15 : index
    %c1024_109 = arith.constant 1024 : index
    %72 = vector.load %arg13[%c0_107, %c15_108, %c1024_109] : memref<16x16x1152xf32, #tpu.memory_space<vmem>>, vector<16x1x128xf32>
    tpu.vector_store %arg13[%c0_107, %c15_108, %c1024_109], %71 {strides = array<i32>} : memref<16x16x1152xf32, #tpu.memory_space<vmem>>, vector<16x1x128xf32>,
    %c1_110 = arith.constant 1 : index
    %c1_111 = arith.constant 1 : index
    %c0_112 = arith.constant 0 : index
    %73 = vector.load %arg12[%c1_110, %c1_111, %c0_112] : memref<16x16x128xf32, #tpu.memory_space<vmem>>, vector<15x15x128xf32>
    %c0_113 = arith.constant 0 : index
    %c0_114 = arith.constant 0 : index
    %c1024_115 = arith.constant 1024 : index
    %74 = vector.load %arg13[%c0_113, %c0_114, %c1024_115] : memref<16x16x1152xf32, #tpu.memory_space<vmem>>, vector<15x15x128xf32>
    tpu.vector_store %arg13[%c0_113, %c0_114, %c1024_115], %73 {strides = array<i32>} : memref<16x16x1152xf32, #tpu.memory_space<vmem>>, vector<15x15x128xf32>,
    %c0_116 = arith.constant 0 : index
    %c0_117 = arith.constant 0 : index
    %c0_118 = arith.constant 0 : index
    %75 = vector.load %arg13[%c0_116, %c0_117, %c0_118] : memref<16x16x1152xf32, #tpu.memory_space<vmem>>, vector<16x16x1152xf32>
    %76 = vector.shape_cast %75 : vector<16x16x1152xf32> to vector<256x1152xf32>
    %77 = arith.truncf %76 : vector<256x1152xf32> to vector<256x1152xbf16>
    %c0_119 = arith.constant 0 : index
    %c0_120 = arith.constant 0 : index
    %78 = vector.load %arg7[%c0_119, %c0_120] : memref<1152x128xbf16, #tpu.memory_space<vmem>>, vector<1152x128xbf16>
    %cst_121 = arith.constant dense<0.000000e+00> : vector<256x128xf32>
    %79 = tpu.matmul %77, %78, %cst_121 {dimension_numbers = #tpu.dot_dimension_numbers<[1], [0], [0], [1], [0, 0, 1, 1], [], []>} : vector<256x1152xbf16>, vector<1152x128xbf16>, vector<256x128xf32> -> vector<256x128xf32>
    %c0_122 = arith.constant 0 : index
    %c0_123 = arith.constant 0 : index
    %80 = vector.load %arg8[%c0_122, %c0_123] : memref<1x128xf32, #tpu.memory_space<vmem>>, vector<1x128xf32>
    %81 = vector.broadcast %80 : vector<1x128xf32> to vector<256x128xf32>
    %82 = arith.addf %79, %81 : vector<256x128xf32>
    %cst_124 = arith.constant 0.000000e+00 : f32
    %83 = vector.broadcast %cst_124 : f32 to vector<256x128xf32>
    %84 = arith.maximumf %82, %83 : vector<256x128xf32>
    %85 = vector.shape_cast %84 : vector<256x128xf32> to vector<1x16x16x128xf32>
    %86 = arith.truncf %85 : vector<1x16x16x128xf32> to vector<1x16x16x128xbf16>
    %c0_125 = arith.constant 0 : index
    %c0_126 = arith.constant 0 : index
    %c0_127 = arith.constant 0 : index
    %c0_128 = arith.constant 0 : index
    %87 = vector.load %arg9[%c0_125, %c0_126, %c0_127, %c0_128] : memref<1x16x16x128xbf16, #tpu.memory_space<vmem>>, vector<1x16x16x128xbf16>
    tpu.vector_store %arg9[%c0_125, %c0_126, %c0_127, %c0_128], %86 {strides = array<i32>} : memref<1x16x16x128xbf16, #tpu.memory_space<vmem>>, vector<1x16x16x128xbf16>,
    %cst_129 = arith.constant dense<0.000000e+00> : vector<128xf32>
    %88 = vector.multi_reduction <add>, %84, %cst_129 [0] : vector<256x128xf32> to vector<128xf32>
    %89 = vector.shape_cast %88 : vector<128xf32> to vector<1x128xf32>
    %c0_130 = arith.constant 0 : index
    %c0_131 = arith.constant 0 : index
    %c0_132 = arith.constant 0 : index
    %90 = vector.load %arg10[%c0_130, %c0_131, %c0_132] : memref<1x1x128xf32, #tpu.memory_space<vmem>>, vector<1x1x128xf32>
    %91 = vector.shape_cast %90 : vector<1x1x128xf32> to vector<1x128xf32>
    %92 = vector.shape_cast %89 : vector<1x128xf32> to vector<1x1x128xf32>
    tpu.vector_store %arg10[%c0_130, %c0_131, %c0_132], %92 {strides = array<i32>} : memref<1x1x128xf32, #tpu.memory_space<vmem>>, vector<1x1x128xf32>,
    %93 = arith.mulf %84, %84 : vector<256x128xf32>
    %cst_133 = arith.constant dense<0.000000e+00> : vector<128xf32>
    %94 = vector.multi_reduction <add>, %93, %cst_133 [0] : vector<256x128xf32> to vector<128xf32>
    %95 = vector.shape_cast %94 : vector<128xf32> to vector<1x128xf32>
    %c0_134 = arith.constant 0 : index
    %c0_135 = arith.constant 0 : index
    %c0_136 = arith.constant 0 : index
    %96 = vector.load %arg11[%c0_134, %c0_135, %c0_136] : memref<1x1x128xf32, #tpu.memory_space<vmem>>, vector<1x1x128xf32>
    %97 = vector.shape_cast %96 : vector<1x1x128xf32> to vector<1x128xf32>
    %98 = vector.shape_cast %95 : vector<1x128xf32> to vector<1x1x128xf32>
    tpu.vector_store %arg11[%c0_134, %c0_135, %c0_136], %98 {strides = array<i32>} : memref<1x1x128xf32, #tpu.memory_space<vmem>>, vector<1x1x128xf32>,
    return
  }
  func.func @transform_0(%arg0: i32) -> (i32, i32, i32, i32) {
    %c0_i32 = arith.constant 0 : i32
    %c0_i32_0 = arith.constant 0 : i32
    %c0_i32_1 = arith.constant 0 : i32
    %c0_i32_2 = arith.constant 0 : i32
    return %arg0, %c0_i32, %c0_i32_0, %c0_i32_1 : i32, i32, i32, i32
  }
  func.func @transform_1(%arg0: i32) -> (i32, i32, i32) {
    %c0_i32 = arith.constant 0 : i32
    %c0_i32_0 = arith.constant 0 : i32
    %c0_i32_1 = arith.constant 0 : i32
    %c0_i32_2 = arith.constant 0 : i32
    return %c0_i32, %c0_i32_0, %c0_i32_1 : i32, i32, i32
  }
  func.func @transform_2(%arg0: i32) -> (i32, i32, i32) {
    %c0_i32 = arith.constant 0 : i32
    %c0_i32_0 = arith.constant 0 : i32
    %c0_i32_1 = arith.constant 0 : i32
    %c0_i32_2 = arith.constant 0 : i32
    return %c0_i32, %c0_i32_0, %c0_i32_1 : i32, i32, i32
  }
  func.func @transform_3(%arg0: i32) -> (i32, i32, i32) {
    %c0_i32 = arith.constant 0 : i32
    %c0_i32_0 = arith.constant 0 : i32
    %c0_i32_1 = arith.constant 0 : i32
    return %arg0, %c0_i32, %c0_i32_0 : i32, i32, i32
  }
  func.func @transform_4(%arg0: i32) -> (i32, i32) {
    %c0_i32 = arith.constant 0 : i32
    %c0_i32_0 = arith.constant 0 : i32
    %c0_i32_1 = arith.constant 0 : i32
    return %c0_i32, %c0_i32_0 : i32, i32
  }
  func.func @transform_5(%arg0: i32) -> (i32, i32) {
    %c0_i32 = arith.constant 0 : i32
    %c0_i32_0 = arith.constant 0 : i32
    %c0_i32_1 = arith.constant 0 : i32
    return %c0_i32, %c0_i32_0 : i32, i32
  }
  func.func @transform_6(%arg0: i32) -> (i32, i32) {
    %c0_i32 = arith.constant 0 : i32
    %c0_i32_0 = arith.constant 0 : i32
    %c0_i32_1 = arith.constant 0 : i32
    return %c0_i32, %c0_i32_0 : i32, i32
  }
  func.func @transform_7(%arg0: i32) -> (i32, i32) {
    %c0_i32 = arith.constant 0 : i32
    %c0_i32_0 = arith.constant 0 : i32
    %c0_i32_1 = arith.constant 0 : i32
    return %c0_i32, %c0_i32_0 : i32, i32
  }
  func.func @transform_8(%arg0: i32) -> (i32, i32, i32, i32) {
    %c0_i32 = arith.constant 0 : i32
    %c0_i32_0 = arith.constant 0 : i32
    %c0_i32_1 = arith.constant 0 : i32
    %c0_i32_2 = arith.constant 0 : i32
    return %arg0, %c0_i32, %c0_i32_0, %c0_i32_1 : i32, i32, i32, i32
  }
  func.func @transform_9(%arg0: i32) -> (i32, i32, i32) {
    %c0_i32 = arith.constant 0 : i32
    %c0_i32_0 = arith.constant 0 : i32
    %c0_i32_1 = arith.constant 0 : i32
    return %arg0, %c0_i32, %c0_i32_0 : i32, i32, i32
  }
  func.func @transform_10(%arg0: i32) -> (i32, i32, i32) {
    %c0_i32 = arith.constant 0 : i32
    %c0_i32_0 = arith.constant 0 : i32
    %c0_i32_1 = arith.constant 0 : i32
    return %arg0, %c0_i32, %c0_i32_0 : i32, i32, i32
  }
}

module attributes {stable_mosaic.version = 11 : i64} {
  func.func @bn2_transform_kernel(%arg0: i32, %arg1: memref<1x8x2x8x256xbf16, #tpu.memory_space<vmem>>, %arg2: memref<2x1x128xf32, #tpu.memory_space<vmem>>, %arg3: memref<2x1x128xf32, #tpu.memory_space<vmem>>, %arg4: memref<1x128xf32, #tpu.memory_space<vmem>>, %arg5: memref<1x128xf32, #tpu.memory_space<vmem>>, %arg6: memref<2048x128xbf16, #tpu.memory_space<vmem>>, %arg7: memref<1x128xf32, #tpu.memory_space<vmem>>, %arg8: memref<1x8x8x128xf32, #tpu.memory_space<vmem>>, %arg9: memref<4x8x8x128xf32, #tpu.memory_space<vmem>>, %arg10: memref<8x8x2048xf32, #tpu.memory_space<vmem>>) attributes {dimension_semantics = [#tpu.dimension_semantics<parallel>], iteration_bounds = array<i64: 2>, scalar_prefetch = 0 : i64, scratch_operands = 2 : i64, tpu.core_type = #tpu.core_type<tc>, window_params = [{transform_indices = @transform_0, window_bounds = array<i64: 1, 8, 2, 8, 256>}, {pipeline_mode = #tpu.pipeline_mode<synchronous>, transform_indices = @transform_1, window_bounds = array<i64: 2, 1, 128>}, {pipeline_mode = #tpu.pipeline_mode<synchronous>, transform_indices = @transform_2, window_bounds = array<i64: 2, 1, 128>}, {pipeline_mode = #tpu.pipeline_mode<synchronous>, transform_indices = @transform_3, window_bounds = array<i64: 1, 128>}, {pipeline_mode = #tpu.pipeline_mode<synchronous>, transform_indices = @transform_4, window_bounds = array<i64: 1, 128>}, {pipeline_mode = #tpu.pipeline_mode<synchronous>, transform_indices = @transform_5, window_bounds = array<i64: 2048, 128>}, {pipeline_mode = #tpu.pipeline_mode<synchronous>, transform_indices = @transform_6, window_bounds = array<i64: 1, 128>}, {transform_indices = @transform_7, window_bounds = array<i64: 1, 8, 8, 128>}]} {
    %c0 = arith.constant 0 : index
    %c0_0 = arith.constant 0 : index
    %c0_1 = arith.constant 0 : index
    %0 = vector.load %arg2[%c0, %c0_0, %c0_1] : memref<2x1x128xf32, #tpu.memory_space<vmem>>, vector<2x1x128xf32>
    %cst = arith.constant dense<0.000000e+00> : vector<1x128xf32>
    %1 = vector.multi_reduction <add>, %0, %cst [0] : vector<2x1x128xf32> to vector<1x128xf32>
    %cst_2 = arith.constant 0.001953125 : f32
    %2 = vector.broadcast %cst_2 : f32 to vector<1x128xf32>
    %3 = arith.mulf %1, %2 : vector<1x128xf32>
    %c0_3 = arith.constant 0 : index
    %c0_4 = arith.constant 0 : index
    %c0_5 = arith.constant 0 : index
    %4 = vector.load %arg3[%c0_3, %c0_4, %c0_5] : memref<2x1x128xf32, #tpu.memory_space<vmem>>, vector<2x1x128xf32>
    %cst_6 = arith.constant dense<0.000000e+00> : vector<1x128xf32>
    %5 = vector.multi_reduction <add>, %4, %cst_6 [0] : vector<2x1x128xf32> to vector<1x128xf32>
    %cst_7 = arith.constant 0.001953125 : f32
    %6 = vector.broadcast %cst_7 : f32 to vector<1x128xf32>
    %7 = arith.mulf %5, %6 : vector<1x128xf32>
    %8 = arith.mulf %3, %3 : vector<1x128xf32>
    %9 = arith.subf %7, %8 : vector<1x128xf32>
    %cst_8 = arith.constant 0.000000e+00 : f32
    %10 = vector.broadcast %cst_8 : f32 to vector<1x128xf32>
    %11 = arith.maximumf %9, %10 : vector<1x128xf32>
    %c0_9 = arith.constant 0 : index
    %c0_10 = arith.constant 0 : index
    %12 = vector.load %arg4[%c0_9, %c0_10] : memref<1x128xf32, #tpu.memory_space<vmem>>, vector<1x128xf32>
    %cst_11 = arith.constant 9.99999974E-6 : f32
    %13 = vector.broadcast %cst_11 : f32 to vector<1x128xf32>
    %14 = arith.addf %11, %13 : vector<1x128xf32>
    %15 = math.rsqrt %14 : vector<1x128xf32>
    %16 = arith.mulf %12, %15 : vector<1x128xf32>
    %c0_12 = arith.constant 0 : index
    %c0_13 = arith.constant 0 : index
    %17 = vector.load %arg5[%c0_12, %c0_13] : memref<1x128xf32, #tpu.memory_space<vmem>>, vector<1x128xf32>
    %18 = arith.mulf %3, %16 : vector<1x128xf32>
    %19 = arith.subf %17, %18 : vector<1x128xf32>
    %c0_14 = arith.constant 0 : index
    %c0_15 = arith.constant 0 : index
    %c0_16 = arith.constant 0 : index
    %c0_17 = arith.constant 0 : index
    %c0_18 = arith.constant 0 : index
    %20 = vector.load %arg1[%c0_14, %c0_15, %c0_16, %c0_17, %c0_18] : memref<1x8x2x8x256xbf16, #tpu.memory_space<vmem>>, vector<1x8x2x8x256xbf16>
    %21 = vector.shape_cast %20 : vector<1x8x2x8x256xbf16> to vector<8x2x8x256xbf16>
    %22 = arith.extf %21 : vector<8x2x8x256xbf16> to vector<8x2x8x256xf32>
    %23 = vector.extract_strided_slice %22 {offsets = [0, 0, 0, 0], sizes = [8, 1, 8, 256], strides = [1, 1, 1, 1]} : vector<8x2x8x256xf32> to vector<8x1x8x256xf32>
    %24 = vector.shape_cast %23 : vector<8x1x8x256xf32> to vector<8x8x256xf32>
    %25 = vector.extract_strided_slice %22 {offsets = [0, 1, 0, 0], sizes = [8, 1, 8, 256], strides = [1, 1, 1, 1]} : vector<8x2x8x256xf32> to vector<8x1x8x256xf32>
    %26 = vector.shape_cast %25 : vector<8x1x8x256xf32> to vector<8x8x256xf32>
    %27 = vector.extract_strided_slice %24 {offsets = [0, 0, 0], sizes = [8, 8, 128], strides = [1, 1, 1]} : vector<8x8x256xf32> to vector<8x8x128xf32>
    %28 = vector.shape_cast %16 : vector<1x128xf32> to vector<1x1x128xf32>
    %29 = vector.broadcast %28 : vector<1x1x128xf32> to vector<8x8x128xf32>
    %30 = arith.mulf %27, %29 : vector<8x8x128xf32>
    %31 = vector.shape_cast %19 : vector<1x128xf32> to vector<1x1x128xf32>
    %32 = vector.broadcast %31 : vector<1x1x128xf32> to vector<8x8x128xf32>
    %33 = arith.addf %30, %32 : vector<8x8x128xf32>
    %c0_19 = arith.constant 0 : index
    %c0_20 = arith.constant 0 : index
    %c0_21 = arith.constant 0 : index
    %c0_22 = arith.constant 0 : index
    %34 = vector.load %arg9[%c0_19, %c0_20, %c0_21, %c0_22] : memref<4x8x8x128xf32, #tpu.memory_space<vmem>>, vector<1x8x8x128xf32>
    %35 = vector.shape_cast %34 : vector<1x8x8x128xf32> to vector<8x8x128xf32>
    %36 = vector.shape_cast %33 : vector<8x8x128xf32> to vector<1x8x8x128xf32>
    tpu.vector_store %arg9[%c0_19, %c0_20, %c0_21, %c0_22], %36 {strides = array<i32>} : memref<4x8x8x128xf32, #tpu.memory_space<vmem>>, vector<1x8x8x128xf32>,
    %37 = vector.extract_strided_slice %24 {offsets = [0, 0, 128], sizes = [8, 8, 128], strides = [1, 1, 1]} : vector<8x8x256xf32> to vector<8x8x128xf32>
    %38 = vector.shape_cast %16 : vector<1x128xf32> to vector<1x1x128xf32>
    %39 = vector.broadcast %38 : vector<1x1x128xf32> to vector<8x8x128xf32>
    %40 = arith.mulf %37, %39 : vector<8x8x128xf32>
    %41 = vector.shape_cast %19 : vector<1x128xf32> to vector<1x1x128xf32>
    %42 = vector.broadcast %41 : vector<1x1x128xf32> to vector<8x8x128xf32>
    %43 = arith.addf %40, %42 : vector<8x8x128xf32>
    %c1 = arith.constant 1 : index
    %c0_23 = arith.constant 0 : index
    %c0_24 = arith.constant 0 : index
    %c0_25 = arith.constant 0 : index
    %44 = vector.load %arg9[%c1, %c0_23, %c0_24, %c0_25] : memref<4x8x8x128xf32, #tpu.memory_space<vmem>>, vector<1x8x8x128xf32>
    %45 = vector.shape_cast %44 : vector<1x8x8x128xf32> to vector<8x8x128xf32>
    %46 = vector.shape_cast %43 : vector<8x8x128xf32> to vector<1x8x8x128xf32>
    tpu.vector_store %arg9[%c1, %c0_23, %c0_24, %c0_25], %46 {strides = array<i32>} : memref<4x8x8x128xf32, #tpu.memory_space<vmem>>, vector<1x8x8x128xf32>,
    %47 = vector.extract_strided_slice %26 {offsets = [0, 0, 0], sizes = [8, 8, 128], strides = [1, 1, 1]} : vector<8x8x256xf32> to vector<8x8x128xf32>
    %48 = vector.shape_cast %16 : vector<1x128xf32> to vector<1x1x128xf32>
    %49 = vector.broadcast %48 : vector<1x1x128xf32> to vector<8x8x128xf32>
    %50 = arith.mulf %47, %49 : vector<8x8x128xf32>
    %51 = vector.shape_cast %19 : vector<1x128xf32> to vector<1x1x128xf32>
    %52 = vector.broadcast %51 : vector<1x1x128xf32> to vector<8x8x128xf32>
    %53 = arith.addf %50, %52 : vector<8x8x128xf32>
    %c2 = arith.constant 2 : index
    %c0_26 = arith.constant 0 : index
    %c0_27 = arith.constant 0 : index
    %c0_28 = arith.constant 0 : index
    %54 = vector.load %arg9[%c2, %c0_26, %c0_27, %c0_28] : memref<4x8x8x128xf32, #tpu.memory_space<vmem>>, vector<1x8x8x128xf32>
    %55 = vector.shape_cast %54 : vector<1x8x8x128xf32> to vector<8x8x128xf32>
    %56 = vector.shape_cast %53 : vector<8x8x128xf32> to vector<1x8x8x128xf32>
    tpu.vector_store %arg9[%c2, %c0_26, %c0_27, %c0_28], %56 {strides = array<i32>} : memref<4x8x8x128xf32, #tpu.memory_space<vmem>>, vector<1x8x8x128xf32>,
    %57 = vector.extract_strided_slice %26 {offsets = [0, 0, 128], sizes = [8, 8, 128], strides = [1, 1, 1]} : vector<8x8x256xf32> to vector<8x8x128xf32>
    %58 = vector.shape_cast %16 : vector<1x128xf32> to vector<1x1x128xf32>
    %59 = vector.broadcast %58 : vector<1x1x128xf32> to vector<8x8x128xf32>
    %60 = arith.mulf %57, %59 : vector<8x8x128xf32>
    %61 = vector.shape_cast %19 : vector<1x128xf32> to vector<1x1x128xf32>
    %62 = vector.broadcast %61 : vector<1x1x128xf32> to vector<8x8x128xf32>
    %63 = arith.addf %60, %62 : vector<8x8x128xf32>
    %c3 = arith.constant 3 : index
    %c0_29 = arith.constant 0 : index
    %c0_30 = arith.constant 0 : index
    %c0_31 = arith.constant 0 : index
    %64 = vector.load %arg9[%c3, %c0_29, %c0_30, %c0_31] : memref<4x8x8x128xf32, #tpu.memory_space<vmem>>, vector<1x8x8x128xf32>
    %65 = vector.shape_cast %64 : vector<1x8x8x128xf32> to vector<8x8x128xf32>
    %66 = vector.shape_cast %63 : vector<8x8x128xf32> to vector<1x8x8x128xf32>
    tpu.vector_store %arg9[%c3, %c0_29, %c0_30, %c0_31], %66 {strides = array<i32>} : memref<4x8x8x128xf32, #tpu.memory_space<vmem>>, vector<1x8x8x128xf32>,
    %cst_32 = arith.constant 0.000000e+00 : f32
    %67 = vector.broadcast %cst_32 : f32 to vector<1x8x128xf32>
    %c0_33 = arith.constant 0 : index
    %c0_34 = arith.constant 0 : index
    %c0_35 = arith.constant 0 : index
    %68 = vector.load %arg10[%c0_33, %c0_34, %c0_35] : memref<8x8x2048xf32, #tpu.memory_space<vmem>>, vector<1x8x128xf32>
    tpu.vector_store %arg10[%c0_33, %c0_34, %c0_35], %67 {strides = array<i32>} : memref<8x8x2048xf32, #tpu.memory_space<vmem>>, vector<1x8x128xf32>,
    %cst_36 = arith.constant 0.000000e+00 : f32
    %69 = vector.broadcast %cst_36 : f32 to vector<8x1x128xf32>
    %c0_37 = arith.constant 0 : index
    %c0_38 = arith.constant 0 : index
    %c0_39 = arith.constant 0 : index
    %70 = vector.load %arg10[%c0_37, %c0_38, %c0_39] : memref<8x8x2048xf32, #tpu.memory_space<vmem>>, vector<8x1x128xf32>
    tpu.vector_store %arg10[%c0_37, %c0_38, %c0_39], %69 {strides = array<i32>} : memref<8x8x2048xf32, #tpu.memory_space<vmem>>, vector<8x1x128xf32>,
    %c3_40 = arith.constant 3 : index
    %c0_41 = arith.constant 0 : index
    %c0_42 = arith.constant 0 : index
    %c0_43 = arith.constant 0 : index
    %71 = vector.load %arg9[%c3_40, %c0_41, %c0_42, %c0_43] : memref<4x8x8x128xf32, #tpu.memory_space<vmem>>, vector<1x7x7x128xf32>
    %72 = vector.shape_cast %71 : vector<1x7x7x128xf32> to vector<7x7x128xf32>
    %c1_44 = arith.constant 1 : index
    %c1_45 = arith.constant 1 : index
    %c0_46 = arith.constant 0 : index
    %73 = vector.load %arg10[%c1_44, %c1_45, %c0_46] : memref<8x8x2048xf32, #tpu.memory_space<vmem>>, vector<7x7x128xf32>
    tpu.vector_store %arg10[%c1_44, %c1_45, %c0_46], %72 {strides = array<i32>} : memref<8x8x2048xf32, #tpu.memory_space<vmem>>, vector<7x7x128xf32>,
    %cst_47 = arith.constant 0.000000e+00 : f32
    %74 = vector.broadcast %cst_47 : f32 to vector<1x8x128xf32>
    %c0_48 = arith.constant 0 : index
    %c0_49 = arith.constant 0 : index
    %c128 = arith.constant 128 : index
    %75 = vector.load %arg10[%c0_48, %c0_49, %c128] : memref<8x8x2048xf32, #tpu.memory_space<vmem>>, vector<1x8x128xf32>
    tpu.vector_store %arg10[%c0_48, %c0_49, %c128], %74 {strides = array<i32>} : memref<8x8x2048xf32, #tpu.memory_space<vmem>>, vector<1x8x128xf32>,
    %c2_50 = arith.constant 2 : index
    %c0_51 = arith.constant 0 : index
    %c0_52 = arith.constant 0 : index
    %c0_53 = arith.constant 0 : index
    %76 = vector.load %arg9[%c2_50, %c0_51, %c0_52, %c0_53] : memref<4x8x8x128xf32, #tpu.memory_space<vmem>>, vector<1x7x8x128xf32>
    %77 = vector.shape_cast %76 : vector<1x7x8x128xf32> to vector<7x8x128xf32>
    %c1_54 = arith.constant 1 : index
    %c0_55 = arith.constant 0 : index
    %c128_56 = arith.constant 128 : index
    %78 = vector.load %arg10[%c1_54, %c0_55, %c128_56] : memref<8x8x2048xf32, #tpu.memory_space<vmem>>, vector<7x8x128xf32>
    tpu.vector_store %arg10[%c1_54, %c0_55, %c128_56], %77 {strides = array<i32>} : memref<8x8x2048xf32, #tpu.memory_space<vmem>>, vector<7x8x128xf32>,
    %cst_57 = arith.constant 0.000000e+00 : f32
    %79 = vector.broadcast %cst_57 : f32 to vector<1x8x128xf32>
    %c0_58 = arith.constant 0 : index
    %c0_59 = arith.constant 0 : index
    %c256 = arith.constant 256 : index
    %80 = vector.load %arg10[%c0_58, %c0_59, %c256] : memref<8x8x2048xf32, #tpu.memory_space<vmem>>, vector<1x8x128xf32>
    tpu.vector_store %arg10[%c0_58, %c0_59, %c256], %79 {strides = array<i32>} : memref<8x8x2048xf32, #tpu.memory_space<vmem>>, vector<1x8x128xf32>,
    %c3_60 = arith.constant 3 : index
    %c0_61 = arith.constant 0 : index
    %c0_62 = arith.constant 0 : index
    %c0_63 = arith.constant 0 : index
    %81 = vector.load %arg9[%c3_60, %c0_61, %c0_62, %c0_63] : memref<4x8x8x128xf32, #tpu.memory_space<vmem>>, vector<1x7x8x128xf32>
    %82 = vector.shape_cast %81 : vector<1x7x8x128xf32> to vector<7x8x128xf32>
    %c1_64 = arith.constant 1 : index
    %c0_65 = arith.constant 0 : index
    %c256_66 = arith.constant 256 : index
    %83 = vector.load %arg10[%c1_64, %c0_65, %c256_66] : memref<8x8x2048xf32, #tpu.memory_space<vmem>>, vector<7x8x128xf32>
    tpu.vector_store %arg10[%c1_64, %c0_65, %c256_66], %82 {strides = array<i32>} : memref<8x8x2048xf32, #tpu.memory_space<vmem>>, vector<7x8x128xf32>,
    %cst_67 = arith.constant 0.000000e+00 : f32
    %84 = vector.broadcast %cst_67 : f32 to vector<1x8x128xf32>
    %c0_68 = arith.constant 0 : index
    %c0_69 = arith.constant 0 : index
    %c384 = arith.constant 384 : index
    %85 = vector.load %arg10[%c0_68, %c0_69, %c384] : memref<8x8x2048xf32, #tpu.memory_space<vmem>>, vector<1x8x128xf32>
    tpu.vector_store %arg10[%c0_68, %c0_69, %c384], %84 {strides = array<i32>} : memref<8x8x2048xf32, #tpu.memory_space<vmem>>, vector<1x8x128xf32>,
    %cst_70 = arith.constant 0.000000e+00 : f32
    %86 = vector.broadcast %cst_70 : f32 to vector<8x1x128xf32>
    %c0_71 = arith.constant 0 : index
    %c7 = arith.constant 7 : index
    %c384_72 = arith.constant 384 : index
    %87 = vector.load %arg10[%c0_71, %c7, %c384_72] : memref<8x8x2048xf32, #tpu.memory_space<vmem>>, vector<8x1x128xf32>
    tpu.vector_store %arg10[%c0_71, %c7, %c384_72], %86 {strides = array<i32>} : memref<8x8x2048xf32, #tpu.memory_space<vmem>>, vector<8x1x128xf32>,
    %c2_73 = arith.constant 2 : index
    %c0_74 = arith.constant 0 : index
    %c1_75 = arith.constant 1 : index
    %c0_76 = arith.constant 0 : index
    %88 = vector.load %arg9[%c2_73, %c0_74, %c1_75, %c0_76] : memref<4x8x8x128xf32, #tpu.memory_space<vmem>>, vector<1x7x7x128xf32>
    %89 = vector.shape_cast %88 : vector<1x7x7x128xf32> to vector<7x7x128xf32>
    %c1_77 = arith.constant 1 : index
    %c0_78 = arith.constant 0 : index
    %c384_79 = arith.constant 384 : index
    %90 = vector.load %arg10[%c1_77, %c0_78, %c384_79] : memref<8x8x2048xf32, #tpu.memory_space<vmem>>, vector<7x7x128xf32>
    tpu.vector_store %arg10[%c1_77, %c0_78, %c384_79], %89 {strides = array<i32>} : memref<8x8x2048xf32, #tpu.memory_space<vmem>>, vector<7x7x128xf32>,
    %cst_80 = arith.constant 0.000000e+00 : f32
    %91 = vector.broadcast %cst_80 : f32 to vector<8x1x128xf32>
    %c0_81 = arith.constant 0 : index
    %c0_82 = arith.constant 0 : index
    %c512 = arith.constant 512 : index
    %92 = vector.load %arg10[%c0_81, %c0_82, %c512] : memref<8x8x2048xf32, #tpu.memory_space<vmem>>, vector<8x1x128xf32>
    tpu.vector_store %arg10[%c0_81, %c0_82, %c512], %91 {strides = array<i32>} : memref<8x8x2048xf32, #tpu.memory_space<vmem>>, vector<8x1x128xf32>,
    %c1_83 = arith.constant 1 : index
    %c0_84 = arith.constant 0 : index
    %c0_85 = arith.constant 0 : index
    %c0_86 = arith.constant 0 : index
    %93 = vector.load %arg9[%c1_83, %c0_84, %c0_85, %c0_86] : memref<4x8x8x128xf32, #tpu.memory_space<vmem>>, vector<1x8x7x128xf32>
    %94 = vector.shape_cast %93 : vector<1x8x7x128xf32> to vector<8x7x128xf32>
    %c0_87 = arith.constant 0 : index
    %c1_88 = arith.constant 1 : index
    %c512_89 = arith.constant 512 : index
    %95 = vector.load %arg10[%c0_87, %c1_88, %c512_89] : memref<8x8x2048xf32, #tpu.memory_space<vmem>>, vector<8x7x128xf32>
    tpu.vector_store %arg10[%c0_87, %c1_88, %c512_89], %94 {strides = array<i32>} : memref<8x8x2048xf32, #tpu.memory_space<vmem>>, vector<8x7x128xf32>,
    %c0_90 = arith.constant 0 : index
    %c0_91 = arith.constant 0 : index
    %c0_92 = arith.constant 0 : index
    %c0_93 = arith.constant 0 : index
    %96 = vector.load %arg9[%c0_90, %c0_91, %c0_92, %c0_93] : memref<4x8x8x128xf32, #tpu.memory_space<vmem>>, vector<1x8x8x128xf32>
    %97 = vector.shape_cast %96 : vector<1x8x8x128xf32> to vector<8x8x128xf32>
    %c0_94 = arith.constant 0 : index
    %c0_95 = arith.constant 0 : index
    %c640 = arith.constant 640 : index
    %98 = vector.load %arg10[%c0_94, %c0_95, %c640] : memref<8x8x2048xf32, #tpu.memory_space<vmem>>, vector<8x8x128xf32>
    tpu.vector_store %arg10[%c0_94, %c0_95, %c640], %97 {strides = array<i32>} : memref<8x8x2048xf32, #tpu.memory_space<vmem>>, vector<8x8x128xf32>,
    %c1_96 = arith.constant 1 : index
    %c0_97 = arith.constant 0 : index
    %c0_98 = arith.constant 0 : index
    %c0_99 = arith.constant 0 : index
    %99 = vector.load %arg9[%c1_96, %c0_97, %c0_98, %c0_99] : memref<4x8x8x128xf32, #tpu.memory_space<vmem>>, vector<1x8x8x128xf32>
    %100 = vector.shape_cast %99 : vector<1x8x8x128xf32> to vector<8x8x128xf32>
    %c0_100 = arith.constant 0 : index
    %c0_101 = arith.constant 0 : index
    %c768 = arith.constant 768 : index
    %101 = vector.load %arg10[%c0_100, %c0_101, %c768] : memref<8x8x2048xf32, #tpu.memory_space<vmem>>, vector<8x8x128xf32>
    tpu.vector_store %arg10[%c0_100, %c0_101, %c768], %100 {strides = array<i32>} : memref<8x8x2048xf32, #tpu.memory_space<vmem>>, vector<8x8x128xf32>,
    %cst_102 = arith.constant 0.000000e+00 : f32
    %102 = vector.broadcast %cst_102 : f32 to vector<8x1x128xf32>
    %c0_103 = arith.constant 0 : index
    %c7_104 = arith.constant 7 : index
    %c896 = arith.constant 896 : index
    %103 = vector.load %arg10[%c0_103, %c7_104, %c896] : memref<8x8x2048xf32, #tpu.memory_space<vmem>>, vector<8x1x128xf32>
    tpu.vector_store %arg10[%c0_103, %c7_104, %c896], %102 {strides = array<i32>} : memref<8x8x2048xf32, #tpu.memory_space<vmem>>, vector<8x1x128xf32>,
    %c0_105 = arith.constant 0 : index
    %c0_106 = arith.constant 0 : index
    %c1_107 = arith.constant 1 : index
    %c0_108 = arith.constant 0 : index
    %104 = vector.load %arg9[%c0_105, %c0_106, %c1_107, %c0_108] : memref<4x8x8x128xf32, #tpu.memory_space<vmem>>, vector<1x8x7x128xf32>
    %105 = vector.shape_cast %104 : vector<1x8x7x128xf32> to vector<8x7x128xf32>
    %c0_109 = arith.constant 0 : index
    %c0_110 = arith.constant 0 : index
    %c896_111 = arith.constant 896 : index
    %106 = vector.load %arg10[%c0_109, %c0_110, %c896_111] : memref<8x8x2048xf32, #tpu.memory_space<vmem>>, vector<8x7x128xf32>
    tpu.vector_store %arg10[%c0_109, %c0_110, %c896_111], %105 {strides = array<i32>} : memref<8x8x2048xf32, #tpu.memory_space<vmem>>, vector<8x7x128xf32>,
    %cst_112 = arith.constant 0.000000e+00 : f32
    %107 = vector.broadcast %cst_112 : f32 to vector<8x1x128xf32>
    %c0_113 = arith.constant 0 : index
    %c0_114 = arith.constant 0 : index
    %c1024 = arith.constant 1024 : index
    %108 = vector.load %arg10[%c0_113, %c0_114, %c1024] : memref<8x8x2048xf32, #tpu.memory_space<vmem>>, vector<8x1x128xf32>
    tpu.vector_store %arg10[%c0_113, %c0_114, %c1024], %107 {strides = array<i32>} : memref<8x8x2048xf32, #tpu.memory_space<vmem>>, vector<8x1x128xf32>,
    %c3_115 = arith.constant 3 : index
    %c0_116 = arith.constant 0 : index
    %c0_117 = arith.constant 0 : index
    %c0_118 = arith.constant 0 : index
    %109 = vector.load %arg9[%c3_115, %c0_116, %c0_117, %c0_118] : memref<4x8x8x128xf32, #tpu.memory_space<vmem>>, vector<1x8x7x128xf32>
    %110 = vector.shape_cast %109 : vector<1x8x7x128xf32> to vector<8x7x128xf32>
    %c0_119 = arith.constant 0 : index
    %c1_120 = arith.constant 1 : index
    %c1024_121 = arith.constant 1024 : index
    %111 = vector.load %arg10[%c0_119, %c1_120, %c1024_121] : memref<8x8x2048xf32, #tpu.memory_space<vmem>>, vector<8x7x128xf32>
    tpu.vector_store %arg10[%c0_119, %c1_120, %c1024_121], %110 {strides = array<i32>} : memref<8x8x2048xf32, #tpu.memory_space<vmem>>, vector<8x7x128xf32>,
    %c2_122 = arith.constant 2 : index
    %c0_123 = arith.constant 0 : index
    %c0_124 = arith.constant 0 : index
    %c0_125 = arith.constant 0 : index
    %112 = vector.load %arg9[%c2_122, %c0_123, %c0_124, %c0_125] : memref<4x8x8x128xf32, #tpu.memory_space<vmem>>, vector<1x8x8x128xf32>
    %113 = vector.shape_cast %112 : vector<1x8x8x128xf32> to vector<8x8x128xf32>
    %c0_126 = arith.constant 0 : index
    %c0_127 = arith.constant 0 : index
    %c1152 = arith.constant 1152 : index
    %114 = vector.load %arg10[%c0_126, %c0_127, %c1152] : memref<8x8x2048xf32, #tpu.memory_space<vmem>>, vector<8x8x128xf32>
    tpu.vector_store %arg10[%c0_126, %c0_127, %c1152], %113 {strides = array<i32>} : memref<8x8x2048xf32, #tpu.memory_space<vmem>>, vector<8x8x128xf32>,
    %c3_128 = arith.constant 3 : index
    %c0_129 = arith.constant 0 : index
    %c0_130 = arith.constant 0 : index
    %c0_131 = arith.constant 0 : index
    %115 = vector.load %arg9[%c3_128, %c0_129, %c0_130, %c0_131] : memref<4x8x8x128xf32, #tpu.memory_space<vmem>>, vector<1x8x8x128xf32>
    %116 = vector.shape_cast %115 : vector<1x8x8x128xf32> to vector<8x8x128xf32>
    %c0_132 = arith.constant 0 : index
    %c0_133 = arith.constant 0 : index
    %c1280 = arith.constant 1280 : index
    %117 = vector.load %arg10[%c0_132, %c0_133, %c1280] : memref<8x8x2048xf32, #tpu.memory_space<vmem>>, vector<8x8x128xf32>
    tpu.vector_store %arg10[%c0_132, %c0_133, %c1280], %116 {strides = array<i32>} : memref<8x8x2048xf32, #tpu.memory_space<vmem>>, vector<8x8x128xf32>,
    %cst_134 = arith.constant 0.000000e+00 : f32
    %118 = vector.broadcast %cst_134 : f32 to vector<8x1x128xf32>
    %c0_135 = arith.constant 0 : index
    %c7_136 = arith.constant 7 : index
    %c1408 = arith.constant 1408 : index
    %119 = vector.load %arg10[%c0_135, %c7_136, %c1408] : memref<8x8x2048xf32, #tpu.memory_space<vmem>>, vector<8x1x128xf32>
    tpu.vector_store %arg10[%c0_135, %c7_136, %c1408], %118 {strides = array<i32>} : memref<8x8x2048xf32, #tpu.memory_space<vmem>>, vector<8x1x128xf32>,
    %c2_137 = arith.constant 2 : index
    %c0_138 = arith.constant 0 : index
    %c1_139 = arith.constant 1 : index
    %c0_140 = arith.constant 0 : index
    %120 = vector.load %arg9[%c2_137, %c0_138, %c1_139, %c0_140] : memref<4x8x8x128xf32, #tpu.memory_space<vmem>>, vector<1x8x7x128xf32>
    %121 = vector.shape_cast %120 : vector<1x8x7x128xf32> to vector<8x7x128xf32>
    %c0_141 = arith.constant 0 : index
    %c0_142 = arith.constant 0 : index
    %c1408_143 = arith.constant 1408 : index
    %122 = vector.load %arg10[%c0_141, %c0_142, %c1408_143] : memref<8x8x2048xf32, #tpu.memory_space<vmem>>, vector<8x7x128xf32>
    tpu.vector_store %arg10[%c0_141, %c0_142, %c1408_143], %121 {strides = array<i32>} : memref<8x8x2048xf32, #tpu.memory_space<vmem>>, vector<8x7x128xf32>,
    %cst_144 = arith.constant 0.000000e+00 : f32
    %123 = vector.broadcast %cst_144 : f32 to vector<1x8x128xf32>
    %c7_145 = arith.constant 7 : index
    %c0_146 = arith.constant 0 : index
    %c1536 = arith.constant 1536 : index
    %124 = vector.load %arg10[%c7_145, %c0_146, %c1536] : memref<8x8x2048xf32, #tpu.memory_space<vmem>>, vector<1x8x128xf32>
    tpu.vector_store %arg10[%c7_145, %c0_146, %c1536], %123 {strides = array<i32>} : memref<8x8x2048xf32, #tpu.memory_space<vmem>>, vector<1x8x128xf32>,
    %cst_147 = arith.constant 0.000000e+00 : f32
    %125 = vector.broadcast %cst_147 : f32 to vector<8x1x128xf32>
    %c0_148 = arith.constant 0 : index
    %c0_149 = arith.constant 0 : index
    %c1536_150 = arith.constant 1536 : index
    %126 = vector.load %arg10[%c0_148, %c0_149, %c1536_150] : memref<8x8x2048xf32, #tpu.memory_space<vmem>>, vector<8x1x128xf32>
    tpu.vector_store %arg10[%c0_148, %c0_149, %c1536_150], %125 {strides = array<i32>} : memref<8x8x2048xf32, #tpu.memory_space<vmem>>, vector<8x1x128xf32>,
    %c1_151 = arith.constant 1 : index
    %c1_152 = arith.constant 1 : index
    %c0_153 = arith.constant 0 : index
    %c0_154 = arith.constant 0 : index
    %127 = vector.load %arg9[%c1_151, %c1_152, %c0_153, %c0_154] : memref<4x8x8x128xf32, #tpu.memory_space<vmem>>, vector<1x7x7x128xf32>
    %128 = vector.shape_cast %127 : vector<1x7x7x128xf32> to vector<7x7x128xf32>
    %c0_155 = arith.constant 0 : index
    %c1_156 = arith.constant 1 : index
    %c1536_157 = arith.constant 1536 : index
    %129 = vector.load %arg10[%c0_155, %c1_156, %c1536_157] : memref<8x8x2048xf32, #tpu.memory_space<vmem>>, vector<7x7x128xf32>
    tpu.vector_store %arg10[%c0_155, %c1_156, %c1536_157], %128 {strides = array<i32>} : memref<8x8x2048xf32, #tpu.memory_space<vmem>>, vector<7x7x128xf32>,
    %cst_158 = arith.constant 0.000000e+00 : f32
    %130 = vector.broadcast %cst_158 : f32 to vector<1x8x128xf32>
    %c7_159 = arith.constant 7 : index
    %c0_160 = arith.constant 0 : index
    %c1664 = arith.constant 1664 : index
    %131 = vector.load %arg10[%c7_159, %c0_160, %c1664] : memref<8x8x2048xf32, #tpu.memory_space<vmem>>, vector<1x8x128xf32>
    tpu.vector_store %arg10[%c7_159, %c0_160, %c1664], %130 {strides = array<i32>} : memref<8x8x2048xf32, #tpu.memory_space<vmem>>, vector<1x8x128xf32>,
    %c0_161 = arith.constant 0 : index
    %c1_162 = arith.constant 1 : index
    %c0_163 = arith.constant 0 : index
    %c0_164 = arith.constant 0 : index
    %132 = vector.load %arg9[%c0_161, %c1_162, %c0_163, %c0_164] : memref<4x8x8x128xf32, #tpu.memory_space<vmem>>, vector<1x7x8x128xf32>
    %133 = vector.shape_cast %132 : vector<1x7x8x128xf32> to vector<7x8x128xf32>
    %c0_165 = arith.constant 0 : index
    %c0_166 = arith.constant 0 : index
    %c1664_167 = arith.constant 1664 : index
    %134 = vector.load %arg10[%c0_165, %c0_166, %c1664_167] : memref<8x8x2048xf32, #tpu.memory_space<vmem>>, vector<7x8x128xf32>
    tpu.vector_store %arg10[%c0_165, %c0_166, %c1664_167], %133 {strides = array<i32>} : memref<8x8x2048xf32, #tpu.memory_space<vmem>>, vector<7x8x128xf32>,
    %cst_168 = arith.constant 0.000000e+00 : f32
    %135 = vector.broadcast %cst_168 : f32 to vector<1x8x128xf32>
    %c7_169 = arith.constant 7 : index
    %c0_170 = arith.constant 0 : index
    %c1792 = arith.constant 1792 : index
    %136 = vector.load %arg10[%c7_169, %c0_170, %c1792] : memref<8x8x2048xf32, #tpu.memory_space<vmem>>, vector<1x8x128xf32>
    tpu.vector_store %arg10[%c7_169, %c0_170, %c1792], %135 {strides = array<i32>} : memref<8x8x2048xf32, #tpu.memory_space<vmem>>, vector<1x8x128xf32>,
    %c1_171 = arith.constant 1 : index
    %c1_172 = arith.constant 1 : index
    %c0_173 = arith.constant 0 : index
    %c0_174 = arith.constant 0 : index
    %137 = vector.load %arg9[%c1_171, %c1_172, %c0_173, %c0_174] : memref<4x8x8x128xf32, #tpu.memory_space<vmem>>, vector<1x7x8x128xf32>
    %138 = vector.shape_cast %137 : vector<1x7x8x128xf32> to vector<7x8x128xf32>
    %c0_175 = arith.constant 0 : index
    %c0_176 = arith.constant 0 : index
    %c1792_177 = arith.constant 1792 : index
    %139 = vector.load %arg10[%c0_175, %c0_176, %c1792_177] : memref<8x8x2048xf32, #tpu.memory_space<vmem>>, vector<7x8x128xf32>
    tpu.vector_store %arg10[%c0_175, %c0_176, %c1792_177], %138 {strides = array<i32>} : memref<8x8x2048xf32, #tpu.memory_space<vmem>>, vector<7x8x128xf32>,
    %cst_178 = arith.constant 0.000000e+00 : f32
    %140 = vector.broadcast %cst_178 : f32 to vector<1x8x128xf32>
    %c7_179 = arith.constant 7 : index
    %c0_180 = arith.constant 0 : index
    %c1920 = arith.constant 1920 : index
    %141 = vector.load %arg10[%c7_179, %c0_180, %c1920] : memref<8x8x2048xf32, #tpu.memory_space<vmem>>, vector<1x8x128xf32>
    tpu.vector_store %arg10[%c7_179, %c0_180, %c1920], %140 {strides = array<i32>} : memref<8x8x2048xf32, #tpu.memory_space<vmem>>, vector<1x8x128xf32>,
    %cst_181 = arith.constant 0.000000e+00 : f32
    %142 = vector.broadcast %cst_181 : f32 to vector<8x1x128xf32>
    %c0_182 = arith.constant 0 : index
    %c7_183 = arith.constant 7 : index
    %c1920_184 = arith.constant 1920 : index
    %143 = vector.load %arg10[%c0_182, %c7_183, %c1920_184] : memref<8x8x2048xf32, #tpu.memory_space<vmem>>, vector<8x1x128xf32>
    tpu.vector_store %arg10[%c0_182, %c7_183, %c1920_184], %142 {strides = array<i32>} : memref<8x8x2048xf32, #tpu.memory_space<vmem>>, vector<8x1x128xf32>,
    %c0_185 = arith.constant 0 : index
    %c1_186 = arith.constant 1 : index
    %c1_187 = arith.constant 1 : index
    %c0_188 = arith.constant 0 : index
    %144 = vector.load %arg9[%c0_185, %c1_186, %c1_187, %c0_188] : memref<4x8x8x128xf32, #tpu.memory_space<vmem>>, vector<1x7x7x128xf32>
    %145 = vector.shape_cast %144 : vector<1x7x7x128xf32> to vector<7x7x128xf32>
    %c0_189 = arith.constant 0 : index
    %c0_190 = arith.constant 0 : index
    %c1920_191 = arith.constant 1920 : index
    %146 = vector.load %arg10[%c0_189, %c0_190, %c1920_191] : memref<8x8x2048xf32, #tpu.memory_space<vmem>>, vector<7x7x128xf32>
    tpu.vector_store %arg10[%c0_189, %c0_190, %c1920_191], %145 {strides = array<i32>} : memref<8x8x2048xf32, #tpu.memory_space<vmem>>, vector<7x7x128xf32>,
    %c0_192 = arith.constant 0 : index
    %c0_193 = arith.constant 0 : index
    %c0_194 = arith.constant 0 : index
    %147 = vector.load %arg10[%c0_192, %c0_193, %c0_194] : memref<8x8x2048xf32, #tpu.memory_space<vmem>>, vector<8x8x2048xf32>
    %148 = vector.shape_cast %147 : vector<8x8x2048xf32> to vector<64x2048xf32>
    %149 = arith.truncf %148 : vector<64x2048xf32> to vector<64x2048xbf16>
    %c0_195 = arith.constant 0 : index
    %c0_196 = arith.constant 0 : index
    %150 = vector.load %arg6[%c0_195, %c0_196] : memref<2048x128xbf16, #tpu.memory_space<vmem>>, vector<2048x128xbf16>
    %cst_197 = arith.constant dense<0.000000e+00> : vector<64x128xf32>
    %151 = tpu.matmul %149, %150, %cst_197 {dimension_numbers = #tpu.dot_dimension_numbers<[1], [0], [0], [1], [0, 0, 1, 1], [], []>} : vector<64x2048xbf16>, vector<2048x128xbf16>, vector<64x128xf32> -> vector<64x128xf32>
    %c0_198 = arith.constant 0 : index
    %c0_199 = arith.constant 0 : index
    %152 = vector.load %arg7[%c0_198, %c0_199] : memref<1x128xf32, #tpu.memory_space<vmem>>, vector<1x128xf32>
    %153 = vector.broadcast %152 : vector<1x128xf32> to vector<64x128xf32>
    %154 = arith.addf %151, %153 : vector<64x128xf32>
    %155 = vector.shape_cast %154 : vector<64x128xf32> to vector<1x8x8x128xf32>
    %c0_200 = arith.constant 0 : index
    %c0_201 = arith.constant 0 : index
    %c0_202 = arith.constant 0 : index
    %c0_203 = arith.constant 0 : index
    %156 = vector.load %arg8[%c0_200, %c0_201, %c0_202, %c0_203] : memref<1x8x8x128xf32, #tpu.memory_space<vmem>>, vector<1x8x8x128xf32>
    tpu.vector_store %arg8[%c0_200, %c0_201, %c0_202, %c0_203], %155 {strides = array<i32>} : memref<1x8x8x128xf32, #tpu.memory_space<vmem>>, vector<1x8x8x128xf32>,
    return
  }
  func.func @transform_0(%arg0: i32) -> (i32, i32, i32, i32, i32) {
    %c0_i32 = arith.constant 0 : i32
    %c0_i32_0 = arith.constant 0 : i32
    %c0_i32_1 = arith.constant 0 : i32
    %c0_i32_2 = arith.constant 0 : i32
    %c0_i32_3 = arith.constant 0 : i32
    return %arg0, %c0_i32, %c0_i32_0, %c0_i32_1, %c0_i32_2 : i32, i32, i32, i32, i32
  }
  func.func @transform_1(%arg0: i32) -> (i32, i32, i32) {
    %c0_i32 = arith.constant 0 : i32
    %c0_i32_0 = arith.constant 0 : i32
    %c0_i32_1 = arith.constant 0 : i32
    %c0_i32_2 = arith.constant 0 : i32
    return %c0_i32, %c0_i32_0, %c0_i32_1 : i32, i32, i32
  }
  func.func @transform_2(%arg0: i32) -> (i32, i32, i32) {
    %c0_i32 = arith.constant 0 : i32
    %c0_i32_0 = arith.constant 0 : i32
    %c0_i32_1 = arith.constant 0 : i32
    %c0_i32_2 = arith.constant 0 : i32
    return %c0_i32, %c0_i32_0, %c0_i32_1 : i32, i32, i32
  }
  func.func @transform_3(%arg0: i32) -> (i32, i32) {
    %c0_i32 = arith.constant 0 : i32
    %c0_i32_0 = arith.constant 0 : i32
    %c0_i32_1 = arith.constant 0 : i32
    return %c0_i32, %c0_i32_0 : i32, i32
  }
  func.func @transform_4(%arg0: i32) -> (i32, i32) {
    %c0_i32 = arith.constant 0 : i32
    %c0_i32_0 = arith.constant 0 : i32
    %c0_i32_1 = arith.constant 0 : i32
    return %c0_i32, %c0_i32_0 : i32, i32
  }
  func.func @transform_5(%arg0: i32) -> (i32, i32) {
    %c0_i32 = arith.constant 0 : i32
    %c0_i32_0 = arith.constant 0 : i32
    %c0_i32_1 = arith.constant 0 : i32
    return %c0_i32, %c0_i32_0 : i32, i32
  }
  func.func @transform_6(%arg0: i32) -> (i32, i32) {
    %c0_i32 = arith.constant 0 : i32
    %c0_i32_0 = arith.constant 0 : i32
    %c0_i32_1 = arith.constant 0 : i32
    return %c0_i32, %c0_i32_0 : i32, i32
  }
  func.func @transform_7(%arg0: i32) -> (i32, i32, i32, i32) {
    %c0_i32 = arith.constant 0 : i32
    %c0_i32_0 = arith.constant 0 : i32
    %c0_i32_1 = arith.constant 0 : i32
    %c0_i32_2 = arith.constant 0 : i32
    return %arg0, %c0_i32, %c0_i32_0, %c0_i32_1 : i32, i32, i32, i32
  }
}

</mosaic_0001>

<llo_original>
// kernel: block_forward.5
$region0: #{block_forward.5}
  #allocation0 [shape = 'u32[]', space=smem, size = 0x4, offset = 0x4, fixed_abs, tag = 'smem constant byte address 0x4 - core index']
  #allocation1 [shape = 'u32[144,128]{1,0:T(1,128)}', space=vmem, size = 0x12000, scoped, tag = 'internal scratch']
  #allocation2 [shape = 'f32[4,8,8,128]{3,2,1,0:T(8,128)}', space=vmem, size = 0x20000, scoped, tag = 'scratch operand']
  #allocation3 [shape = 'f32[8,8,2048]{2,1,0:T(8,128)}', space=vmem, size = 0x80000, scoped, tag = 'scratch operand']
  %s0 = inlined_call_operand.vmem [shape: bf16[2,8,2,8,256], index: 0, kind: input, shape index: {}]
  %s1 = inlined_call_operand.vmem [shape: f32[2,1,128], index: 1, kind: input, shape index: {}]
  %s2 = inlined_call_operand.vmem [shape: f32[2,1,128], index: 2, kind: input, shape index: {}]
  %s3 = inlined_call_operand.vmem [shape: f32[1,128], index: 3, kind: input, shape index: {}]
  %s4 = inlined_call_operand.vmem [shape: f32[1,128], index: 4, kind: input, shape index: {}]
  %s5 = inlined_call_operand.vmem [shape: bf16[2048,128], index: 5, kind: input, shape index: {}]
  %s6 = inlined_call_operand.vmem [shape: f32[1,128], index: 6, kind: input, shape index: {}]
  %s7 = inlined_call_operand.vmem [shape: f32[2,8,8,128], index: 7, kind: output, shape index: {}]
  %s8 = sld [smem:[#allocation0]]
  $region61: #{block_forward.5} parent=0
    _
  %s10 = ssub.s32 1, %s8
  %s11 = scalar_select 0, %s10, %s8
  loop: start=0, step=1, limit=4
  $region2: #{block_forward.5} parent=0 // loop_pre_header
    _
  $region3: #{block_forward.5} parent=0 // loop_header
    %s13 = sphi 0, %s17
    %p14 = scmp.ge.s32.totalorder %s13, 4
    %s23 = sphi 0, %s25
    %s26 = sphi 0, %s23
    %s27 = sphi 0, %s26
    %s43 = sphi 0, %s27
    %s47 = sphi 0, %s47
    %s49 = sphi 0, %s47
    %s50 = sphi 0, %s49
    %s64 = sphi 0, %s50
    %s68 = sphi 0, %s68
    %s70 = sphi 0, %s68
    %s71 = sphi 0, %s70
    %s85 = sphi 0, %s71
    %s89 = sphi 0, %s89
    %s91 = sphi 0, %s89
    %s92 = sphi 0, %s91
    %s106 = sphi 0, %s92
    %s110 = sphi 0, %s110
    %s112 = sphi 0, %s110
    %s113 = sphi 0, %s112
    %s127 = sphi 0, %s113
    %s131 = sphi 0, %s131
    %s133 = sphi 0, %s131
    %s134 = sphi 0, %s133
    %s148 = sphi 0, %s134
    %s152 = sphi 0, %s152
    %s154 = sphi 0, %s152
    %s155 = sphi 0, %s154
    %s169 = sphi 0, %s155
    %s175 = sphi 0, %s177
    %s178 = sphi 0, %s175
    %s179 = sphi 0, %s178
    %s195 = sphi 0, %s179
  $region4: #{block_forward.5} parent=0 // loop_header_branch
    %16 = sbr.rel (%p14) target = $region8
  $region5: #{block_forward.5} parent=0 // loop_body
    %s18 = ssub.s32 %s13, 1
    %s19 = ssub.s32 %s13, 2
    %s20 = sadd.s32 %s13, 1
    %s21 = ssub.s32 %s13, %s20
    %p22 = scmp.eq.s32.totalorder %s21, 0
    %s24 = sadd.s32 %s23, 1
    %s25 = scalar_select %p22, %s23, %s24
    %p28 = pneg %p22
    %p29 = scmp.eq.s32.totalorder %s13, 1
    %p30 = por %p28, %p29
    %p31 = scmp.ne.s32.totalorder %s23, %s26
    %p32 = scmp.eq.s32.totalorder %s13, 0
    %p33 = por %p31, %p32
    %p34 = scmp.ne.s32.totalorder %s23, %s26
    %p35 = scmp.eq.s32.totalorder %s18, 1
    %p36 = por %p34, %p35
    %p37 = scmp.ne.s32.totalorder %s26, %s27
    %p38 = scmp.eq.s32.totalorder %s18, 0
    %p39 = por %p37, %p38
    %p40 = scmp.ne.s32.totalorder %s26, %s27
    %p41 = scmp.eq.s32.totalorder %s19, 1
    %p42 = por %p40, %p41
    %p44 = scmp.ne.s32.totalorder %s27, %s43
    %p45 = scmp.eq.s32.totalorder %s19, 0
    %p46 = por %p44, %p45
    %s48 = sadd.s32 %s47, 1
    %p51 = scmp.eq.s32.totalorder %s13, 1
    %p52 = scmp.ne.s32.totalorder %s47, %s49
    %p53 = scmp.eq.s32.totalorder %s13, 0
    %p54 = por %p52, %p53
    %p55 = scmp.ne.s32.totalorder %s47, %s49
    %p56 = scmp.eq.s32.totalorder %s18, 1
    %p57 = por %p55, %p56
    %p58 = scmp.ne.s32.totalorder %s49, %s50
    %p59 = scmp.eq.s32.totalorder %s18, 0
    %p60 = por %p58, %p59
    %p61 = scmp.ne.s32.totalorder %s49, %s50
    %p62 = scmp.eq.s32.totalorder %s19, 1
    %p63 = por %p61, %p62
    %p65 = scmp.ne.s32.totalorder %s50, %s64
    %p66 = scmp.eq.s32.totalorder %s19, 0
    %p67 = por %p65, %p66
    %s69 = sadd.s32 %s68, 1
    %p72 = scmp.eq.s32.totalorder %s13, 1
    %p73 = scmp.ne.s32.totalorder %s68, %s70
    %p74 = scmp.eq.s32.totalorder %s13, 0
    %p75 = por %p73, %p74
    %p76 = scmp.ne.s32.totalorder %s68, %s70
    %p77 = scmp.eq.s32.totalorder %s18, 1
    %p78 = por %p76, %p77
    %p79 = scmp.ne.s32.totalorder %s70, %s71
    %p80 = scmp.eq.s32.totalorder %s18, 0
    %p81 = por %p79, %p80
    %p82 = scmp.ne.s32.totalorder %s70, %s71
    %p83 = scmp.eq.s32.totalorder %s19, 1
    %p84 = por %p82, %p83
    %p86 = scmp.ne.s32.totalorder %s71, %s85
    %p87 = scmp.eq.s32.totalorder %s19, 0
    %p88 = por %p86, %p87
    %s90 = sadd.s32 %s89, 1
    %p93 = scmp.eq.s32.totalorder %s13, 1
    %p94 = scmp.ne.s32.totalorder %s89, %s91
    %p95 = scmp.eq.s32.totalorder %s13, 0
    %p96 = por %p94, %p95
    %p97 = scmp.ne.s32.totalorder %s89, %s91
    %p98 = scmp.eq.s32.totalorder %s18, 1
    %p99 = por %p97, %p98
    %p100 = scmp.ne.s32.totalorder %s91, %s92
    %p101 = scmp.eq.s32.totalorder %s18, 0
    %p102 = por %p100, %p101
    %p103 = scmp.ne.s32.totalorder %s91, %s92
    %p104 = scmp.eq.s32.totalorder %s19, 1
    %p105 = por %p103, %p104
    %p107 = scmp.ne.s32.totalorder %s92, %s106
    %p108 = scmp.eq.s32.totalorder %s19, 0
    %p109 = por %p107, %p108
    %s111 = sadd.s32 %s110, 1
    %p114 = scmp.eq.s32.totalorder %s13, 1
    %p115 = scmp.ne.s32.totalorder %s110, %s112
    %p116 = scmp.eq.s32.totalorder %s13, 0
    %p117 = por %p115, %p116
    %p118 = scmp.ne.s32.totalorder %s110, %s112
    %p119 = scmp.eq.s32.totalorder %s18, 1
    %p120 = por %p118, %p119
    %p121 = scmp.ne.s32.totalorder %s112, %s113
    %p122 = scmp.eq.s32.totalorder %s18, 0
    %p123 = por %p121, %p122
    %p124 = scmp.ne.s32.totalorder %s112, %s113
    %p125 = scmp.eq.s32.totalorder %s19, 1
    %p126 = por %p124, %p125
    %p128 = scmp.ne.s32.totalorder %s113, %s127
    %p129 = scmp.eq.s32.totalorder %s19, 0
    %p130 = por %p128, %p129
    %s132 = sadd.s32 %s131, 1
    %p135 = scmp.eq.s32.totalorder %s13, 1
    %p136 = scmp.ne.s32.totalorder %s131, %s133
    %p137 = scmp.eq.s32.totalorder %s13, 0
    %p138 = por %p136, %p137
    %p139 = scmp.ne.s32.totalorder %s131, %s133
    %p140 = scmp.eq.s32.totalorder %s18, 1
    %p141 = por %p139, %p140
    %p142 = scmp.ne.s32.totalorder %s133, %s134
    %p143 = scmp.eq.s32.totalorder %s18, 0
    %p144 = por %p142, %p143
    %p145 = scmp.ne.s32.totalorder %s133, %s134
    %p146 = scmp.eq.s32.totalorder %s19, 1
    %p147 = por %p145, %p146
    %p149 = scmp.ne.s32.totalorder %s134, %s148
    %p150 = scmp.eq.s32.totalorder %s19, 0
    %p151 = por %p149, %p150
    %s153 = sadd.s32 %s152, 1
    %p156 = scmp.eq.s32.totalorder %s13, 1
    %p157 = scmp.ne.s32.totalorder %s152, %s154
    %p158 = scmp.eq.s32.totalorder %s13, 0
    %p159 = por %p157, %p158
    %p160 = scmp.ne.s32.totalorder %s152, %s154
    %p161 = scmp.eq.s32.totalorder %s18, 1
    %p162 = por %p160, %p161
    %p163 = scmp.ne.s32.totalorder %s154, %s155
    %p164 = scmp.eq.s32.totalorder %s18, 0
    %p165 = por %p163, %p164
    %p166 = scmp.ne.s32.totalorder %s154, %s155
    %p167 = scmp.eq.s32.totalorder %s19, 1
    %p168 = por %p166, %p167
    %p170 = scmp.ne.s32.totalorder %s155, %s169
    %p171 = scmp.eq.s32.totalorder %s19, 0
    %p172 = por %p170, %p171
    %s173 = ssub.s32 %s13, %s20
    %p174 = scmp.eq.s32.totalorder %s173, 0
    %s176 = sadd.s32 %s175, 1
    %s177 = scalar_select %p174, %s175, %s176
    %p180 = pneg %p174
    %p181 = scmp.eq.s32.totalorder %s13, 1
    %p182 = por %p180, %p181
    %p183 = scmp.ne.s32.totalorder %s175, %s178
    %p184 = scmp.eq.s32.totalorder %s13, 0
    %p185 = por %p183, %p184
    %p186 = scmp.ne.s32.totalorder %s175, %s178
    %p187 = scmp.eq.s32.totalorder %s18, 1
    %p188 = por %p186, %p187
    %p189 = scmp.ne.s32.totalorder %s178, %s179
    %p190 = scmp.eq.s32.totalorder %s18, 0
    %p191 = por %p189, %p190
    %p192 = scmp.ne.s32.totalorder %s178, %s179
    %p193 = scmp.eq.s32.totalorder %s19, 1
    %p194 = por %p192, %p193
    %p196 = scmp.ne.s32.totalorder %s179, %s195
    %p197 = scmp.eq.s32.totalorder %s19, 0
    %p198 = por %p196, %p197
    %p199 = scmp.le.s32.totalorder 1, %s13
    %p200 = scmp.lt.s32.totalorder %s13, 3
    %p201 = pnand %p199, %p200
    %p202 = pneg %p201
    // Predicated region
    $region9: #{block_forward.5} parent=5 // pred_check
      _
    $region10: #{block_forward.5} parent=5 // pred_check_branch
      %204 = sbr.rel (%p201) target = $region12
    $region11: #{block_forward.5} parent=5 // pred_region
      %s205 = ssub.s32 %s13, 1
      // Predicated region
      $region13: #{block_forward.5} parent=11 // pred_check
        %p206 = pneg %p60
      $region14: #{block_forward.5} parent=11 // pred_check_branch
        %208 = sbr.rel (%p206) target = $region16
      $region15: #{block_forward.5} parent=11 // pred_region
        _
      $region16: #{block_forward.5} parent=11 // pred_fallthru
        _
      // Predicated region
      $region17: #{block_forward.5} parent=11 // pred_check
        %p209 = pneg %p81
      $region18: #{block_forward.5} parent=11 // pred_check_branch
        %211 = sbr.rel (%p209) target = $region20
      $region19: #{block_forward.5} parent=11 // pred_region
        _
      $region20: #{block_forward.5} parent=11 // pred_fallthru
        _
      // Predicated region
      $region21: #{block_forward.5} parent=11 // pred_check
        %p212 = pneg %p102
      $region22: #{block_forward.5} parent=11 // pred_check_branch
        %214 = sbr.rel (%p212) target = $region24
      $region23: #{block_forward.5} parent=11 // pred_region
        _
      $region24: #{block_forward.5} parent=11 // pred_fallthru
        _
      // Predicated region
      $region25: #{block_forward.5} parent=11 // pred_check
        %p215 = pneg %p123
      $region26: #{block_forward.5} parent=11 // pred_check_branch
        %217 = sbr.rel (%p215) target = $region28
      $region27: #{block_forward.5} parent=11 // pred_region
        _
      $region28: #{block_forward.5} parent=11 // pred_fallthru
        _
      // Predicated region
      $region29: #{block_forward.5} parent=11 // pred_check
        %p218 = pneg %p144
      $region30: #{block_forward.5} parent=11 // pred_check_branch
        %220 = sbr.rel (%p218) target = $region32
      $region31: #{block_forward.5} parent=11 // pred_region
        _
      $region32: #{block_forward.5} parent=11 // pred_fallthru
        _
      // Predicated region
      $region33: #{block_forward.5} parent=11 // pred_check
        %p221 = pneg %p165
      $region34: #{block_forward.5} parent=11 // pred_check_branch
        %223 = sbr.rel (%p221) target = $region36
      $region35: #{block_forward.5} parent=11 // pred_region
        _
      $region36: #{block_forward.5} parent=11 // pred_fallthru
        _
    $region12: #{block_forward.5} parent=5 // pred_fallthru
      _
    %p224 = scmp.lt.s32.totalorder %s13, 2
    // Predicated region
    $region37: #{block_forward.5} parent=5 // pred_check
      %p225 = pneg %p224
    $region38: #{block_forward.5} parent=5 // pred_check_branch
      %227 = sbr.rel (%p225) target = $region40
    $region39: #{block_forward.5} parent=5 // pred_region
      // Predicated region
      $region41: #{block_forward.5} parent=39 // pred_check
        %p228 = pneg %p33
      $region42: #{block_forward.5} parent=39 // pred_check_branch
        %230 = sbr.rel (%p228) target = $region44
      $region43: #{block_forward.5} parent=39 // pred_region
        %p231 = scmp.lt.s32.totalorder %s13, 1
        %s232 = scalar_select %p231, %s13, 1
        %s233 = smul.addr %s232, 32
        %s234 = smul.addr %s233, 4
        %s235 = scalar_lea.vmem %s0, %s234
      $region44: #{block_forward.5} parent=39 // pred_fallthru
        _
    $region40: #{block_forward.5} parent=5 // pred_fallthru
      _
    %p236 = scmp.le.s32.totalorder 1, %s13
    %p237 = scmp.lt.s32.totalorder %s13, 3
    %p238 = pnand %p236, %p237
    %p239 = pneg %p238
    // Predicated region
    $region45: #{block_forward.5} parent=5 // pred_check
      _
    $region46: #{block_forward.5} parent=5 // pred_check_branch
      %241 = sbr.rel (%p238) target = $region48
    $region47: #{block_forward.5} parent=5 // pred_region
      %s242 = ssub.s32 %s13, 1
      %p243 = scmp.lt.s32.totalorder %s18, 1
      %s244 = scalar_select %p243, %s18, 1
      %s245 = smul.addr %s244, 32
      %s246 = smul.addr %s245, 4
      %s247 = scalar_lea.vmem %s0, %s246
      %p248 = pneg %p39
      %p249 = pneg %p36
      %p250 = pneg %p60
      %p251 = pneg %p57
      %p252 = pneg %p81
      %p253 = pneg %p78
      %p254 = pneg %p102
      %p255 = pneg %p99
      %p256 = pneg %p123
      %p257 = pneg %p120
      %p258 = pneg %p144
      %p259 = pneg %p141
      %p260 = pneg %p165
      %p261 = pneg %p162
      %p262 = pneg %p191
      %p263 = pneg %p188
      %p264 = scmp.lt.s32.totalorder %s18, 1
      %s265 = scalar_select %p264, %s18, 1
      %s266 = smul.addr %s265, 8
      %s267 = smul.addr %s266, 8
      %s268 = scalar_lea.vmem %s7, %s267
      %p269 = scmp.lt.s32.totalorder %s18, 1
      %s270 = scalar_select %p269, %s18, 1
      %s271 = smul.addr %s270, 32
      %s272 = smul.addr %s271, 4
      %s273 = scalar_lea.vmem %s0, %s272
      %p274 = scmp.lt.s32.totalorder %s18, 1
      %s275 = scalar_select %p274, %s18, 1
      %s276 = smul.addr %s275, 8
      %s277 = smul.addr %s276, 8
      %s278 = scalar_lea.vmem %s7, %s277
      %v280 = vld [vmem:[%s1] sm:$0x1]
      %v281 = vld [vmem:[%s1 + $0x1] sm:$0x1]
      %vm282 = vcmask 1040384
      %v283 = vsel %vm282, %v280, 0.0
      %v284 = vsel %vm282, %v281, 0.0
      %v285 = vadd.f32 %v283, %v284
      %v286 = vmul.f32 %v285, 0.001953125
      %v287 = vld [vmem:[%s2] sm:$0x1]
      %v288 = vld [vmem:[%s2 + $0x1] sm:$0x1]
      %v289 = vsel %vm282, %v287, 0.0
      %v290 = vsel %vm282, %v288, 0.0
      %v291 = vadd.f32 %v289, %v290
      %v292 = vmul.f32 %v291, 0.001953125
      %v293 = vmul.f32 %v286, %v286
      %v294 = vsub.f32 %v292, %v293
      %v295 = vmax.f32 %v294, 0.0
      %v296 = vld [vmem:[%s3] sm:$0x1]
      %v297 = vadd.f32 %v295, 1e-05
      %v298 = vrsqrt.pop %v297
      %v299 = vmul.f32 %v296, %v298
      %v300 = vld [vmem:[%s4] sm:$0x1]
      %v301 = vmul.f32 %v286, %v299
      %v302 = vsub.f32 %v300, %v301
      %v303 = vld [vmem:[%s273] sm:$0xff]
      %v304 = vld [vmem:[%s273 + $0x8] sm:$0xff]
      %v305 = vld [vmem:[%s273 + $0x10] sm:$0xff]
      %v306 = vld [vmem:[%s273 + $0x18] sm:$0xff]
      %v307 = vld [vmem:[%s273 + $0x20] sm:$0xff]
      %v308 = vld [vmem:[%s273 + $0x28] sm:$0xff]
      %v309 = vld [vmem:[%s273 + $0x30] sm:$0xff]
      %v310 = vld [vmem:[%s273 + $0x38] sm:$0xff]
      %v311 = vld [vmem:[%s273 + $0x40] sm:$0xff]
      %v312 = vld [vmem:[%s273 + $0x48] sm:$0xff]
      %v313 = vld [vmem:[%s273 + $0x50] sm:$0xff]
      %v314 = vld [vmem:[%s273 + $0x58] sm:$0xff]
      %v315 = vld [vmem:[%s273 + $0x60] sm:$0xff]
      %v316 = vld [vmem:[%s273 + $0x68] sm:$0xff]
      %v317 = vld [vmem:[%s273 + $0x70] sm:$0xff]
      %v318 = vld [vmem:[%s273 + $0x78] sm:$0xff]
      %v319 = vunpack.c.l.bf16 %v303
      %v320 = vunpack.c.h.bf16 %v303
      %v321 = vunpack.c.l.bf16 %v304
      %v322 = vunpack.c.h.bf16 %v304
      %v323 = vunpack.c.l.bf16 %v305
      %v324 = vunpack.c.h.bf16 %v305
      %v325 = vunpack.c.l.bf16 %v306
      %v326 = vunpack.c.h.bf16 %v306
      %v327 = vunpack.c.l.bf16 %v307
      %v328 = vunpack.c.h.bf16 %v307
      %v329 = vunpack.c.l.bf16 %v308
      %v330 = vunpack.c.h.bf16 %v308
      %v331 = vunpack.c.l.bf16 %v309
      %v332 = vunpack.c.h.bf16 %v309
      %v333 = vunpack.c.l.bf16 %v310
      %v334 = vunpack.c.h.bf16 %v310
      %v335 = vunpack.c.l.bf16 %v311
      %v336 = vunpack.c.h.bf16 %v311
      %v337 = vunpack.c.l.bf16 %v312
      %v338 = vunpack.c.h.bf16 %v312
      %v339 = vunpack.c.l.bf16 %v313
      %v340 = vunpack.c.h.bf16 %v313
      %v341 = vunpack.c.l.bf16 %v314
      %v342 = vunpack.c.h.bf16 %v314
      %v343 = vunpack.c.l.bf16 %v315
      %v344 = vunpack.c.h.bf16 %v315
      %v345 = vunpack.c.l.bf16 %v316
      %v346 = vunpack.c.h.bf16 %v316
      %v347 = vunpack.c.l.bf16 %v317
      %v348 = vunpack.c.h.bf16 %v317
      %v349 = vunpack.c.l.bf16 %v318
      %v350 = vunpack.c.h.bf16 %v318
      %v352 = vlaneseq
      %v353 = vshrl.u32 %v352, 7
      %v354 = vsub.s32 0, %v353
      %v355 = vrot.slane %v299, %v354
      %v357 = vmul.f32 %v319, %v355
      %v358 = vmul.f32 %v323, %v355
      %v359 = vmul.f32 %v327, %v355
      %v360 = vmul.f32 %v331, %v355
      %v361 = vmul.f32 %v335, %v355
      %v362 = vmul.f32 %v339, %v355
      %v363 = vmul.f32 %v343, %v355
      %v364 = vmul.f32 %v347, %v355
      %v366 = vlaneseq
      %v367 = vshrl.u32 %v366, 7
      %v368 = vsub.s32 0, %v367
      %v369 = vrot.slane %v302, %v368
      %v371 = vadd.f32 %v357, %v369
      %v372 = vadd.f32 %v358, %v369
      %v373 = vadd.f32 %v359, %v369
      %v374 = vadd.f32 %v360, %v369
      %v375 = vadd.f32 %v361, %v369
      %v376 = vadd.f32 %v362, %v369
      %v377 = vadd.f32 %v363, %v369
      %v378 = vadd.f32 %v364, %v369
      %379 = vst [vmem:[#allocation2] sm:$0xff] %v371
      %380 = vst [vmem:[#allocation2 + $0x8] sm:$0xff] %v372
      %381 = vst [vmem:[#allocation2 + $0x10] sm:$0xff] %v373
      %382 = vst [vmem:[#allocation2 + $0x18] sm:$0xff] %v374
      %383 = vst [vmem:[#allocation2 + $0x20] sm:$0xff] %v375
      %384 = vst [vmem:[#allocation2 + $0x28] sm:$0xff] %v376
      %385 = vst [vmem:[#allocation2 + $0x30] sm:$0xff] %v377
      %386 = vst [vmem:[#allocation2 + $0x38] sm:$0xff] %v378
      %v387 = vmul.f32 %v320, %v355
      %v388 = vmul.f32 %v324, %v355
      %v389 = vmul.f32 %v328, %v355
      %v390 = vmul.f32 %v332, %v355
      %v391 = vmul.f32 %v336, %v355
      %v392 = vmul.f32 %v340, %v355
      %v393 = vmul.f32 %v344, %v355
      %v394 = vmul.f32 %v348, %v355
      %v395 = vadd.f32 %v387, %v369
      %v396 = vadd.f32 %v388, %v369
      %v397 = vadd.f32 %v389, %v369
      %v398 = vadd.f32 %v390, %v369
      %v399 = vadd.f32 %v391, %v369
      %v400 = vadd.f32 %v392, %v369
      %v401 = vadd.f32 %v393, %v369
      %v402 = vadd.f32 %v394, %v369
      %s403 = scalar_lea.vmem [#allocation2], 64
      %404 = vst [vmem:[%s403] sm:$0xff] %v395
      %405 = vst [vmem:[%s403 + $0x8] sm:$0xff] %v396
      %406 = vst [vmem:[%s403 + $0x10] sm:$0xff] %v397
      %407 = vst [vmem:[%s403 + $0x18] sm:$0xff] %v398
      %408 = vst [vmem:[%s403 + $0x20] sm:$0xff] %v399
      %409 = vst [vmem:[%s403 + $0x28] sm:$0xff] %v400
      %410 = vst [vmem:[%s403 + $0x30] sm:$0xff] %v401
      %411 = vst [vmem:[%s403 + $0x38] sm:$0xff] %v402
      %v412 = vmul.f32 %v321, %v355
      %v413 = vmul.f32 %v325, %v355
      %v414 = vmul.f32 %v329, %v355
      %v415 = vmul.f32 %v333, %v355
      %v416 = vmul.f32 %v337, %v355
      %v417 = vmul.f32 %v341, %v355
      %v418 = vmul.f32 %v345, %v355
      %v419 = vmul.f32 %v349, %v355
      %v420 = vadd.f32 %v412, %v369
      %v421 = vadd.f32 %v413, %v369
      %v422 = vadd.f32 %v414, %v369
      %v423 = vadd.f32 %v415, %v369
      %v424 = vadd.f32 %v416, %v369
      %v425 = vadd.f32 %v417, %v369
      %v426 = vadd.f32 %v418, %v369
      %v427 = vadd.f32 %v419, %v369
      %s428 = scalar_lea.vmem [#allocation2], 128
      %429 = vst [vmem:[%s428] sm:$0xff] %v420
      %430 = vst [vmem:[%s428 + $0x8] sm:$0xff] %v421
      %431 = vst [vmem:[%s428 + $0x10] sm:$0xff] %v422
      %432 = vst [vmem:[%s428 + $0x18] sm:$0xff] %v423
      %433 = vst [vmem:[%s428 + $0x20] sm:$0xff] %v424
      %434 = vst [vmem:[%s428 + $0x28] sm:$0xff] %v425
      %435 = vst [vmem:[%s428 + $0x30] sm:$0xff] %v426
      %436 = vst [vmem:[%s428 + $0x38] sm:$0xff] %v427
      %v437 = vmul.f32 %v322, %v355
      %v438 = vmul.f32 %v326, %v355
      %v439 = vmul.f32 %v330, %v355
      %v440 = vmul.f32 %v334, %v355
      %v441 = vmul.f32 %v338, %v355
      %v442 = vmul.f32 %v342, %v355
      %v443 = vmul.f32 %v346, %v355
      %v444 = vmul.f32 %v350, %v355
      %v445 = vadd.f32 %v437, %v369
      %v446 = vadd.f32 %v438, %v369
      %v447 = vadd.f32 %v439, %v369
      %v448 = vadd.f32 %v440, %v369
      %v449 = vadd.f32 %v441, %v369
      %v450 = vadd.f32 %v442, %v369
      %v451 = vadd.f32 %v443, %v369
      %v452 = vadd.f32 %v444, %v369
      %s453 = scalar_lea.vmem [#allocation2], 192
      %454 = vst [vmem:[%s453] sm:$0xff] %v445
      %455 = vst [vmem:[%s453 + $0x8] sm:$0xff] %v446
      %456 = vst [vmem:[%s453 + $0x10] sm:$0xff] %v447
      %457 = vst [vmem:[%s453 + $0x18] sm:$0xff] %v448
      %458 = vst [vmem:[%s453 + $0x20] sm:$0xff] %v449
      %459 = vst [vmem:[%s453 + $0x28] sm:$0xff] %v450
      %460 = vst [vmem:[%s453 + $0x30] sm:$0xff] %v451
      %461 = vst [vmem:[%s453 + $0x38] sm:$0xff] %v452
      %462 = vst [vmem:[#allocation3] sm:$0xff] 0.0
      %463 = vst [vmem:[#allocation3] sm:$0x1] 0.0
      %464 = vst [vmem:[#allocation3 + $0x80] sm:$0x1] 0.0
      %465 = vst [vmem:[#allocation3 + $0x100] sm:$0x1] 0.0
      %466 = vst [vmem:[#allocation3 + $0x180] sm:$0x1] 0.0
      %467 = vst [vmem:[#allocation3 + $0x200] sm:$0x1] 0.0
      %468 = vst [vmem:[#allocation3 + $0x280] sm:$0x1] 0.0
      %469 = vst [vmem:[#allocation3 + $0x300] sm:$0x1] 0.0
      %470 = vst [vmem:[#allocation3 + $0x380] sm:$0x1] 0.0
      %v471 = vld [vmem:[%s453] sm:$0x7f]
      %v472 = vld [vmem:[%s453 + $0x8] sm:$0x7f]
      %v473 = vld [vmem:[%s453 + $0x10] sm:$0x7f]
      %v474 = vld [vmem:[%s453 + $0x18] sm:$0x7f]
      %v475 = vld [vmem:[%s453 + $0x20] sm:$0x7f]
      %v476 = vld [vmem:[%s453 + $0x28] sm:$0x7f]
      %v477 = vld [vmem:[%s453 + $0x30] sm:$0x7f]
      %v485 = vrot.slane %v471, 7
      %v486 = vrot.slane %v472, 7
      %v487 = vrot.slane %v473, 7
      %v488 = vrot.slane %v474, 7
      %v489 = vrot.slane %v475, 7
      %v490 = vrot.slane %v476, 7
      %v491 = vrot.slane %v477, 7
      %s499 = scalar_lea.vmem [#allocation3], 128
      %500 = vst [vmem:[%s499] sm:$0xfe] %v485
      %501 = vst [vmem:[%s499 + $0x80] sm:$0xfe] %v486
      %502 = vst [vmem:[%s499 + $0x100] sm:$0xfe] %v487
      %503 = vst [vmem:[%s499 + $0x180] sm:$0xfe] %v488
      %504 = vst [vmem:[%s499 + $0x200] sm:$0xfe] %v489
      %505 = vst [vmem:[%s499 + $0x280] sm:$0xfe] %v490
      %506 = vst [vmem:[%s499 + $0x300] sm:$0xfe] %v491
      %507 = vst [vmem:[#allocation3 + $0x8] sm:$0xff] 0.0
      %v508 = vld [vmem:[%s428] sm:$0xff]
      %v509 = vld [vmem:[%s428 + $0x8] sm:$0xff]
      %v510 = vld [vmem:[%s428 + $0x10] sm:$0xff]
      %v511 = vld [vmem:[%s428 + $0x18] sm:$0xff]
      %v512 = vld [vmem:[%s428 + $0x20] sm:$0xff]
      %v513 = vld [vmem:[%s428 + $0x28] sm:$0xff]
      %v514 = vld [vmem:[%s428 + $0x30] sm:$0xff]
      %515 = vst [vmem:[%s499 + $0x8] sm:$0xff] %v508
      %516 = vst [vmem:[%s499 + $0x88] sm:$0xff] %v509
      %517 = vst [vmem:[%s499 + $0x108] sm:$0xff] %v510
      %518 = vst [vmem:[%s499 + $0x188] sm:$0xff] %v511
      %519 = vst [vmem:[%s499 + $0x208] sm:$0xff] %v512
      %520 = vst [vmem:[%s499 + $0x288] sm:$0xff] %v513
      %521 = vst [vmem:[%s499 + $0x308] sm:$0xff] %v514
      %522 = vst [vmem:[#allocation3 + $0x10] sm:$0xff] 0.0
      %v523 = vld [vmem:[%s453] sm:$0xff]
      %v524 = vld [vmem:[%s453 + $0x8] sm:$0xff]
      %v525 = vld [vmem:[%s453 + $0x10] sm:$0xff]
      %v526 = vld [vmem:[%s453 + $0x18] sm:$0xff]
      %v527 = vld [vmem:[%s453 + $0x20] sm:$0xff]
      %v528 = vld [vmem:[%s453 + $0x28] sm:$0xff]
      %v529 = vld [vmem:[%s453 + $0x30] sm:$0xff]
      %530 = vst [vmem:[%s499 + $0x10] sm:$0xff] %v523
      %531 = vst [vmem:[%s499 + $0x90] sm:$0xff] %v524
      %532 = vst [vmem:[%s499 + $0x110] sm:$0xff] %v525
      %533 = vst [vmem:[%s499 + $0x190] sm:$0xff] %v526
      %534 = vst [vmem:[%s499 + $0x210] sm:$0xff] %v527
      %535 = vst [vmem:[%s499 + $0x290] sm:$0xff] %v528
      %536 = vst [vmem:[%s499 + $0x310] sm:$0xff] %v529
      %537 = vst [vmem:[#allocation3 + $0x18] sm:$0xff] 0.0
      %538 = vst [vmem:[#allocation3 + $0x1f] sm:$0x1] 0.0
      %539 = vst [vmem:[#allocation3 + $0x9f] sm:$0x1] 0.0
      %540 = vst [vmem:[#allocation3 + $0x11f] sm:$0x1] 0.0
      %541 = vst [vmem:[#allocation3 + $0x19f] sm:$0x1] 0.0
      %542 = vst [vmem:[#allocation3 + $0x21f] sm:$0x1] 0.0
      %543 = vst [vmem:[#allocation3 + $0x29f] sm:$0x1] 0.0
      %544 = vst [vmem:[#allocation3 + $0x31f] sm:$0x1] 0.0
      %545 = vst [vmem:[#allocation3 + $0x39f] sm:$0x1] 0.0
      %v546 = vld [vmem:[%s428 + $0x1] sm:$0x7f]
      %v547 = vld [vmem:[%s428 + $0x9] sm:$0x7f]
      %v548 = vld [vmem:[%s428 + $0x11] sm:$0x7f]
      %v549 = vld [vmem:[%s428 + $0x19] sm:$0x7f]
      %v550 = vld [vmem:[%s428 + $0x21] sm:$0x7f]
      %v551 = vld [vmem:[%s428 + $0x29] sm:$0x7f]
      %v552 = vld [vmem:[%s428 + $0x31] sm:$0x7f]
      %553 = vst [vmem:[%s499 + $0x18] sm:$0x7f] %v546
      %554 = vst [vmem:[%s499 + $0x98] sm:$0x7f] %v547
      %555 = vst [vmem:[%s499 + $0x118] sm:$0x7f] %v548
      %556 = vst [vmem:[%s499 + $0x198] sm:$0x7f] %v549
      %557 = vst [vmem:[%s499 + $0x218] sm:$0x7f] %v550
      %558 = vst [vmem:[%s499 + $0x298] sm:$0x7f] %v551
      %559 = vst [vmem:[%s499 + $0x318] sm:$0x7f] %v552
      %560 = vst [vmem:[#allocation3 + $0x20] sm:$0x1] 0.0
      %561 = vst [vmem:[#allocation3 + $0xa0] sm:$0x1] 0.0
      %562 = vst [vmem:[#allocation3 + $0x120] sm:$0x1] 0.0
      %563 = vst [vmem:[#allocation3 + $0x1a0] sm:$0x1] 0.0
      %564 = vst [vmem:[#allocation3 + $0x220] sm:$0x1] 0.0
      %565 = vst [vmem:[#allocation3 + $0x2a0] sm:$0x1] 0.0
      %566 = vst [vmem:[#allocation3 + $0x320] sm:$0x1] 0.0
      %567 = vst [vmem:[#allocation3 + $0x3a0] sm:$0x1] 0.0
      %v568 = vld [vmem:[%s403] sm:$0x7f]
      %v569 = vld [vmem:[%s403 + $0x8] sm:$0x7f]
      %v570 = vld [vmem:[%s403 + $0x10] sm:$0x7f]
      %v571 = vld [vmem:[%s403 + $0x18] sm:$0x7f]
      %v572 = vld [vmem:[%s403 + $0x20] sm:$0x7f]
      %v573 = vld [vmem:[%s403 + $0x28] sm:$0x7f]
      %v574 = vld [vmem:[%s403 + $0x30] sm:$0x7f]
      %v575 = vld [vmem:[%s403 + $0x38] sm:$0x7f]
      %v584 = vrot.slane %v568, 7
      %v585 = vrot.slane %v569, 7
      %v586 = vrot.slane %v570, 7
      %v587 = vrot.slane %v571, 7
      %v588 = vrot.slane %v572, 7
      %v589 = vrot.slane %v573, 7
      %v590 = vrot.slane %v574, 7
      %v591 = vrot.slane %v575, 7
      %600 = vst [vmem:[#allocation3 + $0x20] sm:$0xfe] %v584
      %601 = vst [vmem:[#allocation3 + $0xa0] sm:$0xfe] %v585
      %602 = vst [vmem:[#allocation3 + $0x120] sm:$0xfe] %v586
      %603 = vst [vmem:[#allocation3 + $0x1a0] sm:$0xfe] %v587
      %604 = vst [vmem:[#allocation3 + $0x220] sm:$0xfe] %v588
      %605 = vst [vmem:[#allocation3 + $0x2a0] sm:$0xfe] %v589
      %606 = vst [vmem:[#allocation3 + $0x320] sm:$0xfe] %v590
      %607 = vst [vmem:[#allocation3 + $0x3a0] sm:$0xfe] %v591
      %v608 = vld [vmem:[#allocation2] sm:$0xff]
      %v609 = vld [vmem:[#allocation2 + $0x8] sm:$0xff]
      %v610 = vld [vmem:[#allocation2 + $0x10] sm:$0xff]
      %v611 = vld [vmem:[#allocation2 + $0x18] sm:$0xff]
      %v612 = vld [vmem:[#allocation2 + $0x20] sm:$0xff]
      %v613 = vld [vmem:[#allocation2 + $0x28] sm:$0xff]
      %v614 = vld [vmem:[#allocation2 + $0x30] sm:$0xff]
      %v615 = vld [vmem:[#allocation2 + $0x38] sm:$0xff]
      %616 = vst [vmem:[#allocation3 + $0x28] sm:$0xff] %v608
      %617 = vst [vmem:[#allocation3 + $0xa8] sm:$0xff] %v609
      %618 = vst [vmem:[#allocation3 + $0x128] sm:$0xff] %v610
      %619 = vst [vmem:[#allocation3 + $0x1a8] sm:$0xff] %v611
      %620 = vst [vmem:[#allocation3 + $0x228] sm:$0xff] %v612
      %621 = vst [vmem:[#allocation3 + $0x2a8] sm:$0xff] %v613
      %622 = vst [vmem:[#allocation3 + $0x328] sm:$0xff] %v614
      %623 = vst [vmem:[#allocation3 + $0x3a8] sm:$0xff] %v615
      %v624 = vld [vmem:[%s403] sm:$0xff]
      %v625 = vld [vmem:[%s403 + $0x8] sm:$0xff]
      %v626 = vld [vmem:[%s403 + $0x10] sm:$0xff]
      %v627 = vld [vmem:[%s403 + $0x18] sm:$0xff]
      %v628 = vld [vmem:[%s403 + $0x20] sm:$0xff]
      %v629 = vld [vmem:[%s403 + $0x28] sm:$0xff]
      %v630 = vld [vmem:[%s403 + $0x30] sm:$0xff]
      %v631 = vld [vmem:[%s403 + $0x38] sm:$0xff]
      %632 = vst [vmem:[#allocation3 + $0x30] sm:$0xff] %v624
      %633 = vst [vmem:[#allocation3 + $0xb0] sm:$0xff] %v625
      %634 = vst [vmem:[#allocation3 + $0x130] sm:$0xff] %v626
      %635 = vst [vmem:[#allocation3 + $0x1b0] sm:$0xff] %v627
      %636 = vst [vmem:[#allocation3 + $0x230] sm:$0xff] %v628
      %637 = vst [vmem:[#allocation3 + $0x2b0] sm:$0xff] %v629
      %638 = vst [vmem:[#allocation3 + $0x330] sm:$0xff] %v630
      %639 = vst [vmem:[#allocation3 + $0x3b0] sm:$0xff] %v631
      %640 = vst [vmem:[#allocation3 + $0x3f] sm:$0x1] 0.0
      %641 = vst [vmem:[#allocation3 + $0xbf] sm:$0x1] 0.0
      %642 = vst [vmem:[#allocation3 + $0x13f] sm:$0x1] 0.0
      %643 = vst [vmem:[#allocation3 + $0x1bf] sm:$0x1] 0.0
      %644 = vst [vmem:[#allocation3 + $0x23f] sm:$0x1] 0.0
      %645 = vst [vmem:[#allocation3 + $0x2bf] sm:$0x1] 0.0
      %646 = vst [vmem:[#allocation3 + $0x33f] sm:$0x1] 0.0
      %647 = vst [vmem:[#allocation3 + $0x3bf] sm:$0x1] 0.0
      %v648 = vld [vmem:[#allocation2 + $0x1] sm:$0x7f]
      %v649 = vld [vmem:[#allocation2 + $0x9] sm:$0x7f]
      %v650 = vld [vmem:[#allocation2 + $0x11] sm:$0x7f]
      %v651 = vld [vmem:[#allocation2 + $0x19] sm:$0x7f]
      %v652 = vld [vmem:[#allocation2 + $0x21] sm:$0x7f]
      %v653 = vld [vmem:[#allocation2 + $0x29] sm:$0x7f]
      %v654 = vld [vmem:[#allocation2 + $0x31] sm:$0x7f]
      %v655 = vld [vmem:[#allocation2 + $0x39] sm:$0x7f]
      %656 = vst [vmem:[#allocation3 + $0x38] sm:$0x7f] %v648
      %657 = vst [vmem:[#allocation3 + $0xb8] sm:$0x7f] %v649
      %658 = vst [vmem:[#allocation3 + $0x138] sm:$0x7f] %v650
      %659 = vst [vmem:[#allocation3 + $0x1b8] sm:$0x7f] %v651
      %660 = vst [vmem:[#allocation3 + $0x238] sm:$0x7f] %v652
      %661 = vst [vmem:[#allocation3 + $0x2b8] sm:$0x7f] %v653
      %662 = vst [vmem:[#allocation3 + $0x338] sm:$0x7f] %v654
      %663 = vst [vmem:[#allocation3 + $0x3b8] sm:$0x7f] %v655
      %664 = vst [vmem:[#allocation3 + $0x40] sm:$0x1] 0.0
      %665 = vst [vmem:[#allocation3 + $0xc0] sm:$0x1] 0.0
      %666 = vst [vmem:[#allocation3 + $0x140] sm:$0x1] 0.0
      %667 = vst [vmem:[#allocation3 + $0x1c0] sm:$0x1] 0.0
      %668 = vst [vmem:[#allocation3 + $0x240] sm:$0x1] 0.0
      %669 = vst [vmem:[#allocation3 + $0x2c0] sm:$0x1] 0.0
      %670 = vst [vmem:[#allocation3 + $0x340] sm:$0x1] 0.0
      %671 = vst [vmem:[#allocation3 + $0x3c0] sm:$0x1] 0.0
      %v672 = vld [vmem:[%s453] sm:$0x7f]
      %v673 = vld [vmem:[%s453 + $0x8] sm:$0x7f]
      %v674 = vld [vmem:[%s453 + $0x10] sm:$0x7f]
      %v675 = vld [vmem:[%s453 + $0x18] sm:$0x7f]
      %v676 = vld [vmem:[%s453 + $0x20] sm:$0x7f]
      %v677 = vld [vmem:[%s453 + $0x28] sm:$0x7f]
      %v678 = vld [vmem:[%s453 + $0x30] sm:$0x7f]
      %v679 = vld [vmem:[%s453 + $0x38] sm:$0x7f]
      %v688 = vrot.slane %v672, 7
      %v689 = vrot.slane %v673, 7
      %v690 = vrot.slane %v674, 7
      %v691 = vrot.slane %v675, 7
      %v692 = vrot.slane %v676, 7
      %v693 = vrot.slane %v677, 7
      %v694 = vrot.slane %v678, 7
      %v695 = vrot.slane %v679, 7
      %704 = vst [vmem:[#allocation3 + $0x40] sm:$0xfe] %v688
      %705 = vst [vmem:[#allocation3 + $0xc0] sm:$0xfe] %v689
      %706 = vst [vmem:[#allocation3 + $0x140] sm:$0xfe] %v690
      %707 = vst [vmem:[#allocation3 + $0x1c0] sm:$0xfe] %v691
      %708 = vst [vmem:[#allocation3 + $0x240] sm:$0xfe] %v692
      %709 = vst [vmem:[#allocation3 + $0x2c0] sm:$0xfe] %v693
      %710 = vst [vmem:[#allocation3 + $0x340] sm:$0xfe] %v694
      %711 = vst [vmem:[#allocation3 + $0x3c0] sm:$0xfe] %v695
      %v712 = vld [vmem:[%s428] sm:$0xff]
      %v713 = vld [vmem:[%s428 + $0x8] sm:$0xff]
      %v714 = vld [vmem:[%s428 + $0x10] sm:$0xff]
      %v715 = vld [vmem:[%s428 + $0x18] sm:$0xff]
      %v716 = vld [vmem:[%s428 + $0x20] sm:$0xff]
      %v717 = vld [vmem:[%s428 + $0x28] sm:$0xff]
      %v718 = vld [vmem:[%s428 + $0x30] sm:$0xff]
      %v719 = vld [vmem:[%s428 + $0x38] sm:$0xff]
      %720 = vst [vmem:[#allocation3 + $0x48] sm:$0xff] %v712
      %721 = vst [vmem:[#allocation3 + $0xc8] sm:$0xff] %v713
      %722 = vst [vmem:[#allocation3 + $0x148] sm:$0xff] %v714
      %723 = vst [vmem:[#allocation3 + $0x1c8] sm:$0xff] %v715
      %724 = vst [vmem:[#allocation3 + $0x248] sm:$0xff] %v716
      %725 = vst [vmem:[#allocation3 + $0x2c8] sm:$0xff] %v717
      %726 = vst [vmem:[#allocation3 + $0x348] sm:$0xff] %v718
      %727 = vst [vmem:[#allocation3 + $0x3c8] sm:$0xff] %v719
      %v728 = vld [vmem:[%s453] sm:$0xff]
      %v729 = vld [vmem:[%s453 + $0x8] sm:$0xff]
      %v730 = vld [vmem:[%s453 + $0x10] sm:$0xff]
      %v731 = vld [vmem:[%s453 + $0x18] sm:$0xff]
      %v732 = vld [vmem:[%s453 + $0x20] sm:$0xff]
      %v733 = vld [vmem:[%s453 + $0x28] sm:$0xff]
      %v734 = vld [vmem:[%s453 + $0x30] sm:$0xff]
      %v735 = vld [vmem:[%s453 + $0x38] sm:$0xff]
      %736 = vst [vmem:[#allocation3 + $0x50] sm:$0xff] %v728
      %737 = vst [vmem:[#allocation3 + $0xd0] sm:$0xff] %v729
      %738 = vst [vmem:[#allocation3 + $0x150] sm:$0xff] %v730
      %739 = vst [vmem:[#allocation3 + $0x1d0] sm:$0xff] %v731
      %740 = vst [vmem:[#allocation3 + $0x250] sm:$0xff] %v732
      %741 = vst [vmem:[#allocation3 + $0x2d0] sm:$0xff] %v733
      %742 = vst [vmem:[#allocation3 + $0x350] sm:$0xff] %v734
      %743 = vst [vmem:[#allocation3 + $0x3d0] sm:$0xff] %v735
      %744 = vst [vmem:[#allocation3 + $0x5f] sm:$0x1] 0.0
      %745 = vst [vmem:[#allocation3 + $0xdf] sm:$0x1] 0.0
      %746 = vst [vmem:[#allocation3 + $0x15f] sm:$0x1] 0.0
      %747 = vst [vmem:[#allocation3 + $0x1df] sm:$0x1] 0.0
      %748 = vst [vmem:[#allocation3 + $0x25f] sm:$0x1] 0.0
      %749 = vst [vmem:[#allocation3 + $0x2df] sm:$0x1] 0.0
      %750 = vst [vmem:[#allocation3 + $0x35f] sm:$0x1] 0.0
      %751 = vst [vmem:[#allocation3 + $0x3df] sm:$0x1] 0.0
      %v752 = vld [vmem:[%s428 + $0x1] sm:$0x7f]
      %v753 = vld [vmem:[%s428 + $0x9] sm:$0x7f]
      %v754 = vld [vmem:[%s428 + $0x11] sm:$0x7f]
      %v755 = vld [vmem:[%s428 + $0x19] sm:$0x7f]
      %v756 = vld [vmem:[%s428 + $0x21] sm:$0x7f]
      %v757 = vld [vmem:[%s428 + $0x29] sm:$0x7f]
      %v758 = vld [vmem:[%s428 + $0x31] sm:$0x7f]
      %v759 = vld [vmem:[%s428 + $0x39] sm:$0x7f]
      %760 = vst [vmem:[#allocation3 + $0x58] sm:$0x7f] %v752
      %761 = vst [vmem:[#allocation3 + $0xd8] sm:$0x7f] %v753
      %762 = vst [vmem:[#allocation3 + $0x158] sm:$0x7f] %v754
      %763 = vst [vmem:[#allocation3 + $0x1d8] sm:$0x7f] %v755
      %764 = vst [vmem:[#allocation3 + $0x258] sm:$0x7f] %v756
      %765 = vst [vmem:[#allocation3 + $0x2d8] sm:$0x7f] %v757
      %766 = vst [vmem:[#allocation3 + $0x358] sm:$0x7f] %v758
      %767 = vst [vmem:[#allocation3 + $0x3d8] sm:$0x7f] %v759
      %s768 = scalar_lea.vmem [#allocation3], 896
      %769 = vst [vmem:[%s768 + $0x60] sm:$0xff] 0.0
      %770 = vst [vmem:[#allocation3 + $0x60] sm:$0x1] 0.0
      %771 = vst [vmem:[#allocation3 + $0xe0] sm:$0x1] 0.0
      %772 = vst [vmem:[#allocation3 + $0x160] sm:$0x1] 0.0
      %773 = vst [vmem:[#allocation3 + $0x1e0] sm:$0x1] 0.0
      %774 = vst [vmem:[#allocation3 + $0x260] sm:$0x1] 0.0
      %775 = vst [vmem:[#allocation3 + $0x2e0] sm:$0x1] 0.0
      %776 = vst [vmem:[#allocation3 + $0x360] sm:$0x1] 0.0
      %777 = vst [vmem:[#allocation3 + $0x3e0] sm:$0x1] 0.0
      %s778 = scalar_lea.vmem [#allocation2], 72
      %v779 = vld [vmem:[%s778] sm:$0x7f]
      %v780 = vld [vmem:[%s778 + $0x8] sm:$0x7f]
      %v781 = vld [vmem:[%s778 + $0x10] sm:$0x7f]
      %v782 = vld [vmem:[%s778 + $0x18] sm:$0x7f]
      %v783 = vld [vmem:[%s778 + $0x20] sm:$0x7f]
      %v784 = vld [vmem:[%s778 + $0x28] sm:$0x7f]
      %v785 = vld [vmem:[%s778 + $0x30] sm:$0x7f]
      %v793 = vrot.slane %v779, 7
      %v794 = vrot.slane %v780, 7
      %v795 = vrot.slane %v781, 7
      %v796 = vrot.slane %v782, 7
      %v797 = vrot.slane %v783, 7
      %v798 = vrot.slane %v784, 7
      %v799 = vrot.slane %v785, 7
      %807 = vst [vmem:[#allocation3 + $0x60] sm:$0xfe] %v793
      %808 = vst [vmem:[#allocation3 + $0xe0] sm:$0xfe] %v794
      %809 = vst [vmem:[#allocation3 + $0x160] sm:$0xfe] %v795
      %810 = vst [vmem:[#allocation3 + $0x1e0] sm:$0xfe] %v796
      %811 = vst [vmem:[#allocation3 + $0x260] sm:$0xfe] %v797
      %812 = vst [vmem:[#allocation3 + $0x2e0] sm:$0xfe] %v798
      %813 = vst [vmem:[#allocation3 + $0x360] sm:$0xfe] %v799
      %814 = vst [vmem:[%s768 + $0x68] sm:$0xff] 0.0
      %s815 = scalar_lea.vmem [#allocation2], 8
      %v816 = vld [vmem:[%s815] sm:$0xff]
      %v817 = vld [vmem:[%s815 + $0x8] sm:$0xff]
      %v818 = vld [vmem:[%s815 + $0x10] sm:$0xff]
      %v819 = vld [vmem:[%s815 + $0x18] sm:$0xff]
      %v820 = vld [vmem:[%s815 + $0x20] sm:$0xff]
      %v821 = vld [vmem:[%s815 + $0x28] sm:$0xff]
      %v822 = vld [vmem:[%s815 + $0x30] sm:$0xff]
      %823 = vst [vmem:[#allocation3 + $0x68] sm:$0xff] %v816
      %824 = vst [vmem:[#allocation3 + $0xe8] sm:$0xff] %v817
      %825 = vst [vmem:[#allocation3 + $0x168] sm:$0xff] %v818
      %826 = vst [vmem:[#allocation3 + $0x1e8] sm:$0xff] %v819
      %827 = vst [vmem:[#allocation3 + $0x268] sm:$0xff] %v820
      %828 = vst [vmem:[#allocation3 + $0x2e8] sm:$0xff] %v821
      %829 = vst [vmem:[#allocation3 + $0x368] sm:$0xff] %v822
      %830 = vst [vmem:[%s768 + $0x70] sm:$0xff] 0.0
      %v831 = vld [vmem:[%s778] sm:$0xff]
      %v832 = vld [vmem:[%s778 + $0x8] sm:$0xff]
      %v833 = vld [vmem:[%s778 + $0x10] sm:$0xff]
      %v834 = vld [vmem:[%s778 + $0x18] sm:$0xff]
      %v835 = vld [vmem:[%s778 + $0x20] sm:$0xff]
      %v836 = vld [vmem:[%s778 + $0x28] sm:$0xff]
      %v837 = vld [vmem:[%s778 + $0x30] sm:$0xff]
      %838 = vst [vmem:[#allocation3 + $0x70] sm:$0xff] %v831
      %839 = vst [vmem:[#allocation3 + $0xf0] sm:$0xff] %v832
      %840 = vst [vmem:[#allocation3 + $0x170] sm:$0xff] %v833
      %841 = vst [vmem:[#allocation3 + $0x1f0] sm:$0xff] %v834
      %842 = vst [vmem:[#allocation3 + $0x270] sm:$0xff] %v835
      %843 = vst [vmem:[#allocation3 + $0x2f0] sm:$0xff] %v836
      %844 = vst [vmem:[#allocation3 + $0x370] sm:$0xff] %v837
      %845 = vst [vmem:[%s768 + $0x78] sm:$0xff] 0.0
      %846 = vst [vmem:[#allocation3 + $0x7f] sm:$0x1] 0.0
      %847 = vst [vmem:[#allocation3 + $0xff] sm:$0x1] 0.0
      %848 = vst [vmem:[#allocation3 + $0x17f] sm:$0x1] 0.0
      %849 = vst [vmem:[#allocation3 + $0x1ff] sm:$0x1] 0.0
      %850 = vst [vmem:[#allocation3 + $0x27f] sm:$0x1] 0.0
      %851 = vst [vmem:[#allocation3 + $0x2ff] sm:$0x1] 0.0
      %852 = vst [vmem:[#allocation3 + $0x37f] sm:$0x1] 0.0
      %853 = vst [vmem:[#allocation3 + $0x3ff] sm:$0x1] 0.0
      %v854 = vld [vmem:[%s815 + $0x1] sm:$0x7f]
      %v855 = vld [vmem:[%s815 + $0x9] sm:$0x7f]
      %v856 = vld [vmem:[%s815 + $0x11] sm:$0x7f]
      %v857 = vld [vmem:[%s815 + $0x19] sm:$0x7f]
      %v858 = vld [vmem:[%s815 + $0x21] sm:$0x7f]
      %v859 = vld [vmem:[%s815 + $0x29] sm:$0x7f]
      %v860 = vld [vmem:[%s815 + $0x31] sm:$0x7f]
      %861 = vst [vmem:[#allocation3 + $0x78] sm:$0x7f] %v854
      %862 = vst [vmem:[#allocation3 + $0xf8] sm:$0x7f] %v855
      %863 = vst [vmem:[#allocation3 + $0x178] sm:$0x7f] %v856
      %864 = vst [vmem:[#allocation3 + $0x1f8] sm:$0x7f] %v857
      %865 = vst [vmem:[#allocation3 + $0x278] sm:$0x7f] %v858
      %866 = vst [vmem:[#allocation3 + $0x2f8] sm:$0x7f] %v859
      %867 = vst [vmem:[#allocation3 + $0x378] sm:$0x7f] %v860
      %v868 = vld [vmem:[#allocation3] sm:$0xff]
      %v869 = vld [vmem:[#allocation3 + $0x8] sm:$0xff]
      %v870 = vld [vmem:[#allocation3 + $0x10] sm:$0xff]
      %v871 = vld [vmem:[#allocation3 + $0x18] sm:$0xff]
      %v872 = vld [vmem:[#allocation3 + $0x20] sm:$0xff]
      %v873 = vld [vmem:[#allocation3 + $0x28] sm:$0xff]
      %v874 = vld [vmem:[#allocation3 + $0x30] sm:$0xff]
      %v875 = vld [vmem:[#allocation3 + $0x38] sm:$0xff]
      %v876 = vld [vmem:[#allocation3 + $0x40] sm:$0xff]
      %v877 = vld [vmem:[#allocation3 + $0x48] sm:$0xff]
      %v878 = vld [vmem:[#allocation3 + $0x50] sm:$0xff]
      %v879 = vld [vmem:[#allocation3 + $0x58] sm:$0xff]
      %v880 = vld [vmem:[#allocation3 + $0x60] sm:$0xff]
      %v881 = vld [vmem:[#allocation3 + $0x68] sm:$0xff]
      %v882 = vld [vmem:[#allocation3 + $0x70] sm:$0xff]
      %v883 = vld [vmem:[#allocation3 + $0x78] sm:$0xff]
      %v884 = vld [vmem:[#allocation3 + $0x80] sm:$0xff]
      %v885 = vld [vmem:[#allocation3 + $0x88] sm:$0xff]
      %v886 = vld [vmem:[#allocation3 + $0x90] sm:$0xff]
      %v887 = vld [vmem:[#allocation3 + $0x98] sm:$0xff]
      %v888 = vld [vmem:[#allocation3 + $0xa0] sm:$0xff]
      %v889 = vld [vmem:[#allocation3 + $0xa8] sm:$0xff]
      %v890 = vld [vmem:[#allocation3 + $0xb0] sm:$0xff]
      %v891 = vld [vmem:[#allocation3 + $0xb8] sm:$0xff]
      %v892 = vld [vmem:[#allocation3 + $0xc0] sm:$0xff]
      %v893 = vld [vmem:[#allocation3 + $0xc8] sm:$0xff]
      %v894 = vld [vmem:[#allocation3 + $0xd0] sm:$0xff]
      %v895 = vld [vmem:[#allocation3 + $0xd8] sm:$0xff]
      %v896 = vld [vmem:[#allocation3 + $0xe0] sm:$0xff]
      %v897 = vld [vmem:[#allocation3 + $0xe8] sm:$0xff]
      %v898 = vld [vmem:[#allocation3 + $0xf0] sm:$0xff]
      %v899 = vld [vmem:[#allocation3 + $0xf8] sm:$0xff]
      %v900 = vld [vmem:[#allocation3 + $0x100] sm:$0xff]
      %v901 = vld [vmem:[#allocation3 + $0x108] sm:$0xff]
      %v902 = vld [vmem:[#allocation3 + $0x110] sm:$0xff]
      %v903 = vld [vmem:[#allocation3 + $0x118] sm:$0xff]
      %v904 = vld [vmem:[#allocation3 + $0x120] sm:$0xff]
      %v905 = vld [vmem:[#allocation3 + $0x128] sm:$0xff]
      %v906 = vld [vmem:[#allocation3 + $0x130] sm:$0xff]
      %v907 = vld [vmem:[#allocation3 + $0x138] sm:$0xff]
      %v908 = vld [vmem:[#allocation3 + $0x140] sm:$0xff]
      %v909 = vld [vmem:[#allocation3 + $0x148] sm:$0xff]
      %v910 = vld [vmem:[#allocation3 + $0x150] sm:$0xff]
      %v911 = vld [vmem:[#allocation3 + $0x158] sm:$0xff]
      %v912 = vld [vmem:[#allocation3 + $0x160] sm:$0xff]
      %v913 = vld [vmem:[#allocation3 + $0x168] sm:$0xff]
      %v914 = vld [vmem:[#allocation3 + $0x170] sm:$0xff]
      %v915 = vld [vmem:[#allocation3 + $0x178] sm:$0xff]
      %v916 = vld [vmem:[#allocation3 + $0x180] sm:$0xff]
      %v917 = vld [vmem:[#allocation3 + $0x188] sm:$0xff]
      %v918 = vld [vmem:[#allocation3 + $0x190] sm:$0xff]
      %v919 = vld [vmem:[#allocation3 + $0x198] sm:$0xff]
      %v920 = vld [vmem:[#allocation3 + $0x1a0] sm:$0xff]
      %v921 = vld [vmem:[#allocation3 + $0x1a8] sm:$0xff]
      %v922 = vld [vmem:[#allocation3 + $0x1b0] sm:$0xff]
      %v923 = vld [vmem:[#allocation3 + $0x1b8] sm:$0xff]
      %v924 = vld [vmem:[#allocation3 + $0x1c0] sm:$0xff]
      %v925 = vld [vmem:[#allocation3 + $0x1c8] sm:$0xff]
      %v926 = vld [vmem:[#allocation3 + $0x1d0] sm:$0xff]
      %v927 = vld [vmem:[#allocation3 + $0x1d8] sm:$0xff]
      %v928 = vld [vmem:[#allocation3 + $0x1e0] sm:$0xff]
      %v929 = vld [vmem:[#allocation3 + $0x1e8] sm:$0xff]
      %v930 = vld [vmem:[#allocation3 + $0x1f0] sm:$0xff]
      %v931 = vld [vmem:[#allocation3 + $0x1f8] sm:$0xff]
      %v932 = vld [vmem:[#allocation3 + $0x200] sm:$0xff]
      %v933 = vld [vmem:[#allocation3 + $0x208] sm:$0xff]
      %v934 = vld [vmem:[#allocation3 + $0x210] sm:$0xff]
      %v935 = vld [vmem:[#allocation3 + $0x218] sm:$0xff]
      %v936 = vld [vmem:[#allocation3 + $0x220] sm:$0xff]
      %v937 = vld [vmem:[#allocation3 + $0x228] sm:$0xff]
      %v938 = vld [vmem:[#allocation3 + $0x230] sm:$0xff]
      %v939 = vld [vmem:[#allocation3 + $0x238] sm:$0xff]
      %v940 = vld [vmem:[#allocation3 + $0x240] sm:$0xff]
      %v941 = vld [vmem:[#allocation3 + $0x248] sm:$0xff]
      %v942 = vld [vmem:[#allocation3 + $0x250] sm:$0xff]
      %v943 = vld [vmem:[#allocation3 + $0x258] sm:$0xff]
      %v944 = vld [vmem:[#allocation3 + $0x260] sm:$0xff]
      %v945 = vld [vmem:[#allocation3 + $0x268] sm:$0xff]
      %v946 = vld [vmem:[#allocation3 + $0x270] sm:$0xff]
      %v947 = vld [vmem:[#allocation3 + $0x278] sm:$0xff]
      %v948 = vld [vmem:[#allocation3 + $0x280] sm:$0xff]
      %v949 = vld [vmem:[#allocation3 + $0x288] sm:$0xff]
      %v950 = vld [vmem:[#allocation3 + $0x290] sm:$0xff]
      %v951 = vld [vmem:[#allocation3 + $0x298] sm:$0xff]
      %v952 = vld [vmem:[#allocation3 + $0x2a0] sm:$0xff]
      %v953 = vld [vmem:[#allocation3 + $0x2a8] sm:$0xff]
      %v954 = vld [vmem:[#allocation3 + $0x2b0] sm:$0xff]
      %v955 = vld [vmem:[#allocation3 + $0x2b8] sm:$0xff]
      %v956 = vld [vmem:[#allocation3 + $0x2c0] sm:$0xff]
      %v957 = vld [vmem:[#allocation3 + $0x2c8] sm:$0xff]
      %v958 = vld [vmem:[#allocation3 + $0x2d0] sm:$0xff]
      %v959 = vld [vmem:[#allocation3 + $0x2d8] sm:$0xff]
      %v960 = vld [vmem:[#allocation3 + $0x2e0] sm:$0xff]
      %v961 = vld [vmem:[#allocation3 + $0x2e8] sm:$0xff]
      %v962 = vld [vmem:[#allocation3 + $0x2f0] sm:$0xff]
      %v963 = vld [vmem:[#allocation3 + $0x2f8] sm:$0xff]
      %v964 = vld [vmem:[#allocation3 + $0x300] sm:$0xff]
      %v965 = vld [vmem:[#allocation3 + $0x308] sm:$0xff]
      %v966 = vld [vmem:[#allocation3 + $0x310] sm:$0xff]
      %v967 = vld [vmem:[#allocation3 + $0x318] sm:$0xff]
      %v968 = vld [vmem:[#allocation3 + $0x320] sm:$0xff]
      %v969 = vld [vmem:[#allocation3 + $0x328] sm:$0xff]
      %v970 = vld [vmem:[#allocation3 + $0x330] sm:$0xff]
      %v971 = vld [vmem:[#allocation3 + $0x338] sm:$0xff]
      %v972 = vld [vmem:[#allocation3 + $0x340] sm:$0xff]
      %v973 = vld [vmem:[#allocation3 + $0x348] sm:$0xff]
      %v974 = vld [vmem:[#allocation3 + $0x350] sm:$0xff]
      %v975 = vld [vmem:[#allocation3 + $0x358] sm:$0xff]
      %v976 = vld [vmem:[#allocation3 + $0x360] sm:$0xff]
      %v977 = vld [vmem:[#allocation3 + $0x368] sm:$0xff]
      %v978 = vld [vmem:[#allocation3 + $0x370] sm:$0xff]
      %v979 = vld [vmem:[#allocation3 + $0x378] sm:$0xff]
      %v980 = vld [vmem:[#allocation3 + $0x380] sm:$0xff]
      %v981 = vld [vmem:[#allocation3 + $0x388] sm:$0xff]
      %v982 = vld [vmem:[#allocation3 + $0x390] sm:$0xff]
      %v983 = vld [vmem:[#allocation3 + $0x398] sm:$0xff]
      %v984 = vld [vmem:[#allocation3 + $0x3a0] sm:$0xff]
      %v985 = vld [vmem:[#allocation3 + $0x3a8] sm:$0xff]
      %v986 = vld [vmem:[#allocation3 + $0x3b0] sm:$0xff]
      %v987 = vld [vmem:[#allocation3 + $0x3b8] sm:$0xff]
      %v988 = vld [vmem:[#allocation3 + $0x3c0] sm:$0xff]
      %v989 = vld [vmem:[#allocation3 + $0x3c8] sm:$0xff]
      %v990 = vld [vmem:[#allocation3 + $0x3d0] sm:$0xff]
      %v991 = vld [vmem:[#allocation3 + $0x3d8] sm:$0xff]
      %v992 = vld [vmem:[#allocation3 + $0x3e0] sm:$0xff]
      %v993 = vld [vmem:[#allocation3 + $0x3e8] sm:$0xff]
      %v994 = vld [vmem:[#allocation3 + $0x3f0] sm:$0xff]
      %v995 = vld [vmem:[#allocation3 + $0x3f8] sm:$0xff]
      %v996 = vpack.c.bf16 %v884, %v868
      %v997 = vpack.c.bf16 %v885, %v869
      %v998 = vpack.c.bf16 %v886, %v870
      %v999 = vpack.c.bf16 %v887, %v871
      %v1000 = vpack.c.bf16 %v888, %v872
      %v1001 = vpack.c.bf16 %v889, %v873
      %v1002 = vpack.c.bf16 %v890, %v874
      %v1003 = vpack.c.bf16 %v891, %v875
      %v1004 = vpack.c.bf16 %v892, %v876
      %v1005 = vpack.c.bf16 %v893, %v877
      %v1006 = vpack.c.bf16 %v894, %v878
      %v1007 = vpack.c.bf16 %v895, %v879
      %v1008 = vpack.c.bf16 %v896, %v880
      %v1009 = vpack.c.bf16 %v897, %v881
      %v1010 = vpack.c.bf16 %v898, %v882
      %v1011 = vpack.c.bf16 %v899, %v883
      %v1012 = vpack.c.bf16 %v916, %v900
      %v1013 = vpack.c.bf16 %v917, %v901
      %v1014 = vpack.c.bf16 %v918, %v902
      %v1015 = vpack.c.bf16 %v919, %v903
      %v1016 = vpack.c.bf16 %v920, %v904
      %v1017 = vpack.c.bf16 %v921, %v905
      %v1018 = vpack.c.bf16 %v922, %v906
      %v1019 = vpack.c.bf16 %v923, %v907
      %v1020 = vpack.c.bf16 %v924, %v908
      %v1021 = vpack.c.bf16 %v925, %v909
      %v1022 = vpack.c.bf16 %v926, %v910
      %v1023 = vpack.c.bf16 %v927, %v911
      %v1024 = vpack.c.bf16 %v928, %v912
      %v1025 = vpack.c.bf16 %v929, %v913
      %v1026 = vpack.c.bf16 %v930, %v914
      %v1027 = vpack.c.bf16 %v931, %v915
      %v1028 = vpack.c.bf16 %v948, %v932
      %v1029 = vpack.c.bf16 %v949, %v933
      %v1030 = vpack.c.bf16 %v950, %v934
      %v1031 = vpack.c.bf16 %v951, %v935
      %v1032 = vpack.c.bf16 %v952, %v936
      %v1033 = vpack.c.bf16 %v953, %v937
      %v1034 = vpack.c.bf16 %v954, %v938
      %v1035 = vpack.c.bf16 %v955, %v939
      %v1036 = vpack.c.bf16 %v956, %v940
      %v1037 = vpack.c.bf16 %v957, %v941
      %v1038 = vpack.c.bf16 %v958, %v942
      %v1039 = vpack.c.bf16 %v959, %v943
      %v1040 = vpack.c.bf16 %v960, %v944
      %v1041 = vpack.c.bf16 %v961, %v945
      %v1042 = vpack.c.bf16 %v962, %v946
      %v1043 = vpack.c.bf16 %v963, %v947
      %v1044 = vpack.c.bf16 %v980, %v964
      %v1045 = vpack.c.bf16 %v981, %v965
      %v1046 = vpack.c.bf16 %v982, %v966
      %v1047 = vpack.c.bf16 %v983, %v967
      %v1048 = vpack.c.bf16 %v984, %v968
      %v1049 = vpack.c.bf16 %v985, %v969
      %v1050 = vpack.c.bf16 %v986, %v970
      %v1051 = vpack.c.bf16 %v987, %v971
      %v1052 = vpack.c.bf16 %v988, %v972
      %v1053 = vpack.c.bf16 %v989, %v973
      %v1054 = vpack.c.bf16 %v990, %v974
      %v1055 = vpack.c.bf16 %v991, %v975
      %v1056 = vpack.c.bf16 %v992, %v976
      %v1057 = vpack.c.bf16 %v993, %v977
      %v1058 = vpack.c.bf16 %v994, %v978
      %v1059 = vpack.c.bf16 %v995, %v979
      %v1060 = vld [vmem:[%s5] sm:$0xf]
      %v1061 = vld [vmem:[%s5 + $0x4] sm:$0xf]
      %v1062 = vld [vmem:[%s5 + $0x8] sm:$0xf]
      %v1063 = vld [vmem:[%s5 + $0xc] sm:$0xf]
      %v1064 = vld [vmem:[%s5 + $0x10] sm:$0xf]
      %v1065 = vld [vmem:[%s5 + $0x14] sm:$0xf]
      %v1066 = vld [vmem:[%s5 + $0x18] sm:$0xf]
      %v1067 = vld [vmem:[%s5 + $0x1c] sm:$0xf]
      %v1068 = vld [vmem:[%s5 + $0x20] sm:$0xf]
      %v1069 = vld [vmem:[%s5 + $0x24] sm:$0xf]
      %v1070 = vld [vmem:[%s5 + $0x28] sm:$0xf]
      %v1071 = vld [vmem:[%s5 + $0x2c] sm:$0xf]
      %v1072 = vld [vmem:[%s5 + $0x30] sm:$0xf]
      %v1073 = vld [vmem:[%s5 + $0x34] sm:$0xf]
      %v1074 = vld [vmem:[%s5 + $0x38] sm:$0xf]
      %v1075 = vld [vmem:[%s5 + $0x3c] sm:$0xf]
      %v1076 = vld [vmem:[%s5 + $0x40] sm:$0xf]
      %v1077 = vld [vmem:[%s5 + $0x44] sm:$0xf]
      %v1078 = vld [vmem:[%s5 + $0x48] sm:$0xf]
      %v1079 = vld [vmem:[%s5 + $0x4c] sm:$0xf]
      %v1080 = vld [vmem:[%s5 + $0x50] sm:$0xf]
      %v1081 = vld [vmem:[%s5 + $0x54] sm:$0xf]
      %v1082 = vld [vmem:[%s5 + $0x58] sm:$0xf]
      %v1083 = vld [vmem:[%s5 + $0x5c] sm:$0xf]
      %v1084 = vld [vmem:[%s5 + $0x60] sm:$0xf]
      %v1085 = vld [vmem:[%s5 + $0x64] sm:$0xf]
      %v1086 = vld [vmem:[%s5 + $0x68] sm:$0xf]
      %v1087 = vld [vmem:[%s5 + $0x6c] sm:$0xf]
      %v1088 = vld [vmem:[%s5 + $0x70] sm:$0xf]
      %v1089 = vld [vmem:[%s5 + $0x74] sm:$0xf]
      %v1090 = vld [vmem:[%s5 + $0x78] sm:$0xf]
      %v1091 = vld [vmem:[%s5 + $0x7c] sm:$0xf]
      %v1092 = vld [vmem:[%s5 + $0x80] sm:$0xf]
      %v1093 = vld [vmem:[%s5 + $0x84] sm:$0xf]
      %v1094 = vld [vmem:[%s5 + $0x88] sm:$0xf]
      %v1095 = vld [vmem:[%s5 + $0x8c] sm:$0xf]
      %v1096 = vld [vmem:[%s5 + $0x90] sm:$0xf]
      %v1097 = vld [vmem:[%s5 + $0x94] sm:$0xf]
      %v1098 = vld [vmem:[%s5 + $0x98] sm:$0xf]
      %v1099 = vld [vmem:[%s5 + $0x9c] sm:$0xf]
      %v1100 = vld [vmem:[%s5 + $0xa0] sm:$0xf]
      %v1101 = vld [vmem:[%s5 + $0xa4] sm:$0xf]
      %v1102 = vld [vmem:[%s5 + $0xa8] sm:$0xf]
      %v1103 = vld [vmem:[%s5 + $0xac] sm:$0xf]
      %v1104 = vld [vmem:[%s5 + $0xb0] sm:$0xf]
      %v1105 = vld [vmem:[%s5 + $0xb4] sm:$0xf]
      %v1106 = vld [vmem:[%s5 + $0xb8] sm:$0xf]
      %v1107 = vld [vmem:[%s5 + $0xbc] sm:$0xf]
      %v1108 = vld [vmem:[%s5 + $0xc0] sm:$0xf]
      %v1109 = vld [vmem:[%s5 + $0xc4] sm:$0xf]
      %v1110 = vld [vmem:[%s5 + $0xc8] sm:$0xf]
      %v1111 = vld [vmem:[%s5 + $0xcc] sm:$0xf]
      %v1112 = vld [vmem:[%s5 + $0xd0] sm:$0xf]
      %v1113 = vld [vmem:[%s5 + $0xd4] sm:$0xf]
      %v1114 = vld [vmem:[%s5 + $0xd8] sm:$0xf]
      %v1115 = vld [vmem:[%s5 + $0xdc] sm:$0xf]
      %v1116 = vld [vmem:[%s5 + $0xe0] sm:$0xf]
      %v1117 = vld [vmem:[%s5 + $0xe4] sm:$0xf]
      %v1118 = vld [vmem:[%s5 + $0xe8] sm:$0xf]
      %v1119 = vld [vmem:[%s5 + $0xec] sm:$0xf]
      %v1120 = vld [vmem:[%s5 + $0xf0] sm:$0xf]
      %v1121 = vld [vmem:[%s5 + $0xf4] sm:$0xf]
      %v1122 = vld [vmem:[%s5 + $0xf8] sm:$0xf]
      %v1123 = vld [vmem:[%s5 + $0xfc] sm:$0xf]
      %v1124 = vld [vmem:[%s5 + $0x100] sm:$0xf]
      %v1125 = vld [vmem:[%s5 + $0x104] sm:$0xf]
      %v1126 = vld [vmem:[%s5 + $0x108] sm:$0xf]
      %v1127 = vld [vmem:[%s5 + $0x10c] sm:$0xf]
      %v1128 = vld [vmem:[%s5 + $0x110] sm:$0xf]
      %v1129 = vld [vmem:[%s5 + $0x114] sm:$0xf]
      %v1130 = vld [vmem:[%s5 + $0x118] sm:$0xf]
      %v1131 = vld [vmem:[%s5 + $0x11c] sm:$0xf]
      %v1132 = vld [vmem:[%s5 + $0x120] sm:$0xf]
      %v1133 = vld [vmem:[%s5 + $0x124] sm:$0xf]
      %v1134 = vld [vmem:[%s5 + $0x128] sm:$0xf]
      %v1135 = vld [vmem:[%s5 + $0x12c] sm:$0xf]
      %v1136 = vld [vmem:[%s5 + $0x130] sm:$0xf]
      %v1137 = vld [vmem:[%s5 + $0x134] sm:$0xf]
      %v1138 = vld [vmem:[%s5 + $0x138] sm:$0xf]
      %v1139 = vld [vmem:[%s5 + $0x13c] sm:$0xf]
      %v1140 = vld [vmem:[%s5 + $0x140] sm:$0xf]
      %v1141 = vld [vmem:[%s5 + $0x144] sm:$0xf]
      %v1142 = vld [vmem:[%s5 + $0x148] sm:$0xf]
      %v1143 = vld [vmem:[%s5 + $0x14c] sm:$0xf]
      %v1144 = vld [vmem:[%s5 + $0x150] sm:$0xf]
      %v1145 = vld [vmem:[%s5 + $0x154] sm:$0xf]
      %v1146 = vld [vmem:[%s5 + $0x158] sm:$0xf]
      %v1147 = vld [vmem:[%s5 + $0x15c] sm:$0xf]
      %v1148 = vld [vmem:[%s5 + $0x160] sm:$0xf]
      %v1149 = vld [vmem:[%s5 + $0x164] sm:$0xf]
      %v1150 = vld [vmem:[%s5 + $0x168] sm:$0xf]
      %v1151 = vld [vmem:[%s5 + $0x16c] sm:$0xf]
      %v1152 = vld [vmem:[%s5 + $0x170] sm:$0xf]
      %v1153 = vld [vmem:[%s5 + $0x174] sm:$0xf]
      %v1154 = vld [vmem:[%s5 + $0x178] sm:$0xf]
      %v1155 = vld [vmem:[%s5 + $0x17c] sm:$0xf]
      %v1156 = vld [vmem:[%s5 + $0x180] sm:$0xf]
      %v1157 = vld [vmem:[%s5 + $0x184] sm:$0xf]
      %v1158 = vld [vmem:[%s5 + $0x188] sm:$0xf]
      %v1159 = vld [vmem:[%s5 + $0x18c] sm:$0xf]
      %v1160 = vld [vmem:[%s5 + $0x190] sm:$0xf]
      %v1161 = vld [vmem:[%s5 + $0x194] sm:$0xf]
      %v1162 = vld [vmem:[%s5 + $0x198] sm:$0xf]
      %v1163 = vld [vmem:[%s5 + $0x19c] sm:$0xf]
      %v1164 = vld [vmem:[%s5 + $0x1a0] sm:$0xf]
      %v1165 = vld [vmem:[%s5 + $0x1a4] sm:$0xf]
      %v1166 = vld [vmem:[%s5 + $0x1a8] sm:$0xf]
      %v1167 = vld [vmem:[%s5 + $0x1ac] sm:$0xf]
      %v1168 = vld [vmem:[%s5 + $0x1b0] sm:$0xf]
      %v1169 = vld [vmem:[%s5 + $0x1b4] sm:$0xf]
      %v1170 = vld [vmem:[%s5 + $0x1b8] sm:$0xf]
      %v1171 = vld [vmem:[%s5 + $0x1bc] sm:$0xf]
      %v1172 = vld [vmem:[%s5 + $0x1c0] sm:$0xf]
      %v1173 = vld [vmem:[%s5 + $0x1c4] sm:$0xf]
      %v1174 = vld [vmem:[%s5 + $0x1c8] sm:$0xf]
      %v1175 = vld [vmem:[%s5 + $0x1cc] sm:$0xf]
      %v1176 = vld [vmem:[%s5 + $0x1d0] sm:$0xf]
      %v1177 = vld [vmem:[%s5 + $0x1d4] sm:$0xf]
      %v1178 = vld [vmem:[%s5 + $0x1d8] sm:$0xf]
      %v1179 = vld [vmem:[%s5 + $0x1dc] sm:$0xf]
      %v1180 = vld [vmem:[%s5 + $0x1e0] sm:$0xf]
      %v1181 = vld [vmem:[%s5 + $0x1e4] sm:$0xf]
      %v1182 = vld [vmem:[%s5 + $0x1e8] sm:$0xf]
      %v1183 = vld [vmem:[%s5 + $0x1ec] sm:$0xf]
      %v1184 = vld [vmem:[%s5 + $0x1f0] sm:$0xf]
      %v1185 = vld [vmem:[%s5 + $0x1f4] sm:$0xf]
      %v1186 = vld [vmem:[%s5 + $0x1f8] sm:$0xf]
      %v1187 = vld [vmem:[%s5 + $0x1fc] sm:$0xf]
      %v1188 = vld [vmem:[%s5 + $0x200] sm:$0xf]
      %v1189 = vld [vmem:[%s5 + $0x204] sm:$0xf]
      %v1190 = vld [vmem:[%s5 + $0x208] sm:$0xf]
      %v1191 = vld [vmem:[%s5 + $0x20c] sm:$0xf]
      %v1192 = vld [vmem:[%s5 + $0x210] sm:$0xf]
      %v1193 = vld [vmem:[%s5 + $0x214] sm:$0xf]
      %v1194 = vld [vmem:[%s5 + $0x218] sm:$0xf]
      %v1195 = vld [vmem:[%s5 + $0x21c] sm:$0xf]
      %v1196 = vld [vmem:[%s5 + $0x220] sm:$0xf]
      %v1197 = vld [vmem:[%s5 + $0x224] sm:$0xf]
      %v1198 = vld [vmem:[%s5 + $0x228] sm:$0xf]
      %v1199 = vld [vmem:[%s5 + $0x22c] sm:$0xf]
      %v1200 = vld [vmem:[%s5 + $0x230] sm:$0xf]
      %v1201 = vld [vmem:[%s5 + $0x234] sm:$0xf]
      %v1202 = vld [vmem:[%s5 + $0x238] sm:$0xf]
      %v1203 = vld [vmem:[%s5 + $0x23c] sm:$0xf]
      %v1204 = vld [vmem:[%s5 + $0x240] sm:$0xf]
      %v1205 = vld [vmem:[%s5 + $0x244] sm:$0xf]
      %v1206 = vld [vmem:[%s5 + $0x248] sm:$0xf]
      %v1207 = vld [vmem:[%s5 + $0x24c] sm:$0xf]
      %v1208 = vld [vmem:[%s5 + $0x250] sm:$0xf]
      %v1209 = vld [vmem:[%s5 + $0x254] sm:$0xf]
      %v1210 = vld [vmem:[%s5 + $0x258] sm:$0xf]
      %v1211 = vld [vmem:[%s5 + $0x25c] sm:$0xf]
      %v1212 = vld [vmem:[%s5 + $0x260] sm:$0xf]
      %v1213 = vld [vmem:[%s5 + $0x264] sm:$0xf]
      %v1214 = vld [vmem:[%s5 + $0x268] sm:$0xf]
      %v1215 = vld [vmem:[%s5 + $0x26c] sm:$0xf]
      %v1216 = vld [vmem:[%s5 + $0x270] sm:$0xf]
      %v1217 = vld [vmem:[%s5 + $0x274] sm:$0xf]
      %v1218 = vld [vmem:[%s5 + $0x278] sm:$0xf]
      %v1219 = vld [vmem:[%s5 + $0x27c] sm:$0xf]
      %v1220 = vld [vmem:[%s5 + $0x280] sm:$0xf]
      %v1221 = vld [vmem:[%s5 + $0x284] sm:$0xf]
      %v1222 = vld [vmem:[%s5 + $0x288] sm:$0xf]
      %v1223 = vld [vmem:[%s5 + $0x28c] sm:$0xf]
      %v1224 = vld [vmem:[%s5 + $0x290] sm:$0xf]
      %v1225 = vld [vmem:[%s5 + $0x294] sm:$0xf]
      %v1226 = vld [vmem:[%s5 + $0x298] sm:$0xf]
      %v1227 = vld [vmem:[%s5 + $0x29c] sm:$0xf]
      %v1228 = vld [vmem:[%s5 + $0x2a0] sm:$0xf]
      %v1229 = vld [vmem:[%s5 + $0x2a4] sm:$0xf]
      %v1230 = vld [vmem:[%s5 + $0x2a8] sm:$0xf]
      %v1231 = vld [vmem:[%s5 + $0x2ac] sm:$0xf]
      %v1232 = vld [vmem:[%s5 + $0x2b0] sm:$0xf]
      %v1233 = vld [vmem:[%s5 + $0x2b4] sm:$0xf]
      %v1234 = vld [vmem:[%s5 + $0x2b8] sm:$0xf]
      %v1235 = vld [vmem:[%s5 + $0x2bc] sm:$0xf]
      %v1236 = vld [vmem:[%s5 + $0x2c0] sm:$0xf]
      %v1237 = vld [vmem:[%s5 + $0x2c4] sm:$0xf]
      %v1238 = vld [vmem:[%s5 + $0x2c8] sm:$0xf]
      %v1239 = vld [vmem:[%s5 + $0x2cc] sm:$0xf]
      %v1240 = vld [vmem:[%s5 + $0x2d0] sm:$0xf]
      %v1241 = vld [vmem:[%s5 + $0x2d4] sm:$0xf]
      %v1242 = vld [vmem:[%s5 + $0x2d8] sm:$0xf]
      %v1243 = vld [vmem:[%s5 + $0x2dc] sm:$0xf]
      %v1244 = vld [vmem:[%s5 + $0x2e0] sm:$0xf]
      %v1245 = vld [vmem:[%s5 + $0x2e4] sm:$0xf]
      %v1246 = vld [vmem:[%s5 + $0x2e8] sm:$0xf]
      %v1247 = vld [vmem:[%s5 + $0x2ec] sm:$0xf]
      %v1248 = vld [vmem:[%s5 + $0x2f0] sm:$0xf]
      %v1249 = vld [vmem:[%s5 + $0x2f4] sm:$0xf]
      %v1250 = vld [vmem:[%s5 + $0x2f8] sm:$0xf]
      %v1251 = vld [vmem:[%s5 + $0x2fc] sm:$0xf]
      %v1252 = vld [vmem:[%s5 + $0x300] sm:$0xf]
      %v1253 = vld [vmem:[%s5 + $0x304] sm:$0xf]
      %v1254 = vld [vmem:[%s5 + $0x308] sm:$0xf]
      %v1255 = vld [vmem:[%s5 + $0x30c] sm:$0xf]
      %v1256 = vld [vmem:[%s5 + $0x310] sm:$0xf]
      %v1257 = vld [vmem:[%s5 + $0x314] sm:$0xf]
      %v1258 = vld [vmem:[%s5 + $0x318] sm:$0xf]
      %v1259 = vld [vmem:[%s5 + $0x31c] sm:$0xf]
      %v1260 = vld [vmem:[%s5 + $0x320] sm:$0xf]
      %v1261 = vld [vmem:[%s5 + $0x324] sm:$0xf]
      %v1262 = vld [vmem:[%s5 + $0x328] sm:$0xf]
      %v1263 = vld [vmem:[%s5 + $0x32c] sm:$0xf]
      %v1264 = vld [vmem:[%s5 + $0x330] sm:$0xf]
      %v1265 = vld [vmem:[%s5 + $0x334] sm:$0xf]
      %v1266 = vld [vmem:[%s5 + $0x338] sm:$0xf]
      %v1267 = vld [vmem:[%s5 + $0x33c] sm:$0xf]
      %v1268 = vld [vmem:[%s5 + $0x340] sm:$0xf]
      %v1269 = vld [vmem:[%s5 + $0x344] sm:$0xf]
      %v1270 = vld [vmem:[%s5 + $0x348] sm:$0xf]
      %v1271 = vld [vmem:[%s5 + $0x34c] sm:$0xf]
      %v1272 = vld [vmem:[%s5 + $0x350] sm:$0xf]
      %v1273 = vld [vmem:[%s5 + $0x354] sm:$0xf]
      %v1274 = vld [vmem:[%s5 + $0x358] sm:$0xf]
      %v1275 = vld [vmem:[%s5 + $0x35c] sm:$0xf]
      %v1276 = vld [vmem:[%s5 + $0x360] sm:$0xf]
      %v1277 = vld [vmem:[%s5 + $0x364] sm:$0xf]
      %v1278 = vld [vmem:[%s5 + $0x368] sm:$0xf]
      %v1279 = vld [vmem:[%s5 + $0x36c] sm:$0xf]
      %v1280 = vld [vmem:[%s5 + $0x370] sm:$0xf]
      %v1281 = vld [vmem:[%s5 + $0x374] sm:$0xf]
      %v1282 = vld [vmem:[%s5 + $0x378] sm:$0xf]
      %v1283 = vld [vmem:[%s5 + $0x37c] sm:$0xf]
      %v1284 = vld [vmem:[%s5 + $0x380] sm:$0xf]
      %v1285 = vld [vmem:[%s5 + $0x384] sm:$0xf]
      %v1286 = vld [vmem:[%s5 + $0x388] sm:$0xf]
      %v1287 = vld [vmem:[%s5 + $0x38c] sm:$0xf]
      %v1288 = vld [vmem:[%s5 + $0x390] sm:$0xf]
      %v1289 = vld [vmem:[%s5 + $0x394] sm:$0xf]
      %v1290 = vld [vmem:[%s5 + $0x398] sm:$0xf]
      %v1291 = vld [vmem:[%s5 + $0x39c] sm:$0xf]
      %v1292 = vld [vmem:[%s5 + $0x3a0] sm:$0xf]
      %v1293 = vld [vmem:[%s5 + $0x3a4] sm:$0xf]
      %v1294 = vld [vmem:[%s5 + $0x3a8] sm:$0xf]
      %v1295 = vld [vmem:[%s5 + $0x3ac] sm:$0xf]
      %v1296 = vld [vmem:[%s5 + $0x3b0] sm:$0xf]
      %v1297 = vld [vmem:[%s5 + $0x3b4] sm:$0xf]
      %v1298 = vld [vmem:[%s5 + $0x3b8] sm:$0xf]
      %v1299 = vld [vmem:[%s5 + $0x3bc] sm:$0xf]
      %v1300 = vld [vmem:[%s5 + $0x3c0] sm:$0xf]
      %v1301 = vld [vmem:[%s5 + $0x3c4] sm:$0xf]
      %v1302 = vld [vmem:[%s5 + $0x3c8] sm:$0xf]
      %v1303 = vld [vmem:[%s5 + $0x3cc] sm:$0xf]
      %v1304 = vld [vmem:[%s5 + $0x3d0] sm:$0xf]
      %v1305 = vld [vmem:[%s5 + $0x3d4] sm:$0xf]
      %v1306 = vld [vmem:[%s5 + $0x3d8] sm:$0xf]
      %v1307 = vld [vmem:[%s5 + $0x3dc] sm:$0xf]
      %v1308 = vld [vmem:[%s5 + $0x3e0] sm:$0xf]
      %v1309 = vld [vmem:[%s5 + $0x3e4] sm:$0xf]
      %v1310 = vld [vmem:[%s5 + $0x3e8] sm:$0xf]
      %v1311 = vld [vmem:[%s5 + $0x3ec] sm:$0xf]
      %v1312 = vld [vmem:[%s5 + $0x3f0] sm:$0xf]
      %v1313 = vld [vmem:[%s5 + $0x3f4] sm:$0xf]
      %v1314 = vld [vmem:[%s5 + $0x3f8] sm:$0xf]
      %v1315 = vld [vmem:[%s5 + $0x3fc] sm:$0xf]
      %v1316 = vld [vmem:[%s6] sm:$0x1]
      %v1318 = vlaneseq
      %v1319 = vshrl.u32 %v1318, 7
      %v1320 = vsub.s32 0, %v1319
      %v1321 = vrot.slane %v1316, %v1320
      %v1579 = vunpack.c.l.b16 %v1060
      %v1580 = vunpack.c.l.b16 %v1061
      %v1581 = vunpack.c.l.b16 %v1062
      %v1582 = vunpack.c.l.b16 %v1063
      %v1583 = vunpack.c.l.b16 %v1064
      %v1584 = vunpack.c.l.b16 %v1065
      %v1585 = vunpack.c.l.b16 %v1066
      %v1586 = vunpack.c.l.b16 %v1067
      %v1587 = vunpack.c.l.b16 %v1068
      %v1588 = vunpack.c.l.b16 %v1069
      %v1589 = vunpack.c.l.b16 %v1070
      %v1590 = vunpack.c.l.b16 %v1071
      %v1591 = vunpack.c.l.b16 %v1072
      %v1592 = vunpack.c.l.b16 %v1073
      %v1593 = vunpack.c.l.b16 %v1074
      %v1594 = vunpack.c.l.b16 %v1075
      %v1595 = vunpack.c.l.b16 %v1076
      %v1596 = vunpack.c.l.b16 %v1077
      %v1597 = vunpack.c.l.b16 %v1078
      %v1598 = vunpack.c.l.b16 %v1079
      %v1599 = vunpack.c.l.b16 %v1080
      %v1600 = vunpack.c.l.b16 %v1081
      %v1601 = vunpack.c.l.b16 %v1082
      %v1602 = vunpack.c.l.b16 %v1083
      %v1603 = vunpack.c.l.b16 %v1084
      %v1604 = vunpack.c.l.b16 %v1085
      %v1605 = vunpack.c.l.b16 %v1086
      %v1606 = vunpack.c.l.b16 %v1087
      %v1607 = vunpack.c.l.b16 %v1088
      %v1608 = vunpack.c.l.b16 %v1089
      %v1609 = vunpack.c.l.b16 %v1090
      %v1610 = vunpack.c.l.b16 %v1091
      %v1611 = vunpack.c.l.b16 %v1092
      %v1612 = vunpack.c.l.b16 %v1093
      %v1613 = vunpack.c.l.b16 %v1094
      %v1614 = vunpack.c.l.b16 %v1095
      %v1615 = vunpack.c.l.b16 %v1096
      %v1616 = vunpack.c.l.b16 %v1097
      %v1617 = vunpack.c.l.b16 %v1098
      %v1618 = vunpack.c.l.b16 %v1099
      %v1619 = vunpack.c.l.b16 %v1100
      %v1620 = vunpack.c.l.b16 %v1101
      %v1621 = vunpack.c.l.b16 %v1102
      %v1622 = vunpack.c.l.b16 %v1103
      %v1623 = vunpack.c.l.b16 %v1104
      %v1624 = vunpack.c.l.b16 %v1105
      %v1625 = vunpack.c.l.b16 %v1106
      %v1626 = vunpack.c.l.b16 %v1107
      %v1627 = vunpack.c.l.b16 %v1108
      %v1628 = vunpack.c.l.b16 %v1109
      %v1629 = vunpack.c.l.b16 %v1110
      %v1630 = vunpack.c.l.b16 %v1111
      %v1631 = vunpack.c.l.b16 %v1112
      %v1632 = vunpack.c.l.b16 %v1113
      %v1633 = vunpack.c.l.b16 %v1114
      %v1634 = vunpack.c.l.b16 %v1115
      %v1635 = vunpack.c.l.b16 %v1116
      %v1636 = vunpack.c.l.b16 %v1117
      %v1637 = vunpack.c.l.b16 %v1118
      %v1638 = vunpack.c.l.b16 %v1119
      %v1639 = vunpack.c.l.b16 %v1120
      %v1640 = vunpack.c.l.b16 %v1121
      %v1641 = vunpack.c.l.b16 %v1122
      %v1642 = vunpack.c.l.b16 %v1123
      %v1643 = vunpack.c.l.b16 %v1124
      %v1644 = vunpack.c.l.b16 %v1125
      %v1645 = vunpack.c.l.b16 %v1126
      %v1646 = vunpack.c.l.b16 %v1127
      %v1647 = vunpack.c.l.b16 %v1128
      %v1648 = vunpack.c.l.b16 %v1129
      %v1649 = vunpack.c.l.b16 %v1130
      %v1650 = vunpack.c.l.b16 %v1131
      %v1651 = vunpack.c.l.b16 %v1132
      %v1652 = vunpack.c.l.b16 %v1133
      %v1653 = vunpack.c.l.b16 %v1134
      %v1654 = vunpack.c.l.b16 %v1135
      %v1655 = vunpack.c.l.b16 %v1136
      %v1656 = vunpack.c.l.b16 %v1137
      %v1657 = vunpack.c.l.b16 %v1138
      %v1658 = vunpack.c.l.b16 %v1139
      %v1659 = vunpack.c.l.b16 %v1140
      %v1660 = vunpack.c.l.b16 %v1141
      %v1661 = vunpack.c.l.b16 %v1142
      %v1662 = vunpack.c.l.b16 %v1143
      %v1663 = vunpack.c.l.b16 %v1144
      %v1664 = vunpack.c.l.b16 %v1145
      %v1665 = vunpack.c.l.b16 %v1146
      %v1666 = vunpack.c.l.b16 %v1147
      %v1667 = vunpack.c.l.b16 %v1148
      %v1668 = vunpack.c.l.b16 %v1149
      %v1669 = vunpack.c.l.b16 %v1150
      %v1670 = vunpack.c.l.b16 %v1151
      %v1671 = vunpack.c.l.b16 %v1152
      %v1672 = vunpack.c.l.b16 %v1153
      %v1673 = vunpack.c.l.b16 %v1154
      %v1674 = vunpack.c.l.b16 %v1155
      %v1675 = vunpack.c.l.b16 %v1156
      %v1676 = vunpack.c.l.b16 %v1157
      %v1677 = vunpack.c.l.b16 %v1158
      %v1678 = vunpack.c.l.b16 %v1159
      %v1679 = vunpack.c.l.b16 %v1160
      %v1680 = vunpack.c.l.b16 %v1161
      %v1681 = vunpack.c.l.b16 %v1162
      %v1682 = vunpack.c.l.b16 %v1163
      %v1683 = vunpack.c.l.b16 %v1164
      %v1684 = vunpack.c.l.b16 %v1165
      %v1685 = vunpack.c.l.b16 %v1166
      %v1686 = vunpack.c.l.b16 %v1167
      %v1687 = vunpack.c.l.b16 %v1168
      %v1688 = vunpack.c.l.b16 %v1169
      %v1689 = vunpack.c.l.b16 %v1170
      %v1690 = vunpack.c.l.b16 %v1171
      %v1691 = vunpack.c.l.b16 %v1172
      %v1692 = vunpack.c.l.b16 %v1173
      %v1693 = vunpack.c.l.b16 %v1174
      %v1694 = vunpack.c.l.b16 %v1175
      %v1695 = vunpack.c.l.b16 %v1176
      %v1696 = vunpack.c.l.b16 %v1177
      %v1697 = vunpack.c.l.b16 %v1178
      %v1698 = vunpack.c.l.b16 %v1179
      %v1699 = vunpack.c.l.b16 %v1180
      %v1700 = vunpack.c.l.b16 %v1181
      %v1701 = vunpack.c.l.b16 %v1182
      %v1702 = vunpack.c.l.b16 %v1183
      %v1703 = vunpack.c.l.b16 %v1184
      %v1704 = vunpack.c.l.b16 %v1185
      %v1705 = vunpack.c.l.b16 %v1186
      %v1706 = vunpack.c.l.b16 %v1187
      %v1707 = vunpack.c.l.b16 %v1188
      %v1708 = vunpack.c.l.b16 %v1189
      %v1709 = vunpack.c.l.b16 %v1190
      %v1710 = vunpack.c.l.b16 %v1191
      %v1711 = vunpack.c.l.b16 %v1192
      %v1712 = vunpack.c.l.b16 %v1193
      %v1713 = vunpack.c.l.b16 %v1194
      %v1714 = vunpack.c.l.b16 %v1195
      %v1715 = vunpack.c.l.b16 %v1196
      %v1716 = vunpack.c.l.b16 %v1197
      %v1717 = vunpack.c.l.b16 %v1198
      %v1718 = vunpack.c.l.b16 %v1199
      %v1719 = vunpack.c.l.b16 %v1200
      %v1720 = vunpack.c.l.b16 %v1201
      %v1721 = vunpack.c.l.b16 %v1202
      %v1722 = vunpack.c.l.b16 %v1203
      %v1723 = vunpack.c.l.b16 %v1204
      %v1724 = vunpack.c.l.b16 %v1205
      %v1725 = vunpack.c.l.b16 %v1206
      %v1726 = vunpack.c.l.b16 %v1207
      %v1727 = vunpack.c.l.b16 %v1208
      %v1728 = vunpack.c.l.b16 %v1209
      %v1729 = vunpack.c.l.b16 %v1210
      %v1730 = vunpack.c.l.b16 %v1211
      %v1731 = vunpack.c.l.b16 %v1212
      %v1732 = vunpack.c.l.b16 %v1213
      %v1733 = vunpack.c.l.b16 %v1214
      %v1734 = vunpack.c.l.b16 %v1215
      %v1735 = vunpack.c.l.b16 %v1216
      %v1736 = vunpack.c.l.b16 %v1217
      %v1737 = vunpack.c.l.b16 %v1218
      %v1738 = vunpack.c.l.b16 %v1219
      %v1739 = vunpack.c.l.b16 %v1220
      %v1740 = vunpack.c.l.b16 %v1221
      %v1741 = vunpack.c.l.b16 %v1222
      %v1742 = vunpack.c.l.b16 %v1223
      %v1743 = vunpack.c.l.b16 %v1224
      %v1744 = vunpack.c.l.b16 %v1225
      %v1745 = vunpack.c.l.b16 %v1226
      %v1746 = vunpack.c.l.b16 %v1227
      %v1747 = vunpack.c.l.b16 %v1228
      %v1748 = vunpack.c.l.b16 %v1229
      %v1749 = vunpack.c.l.b16 %v1230
      %v1750 = vunpack.c.l.b16 %v1231
      %v1751 = vunpack.c.l.b16 %v1232
      %v1752 = vunpack.c.l.b16 %v1233
      %v1753 = vunpack.c.l.b16 %v1234
      %v1754 = vunpack.c.l.b16 %v1235
      %v1755 = vunpack.c.l.b16 %v1236
      %v1756 = vunpack.c.l.b16 %v1237
      %v1757 = vunpack.c.l.b16 %v1238
      %v1758 = vunpack.c.l.b16 %v1239
      %v1759 = vunpack.c.l.b16 %v1240
      %v1760 = vunpack.c.l.b16 %v1241
      %v1761 = vunpack.c.l.b16 %v1242
      %v1762 = vunpack.c.l.b16 %v1243
      %v1763 = vunpack.c.l.b16 %v1244
      %v1764 = vunpack.c.l.b16 %v1245
      %v1765 = vunpack.c.l.b16 %v1246
      %v1766 = vunpack.c.l.b16 %v1247
      %v1767 = vunpack.c.l.b16 %v1248
      %v1768 = vunpack.c.l.b16 %v1249
      %v1769 = vunpack.c.l.b16 %v1250
      %v1770 = vunpack.c.l.b16 %v1251
      %v1771 = vunpack.c.l.b16 %v1252
      %v1772 = vunpack.c.l.b16 %v1253
      %v1773 = vunpack.c.l.b16 %v1254
      %v1774 = vunpack.c.l.b16 %v1255
      %v1775 = vunpack.c.l.b16 %v1256
      %v1776 = vunpack.c.l.b16 %v1257
      %v1777 = vunpack.c.l.b16 %v1258
      %v1778 = vunpack.c.l.b16 %v1259
      %v1779 = vunpack.c.l.b16 %v1260
      %v1780 = vunpack.c.l.b16 %v1261
      %v1781 = vunpack.c.l.b16 %v1262
      %v1782 = vunpack.c.l.b16 %v1263
      %v1783 = vunpack.c.l.b16 %v1264
      %v1784 = vunpack.c.l.b16 %v1265
      %v1785 = vunpack.c.l.b16 %v1266
      %v1786 = vunpack.c.l.b16 %v1267
      %v1787 = vunpack.c.l.b16 %v1268
      %v1788 = vunpack.c.l.b16 %v1269
      %v1789 = vunpack.c.l.b16 %v1270
      %v1790 = vunpack.c.l.b16 %v1271
      %v1791 = vunpack.c.l.b16 %v1272
      %v1792 = vunpack.c.l.b16 %v1273
      %v1793 = vunpack.c.l.b16 %v1274
      %v1794 = vunpack.c.l.b16 %v1275
      %v1795 = vunpack.c.l.b16 %v1276
      %v1796 = vunpack.c.l.b16 %v1277
      %v1797 = vunpack.c.l.b16 %v1278
      %v1798 = vunpack.c.l.b16 %v1279
      %v1799 = vunpack.c.l.b16 %v1280
      %v1800 = vunpack.c.l.b16 %v1281
      %v1801 = vunpack.c.l.b16 %v1282
      %v1802 = vunpack.c.l.b16 %v1283
      %v1803 = vunpack.c.l.b16 %v1284
      %v1804 = vunpack.c.l.b16 %v1285
      %v1805 = vunpack.c.l.b16 %v1286
      %v1806 = vunpack.c.l.b16 %v1287
      %v1807 = vunpack.c.l.b16 %v1288
      %v1808 = vunpack.c.l.b16 %v1289
      %v1809 = vunpack.c.l.b16 %v1290
      %v1810 = vunpack.c.l.b16 %v1291
      %v1811 = vunpack.c.l.b16 %v1292
      %v1812 = vunpack.c.l.b16 %v1293
      %v1813 = vunpack.c.l.b16 %v1294
      %v1814 = vunpack.c.l.b16 %v1295
      %v1815 = vunpack.c.l.b16 %v1296
      %v1816 = vunpack.c.l.b16 %v1297
      %v1817 = vunpack.c.l.b16 %v1298
      %v1818 = vunpack.c.l.b16 %v1299
      %v1819 = vunpack.c.l.b16 %v1300
      %v1820 = vunpack.c.l.b16 %v1301
      %v1821 = vunpack.c.l.b16 %v1302
      %v1822 = vunpack.c.l.b16 %v1303
      %v1823 = vunpack.c.l.b16 %v1304
      %v1824 = vunpack.c.l.b16 %v1305
      %v1825 = vunpack.c.l.b16 %v1306
      %v1826 = vunpack.c.l.b16 %v1307
      %v1827 = vunpack.c.l.b16 %v1308
      %v1828 = vunpack.c.l.b16 %v1309
      %v1829 = vunpack.c.l.b16 %v1310
      %v1830 = vunpack.c.l.b16 %v1311
      %v1831 = vunpack.c.l.b16 %v1312
      %v1832 = vunpack.c.l.b16 %v1313
      %v1833 = vunpack.c.l.b16 %v1314
      %v1834 = vunpack.c.l.b16 %v1315
      %v1835 = vpack.c.b16 %v1580, %v1579
      %v1836 = vpack.c.b16 %v1582, %v1581
      %v1837 = vpack.c.b16 %v1584, %v1583
      %v1838 = vpack.c.b16 %v1586, %v1585
      %v1839 = vpack.c.b16 %v1588, %v1587
      %v1840 = vpack.c.b16 %v1590, %v1589
      %v1841 = vpack.c.b16 %v1592, %v1591
      %v1842 = vpack.c.b16 %v1594, %v1593
      %v1843 = vpack.c.b16 %v1596, %v1595
      %v1844 = vpack.c.b16 %v1598, %v1597
      %v1845 = vpack.c.b16 %v1600, %v1599
      %v1846 = vpack.c.b16 %v1602, %v1601
      %v1847 = vpack.c.b16 %v1604, %v1603
      %v1848 = vpack.c.b16 %v1606, %v1605
      %v1849 = vpack.c.b16 %v1608, %v1607
      %v1850 = vpack.c.b16 %v1610, %v1609
      %v1851 = vpack.c.b16 %v1612, %v1611
      %v1852 = vpack.c.b16 %v1614, %v1613
      %v1853 = vpack.c.b16 %v1616, %v1615
      %v1854 = vpack.c.b16 %v1618, %v1617
      %v1855 = vpack.c.b16 %v1620, %v1619
      %v1856 = vpack.c.b16 %v1622, %v1621
      %v1857 = vpack.c.b16 %v1624, %v1623
      %v1858 = vpack.c.b16 %v1626, %v1625
      %v1859 = vpack.c.b16 %v1628, %v1627
      %v1860 = vpack.c.b16 %v1630, %v1629
      %v1861 = vpack.c.b16 %v1632, %v1631
      %v1862 = vpack.c.b16 %v1634, %v1633
      %v1863 = vpack.c.b16 %v1636, %v1635
      %v1864 = vpack.c.b16 %v1638, %v1637
      %v1865 = vpack.c.b16 %v1640, %v1639
      %v1866 = vpack.c.b16 %v1642, %v1641
      %v1867 = vpack.c.b16 %v1644, %v1643
      %v1868 = vpack.c.b16 %v1646, %v1645
      %v1869 = vpack.c.b16 %v1648, %v1647
      %v1870 = vpack.c.b16 %v1650, %v1649
      %v1871 = vpack.c.b16 %v1652, %v1651
      %v1872 = vpack.c.b16 %v1654, %v1653
      %v1873 = vpack.c.b16 %v1656, %v1655
      %v1874 = vpack.c.b16 %v1658, %v1657
      %v1875 = vpack.c.b16 %v1660, %v1659
      %v1876 = vpack.c.b16 %v1662, %v1661
      %v1877 = vpack.c.b16 %v1664, %v1663
      %v1878 = vpack.c.b16 %v1666, %v1665
      %v1879 = vpack.c.b16 %v1668, %v1667
      %v1880 = vpack.c.b16 %v1670, %v1669
      %v1881 = vpack.c.b16 %v1672, %v1671
      %v1882 = vpack.c.b16 %v1674, %v1673
      %v1883 = vpack.c.b16 %v1676, %v1675
      %v1884 = vpack.c.b16 %v1678, %v1677
      %v1885 = vpack.c.b16 %v1680, %v1679
      %v1886 = vpack.c.b16 %v1682, %v1681
      %v1887 = vpack.c.b16 %v1684, %v1683
      %v1888 = vpack.c.b16 %v1686, %v1685
      %v1889 = vpack.c.b16 %v1688, %v1687
      %v1890 = vpack.c.b16 %v1690, %v1689
      %v1891 = vpack.c.b16 %v1692, %v1691
      %v1892 = vpack.c.b16 %v1694, %v1693
      %v1893 = vpack.c.b16 %v1696, %v1695
      %v1894 = vpack.c.b16 %v1698, %v1697
      %v1895 = vpack.c.b16 %v1700, %v1699
      %v1896 = vpack.c.b16 %v1702, %v1701
      %v1897 = vpack.c.b16 %v1704, %v1703
      %v1898 = vpack.c.b16 %v1706, %v1705
      %v1899 = vpack.c.b16 %v1708, %v1707
      %v1900 = vpack.c.b16 %v1710, %v1709
      %v1901 = vpack.c.b16 %v1712, %v1711
      %v1902 = vpack.c.b16 %v1714, %v1713
      %v1903 = vpack.c.b16 %v1716, %v1715
      %v1904 = vpack.c.b16 %v1718, %v1717
      %v1905 = vpack.c.b16 %v1720, %v1719
      %v1906 = vpack.c.b16 %v1722, %v1721
      %v1907 = vpack.c.b16 %v1724, %v1723
      %v1908 = vpack.c.b16 %v1726, %v1725
      %v1909 = vpack.c.b16 %v1728, %v1727
      %v1910 = vpack.c.b16 %v1730, %v1729
      %v1911 = vpack.c.b16 %v1732, %v1731
      %v1912 = vpack.c.b16 %v1734, %v1733
      %v1913 = vpack.c.b16 %v1736, %v1735
      %v1914 = vpack.c.b16 %v1738, %v1737
      %v1915 = vpack.c.b16 %v1740, %v1739
      %v1916 = vpack.c.b16 %v1742, %v1741
      %v1917 = vpack.c.b16 %v1744, %v1743
      %v1918 = vpack.c.b16 %v1746, %v1745
      %v1919 = vpack.c.b16 %v1748, %v1747
      %v1920 = vpack.c.b16 %v1750, %v1749
      %v1921 = vpack.c.b16 %v1752, %v1751
      %v1922 = vpack.c.b16 %v1754, %v1753
      %v1923 = vpack.c.b16 %v1756, %v1755
      %v1924 = vpack.c.b16 %v1758, %v1757
      %v1925 = vpack.c.b16 %v1760, %v1759
      %v1926 = vpack.c.b16 %v1762, %v1761
      %v1927 = vpack.c.b16 %v1764, %v1763
      %v1928 = vpack.c.b16 %v1766, %v1765
      %v1929 = vpack.c.b16 %v1768, %v1767
      %v1930 = vpack.c.b16 %v1770, %v1769
      %v1931 = vpack.c.b16 %v1772, %v1771
      %v1932 = vpack.c.b16 %v1774, %v1773
      %v1933 = vpack.c.b16 %v1776, %v1775
      %v1934 = vpack.c.b16 %v1778, %v1777
      %v1935 = vpack.c.b16 %v1780, %v1779
      %v1936 = vpack.c.b16 %v1782, %v1781
      %v1937 = vpack.c.b16 %v1784, %v1783
      %v1938 = vpack.c.b16 %v1786, %v1785
      %v1939 = vpack.c.b16 %v1788, %v1787
      %v1940 = vpack.c.b16 %v1790, %v1789
      %v1941 = vpack.c.b16 %v1792, %v1791
      %v1942 = vpack.c.b16 %v1794, %v1793
      %v1943 = vpack.c.b16 %v1796, %v1795
      %v1944 = vpack.c.b16 %v1798, %v1797
      %v1945 = vpack.c.b16 %v1800, %v1799
      %v1946 = vpack.c.b16 %v1802, %v1801
      %v1947 = vpack.c.b16 %v1804, %v1803
      %v1948 = vpack.c.b16 %v1806, %v1805
      %v1949 = vpack.c.b16 %v1808, %v1807
      %v1950 = vpack.c.b16 %v1810, %v1809
      %v1951 = vpack.c.b16 %v1812, %v1811
      %v1952 = vpack.c.b16 %v1814, %v1813
      %v1953 = vpack.c.b16 %v1816, %v1815
      %v1954 = vpack.c.b16 %v1818, %v1817
      %v1955 = vpack.c.b16 %v1820, %v1819
      %v1956 = vpack.c.b16 %v1822, %v1821
      %v1957 = vpack.c.b16 %v1824, %v1823
      %v1958 = vpack.c.b16 %v1826, %v1825
      %v1959 = vpack.c.b16 %v1828, %v1827
      %v1960 = vpack.c.b16 %v1830, %v1829
      %v1961 = vpack.c.b16 %v1832, %v1831
      %v1962 = vpack.c.b16 %v1834, %v1833
      %2091 = vmatprep.subr.bf16.mxu0 0
      %2092 = vmatpush1.bf16.msra.mxu0 %v1842
      %2093 = vmatprep.subr.bf16.mxu0 0
      %2094 = vmatpush1.bf16.msra.mxu0 %v1841
      %2095 = vmatprep.subr.bf16.mxu0 0
      %2096 = vmatpush1.bf16.msra.mxu0 %v1840
      %2097 = vmatprep.subr.bf16.mxu0 0
      %2098 = vmatpush1.bf16.msra.mxu0 %v1839
      %2099 = vmatprep.subr.bf16.mxu0 0
      %2100 = vmatpush1.bf16.msra.mxu0 %v1838
      %2101 = vmatprep.subr.bf16.mxu0 0
      %2102 = vmatpush1.bf16.msra.mxu0 %v1837
      %2103 = vmatprep.subr.bf16.mxu0 0
      %2104 = vmatpush1.bf16.msra.mxu0 %v1836
      %2105 = vmatprep.subr.bf16.mxu0 0
      %2106 = vmatpush1.bf16.msra.mxu0 %v1835
      %2107 = vmatprep.subr.bf16.mxu0 0
      %2108 = vmatpush2.bf16.msra.mxu0 %v1850
      %2109 = vmatprep.subr.bf16.mxu0 0
      %2110 = vmatpush2.bf16.msra.mxu0 %v1849
      %2111 = vmatprep.subr.bf16.mxu0 0
      %2112 = vmatpush2.bf16.msra.mxu0 %v1848
      %2113 = vmatprep.subr.bf16.mxu0 0
      %2114 = vmatpush2.bf16.msra.mxu0 %v1847
      %2115 = vmatprep.subr.bf16.mxu0 0
      %2116 = vmatpush2.bf16.msra.mxu0 %v1846
      %2117 = vmatprep.subr.bf16.mxu0 0
      %2118 = vmatpush2.bf16.msra.mxu0 %v1845
      %2119 = vmatprep.subr.bf16.mxu0 0
      %2120 = vmatpush2.bf16.msra.mxu0 %v1844
      %2121 = vmatprep.subr.bf16.mxu0 0
      %2122 = vmatpush2.bf16.msra.mxu0 %v1843
      %2123 = vmatprep.mubr.bf16.mxu0 %v997
      %2124 = vmatmul.mubr.bf16.gmra.mxu0 %v996
      %v2125 = vpop.f32.mrf.mxu0
      %v2126 = vadd.f32 %v1321, %v2125
      %v2127 = vpop.f32.mrf.mxu0
      %v2128 = vpop.f32.mrf.mxu0
      %v2129 = vadd.f32 %v1321, %v2128
      %v2130 = vpop.f32.mrf.mxu0
      %2131 = vmatprep.mubr.bf16.mxu0 %v1013
      %2132 = vmatmul.mubr.bf16.gmra.mxu0 %v1012
      %v2133 = vpop.f32.mrf.mxu0
      %v2134 = vadd.f32 %v1321, %v2133
      %v2135 = vpop.f32.mrf.mxu0
      %v2136 = vpop.f32.mrf.mxu0
      %v2137 = vadd.f32 %v1321, %v2136
      %v2138 = vpop.f32.mrf.mxu0
      %2139 = vmatprep.mubr.bf16.mxu0 %v1029
      %2140 = vmatmul.mubr.bf16.gmra.mxu0 %v1028
      %v2141 = vpop.f32.mrf.mxu0
      %v2142 = vadd.f32 %v1321, %v2141
      %v2143 = vpop.f32.mrf.mxu0
      %v2144 = vpop.f32.mrf.mxu0
      %v2145 = vadd.f32 %v1321, %v2144
      %v2146 = vpop.f32.mrf.mxu0
      %2147 = vmatprep.mubr.bf16.mxu0 %v1045
      %2148 = vmatmul.mubr.bf16.gmra.mxu0 %v1044
      %v2149 = vpop.f32.mrf.mxu0
      %v2150 = vadd.f32 %v1321, %v2149
      %v2151 = vpop.f32.mrf.mxu0
      %v2152 = vpop.f32.mrf.mxu0
      %v2153 = vadd.f32 %v1321, %v2152
      %v2154 = vpop.f32.mrf.mxu0
      %2155 = vdwg.mxu0
      %2156 = vmatprep.subr.bf16.mxu0 0
      %2157 = vmatpush1.bf16.msra.mxu0 %v1858
      %2158 = vmatprep.subr.bf16.mxu0 0
      %2159 = vmatpush1.bf16.msra.mxu0 %v1857
      %2160 = vmatprep.subr.bf16.mxu0 0
      %2161 = vmatpush1.bf16.msra.mxu0 %v1856
      %2162 = vmatprep.subr.bf16.mxu0 0
      %2163 = vmatpush1.bf16.msra.mxu0 %v1855
      %2164 = vmatprep.subr.bf16.mxu0 0
      %2165 = vmatpush1.bf16.msra.mxu0 %v1854
      %2166 = vmatprep.subr.bf16.mxu0 0
      %2167 = vmatpush1.bf16.msra.mxu0 %v1853
      %2168 = vmatprep.subr.bf16.mxu0 0
      %2169 = vmatpush1.bf16.msra.mxu0 %v1852
      %2170 = vmatprep.subr.bf16.mxu0 0
      %2171 = vmatpush1.bf16.msra.mxu0 %v1851
      %2172 = vmatprep.subr.bf16.mxu0 0
      %2173 = vmatpush2.bf16.msra.mxu0 %v1866
      %2174 = vmatprep.subr.bf16.mxu0 0
      %2175 = vmatpush2.bf16.msra.mxu0 %v1865
      %2176 = vmatprep.subr.bf16.mxu0 0
      %2177 = vmatpush2.bf16.msra.mxu0 %v1864
      %2178 = vmatprep.subr.bf16.mxu0 0
      %2179 = vmatpush2.bf16.msra.mxu0 %v1863
      %2180 = vmatprep.subr.bf16.mxu0 0
      %2181 = vmatpush2.bf16.msra.mxu0 %v1862
      %2182 = vmatprep.subr.bf16.mxu0 0
      %2183 = vmatpush2.bf16.msra.mxu0 %v1861
      %2184 = vmatprep.subr.bf16.mxu0 0
      %2185 = vmatpush2.bf16.msra.mxu0 %v1860
      %2186 = vmatprep.subr.bf16.mxu0 0
      %2187 = vmatpush2.bf16.msra.mxu0 %v1859
      %2188 = vmatprep.mubr.bf16.mxu0 %v999
      %2189 = vmatmul.mubr.bf16.gmra.mxu0 %v998
      %v2190 = vpop.f32.mrf.mxu0
      %v2191 = vadd.f32 %v2126, %v2190
      %v2192 = vpop.f32.mrf.mxu0
      %v2193 = vpop.f32.mrf.mxu0
      %v2194 = vadd.f32 %v2129, %v2193
      %v2195 = vpop.f32.mrf.mxu0
      %2196 = vmatprep.mubr.bf16.mxu0 %v1015
      %2197 = vmatmul.mubr.bf16.gmra.mxu0 %v1014
      %v2198 = vpop.f32.mrf.mxu0
      %v2199 = vadd.f32 %v2134, %v2198
      %v2200 = vpop.f32.mrf.mxu0
      %v2201 = vpop.f32.mrf.mxu0
      %v2202 = vadd.f32 %v2137, %v2201
      %v2203 = vpop.f32.mrf.mxu0
      %2204 = vmatprep.mubr.bf16.mxu0 %v1031
      %2205 = vmatmul.mubr.bf16.gmra.mxu0 %v1030
      %v2206 = vpop.f32.mrf.mxu0
      %v2207 = vadd.f32 %v2142, %v2206
      %v2208 = vpop.f32.mrf.mxu0
      %v2209 = vpop.f32.mrf.mxu0
      %v2210 = vadd.f32 %v2145, %v2209
      %v2211 = vpop.f32.mrf.mxu0
      %2212 = vmatprep.mubr.bf16.mxu0 %v1047
      %2213 = vmatmul.mubr.bf16.gmra.mxu0 %v1046
      %v2214 = vpop.f32.mrf.mxu0
      %v2215 = vadd.f32 %v2150, %v2214
      %v2216 = vpop.f32.mrf.mxu0
      %v2217 = vpop.f32.mrf.mxu0
      %v2218 = vadd.f32 %v2153, %v2217
      %v2219 = vpop.f32.mrf.mxu0
      %2220 = vdwg.mxu0
      %2221 = vmatprep.subr.bf16.mxu0 0
      %2222 = vmatpush1.bf16.msra.mxu0 %v1874
      %2223 = vmatprep.subr.bf16.mxu0 0
      %2224 = vmatpush1.bf16.msra.mxu0 %v1873
      %2225 = vmatprep.subr.bf16.mxu0 0
      %2226 = vmatpush1.bf16.msra.mxu0 %v1872
      %2227 = vmatprep.subr.bf16.mxu0 0
      %2228 = vmatpush1.bf16.msra.mxu0 %v1871
      %2229 = vmatprep.subr.bf16.mxu0 0
      %2230 = vmatpush1.bf16.msra.mxu0 %v1870
      %2231 = vmatprep.subr.bf16.mxu0 0
      %2232 = vmatpush1.bf16.msra.mxu0 %v1869
      %2233 = vmatprep.subr.bf16.mxu0 0
      %2234 = vmatpush1.bf16.msra.mxu0 %v1868
      %2235 = vmatprep.subr.bf16.mxu0 0
      %2236 = vmatpush1.bf16.msra.mxu0 %v1867
      %2237 = vmatprep.subr.bf16.mxu0 0
      %2238 = vmatpush2.bf16.msra.mxu0 %v1882
      %2239 = vmatprep.subr.bf16.mxu0 0
      %2240 = vmatpush2.bf16.msra.mxu0 %v1881
      %2241 = vmatprep.subr.bf16.mxu0 0
      %2242 = vmatpush2.bf16.msra.mxu0 %v1880
      %2243 = vmatprep.subr.bf16.mxu0 0
      %2244 = vmatpush2.bf16.msra.mxu0 %v1879
      %2245 = vmatprep.subr.bf16.mxu0 0
      %2246 = vmatpush2.bf16.msra.mxu0 %v1878
      %2247 = vmatprep.subr.bf16.mxu0 0
      %2248 = vmatpush2.bf16.msra.mxu0 %v1877
      %2249 = vmatprep.subr.bf16.mxu0 0
      %2250 = vmatpush2.bf16.msra.mxu0 %v1876
      %2251 = vmatprep.subr.bf16.mxu0 0
      %2252 = vmatpush2.bf16.msra.mxu0 %v1875
      %2253 = vmatprep.mubr.bf16.mxu0 %v1001
      %2254 = vmatmul.mubr.bf16.gmra.mxu0 %v1000
      %v2255 = vpop.f32.mrf.mxu0
      %v2256 = vadd.f32 %v2191, %v2255
      %v2257 = vpop.f32.mrf.mxu0
      %v2258 = vpop.f32.mrf.mxu0
      %v2259 = vadd.f32 %v2194, %v2258
      %v2260 = vpop.f32.mrf.mxu0
      %2261 = vmatprep.mubr.bf16.mxu0 %v1017
      %2262 = vmatmul.mubr.bf16.gmra.mxu0 %v1016
      %v2263 = vpop.f32.mrf.mxu0
      %v2264 = vadd.f32 %v2199, %v2263
      %v2265 = vpop.f32.mrf.mxu0
      %v2266 = vpop.f32.mrf.mxu0
      %v2267 = vadd.f32 %v2202, %v2266
      %v2268 = vpop.f32.mrf.mxu0
      %2269 = vmatprep.mubr.bf16.mxu0 %v1033
      %2270 = vmatmul.mubr.bf16.gmra.mxu0 %v1032
      %v2271 = vpop.f32.mrf.mxu0
      %v2272 = vadd.f32 %v2207, %v2271
      %v2273 = vpop.f32.mrf.mxu0
      %v2274 = vpop.f32.mrf.mxu0
      %v2275 = vadd.f32 %v2210, %v2274
      %v2276 = vpop.f32.mrf.mxu0
      %2277 = vmatprep.mubr.bf16.mxu0 %v1049
      %2278 = vmatmul.mubr.bf16.gmra.mxu0 %v1048
      %v2279 = vpop.f32.mrf.mxu0
      %v2280 = vadd.f32 %v2215, %v2279
      %v2281 = vpop.f32.mrf.mxu0
      %v2282 = vpop.f32.mrf.mxu0
      %v2283 = vadd.f32 %v2218, %v2282
      %v2284 = vpop.f32.mrf.mxu0
      %2285 = vdwg.mxu0
      %2286 = vmatprep.subr.bf16.mxu0 0
      %2287 = vmatpush1.bf16.msra.mxu0 %v1890
      %2288 = vmatprep.subr.bf16.mxu0 0
      %2289 = vmatpush1.bf16.msra.mxu0 %v1889
      %2290 = vmatprep.subr.bf16.mxu0 0
      %2291 = vmatpush1.bf16.msra.mxu0 %v1888
      %2292 = vmatprep.subr.bf16.mxu0 0
      %2293 = vmatpush1.bf16.msra.mxu0 %v1887
      %2294 = vmatprep.subr.bf16.mxu0 0
      %2295 = vmatpush1.bf16.msra.mxu0 %v1886
      %2296 = vmatprep.subr.bf16.mxu0 0
      %2297 = vmatpush1.bf16.msra.mxu0 %v1885
      %2298 = vmatprep.subr.bf16.mxu0 0
      %2299 = vmatpush1.bf16.msra.mxu0 %v1884
      %2300 = vmatprep.subr.bf16.mxu0 0
      %2301 = vmatpush1.bf16.msra.mxu0 %v1883
      %2302 = vmatprep.subr.bf16.mxu0 0
      %2303 = vmatpush2.bf16.msra.mxu0 %v1898
      %2304 = vmatprep.subr.bf16.mxu0 0
      %2305 = vmatpush2.bf16.msra.mxu0 %v1897
      %2306 = vmatprep.subr.bf16.mxu0 0
      %2307 = vmatpush2.bf16.msra.mxu0 %v1896
      %2308 = vmatprep.subr.bf16.mxu0 0
      %2309 = vmatpush2.bf16.msra.mxu0 %v1895
      %2310 = vmatprep.subr.bf16.mxu0 0
      %2311 = vmatpush2.bf16.msra.mxu0 %v1894
      %2312 = vmatprep.subr.bf16.mxu0 0
      %2313 = vmatpush2.bf16.msra.mxu0 %v1893
      %2314 = vmatprep.subr.bf16.mxu0 0
      %2315 = vmatpush2.bf16.msra.mxu0 %v1892
      %2316 = vmatprep.subr.bf16.mxu0 0
      %2317 = vmatpush2.bf16.msra.mxu0 %v1891
      %2318 = vmatprep.mubr.bf16.mxu0 %v1003
      %2319 = vmatmul.mubr.bf16.gmra.mxu0 %v1002
      %v2320 = vpop.f32.mrf.mxu0
      %v2321 = vadd.f32 %v2256, %v2320
      %v2322 = vpop.f32.mrf.mxu0
      %v2323 = vpop.f32.mrf.mxu0
      %v2324 = vadd.f32 %v2259, %v2323
      %v2325 = vpop.f32.mrf.mxu0
      %2326 = vmatprep.mubr.bf16.mxu0 %v1019
      %2327 = vmatmul.mubr.bf16.gmra.mxu0 %v1018
      %v2328 = vpop.f32.mrf.mxu0
      %v2329 = vadd.f32 %v2264, %v2328
      %v2330 = vpop.f32.mrf.mxu0
      %v2331 = vpop.f32.mrf.mxu0
      %v2332 = vadd.f32 %v2267, %v2331
      %v2333 = vpop.f32.mrf.mxu0
      %2334 = vmatprep.mubr.bf16.mxu0 %v1035
      %2335 = vmatmul.mubr.bf16.gmra.mxu0 %v1034
      %v2336 = vpop.f32.mrf.mxu0
      %v2337 = vadd.f32 %v2272, %v2336
      %v2338 = vpop.f32.mrf.mxu0
      %v2339 = vpop.f32.mrf.mxu0
      %v2340 = vadd.f32 %v2275, %v2339
      %v2341 = vpop.f32.mrf.mxu0
      %2342 = vmatprep.mubr.bf16.mxu0 %v1051
      %2343 = vmatmul.mubr.bf16.gmra.mxu0 %v1050
      %v2344 = vpop.f32.mrf.mxu0
      %v2345 = vadd.f32 %v2280, %v2344
      %v2346 = vpop.f32.mrf.mxu0
      %v2347 = vpop.f32.mrf.mxu0
      %v2348 = vadd.f32 %v2283, %v2347
      %v2349 = vpop.f32.mrf.mxu0
      %2350 = vdwg.mxu0
      %2351 = vmatprep.subr.bf16.mxu0 0
      %2352 = vmatpush1.bf16.msra.mxu0 %v1906
      %2353 = vmatprep.subr.bf16.mxu0 0
      %2354 = vmatpush1.bf16.msra.mxu0 %v1905
      %2355 = vmatprep.subr.bf16.mxu0 0
      %2356 = vmatpush1.bf16.msra.mxu0 %v1904
      %2357 = vmatprep.subr.bf16.mxu0 0
      %2358 = vmatpush1.bf16.msra.mxu0 %v1903
      %2359 = vmatprep.subr.bf16.mxu0 0
      %2360 = vmatpush1.bf16.msra.mxu0 %v1902
      %2361 = vmatprep.subr.bf16.mxu0 0
      %2362 = vmatpush1.bf16.msra.mxu0 %v1901
      %2363 = vmatprep.subr.bf16.mxu0 0
      %2364 = vmatpush1.bf16.msra.mxu0 %v1900
      %2365 = vmatprep.subr.bf16.mxu0 0
      %2366 = vmatpush1.bf16.msra.mxu0 %v1899
      %2367 = vmatprep.subr.bf16.mxu0 0
      %2368 = vmatpush2.bf16.msra.mxu0 %v1914
      %2369 = vmatprep.subr.bf16.mxu0 0
      %2370 = vmatpush2.bf16.msra.mxu0 %v1913
      %2371 = vmatprep.subr.bf16.mxu0 0
      %2372 = vmatpush2.bf16.msra.mxu0 %v1912
      %2373 = vmatprep.subr.bf16.mxu0 0
      %2374 = vmatpush2.bf16.msra.mxu0 %v1911
      %2375 = vmatprep.subr.bf16.mxu0 0
      %2376 = vmatpush2.bf16.msra.mxu0 %v1910
      %2377 = vmatprep.subr.bf16.mxu0 0
      %2378 = vmatpush2.bf16.msra.mxu0 %v1909
      %2379 = vmatprep.subr.bf16.mxu0 0
      %2380 = vmatpush2.bf16.msra.mxu0 %v1908
      %2381 = vmatprep.subr.bf16.mxu0 0
      %2382 = vmatpush2.bf16.msra.mxu0 %v1907
      %2383 = vmatprep.mubr.bf16.mxu0 %v1005
      %2384 = vmatmul.mubr.bf16.gmra.mxu0 %v1004
      %v2385 = vpop.f32.mrf.mxu0
      %v2386 = vadd.f32 %v2321, %v2385
      %v2387 = vpop.f32.mrf.mxu0
      %v2388 = vpop.f32.mrf.mxu0
      %v2389 = vadd.f32 %v2324, %v2388
      %v2390 = vpop.f32.mrf.mxu0
      %2391 = vmatprep.mubr.bf16.mxu0 %v1021
      %2392 = vmatmul.mubr.bf16.gmra.mxu0 %v1020
      %v2393 = vpop.f32.mrf.mxu0
      %v2394 = vadd.f32 %v2329, %v2393
      %v2395 = vpop.f32.mrf.mxu0
      %v2396 = vpop.f32.mrf.mxu0
      %v2397 = vadd.f32 %v2332, %v2396
      %v2398 = vpop.f32.mrf.mxu0
      %2399 = vmatprep.mubr.bf16.mxu0 %v1037
      %2400 = vmatmul.mubr.bf16.gmra.mxu0 %v1036
      %v2401 = vpop.f32.mrf.mxu0
      %v2402 = vadd.f32 %v2337, %v2401
      %v2403 = vpop.f32.mrf.mxu0
      %v2404 = vpop.f32.mrf.mxu0
      %v2405 = vadd.f32 %v2340, %v2404
      %v2406 = vpop.f32.mrf.mxu0
      %2407 = vmatprep.mubr.bf16.mxu0 %v1053
      %2408 = vmatmul.mubr.bf16.gmra.mxu0 %v1052
      %v2409 = vpop.f32.mrf.mxu0
      %v2410 = vadd.f32 %v2345, %v2409
      %v2411 = vpop.f32.mrf.mxu0
      %v2412 = vpop.f32.mrf.mxu0
      %v2413 = vadd.f32 %v2348, %v2412
      %v2414 = vpop.f32.mrf.mxu0
      %2415 = vdwg.mxu0
      %2416 = vmatprep.subr.bf16.mxu0 0
      %2417 = vmatpush1.bf16.msra.mxu0 %v1922
      %2418 = vmatprep.subr.bf16.mxu0 0
      %2419 = vmatpush1.bf16.msra.mxu0 %v1921
      %2420 = vmatprep.subr.bf16.mxu0 0
      %2421 = vmatpush1.bf16.msra.mxu0 %v1920
      %2422 = vmatprep.subr.bf16.mxu0 0
      %2423 = vmatpush1.bf16.msra.mxu0 %v1919
      %2424 = vmatprep.subr.bf16.mxu0 0
      %2425 = vmatpush1.bf16.msra.mxu0 %v1918
      %2426 = vmatprep.subr.bf16.mxu0 0
      %2427 = vmatpush1.bf16.msra.mxu0 %v1917
      %2428 = vmatprep.subr.bf16.mxu0 0
      %2429 = vmatpush1.bf16.msra.mxu0 %v1916
      %2430 = vmatprep.subr.bf16.mxu0 0
      %2431 = vmatpush1.bf16.msra.mxu0 %v1915
      %2432 = vmatprep.subr.bf16.mxu0 0
      %2433 = vmatpush2.bf16.msra.mxu0 %v1930
      %2434 = vmatprep.subr.bf16.mxu0 0
      %2435 = vmatpush2.bf16.msra.mxu0 %v1929
      %2436 = vmatprep.subr.bf16.mxu0 0
      %2437 = vmatpush2.bf16.msra.mxu0 %v1928
      %2438 = vmatprep.subr.bf16.mxu0 0
      %2439 = vmatpush2.bf16.msra.mxu0 %v1927
      %2440 = vmatprep.subr.bf16.mxu0 0
      %2441 = vmatpush2.bf16.msra.mxu0 %v1926
      %2442 = vmatprep.subr.bf16.mxu0 0
      %2443 = vmatpush2.bf16.msra.mxu0 %v1925
      %2444 = vmatprep.subr.bf16.mxu0 0
      %2445 = vmatpush2.bf16.msra.mxu0 %v1924
      %2446 = vmatprep.subr.bf16.mxu0 0
      %2447 = vmatpush2.bf16.msra.mxu0 %v1923
      %2448 = vmatprep.mubr.bf16.mxu0 %v1007
      %2449 = vmatmul.mubr.bf16.gmra.mxu0 %v1006
      %v2450 = vpop.f32.mrf.mxu0
      %v2451 = vadd.f32 %v2386, %v2450
      %v2452 = vpop.f32.mrf.mxu0
      %v2453 = vpop.f32.mrf.mxu0
      %v2454 = vadd.f32 %v2389, %v2453
      %v2455 = vpop.f32.mrf.mxu0
      %2456 = vmatprep.mubr.bf16.mxu0 %v1023
      %2457 = vmatmul.mubr.bf16.gmra.mxu0 %v1022
      %v2458 = vpop.f32.mrf.mxu0
      %v2459 = vadd.f32 %v2394, %v2458
      %v2460 = vpop.f32.mrf.mxu0
      %v2461 = vpop.f32.mrf.mxu0
      %v2462 = vadd.f32 %v2397, %v2461
      %v2463 = vpop.f32.mrf.mxu0
      %2464 = vmatprep.mubr.bf16.mxu0 %v1039
      %2465 = vmatmul.mubr.bf16.gmra.mxu0 %v1038
      %v2466 = vpop.f32.mrf.mxu0
      %v2467 = vadd.f32 %v2402, %v2466
      %v2468 = vpop.f32.mrf.mxu0
      %v2469 = vpop.f32.mrf.mxu0
      %v2470 = vadd.f32 %v2405, %v2469
      %v2471 = vpop.f32.mrf.mxu0
      %2472 = vmatprep.mubr.bf16.mxu0 %v1055
      %2473 = vmatmul.mubr.bf16.gmra.mxu0 %v1054
      %v2474 = vpop.f32.mrf.mxu0
      %v2475 = vadd.f32 %v2410, %v2474
      %v2476 = vpop.f32.mrf.mxu0
      %v2477 = vpop.f32.mrf.mxu0
      %v2478 = vadd.f32 %v2413, %v2477
      %v2479 = vpop.f32.mrf.mxu0
      %2480 = vdwg.mxu0
      %2481 = vmatprep.subr.bf16.mxu0 0
      %2482 = vmatpush1.bf16.msra.mxu0 %v1938
      %2483 = vmatprep.subr.bf16.mxu0 0
      %2484 = vmatpush1.bf16.msra.mxu0 %v1937
      %2485 = vmatprep.subr.bf16.mxu0 0
      %2486 = vmatpush1.bf16.msra.mxu0 %v1936
      %2487 = vmatprep.subr.bf16.mxu0 0
      %2488 = vmatpush1.bf16.msra.mxu0 %v1935
      %2489 = vmatprep.subr.bf16.mxu0 0
      %2490 = vmatpush1.bf16.msra.mxu0 %v1934
      %2491 = vmatprep.subr.bf16.mxu0 0
      %2492 = vmatpush1.bf16.msra.mxu0 %v1933
      %2493 = vmatprep.subr.bf16.mxu0 0
      %2494 = vmatpush1.bf16.msra.mxu0 %v1932
      %2495 = vmatprep.subr.bf16.mxu0 0
      %2496 = vmatpush1.bf16.msra.mxu0 %v1931
      %2497 = vmatprep.subr.bf16.mxu0 0
      %2498 = vmatpush2.bf16.msra.mxu0 %v1946
      %2499 = vmatprep.subr.bf16.mxu0 0
      %2500 = vmatpush2.bf16.msra.mxu0 %v1945
      %2501 = vmatprep.subr.bf16.mxu0 0
      %2502 = vmatpush2.bf16.msra.mxu0 %v1944
      %2503 = vmatprep.subr.bf16.mxu0 0
      %2504 = vmatpush2.bf16.msra.mxu0 %v1943
      %2505 = vmatprep.subr.bf16.mxu0 0
      %2506 = vmatpush2.bf16.msra.mxu0 %v1942
      %2507 = vmatprep.subr.bf16.mxu0 0
      %2508 = vmatpush2.bf16.msra.mxu0 %v1941
      %2509 = vmatprep.subr.bf16.mxu0 0
      %2510 = vmatpush2.bf16.msra.mxu0 %v1940
      %2511 = vmatprep.subr.bf16.mxu0 0
      %2512 = vmatpush2.bf16.msra.mxu0 %v1939
      %2513 = vmatprep.mubr.bf16.mxu0 %v1009
      %2514 = vmatmul.mubr.bf16.gmra.mxu0 %v1008
      %v2515 = vpop.f32.mrf.mxu0
      %v2516 = vadd.f32 %v2451, %v2515
      %v2517 = vpop.f32.mrf.mxu0
      %v2518 = vpop.f32.mrf.mxu0
      %v2519 = vadd.f32 %v2454, %v2518
      %v2520 = vpop.f32.mrf.mxu0
      %2521 = vmatprep.mubr.bf16.mxu0 %v1025
      %2522 = vmatmul.mubr.bf16.gmra.mxu0 %v1024
      %v2523 = vpop.f32.mrf.mxu0
      %v2524 = vadd.f32 %v2459, %v2523
      %v2525 = vpop.f32.mrf.mxu0
      %v2526 = vpop.f32.mrf.mxu0
      %v2527 = vadd.f32 %v2462, %v2526
      %v2528 = vpop.f32.mrf.mxu0
      %2529 = vmatprep.mubr.bf16.mxu0 %v1041
      %2530 = vmatmul.mubr.bf16.gmra.mxu0 %v1040
      %v2531 = vpop.f32.mrf.mxu0
      %v2532 = vadd.f32 %v2467, %v2531
      %v2533 = vpop.f32.mrf.mxu0
      %v2534 = vpop.f32.mrf.mxu0
      %v2535 = vadd.f32 %v2470, %v2534
      %v2536 = vpop.f32.mrf.mxu0
      %2537 = vmatprep.mubr.bf16.mxu0 %v1057
      %2538 = vmatmul.mubr.bf16.gmra.mxu0 %v1056
      %v2539 = vpop.f32.mrf.mxu0
      %v2540 = vadd.f32 %v2475, %v2539
      %v2541 = vpop.f32.mrf.mxu0
      %v2542 = vpop.f32.mrf.mxu0
      %v2543 = vadd.f32 %v2478, %v2542
      %v2544 = vpop.f32.mrf.mxu0
      %2545 = vdwg.mxu0
      %2546 = vmatprep.subr.bf16.mxu0 0
      %2547 = vmatpush1.bf16.msra.mxu0 %v1954
      %2548 = vmatprep.subr.bf16.mxu0 0
      %2549 = vmatpush1.bf16.msra.mxu0 %v1953
      %2550 = vmatprep.subr.bf16.mxu0 0
      %2551 = vmatpush1.bf16.msra.mxu0 %v1952
      %2552 = vmatprep.subr.bf16.mxu0 0
      %2553 = vmatpush1.bf16.msra.mxu0 %v1951
      %2554 = vmatprep.subr.bf16.mxu0 0
      %2555 = vmatpush1.bf16.msra.mxu0 %v1950
      %2556 = vmatprep.subr.bf16.mxu0 0
      %2557 = vmatpush1.bf16.msra.mxu0 %v1949
      %2558 = vmatprep.subr.bf16.mxu0 0
      %2559 = vmatpush1.bf16.msra.mxu0 %v1948
      %2560 = vmatprep.subr.bf16.mxu0 0
      %2561 = vmatpush1.bf16.msra.mxu0 %v1947
      %2562 = vmatprep.subr.bf16.mxu0 0
      %2563 = vmatpush2.bf16.msra.mxu0 %v1962
      %2564 = vmatprep.subr.bf16.mxu0 0
      %2565 = vmatpush2.bf16.msra.mxu0 %v1961
      %2566 = vmatprep.subr.bf16.mxu0 0
      %2567 = vmatpush2.bf16.msra.mxu0 %v1960
      %2568 = vmatprep.subr.bf16.mxu0 0
      %2569 = vmatpush2.bf16.msra.mxu0 %v1959
      %2570 = vmatprep.subr.bf16.mxu0 0
      %2571 = vmatpush2.bf16.msra.mxu0 %v1958
      %2572 = vmatprep.subr.bf16.mxu0 0
      %2573 = vmatpush2.bf16.msra.mxu0 %v1957
      %2574 = vmatprep.subr.bf16.mxu0 0
      %2575 = vmatpush2.bf16.msra.mxu0 %v1956
      %2576 = vmatprep.subr.bf16.mxu0 0
      %2577 = vmatpush2.bf16.msra.mxu0 %v1955
      %2578 = vmatprep.mubr.bf16.mxu0 %v1011
      %2579 = vmatmul.mubr.bf16.gmra.mxu0 %v1010
      %v2580 = vpop.f32.mrf.mxu0
      %v2581 = vadd.f32 %v2516, %v2580
      %v2582 = vpop.f32.mrf.mxu0
      %v2583 = vpop.f32.mrf.mxu0
      %v2584 = vadd.f32 %v2519, %v2583
      %v2585 = vpop.f32.mrf.mxu0
      %2586 = vmatprep.mubr.bf16.mxu0 %v1027
      %2587 = vmatmul.mubr.bf16.gmra.mxu0 %v1026
      %v2588 = vpop.f32.mrf.mxu0
      %v2589 = vadd.f32 %v2524, %v2588
      %v2590 = vpop.f32.mrf.mxu0
      %v2591 = vpop.f32.mrf.mxu0
      %v2592 = vadd.f32 %v2527, %v2591
      %v2593 = vpop.f32.mrf.mxu0
      %2594 = vmatprep.mubr.bf16.mxu0 %v1043
      %2595 = vmatmul.mubr.bf16.gmra.mxu0 %v1042
      %v2596 = vpop.f32.mrf.mxu0
      %v2597 = vadd.f32 %v2532, %v2596
      %v2598 = vpop.f32.mrf.mxu0
      %v2599 = vpop.f32.mrf.mxu0
      %v2600 = vadd.f32 %v2535, %v2599
      %v2601 = vpop.f32.mrf.mxu0
      %2602 = vmatprep.mubr.bf16.mxu0 %v1059
      %2603 = vmatmul.mubr.bf16.gmra.mxu0 %v1058
      %v2604 = vpop.f32.mrf.mxu0
      %v2605 = vadd.f32 %v2540, %v2604
      %v2606 = vpop.f32.mrf.mxu0
      %v2607 = vpop.f32.mrf.mxu0
      %v2608 = vadd.f32 %v2543, %v2607
      %v2609 = vpop.f32.mrf.mxu0
      %2610 = vdwg.mxu0
      %2611 = vst [vmem:[%s278] sm:$0xff] %v2581
      %2612 = vst [vmem:[%s278 + $0x8] sm:$0xff] %v2584
      %2613 = vst [vmem:[%s278 + $0x10] sm:$0xff] %v2589
      %2614 = vst [vmem:[%s278 + $0x18] sm:$0xff] %v2592
      %2615 = vst [vmem:[%s278 + $0x20] sm:$0xff] %v2597
      %2616 = vst [vmem:[%s278 + $0x28] sm:$0xff] %v2600
      %2617 = vst [vmem:[%s278 + $0x30] sm:$0xff] %v2605
      %2618 = vst [vmem:[%s278 + $0x38] sm:$0xff] %v2608
      %p2619 = scmp.lt.s32.totalorder %s18, 1
      %s2620 = scalar_select %p2619, %s18, 1
      %s2621 = smul.addr %s2620, 8
      %s2622 = smul.addr %s2621, 8
      %s2623 = scalar_lea.vmem %s7, %s2622
      // Predicated region
      $region49: #{block_forward.5} parent=47 // pred_check
        %p2624 = pneg %p188
      $region50: #{block_forward.5} parent=47 // pred_check_branch
        %2626 = sbr.rel (%p2624) target = $region52
      $region51: #{block_forward.5} parent=47 // pred_region
        _
      $region52: #{block_forward.5} parent=47 // pred_fallthru
        _
    $region48: #{block_forward.5} parent=5 // pred_fallthru
      _
    %p2627 = scmp.le.s32.totalorder 2, %s13
    // Predicated region
    $region53: #{block_forward.5} parent=5 // pred_check
      %p2628 = pneg %p2627
    $region54: #{block_forward.5} parent=5 // pred_check_branch
      %2630 = sbr.rel (%p2628) target = $region56
    $region55: #{block_forward.5} parent=5 // pred_region
      %s2631 = ssub.s32 %s13, 2
      // Predicated region
      $region57: #{block_forward.5} parent=55 // pred_check
        %p2632 = pneg %p194
      $region58: #{block_forward.5} parent=55 // pred_check_branch
        %2634 = sbr.rel (%p2632) target = $region60
      $region59: #{block_forward.5} parent=55 // pred_region
        %p2635 = scmp.lt.s32.totalorder %s19, 1
        %s2636 = scalar_select %p2635, %s19, 1
        %s2637 = smul.addr %s2636, 8
        %s2638 = smul.addr %s2637, 8
        %s2639 = scalar_lea.vmem %s7, %s2638
      $region60: #{block_forward.5} parent=55 // pred_fallthru
        _
    $region56: #{block_forward.5} parent=5 // pred_fallthru
      _
  $region6: #{block_forward.5} parent=0 // loop_footer
    %s17 = sadd.s32 1, %s13
  $region7: #{block_forward.5} parent=0 // loop_footer_branch
    %12 = sbr.rel target = $region3
  $region8: #{block_forward.5} parent=0 // loop_exit
    _

// kernel: block_forward.4
$region0: #{block_forward.4}
  #allocation0 [shape = 'u32[]', space=smem, size = 0x4, offset = 0x4, fixed_abs, tag = 'smem constant byte address 0x4 - core index']
  #allocation1 [shape = 'u32[144,128]{1,0:T(1,128)}', space=vmem, size = 0x12000, scoped, tag = 'internal scratch']
  #allocation2 [shape = 'f32[16,16,128]{2,1,0:T(8,128)}', space=vmem, size = 0x20000, scoped, tag = 'scratch operand']
  #allocation3 [shape = 'f32[16,16,1152]{2,1,0:T(8,128)}', space=vmem, size = 0x120000, scoped, tag = 'scratch operand']
  %s0 = inlined_call_operand.vmem [shape: bf16[2,16,16,128], index: 0, kind: input, shape index: {}]
  %s1 = inlined_call_operand.vmem [shape: f32[2,1,128], index: 1, kind: input, shape index: {}]
  %s2 = inlined_call_operand.vmem [shape: f32[2,1,128], index: 2, kind: input, shape index: {}]
  %s3 = inlined_call_operand.vmem [shape: f32[2,1,128], index: 3, kind: input, shape index: {}]
  %s4 = inlined_call_operand.vmem [shape: f32[1,128], index: 4, kind: input, shape index: {}]
  %s5 = inlined_call_operand.vmem [shape: f32[1,128], index: 5, kind: input, shape index: {}]
  %s6 = inlined_call_operand.vmem [shape: bf16[1152,128], index: 6, kind: input, shape index: {}]
  %s7 = inlined_call_operand.vmem [shape: f32[1,128], index: 7, kind: input, shape index: {}]
  %s8 = inlined_call_operand.vmem [shape: bf16[2,16,16,128], index: 8, kind: output, shape index: {0}]
  %s9 = inlined_call_operand.vmem [shape: f32[2,1,128], index: 9, kind: output, shape index: {1}]
  %s10 = inlined_call_operand.vmem [shape: f32[2,1,128], index: 10, kind: output, shape index: {2}]
  %11 = xla_tuple %s8, %s9, %s10
  %s12 = sld [smem:[#allocation0]]
  $region81: #{block_forward.4} parent=0
    _
  %s14 = ssub.s32 1, %s12
  %s15 = scalar_select 0, %s14, %s12
  loop: start=0, step=1, limit=4
  $region2: #{block_forward.4} parent=0 // loop_pre_header
    _
  $region3: #{block_forward.4} parent=0 // loop_header
    %s17 = sphi 0, %s21
    %p18 = scmp.ge.s32.totalorder %s17, 4
    %s27 = sphi 0, %s29
    %s30 = sphi 0, %s27
    %s31 = sphi 0, %s30
    %s47 = sphi 0, %s31
    %s51 = sphi 0, %s51
    %s53 = sphi 0, %s51
    %s54 = sphi 0, %s53
    %s68 = sphi 0, %s54
    %s72 = sphi 0, %s72
    %s74 = sphi 0, %s72
    %s75 = sphi 0, %s74
    %s89 = sphi 0, %s75
    %s95 = sphi 0, %s97
    %s98 = sphi 0, %s95
    %s99 = sphi 0, %s98
    %s115 = sphi 0, %s99
    %s119 = sphi 0, %s119
    %s121 = sphi 0, %s119
    %s122 = sphi 0, %s121
    %s136 = sphi 0, %s122
    %s140 = sphi 0, %s140
    %s142 = sphi 0, %s140
    %s143 = sphi 0, %s142
    %s157 = sphi 0, %s143
    %s161 = sphi 0, %s161
    %s163 = sphi 0, %s161
    %s164 = sphi 0, %s163
    %s178 = sphi 0, %s164
    %s182 = sphi 0, %s182
    %s184 = sphi 0, %s182
    %s185 = sphi 0, %s184
    %s199 = sphi 0, %s185
    %s205 = sphi 0, %s207
    %s208 = sphi 0, %s205
    %s209 = sphi 0, %s208
    %s225 = sphi 0, %s209
    %s231 = sphi 0, %s233
    %s234 = sphi 0, %s231
    %s235 = sphi 0, %s234
    %s251 = sphi 0, %s235
    %s257 = sphi 0, %s259
    %s260 = sphi 0, %s257
    %s261 = sphi 0, %s260
    %s277 = sphi 0, %s261
  $region4: #{block_forward.4} parent=0 // loop_header_branch
    %20 = sbr.rel (%p18) target = $region8
  $region5: #{block_forward.4} parent=0 // loop_body
    %s22 = ssub.s32 %s17, 1
    %s23 = ssub.s32 %s17, 2
    %s24 = sadd.s32 %s17, 1
    %s25 = ssub.s32 %s17, %s24
    %p26 = scmp.eq.s32.totalorder %s25, 0
    %s28 = sadd.s32 %s27, 1
    %s29 = scalar_select %p26, %s27, %s28
    %p32 = pneg %p26
    %p33 = scmp.eq.s32.totalorder %s17, 1
    %p34 = por %p32, %p33
    %p35 = scmp.ne.s32.totalorder %s27, %s30
    %p36 = scmp.eq.s32.totalorder %s17, 0
    %p37 = por %p35, %p36
    %p38 = scmp.ne.s32.totalorder %s27, %s30
    %p39 = scmp.eq.s32.totalorder %s22, 1
    %p40 = por %p38, %p39
    %p41 = scmp.ne.s32.totalorder %s30, %s31
    %p42 = scmp.eq.s32.totalorder %s22, 0
    %p43 = por %p41, %p42
    %p44 = scmp.ne.s32.totalorder %s30, %s31
    %p45 = scmp.eq.s32.totalorder %s23, 1
    %p46 = por %p44, %p45
    %p48 = scmp.ne.s32.totalorder %s31, %s47
    %p49 = scmp.eq.s32.totalorder %s23, 0
    %p50 = por %p48, %p49
    %s52 = sadd.s32 %s51, 1
    %p55 = scmp.eq.s32.totalorder %s17, 1
    %p56 = scmp.ne.s32.totalorder %s51, %s53
    %p57 = scmp.eq.s32.totalorder %s17, 0
    %p58 = por %p56, %p57
    %p59 = scmp.ne.s32.totalorder %s51, %s53
    %p60 = scmp.eq.s32.totalorder %s22, 1
    %p61 = por %p59, %p60
    %p62 = scmp.ne.s32.totalorder %s53, %s54
    %p63 = scmp.eq.s32.totalorder %s22, 0
    %p64 = por %p62, %p63
    %p65 = scmp.ne.s32.totalorder %s53, %s54
    %p66 = scmp.eq.s32.totalorder %s23, 1
    %p67 = por %p65, %p66
    %p69 = scmp.ne.s32.totalorder %s54, %s68
    %p70 = scmp.eq.s32.totalorder %s23, 0
    %p71 = por %p69, %p70
    %s73 = sadd.s32 %s72, 1
    %p76 = scmp.eq.s32.totalorder %s17, 1
    %p77 = scmp.ne.s32.totalorder %s72, %s74
    %p78 = scmp.eq.s32.totalorder %s17, 0
    %p79 = por %p77, %p78
    %p80 = scmp.ne.s32.totalorder %s72, %s74
    %p81 = scmp.eq.s32.totalorder %s22, 1
    %p82 = por %p80, %p81
    %p83 = scmp.ne.s32.totalorder %s74, %s75
    %p84 = scmp.eq.s32.totalorder %s22, 0
    %p85 = por %p83, %p84
    %p86 = scmp.ne.s32.totalorder %s74, %s75
    %p87 = scmp.eq.s32.totalorder %s23, 1
    %p88 = por %p86, %p87
    %p90 = scmp.ne.s32.totalorder %s75, %s89
    %p91 = scmp.eq.s32.totalorder %s23, 0
    %p92 = por %p90, %p91
    %s93 = ssub.s32 %s17, %s24
    %p94 = scmp.eq.s32.totalorder %s93, 0
    %s96 = sadd.s32 %s95, 1
    %s97 = scalar_select %p94, %s95, %s96
    %p100 = pneg %p94
    %p101 = scmp.eq.s32.totalorder %s17, 1
    %p102 = por %p100, %p101
    %p103 = scmp.ne.s32.totalorder %s95, %s98
    %p104 = scmp.eq.s32.totalorder %s17, 0
    %p105 = por %p103, %p104
    %p106 = scmp.ne.s32.totalorder %s95, %s98
    %p107 = scmp.eq.s32.totalorder %s22, 1
    %p108 = por %p106, %p107
    %p109 = scmp.ne.s32.totalorder %s98, %s99
    %p110 = scmp.eq.s32.totalorder %s22, 0
    %p111 = por %p109, %p110
    %p112 = scmp.ne.s32.totalorder %s98, %s99
    %p113 = scmp.eq.s32.totalorder %s23, 1
    %p114 = por %p112, %p113
    %p116 = scmp.ne.s32.totalorder %s99, %s115
    %p117 = scmp.eq.s32.totalorder %s23, 0
    %p118 = por %p116, %p117
    %s120 = sadd.s32 %s119, 1
    %p123 = scmp.eq.s32.totalorder %s17, 1
    %p124 = scmp.ne.s32.totalorder %s119, %s121
    %p125 = scmp.eq.s32.totalorder %s17, 0
    %p126 = por %p124, %p125
    %p127 = scmp.ne.s32.totalorder %s119, %s121
    %p128 = scmp.eq.s32.totalorder %s22, 1
    %p129 = por %p127, %p128
    %p130 = scmp.ne.s32.totalorder %s121, %s122
    %p131 = scmp.eq.s32.totalorder %s22, 0
    %p132 = por %p130, %p131
    %p133 = scmp.ne.s32.totalorder %s121, %s122
    %p134 = scmp.eq.s32.totalorder %s23, 1
    %p135 = por %p133, %p134
    %p137 = scmp.ne.s32.totalorder %s122, %s136
    %p138 = scmp.eq.s32.totalorder %s23, 0
    %p139 = por %p137, %p138
    %s141 = sadd.s32 %s140, 1
    %p144 = scmp.eq.s32.totalorder %s17, 1
    %p145 = scmp.ne.s32.totalorder %s140, %s142
    %p146 = scmp.eq.s32.totalorder %s17, 0
    %p147 = por %p145, %p146
    %p148 = scmp.ne.s32.totalorder %s140, %s142
    %p149 = scmp.eq.s32.totalorder %s22, 1
    %p150 = por %p148, %p149
    %p151 = scmp.ne.s32.totalorder %s142, %s143
    %p152 = scmp.eq.s32.totalorder %s22, 0
    %p153 = por %p151, %p152
    %p154 = scmp.ne.s32.totalorder %s142, %s143
    %p155 = scmp.eq.s32.totalorder %s23, 1
    %p156 = por %p154, %p155
    %p158 = scmp.ne.s32.totalorder %s143, %s157
    %p159 = scmp.eq.s32.totalorder %s23, 0
    %p160 = por %p158, %p159
    %s162 = sadd.s32 %s161, 1
    %p165 = scmp.eq.s32.totalorder %s17, 1
    %p166 = scmp.ne.s32.totalorder %s161, %s163
    %p167 = scmp.eq.s32.totalorder %s17, 0
    %p168 = por %p166, %p167
    %p169 = scmp.ne.s32.totalorder %s161, %s163
    %p170 = scmp.eq.s32.totalorder %s22, 1
    %p171 = por %p169, %p170
    %p172 = scmp.ne.s32.totalorder %s163, %s164
    %p173 = scmp.eq.s32.totalorder %s22, 0
    %p174 = por %p172, %p173
    %p175 = scmp.ne.s32.totalorder %s163, %s164
    %p176 = scmp.eq.s32.totalorder %s23, 1
    %p177 = por %p175, %p176
    %p179 = scmp.ne.s32.totalorder %s164, %s178
    %p180 = scmp.eq.s32.totalorder %s23, 0
    %p181 = por %p179, %p180
    %s183 = sadd.s32 %s182, 1
    %p186 = scmp.eq.s32.totalorder %s17, 1
    %p187 = scmp.ne.s32.totalorder %s182, %s184
    %p188 = scmp.eq.s32.totalorder %s17, 0
    %p189 = por %p187, %p188
    %p190 = scmp.ne.s32.totalorder %s182, %s184
    %p191 = scmp.eq.s32.totalorder %s22, 1
    %p192 = por %p190, %p191
    %p193 = scmp.ne.s32.totalorder %s184, %s185
    %p194 = scmp.eq.s32.totalorder %s22, 0
    %p195 = por %p193, %p194
    %p196 = scmp.ne.s32.totalorder %s184, %s185
    %p197 = scmp.eq.s32.totalorder %s23, 1
    %p198 = por %p196, %p197
    %p200 = scmp.ne.s32.totalorder %s185, %s199
    %p201 = scmp.eq.s32.totalorder %s23, 0
    %p202 = por %p200, %p201
    %s203 = ssub.s32 %s17, %s24
    %p204 = scmp.eq.s32.totalorder %s203, 0
    %s206 = sadd.s32 %s205, 1
    %s207 = scalar_select %p204, %s205, %s206
    %p210 = pneg %p204
    %p211 = scmp.eq.s32.totalorder %s17, 1
    %p212 = por %p210, %p211
    %p213 = scmp.ne.s32.totalorder %s205, %s208
    %p214 = scmp.eq.s32.totalorder %s17, 0
    %p215 = por %p213, %p214
    %p216 = scmp.ne.s32.totalorder %s205, %s208
    %p217 = scmp.eq.s32.totalorder %s22, 1
    %p218 = por %p216, %p217
    %p219 = scmp.ne.s32.totalorder %s208, %s209
    %p220 = scmp.eq.s32.totalorder %s22, 0
    %p221 = por %p219, %p220
    %p222 = scmp.ne.s32.totalorder %s208, %s209
    %p223 = scmp.eq.s32.totalorder %s23, 1
    %p224 = por %p222, %p223
    %p226 = scmp.ne.s32.totalorder %s209, %s225
    %p227 = scmp.eq.s32.totalorder %s23, 0
    %p228 = por %p226, %p227
    %s229 = ssub.s32 %s17, %s24
    %p230 = scmp.eq.s32.totalorder %s229, 0
    %s232 = sadd.s32 %s231, 1
    %s233 = scalar_select %p230, %s231, %s232
    %p236 = pneg %p230
    %p237 = scmp.eq.s32.totalorder %s17, 1
    %p238 = por %p236, %p237
    %p239 = scmp.ne.s32.totalorder %s231, %s234
    %p240 = scmp.eq.s32.totalorder %s17, 0
    %p241 = por %p239, %p240
    %p242 = scmp.ne.s32.totalorder %s231, %s234
    %p243 = scmp.eq.s32.totalorder %s22, 1
    %p244 = por %p242, %p243
    %p245 = scmp.ne.s32.totalorder %s234, %s235
    %p246 = scmp.eq.s32.totalorder %s22, 0
    %p247 = por %p245, %p246
    %p248 = scmp.ne.s32.totalorder %s234, %s235
    %p249 = scmp.eq.s32.totalorder %s23, 1
    %p250 = por %p248, %p249
    %p252 = scmp.ne.s32.totalorder %s235, %s251
    %p253 = scmp.eq.s32.totalorder %s23, 0
    %p254 = por %p252, %p253
    %s255 = ssub.s32 %s17, %s24
    %p256 = scmp.eq.s32.totalorder %s255, 0
    %s258 = sadd.s32 %s257, 1
    %s259 = scalar_select %p256, %s257, %s258
    %p262 = pneg %p256
    %p263 = scmp.eq.s32.totalorder %s17, 1
    %p264 = por %p262, %p263
    %p265 = scmp.ne.s32.totalorder %s257, %s260
    %p266 = scmp.eq.s32.totalorder %s17, 0
    %p267 = por %p265, %p266
    %p268 = scmp.ne.s32.totalorder %s257, %s260
    %p269 = scmp.eq.s32.totalorder %s22, 1
    %p270 = por %p268, %p269
    %p271 = scmp.ne.s32.totalorder %s260, %s261
    %p272 = scmp.eq.s32.totalorder %s22, 0
    %p273 = por %p271, %p272
    %p274 = scmp.ne.s32.totalorder %s260, %s261
    %p275 = scmp.eq.s32.totalorder %s23, 1
    %p276 = por %p274, %p275
    %p278 = scmp.ne.s32.totalorder %s261, %s277
    %p279 = scmp.eq.s32.totalorder %s23, 0
    %p280 = por %p278, %p279
    %p281 = scmp.le.s32.totalorder 1, %s17
    %p282 = scmp.lt.s32.totalorder %s17, 3
    %p283 = pnand %p281, %p282
    %p284 = pneg %p283
    // Predicated region
    $region9: #{block_forward.4} parent=5 // pred_check
      _
    $region10: #{block_forward.4} parent=5 // pred_check_branch
      %286 = sbr.rel (%p283) target = $region12
    $region11: #{block_forward.4} parent=5 // pred_region
      %s287 = ssub.s32 %s17, 1
      // Predicated region
      $region13: #{block_forward.4} parent=11 // pred_check
        %p288 = pneg %p64
      $region14: #{block_forward.4} parent=11 // pred_check_branch
        %290 = sbr.rel (%p288) target = $region16
      $region15: #{block_forward.4} parent=11 // pred_region
        _
      $region16: #{block_forward.4} parent=11 // pred_fallthru
        _
      // Predicated region
      $region17: #{block_forward.4} parent=11 // pred_check
        %p291 = pneg %p85
      $region18: #{block_forward.4} parent=11 // pred_check_branch
        %293 = sbr.rel (%p291) target = $region20
      $region19: #{block_forward.4} parent=11 // pred_region
        _
      $region20: #{block_forward.4} parent=11 // pred_fallthru
        _
      // Predicated region
      $region21: #{block_forward.4} parent=11 // pred_check
        %p294 = pneg %p132
      $region22: #{block_forward.4} parent=11 // pred_check_branch
        %296 = sbr.rel (%p294) target = $region24
      $region23: #{block_forward.4} parent=11 // pred_region
        _
      $region24: #{block_forward.4} parent=11 // pred_fallthru
        _
      // Predicated region
      $region25: #{block_forward.4} parent=11 // pred_check
        %p297 = pneg %p153
      $region26: #{block_forward.4} parent=11 // pred_check_branch
        %299 = sbr.rel (%p297) target = $region28
      $region27: #{block_forward.4} parent=11 // pred_region
        _
      $region28: #{block_forward.4} parent=11 // pred_fallthru
        _
      // Predicated region
      $region29: #{block_forward.4} parent=11 // pred_check
        %p300 = pneg %p174
      $region30: #{block_forward.4} parent=11 // pred_check_branch
        %302 = sbr.rel (%p300) target = $region32
      $region31: #{block_forward.4} parent=11 // pred_region
        _
      $region32: #{block_forward.4} parent=11 // pred_fallthru
        _
      // Predicated region
      $region33: #{block_forward.4} parent=11 // pred_check
        %p303 = pneg %p195
      $region34: #{block_forward.4} parent=11 // pred_check_branch
        %305 = sbr.rel (%p303) target = $region36
      $region35: #{block_forward.4} parent=11 // pred_region
        _
      $region36: #{block_forward.4} parent=11 // pred_fallthru
        _
    $region12: #{block_forward.4} parent=5 // pred_fallthru
      _
    %p306 = scmp.lt.s32.totalorder %s17, 2
    // Predicated region
    $region37: #{block_forward.4} parent=5 // pred_check
      %p307 = pneg %p306
    $region38: #{block_forward.4} parent=5 // pred_check_branch
      %309 = sbr.rel (%p307) target = $region40
    $region39: #{block_forward.4} parent=5 // pred_region
      // Predicated region
      $region41: #{block_forward.4} parent=39 // pred_check
        %p310 = pneg %p37
      $region42: #{block_forward.4} parent=39 // pred_check_branch
        %312 = sbr.rel (%p310) target = $region44
      $region43: #{block_forward.4} parent=39 // pred_region
        %p313 = scmp.lt.s32.totalorder %s17, 1
        %s314 = scalar_select %p313, %s17, 1
        %s315 = smul.addr %s314, 32
        %s316 = smul.addr %s315, 4
        %s317 = scalar_lea.vmem %s0, %s316
      $region44: #{block_forward.4} parent=39 // pred_fallthru
        _
      // Predicated region
      $region45: #{block_forward.4} parent=39 // pred_check
        %p318 = pneg %p105
      $region46: #{block_forward.4} parent=39 // pred_check_branch
        %320 = sbr.rel (%p318) target = $region48
      $region47: #{block_forward.4} parent=39 // pred_region
        %p321 = scmp.lt.s32.totalorder %s17, 1
        %s322 = scalar_select %p321, %s17, 1
        %s323 = scalar_lea.vmem %s3, %s322
      $region48: #{block_forward.4} parent=39 // pred_fallthru
        _
    $region40: #{block_forward.4} parent=5 // pred_fallthru
      _
    %p324 = scmp.le.s32.totalorder 1, %s17
    %p325 = scmp.lt.s32.totalorder %s17, 3
    %p326 = pnand %p324, %p325
    %p327 = pneg %p326
    // Predicated region
    $region49: #{block_forward.4} parent=5 // pred_check
      _
    $region50: #{block_forward.4} parent=5 // pred_check_branch
      %329 = sbr.rel (%p326) target = $region52
    $region51: #{block_forward.4} parent=5 // pred_region
      %s330 = ssub.s32 %s17, 1
      %p331 = scmp.lt.s32.totalorder %s22, 1
      %s332 = scalar_select %p331, %s22, 1
      %s333 = smul.addr %s332, 32
      %s334 = smul.addr %s333, 4
      %s335 = scalar_lea.vmem %s0, %s334
      %p336 = pneg %p43
      %p337 = pneg %p40
      %p338 = pneg %p64
      %p339 = pneg %p61
      %p340 = pneg %p85
      %p341 = pneg %p82
      %p342 = scmp.lt.s32.totalorder %s22, 1
      %s343 = scalar_select %p342, %s22, 1
      %s344 = scalar_lea.vmem %s3, %s343
      %p345 = pneg %p111
      %p346 = pneg %p108
      %p347 = pneg %p132
      %p348 = pneg %p129
      %p349 = pneg %p153
      %p350 = pneg %p150
      %p351 = pneg %p174
      %p352 = pneg %p171
      %p353 = pneg %p195
      %p354 = pneg %p192
      %p355 = pneg %p221
      %p356 = pneg %p218
      %p357 = scmp.lt.s32.totalorder %s22, 1
      %s358 = scalar_select %p357, %s22, 1
      %s359 = smul.addr %s358, 32
      %s360 = smul.addr %s359, 4
      %s361 = scalar_lea.vmem %s8, %s360
      %p362 = pneg %p247
      %p363 = pneg %p244
      %p364 = scmp.lt.s32.totalorder %s22, 1
      %s365 = scalar_select %p364, %s22, 1
      %s366 = scalar_lea.vmem %s9, %s365
      %p367 = pneg %p273
      %p368 = pneg %p270
      %p369 = scmp.lt.s32.totalorder %s22, 1
      %s370 = scalar_select %p369, %s22, 1
      %s371 = scalar_lea.vmem %s10, %s370
      %p372 = scmp.lt.s32.totalorder %s22, 1
      %s373 = scalar_select %p372, %s22, 1
      %s374 = smul.addr %s373, 32
      %s375 = smul.addr %s374, 4
      %s376 = scalar_lea.vmem %s0, %s375
      %p377 = scmp.lt.s32.totalorder %s22, 1
      %s378 = scalar_select %p377, %s22, 1
      %s379 = scalar_lea.vmem %s3, %s378
      %p380 = scmp.lt.s32.totalorder %s22, 1
      %s381 = scalar_select %p380, %s22, 1
      %s382 = smul.addr %s381, 32
      %s383 = smul.addr %s382, 4
      %s384 = scalar_lea.vmem %s8, %s383
      %p385 = scmp.lt.s32.totalorder %s22, 1
      %s386 = scalar_select %p385, %s22, 1
      %s387 = scalar_lea.vmem %s9, %s386
      %p388 = scmp.lt.s32.totalorder %s22, 1
      %s389 = scalar_select %p388, %s22, 1
      %s390 = scalar_lea.vmem %s10, %s389
      %v392 = vld [vmem:[%s1] sm:$0x1]
      %v393 = vld [vmem:[%s1 + $0x1] sm:$0x1]
      %vm394 = vcmask 1040384
      %v395 = vsel %vm394, %v392, 0.0
      %v396 = vsel %vm394, %v393, 0.0
      %v397 = vadd.f32 %v395, %v396
      %v398 = vmul.f32 %v397, 0.001953125
      %v399 = vld [vmem:[%s2] sm:$0x1]
      %v400 = vld [vmem:[%s2 + $0x1] sm:$0x1]
      %v401 = vsel %vm394, %v399, 0.0
      %v402 = vsel %vm394, %v400, 0.0
      %v403 = vadd.f32 %v401, %v402
      %v404 = vmul.f32 %v403, 0.001953125
      %v405 = vmul.f32 %v398, %v398
      %v406 = vsub.f32 %v404, %v405
      %v407 = vmax.f32 %v406, 0.0
      %v408 = vld [vmem:[%s4] sm:$0x1]
      %v409 = vadd.f32 %v407, 1e-05
      %v410 = vrsqrt.pop %v409
      %v411 = vmul.f32 %v408, %v410
      %v412 = vld [vmem:[%s5] sm:$0x1]
      %v413 = vmul.f32 %v398, %v411
      %v414 = vsub.f32 %v412, %v413
      %v415 = vld [vmem:[%s379] sm:$0x1]
      %v416 = vadd.f32 %v414, %v415
      %v417 = vld [vmem:[%s376] sm:$0xf]
      %v418 = vld [vmem:[%s376 + $0x4] sm:$0xf]
      %v419 = vld [vmem:[%s376 + $0x8] sm:$0xf]
      %v420 = vld [vmem:[%s376 + $0xc] sm:$0xf]
      %v421 = vld [vmem:[%s376 + $0x10] sm:$0xf]
      %v422 = vld [vmem:[%s376 + $0x14] sm:$0xf]
      %v423 = vld [vmem:[%s376 + $0x18] sm:$0xf]
      %v424 = vld [vmem:[%s376 + $0x1c] sm:$0xf]
      %v425 = vld [vmem:[%s376 + $0x20] sm:$0xf]
      %v426 = vld [vmem:[%s376 + $0x24] sm:$0xf]
      %v427 = vld [vmem:[%s376 + $0x28] sm:$0xf]
      %v428 = vld [vmem:[%s376 + $0x2c] sm:$0xf]
      %v429 = vld [vmem:[%s376 + $0x30] sm:$0xf]
      %v430 = vld [vmem:[%s376 + $0x34] sm:$0xf]
      %v431 = vld [vmem:[%s376 + $0x38] sm:$0xf]
      %v432 = vld [vmem:[%s376 + $0x3c] sm:$0xf]
      %v433 = vld [vmem:[%s376 + $0x40] sm:$0xf]
      %v434 = vld [vmem:[%s376 + $0x44] sm:$0xf]
      %v435 = vld [vmem:[%s376 + $0x48] sm:$0xf]
      %v436 = vld [vmem:[%s376 + $0x4c] sm:$0xf]
      %v437 = vld [vmem:[%s376 + $0x50] sm:$0xf]
      %v438 = vld [vmem:[%s376 + $0x54] sm:$0xf]
      %v439 = vld [vmem:[%s376 + $0x58] sm:$0xf]
      %v440 = vld [vmem:[%s376 + $0x5c] sm:$0xf]
      %v441 = vld [vmem:[%s376 + $0x60] sm:$0xf]
      %v442 = vld [vmem:[%s376 + $0x64] sm:$0xf]
      %v443 = vld [vmem:[%s376 + $0x68] sm:$0xf]
      %v444 = vld [vmem:[%s376 + $0x6c] sm:$0xf]
      %v445 = vld [vmem:[%s376 + $0x70] sm:$0xf]
      %v446 = vld [vmem:[%s376 + $0x74] sm:$0xf]
      %v447 = vld [vmem:[%s376 + $0x78] sm:$0xf]
      %v448 = vld [vmem:[%s376 + $0x7c] sm:$0xf]
      %v449 = vunpack.c.l.bf16 %v417
      %v450 = vunpack.c.l.bf16 %v418
      %v451 = vunpack.c.l.bf16 %v419
      %v452 = vunpack.c.l.bf16 %v420
      %v453 = vunpack.c.l.bf16 %v421
      %v454 = vunpack.c.l.bf16 %v422
      %v455 = vunpack.c.l.bf16 %v423
      %v456 = vunpack.c.l.bf16 %v424
      %v457 = vunpack.c.l.bf16 %v425
      %v458 = vunpack.c.l.bf16 %v426
      %v459 = vunpack.c.l.bf16 %v427
      %v460 = vunpack.c.l.bf16 %v428
      %v461 = vunpack.c.l.bf16 %v429
      %v462 = vunpack.c.l.bf16 %v430
      %v463 = vunpack.c.l.bf16 %v431
      %v464 = vunpack.c.l.bf16 %v432
      %v465 = vunpack.c.l.bf16 %v433
      %v466 = vunpack.c.l.bf16 %v434
      %v467 = vunpack.c.l.bf16 %v435
      %v468 = vunpack.c.l.bf16 %v436
      %v469 = vunpack.c.l.bf16 %v437
      %v470 = vunpack.c.l.bf16 %v438
      %v471 = vunpack.c.l.bf16 %v439
      %v472 = vunpack.c.l.bf16 %v440
      %v473 = vunpack.c.l.bf16 %v441
      %v474 = vunpack.c.l.bf16 %v442
      %v475 = vunpack.c.l.bf16 %v443
      %v476 = vunpack.c.l.bf16 %v444
      %v477 = vunpack.c.l.bf16 %v445
      %v478 = vunpack.c.l.bf16 %v446
      %v479 = vunpack.c.l.bf16 %v447
      %v480 = vunpack.c.l.bf16 %v448
      %v482 = vlaneseq
      %v483 = vshrl.u32 %v482, 7
      %v484 = vsub.s32 0, %v483
      %v485 = vrot.slane %v411, %v484
      %v487 = vmul.f32 %v449, %v485
      %v488 = vmul.f32 %v450, %v485
      %v489 = vmul.f32 %v451, %v485
      %v490 = vmul.f32 %v452, %v485
      %v491 = vmul.f32 %v453, %v485
      %v492 = vmul.f32 %v454, %v485
      %v493 = vmul.f32 %v455, %v485
      %v494 = vmul.f32 %v456, %v485
      %v495 = vmul.f32 %v457, %v485
      %v496 = vmul.f32 %v458, %v485
      %v497 = vmul.f32 %v459, %v485
      %v498 = vmul.f32 %v460, %v485
      %v499 = vmul.f32 %v461, %v485
      %v500 = vmul.f32 %v462, %v485
      %v501 = vmul.f32 %v463, %v485
      %v502 = vmul.f32 %v464, %v485
      %v503 = vmul.f32 %v465, %v485
      %v504 = vmul.f32 %v466, %v485
      %v505 = vmul.f32 %v467, %v485
      %v506 = vmul.f32 %v468, %v485
      %v507 = vmul.f32 %v469, %v485
      %v508 = vmul.f32 %v470, %v485
      %v509 = vmul.f32 %v471, %v485
      %v510 = vmul.f32 %v472, %v485
      %v511 = vmul.f32 %v473, %v485
      %v512 = vmul.f32 %v474, %v485
      %v513 = vmul.f32 %v475, %v485
      %v514 = vmul.f32 %v476, %v485
      %v515 = vmul.f32 %v477, %v485
      %v516 = vmul.f32 %v478, %v485
      %v517 = vmul.f32 %v479, %v485
      %v518 = vmul.f32 %v480, %v485
      %v520 = vlaneseq
      %v521 = vshrl.u32 %v520, 7
      %v522 = vsub.s32 0, %v521
      %v523 = vrot.slane %v416, %v522
      %v525 = vadd.f32 %v487, %v523
      %v526 = vadd.f32 %v488, %v523
      %v527 = vadd.f32 %v489, %v523
      %v528 = vadd.f32 %v490, %v523
      %v529 = vadd.f32 %v491, %v523
      %v530 = vadd.f32 %v492, %v523
      %v531 = vadd.f32 %v493, %v523
      %v532 = vadd.f32 %v494, %v523
      %v533 = vadd.f32 %v495, %v523
      %v534 = vadd.f32 %v496, %v523
      %v535 = vadd.f32 %v497, %v523
      %v536 = vadd.f32 %v498, %v523
      %v537 = vadd.f32 %v499, %v523
      %v538 = vadd.f32 %v500, %v523
      %v539 = vadd.f32 %v501, %v523
      %v540 = vadd.f32 %v502, %v523
      %v541 = vadd.f32 %v503, %v523
      %v542 = vadd.f32 %v504, %v523
      %v543 = vadd.f32 %v505, %v523
      %v544 = vadd.f32 %v506, %v523
      %v545 = vadd.f32 %v507, %v523
      %v546 = vadd.f32 %v508, %v523
      %v547 = vadd.f32 %v509, %v523
      %v548 = vadd.f32 %v510, %v523
      %v549 = vadd.f32 %v511, %v523
      %v550 = vadd.f32 %v512, %v523
      %v551 = vadd.f32 %v513, %v523
      %v552 = vadd.f32 %v514, %v523
      %v553 = vadd.f32 %v515, %v523
      %v554 = vadd.f32 %v516, %v523
      %v555 = vadd.f32 %v517, %v523
      %v556 = vadd.f32 %v518, %v523
      %557 = vst [vmem:[#allocation2] sm:$0xff] %v525
      %558 = vst [vmem:[#allocation2 + $0x8] sm:$0xff] %v526
      %559 = vst [vmem:[#allocation2 + $0x10] sm:$0xff] %v527
      %560 = vst [vmem:[#allocation2 + $0x18] sm:$0xff] %v528
      %561 = vst [vmem:[#allocation2 + $0x20] sm:$0xff] %v529
      %562 = vst [vmem:[#allocation2 + $0x28] sm:$0xff] %v530
      %563 = vst [vmem:[#allocation2 + $0x30] sm:$0xff] %v531
      %564 = vst [vmem:[#allocation2 + $0x38] sm:$0xff] %v532
      %565 = vst [vmem:[#allocation2 + $0x40] sm:$0xff] %v533
      %566 = vst [vmem:[#allocation2 + $0x48] sm:$0xff] %v534
      %567 = vst [vmem:[#allocation2 + $0x50] sm:$0xff] %v535
      %568 = vst [vmem:[#allocation2 + $0x58] sm:$0xff] %v536
      %569 = vst [vmem:[#allocation2 + $0x60] sm:$0xff] %v537
      %570 = vst [vmem:[#allocation2 + $0x68] sm:$0xff] %v538
      %571 = vst [vmem:[#allocation2 + $0x70] sm:$0xff] %v539
      %572 = vst [vmem:[#allocation2 + $0x78] sm:$0xff] %v540
      %573 = vst [vmem:[#allocation2 + $0x80] sm:$0xff] %v541
      %574 = vst [vmem:[#allocation2 + $0x88] sm:$0xff] %v542
      %575 = vst [vmem:[#allocation2 + $0x90] sm:$0xff] %v543
      %576 = vst [vmem:[#allocation2 + $0x98] sm:$0xff] %v544
      %577 = vst [vmem:[#allocation2 + $0xa0] sm:$0xff] %v545
      %578 = vst [vmem:[#allocation2 + $0xa8] sm:$0xff] %v546
      %579 = vst [vmem:[#allocation2 + $0xb0] sm:$0xff] %v547
      %580 = vst [vmem:[#allocation2 + $0xb8] sm:$0xff] %v548
      %581 = vst [vmem:[#allocation2 + $0xc0] sm:$0xff] %v549
      %582 = vst [vmem:[#allocation2 + $0xc8] sm:$0xff] %v550
      %583 = vst [vmem:[#allocation2 + $0xd0] sm:$0xff] %v551
      %584 = vst [vmem:[#allocation2 + $0xd8] sm:$0xff] %v552
      %585 = vst [vmem:[#allocation2 + $0xe0] sm:$0xff] %v553
      %586 = vst [vmem:[#allocation2 + $0xe8] sm:$0xff] %v554
      %587 = vst [vmem:[#allocation2 + $0xf0] sm:$0xff] %v555
      %588 = vst [vmem:[#allocation2 + $0xf8] sm:$0xff] %v556
      %589 = vst [vmem:[#allocation3] sm:$0xff] 0.0
      %590 = vst [vmem:[#allocation3 + $0x48] sm:$0xff] 0.0
      %591 = vst [vmem:[#allocation3] sm:$0x1] 0.0
      %592 = vst [vmem:[#allocation3 + $0x90] sm:$0x1] 0.0
      %593 = vst [vmem:[#allocation3 + $0x120] sm:$0x1] 0.0
      %594 = vst [vmem:[#allocation3 + $0x1b0] sm:$0x1] 0.0
      %595 = vst [vmem:[#allocation3 + $0x240] sm:$0x1] 0.0
      %596 = vst [vmem:[#allocation3 + $0x2d0] sm:$0x1] 0.0
      %597 = vst [vmem:[#allocation3 + $0x360] sm:$0x1] 0.0
      %598 = vst [vmem:[#allocation3 + $0x3f0] sm:$0x1] 0.0
      %599 = vst [vmem:[#allocation3 + $0x480] sm:$0x1] 0.0
      %600 = vst [vmem:[#allocation3 + $0x510] sm:$0x1] 0.0
      %601 = vst [vmem:[#allocation3 + $0x5a0] sm:$0x1] 0.0
      %602 = vst [vmem:[#allocation3 + $0x630] sm:$0x1] 0.0
      %603 = vst [vmem:[#allocation3 + $0x6c0] sm:$0x1] 0.0
      %604 = vst [vmem:[#allocation3 + $0x750] sm:$0x1] 0.0
      %605 = vst [vmem:[#allocation3 + $0x7e0] sm:$0x1] 0.0
      %606 = vst [vmem:[#allocation3 + $0x870] sm:$0x1] 0.0
      %v607 = vld [vmem:[#allocation2] sm:$0xff]
      %v608 = vld [vmem:[#allocation2 + $0x8] sm:$0x7f]
      %v609 = vld [vmem:[#allocation2 + $0x10] sm:$0xff]
      %v610 = vld [vmem:[#allocation2 + $0x18] sm:$0x7f]
      %v611 = vld [vmem:[#allocation2 + $0x20] sm:$0xff]
      %v612 = vld [vmem:[#allocation2 + $0x28] sm:$0x7f]
      %v613 = vld [vmem:[#allocation2 + $0x30] sm:$0xff]
      %v614 = vld [vmem:[#allocation2 + $0x38] sm:$0x7f]
      %v615 = vld [vmem:[#allocation2 + $0x40] sm:$0xff]
      %v616 = vld [vmem:[#allocation2 + $0x48] sm:$0x7f]
      %v617 = vld [vmem:[#allocation2 + $0x50] sm:$0xff]
      %v618 = vld [vmem:[#allocation2 + $0x58] sm:$0x7f]
      %v619 = vld [vmem:[#allocation2 + $0x60] sm:$0xff]
      %v620 = vld [vmem:[#allocation2 + $0x68] sm:$0x7f]
      %v621 = vld [vmem:[#allocation2 + $0x70] sm:$0xff]
      %v622 = vld [vmem:[#allocation2 + $0x78] sm:$0x7f]
      %v623 = vld [vmem:[#allocation2 + $0x80] sm:$0xff]
      %v624 = vld [vmem:[#allocation2 + $0x88] sm:$0x7f]
      %v625 = vld [vmem:[#allocation2 + $0x90] sm:$0xff]
      %v626 = vld [vmem:[#allocation2 + $0x98] sm:$0x7f]
      %v627 = vld [vmem:[#allocation2 + $0xa0] sm:$0xff]
      %v628 = vld [vmem:[#allocation2 + $0xa8] sm:$0x7f]
      %v629 = vld [vmem:[#allocation2 + $0xb0] sm:$0xff]
      %v630 = vld [vmem:[#allocation2 + $0xb8] sm:$0x7f]
      %v631 = vld [vmem:[#allocation2 + $0xc0] sm:$0xff]
      %v632 = vld [vmem:[#allocation2 + $0xc8] sm:$0x7f]
      %v633 = vld [vmem:[#allocation2 + $0xd0] sm:$0xff]
      %v634 = vld [vmem:[#allocation2 + $0xd8] sm:$0x7f]
      %v635 = vld [vmem:[#allocation2 + $0xe0] sm:$0xff]
      %v636 = vld [vmem:[#allocation2 + $0xe8] sm:$0x7f]
      %v667 = vrot.slane %v607, 7
      %v668 = vrot.slane %v608, 7
      %v669 = vsel %vm394, %v667, %v668
      %v670 = vrot.slane %v609, 7
      %v671 = vrot.slane %v610, 7
      %v672 = vsel %vm394, %v670, %v671
      %v673 = vrot.slane %v611, 7
      %v674 = vrot.slane %v612, 7
      %v675 = vsel %vm394, %v673, %v674
      %v676 = vrot.slane %v613, 7
      %v677 = vrot.slane %v614, 7
      %v678 = vsel %vm394, %v676, %v677
      %v679 = vrot.slane %v615, 7
      %v680 = vrot.slane %v616, 7
      %v681 = vsel %vm394, %v679, %v680
      %v682 = vrot.slane %v617, 7
      %v683 = vrot.slane %v618, 7
      %v684 = vsel %vm394, %v682, %v683
      %v685 = vrot.slane %v619, 7
      %v686 = vrot.slane %v620, 7
      %v687 = vsel %vm394, %v685, %v686
      %v688 = vrot.slane %v621, 7
      %v689 = vrot.slane %v622, 7
      %v690 = vsel %vm394, %v688, %v689
      %v691 = vrot.slane %v623, 7
      %v692 = vrot.slane %v624, 7
      %v693 = vsel %vm394, %v691, %v692
      %v694 = vrot.slane %v625, 7
      %v695 = vrot.slane %v626, 7
      %v696 = vsel %vm394, %v694, %v695
      %v697 = vrot.slane %v627, 7
      %v698 = vrot.slane %v628, 7
      %v699 = vsel %vm394, %v697, %v698
      %v700 = vrot.slane %v629, 7
      %v701 = vrot.slane %v630, 7
      %v702 = vsel %vm394, %v700, %v701
      %v703 = vrot.slane %v631, 7
      %v704 = vrot.slane %v632, 7
      %v705 = vsel %vm394, %v703, %v704
      %v706 = vrot.slane %v633, 7
      %v707 = vrot.slane %v634, 7
      %v708 = vsel %vm394, %v706, %v707
      %v709 = vrot.slane %v635, 7
      %v710 = vrot.slane %v636, 7
      %v711 = vsel %vm394, %v709, %v710
      %s742 = scalar_lea.vmem [#allocation3], 144
      %743 = vst [vmem:[%s742] sm:$0xfe] %v667
      %744 = vst [vmem:[%s742 + $0x48] sm:$0xff] %v669
      %745 = vst [vmem:[%s742 + $0x90] sm:$0xfe] %v670
      %746 = vst [vmem:[%s742 + $0xd8] sm:$0xff] %v672
      %747 = vst [vmem:[%s742 + $0x120] sm:$0xfe] %v673
      %748 = vst [vmem:[%s742 + $0x168] sm:$0xff] %v675
      %749 = vst [vmem:[%s742 + $0x1b0] sm:$0xfe] %v676
      %750 = vst [vmem:[%s742 + $0x1f8] sm:$0xff] %v678
      %751 = vst [vmem:[%s742 + $0x240] sm:$0xfe] %v679
      %752 = vst [vmem:[%s742 + $0x288] sm:$0xff] %v681
      %753 = vst [vmem:[%s742 + $0x2d0] sm:$0xfe] %v682
      %754 = vst [vmem:[%s742 + $0x318] sm:$0xff] %v684
      %755 = vst [vmem:[%s742 + $0x360] sm:$0xfe] %v685
      %756 = vst [vmem:[%s742 + $0x3a8] sm:$0xff] %v687
      %757 = vst [vmem:[%s742 + $0x3f0] sm:$0xfe] %v688
      %758 = vst [vmem:[%s742 + $0x438] sm:$0xff] %v690
      %759 = vst [vmem:[%s742 + $0x480] sm:$0xfe] %v691
      %760 = vst [vmem:[%s742 + $0x4c8] sm:$0xff] %v693
      %761 = vst [vmem:[%s742 + $0x510] sm:$0xfe] %v694
      %762 = vst [vmem:[%s742 + $0x558] sm:$0xff] %v696
      %763 = vst [vmem:[%s742 + $0x5a0] sm:$0xfe] %v697
      %764 = vst [vmem:[%s742 + $0x5e8] sm:$0xff] %v699
      %765 = vst [vmem:[%s742 + $0x630] sm:$0xfe] %v700
      %766 = vst [vmem:[%s742 + $0x678] sm:$0xff] %v702
      %767 = vst [vmem:[%s742 + $0x6c0] sm:$0xfe] %v703
      %768 = vst [vmem:[%s742 + $0x708] sm:$0xff] %v705
      %769 = vst [vmem:[%s742 + $0x750] sm:$0xfe] %v706
      %770 = vst [vmem:[%s742 + $0x798] sm:$0xff] %v708
      %771 = vst [vmem:[%s742 + $0x7e0] sm:$0xfe] %v709
      %772 = vst [vmem:[%s742 + $0x828] sm:$0xff] %v711
      %773 = vst [vmem:[#allocation3 + $0x8] sm:$0xff] 0.0
      %774 = vst [vmem:[#allocation3 + $0x50] sm:$0xff] 0.0
      %v775 = vld [vmem:[#allocation2] sm:$0xff]
      %v776 = vld [vmem:[#allocation2 + $0x8] sm:$0xff]
      %v777 = vld [vmem:[#allocation2 + $0x10] sm:$0xff]
      %v778 = vld [vmem:[#allocation2 + $0x18] sm:$0xff]
      %v779 = vld [vmem:[#allocation2 + $0x20] sm:$0xff]
      %v780 = vld [vmem:[#allocation2 + $0x28] sm:$0xff]
      %v781 = vld [vmem:[#allocation2 + $0x30] sm:$0xff]
      %v782 = vld [vmem:[#allocation2 + $0x38] sm:$0xff]
      %v783 = vld [vmem:[#allocation2 + $0x40] sm:$0xff]
      %v784 = vld [vmem:[#allocation2 + $0x48] sm:$0xff]
      %v785 = vld [vmem:[#allocation2 + $0x50] sm:$0xff]
      %v786 = vld [vmem:[#allocation2 + $0x58] sm:$0xff]
      %v787 = vld [vmem:[#allocation2 + $0x60] sm:$0xff]
      %v788 = vld [vmem:[#allocation2 + $0x68] sm:$0xff]
      %v789 = vld [vmem:[#allocation2 + $0x70] sm:$0xff]
      %v790 = vld [vmem:[#allocation2 + $0x78] sm:$0xff]
      %v791 = vld [vmem:[#allocation2 + $0x80] sm:$0xff]
      %v792 = vld [vmem:[#allocation2 + $0x88] sm:$0xff]
      %v793 = vld [vmem:[#allocation2 + $0x90] sm:$0xff]
      %v794 = vld [vmem:[#allocation2 + $0x98] sm:$0xff]
      %v795 = vld [vmem:[#allocation2 + $0xa0] sm:$0xff]
      %v796 = vld [vmem:[#allocation2 + $0xa8] sm:$0xff]
      %v797 = vld [vmem:[#allocation2 + $0xb0] sm:$0xff]
      %v798 = vld [vmem:[#allocation2 + $0xb8] sm:$0xff]
      %v799 = vld [vmem:[#allocation2 + $0xc0] sm:$0xff]
      %v800 = vld [vmem:[#allocation2 + $0xc8] sm:$0xff]
      %v801 = vld [vmem:[#allocation2 + $0xd0] sm:$0xff]
      %v802 = vld [vmem:[#allocation2 + $0xd8] sm:$0xff]
      %v803 = vld [vmem:[#allocation2 + $0xe0] sm:$0xff]
      %v804 = vld [vmem:[#allocation2 + $0xe8] sm:$0xff]
      %805 = vst [vmem:[%s742 + $0x8] sm:$0xff] %v775
      %806 = vst [vmem:[%s742 + $0x50] sm:$0xff] %v776
      %807 = vst [vmem:[%s742 + $0x98] sm:$0xff] %v777
      %808 = vst [vmem:[%s742 + $0xe0] sm:$0xff] %v778
      %809 = vst [vmem:[%s742 + $0x128] sm:$0xff] %v779
      %810 = vst [vmem:[%s742 + $0x170] sm:$0xff] %v780
      %811 = vst [vmem:[%s742 + $0x1b8] sm:$0xff] %v781
      %812 = vst [vmem:[%s742 + $0x200] sm:$0xff] %v782
      %813 = vst [vmem:[%s742 + $0x248] sm:$0xff] %v783
      %814 = vst [vmem:[%s742 + $0x290] sm:$0xff] %v784
      %815 = vst [vmem:[%s742 + $0x2d8] sm:$0xff] %v785
      %816 = vst [vmem:[%s742 + $0x320] sm:$0xff] %v786
      %817 = vst [vmem:[%s742 + $0x368] sm:$0xff] %v787
      %818 = vst [vmem:[%s742 + $0x3b0] sm:$0xff] %v788
      %819 = vst [vmem:[%s742 + $0x3f8] sm:$0xff] %v789
      %820 = vst [vmem:[%s742 + $0x440] sm:$0xff] %v790
      %821 = vst [vmem:[%s742 + $0x488] sm:$0xff] %v791
      %822 = vst [vmem:[%s742 + $0x4d0] sm:$0xff] %v792
      %823 = vst [vmem:[%s742 + $0x518] sm:$0xff] %v793
      %824 = vst [vmem:[%s742 + $0x560] sm:$0xff] %v794
      %825 = vst [vmem:[%s742 + $0x5a8] sm:$0xff] %v795
      %826 = vst [vmem:[%s742 + $0x5f0] sm:$0xff] %v796
      %827 = vst [vmem:[%s742 + $0x638] sm:$0xff] %v797
      %828 = vst [vmem:[%s742 + $0x680] sm:$0xff] %v798
      %829 = vst [vmem:[%s742 + $0x6c8] sm:$0xff] %v799
      %830 = vst [vmem:[%s742 + $0x710] sm:$0xff] %v800
      %831 = vst [vmem:[%s742 + $0x758] sm:$0xff] %v801
      %832 = vst [vmem:[%s742 + $0x7a0] sm:$0xff] %v802
      %833 = vst [vmem:[%s742 + $0x7e8] sm:$0xff] %v803
      %834 = vst [vmem:[%s742 + $0x830] sm:$0xff] %v804
      %835 = vst [vmem:[#allocation3 + $0x10] sm:$0xff] 0.0
      %836 = vst [vmem:[#allocation3 + $0x58] sm:$0xff] 0.0
      %837 = vst [vmem:[#allocation3 + $0x5f] sm:$0x1] 0.0
      %838 = vst [vmem:[#allocation3 + $0xef] sm:$0x1] 0.0
      %839 = vst [vmem:[#allocation3 + $0x17f] sm:$0x1] 0.0
      %840 = vst [vmem:[#allocation3 + $0x20f] sm:$0x1] 0.0
      %841 = vst [vmem:[#allocation3 + $0x29f] sm:$0x1] 0.0
      %842 = vst [vmem:[#allocation3 + $0x32f] sm:$0x1] 0.0
      %843 = vst [vmem:[#allocation3 + $0x3bf] sm:$0x1] 0.0
      %844 = vst [vmem:[#allocation3 + $0x44f] sm:$0x1] 0.0
      %845 = vst [vmem:[#allocation3 + $0x4df] sm:$0x1] 0.0
      %846 = vst [vmem:[#allocation3 + $0x56f] sm:$0x1] 0.0
      %847 = vst [vmem:[#allocation3 + $0x5ff] sm:$0x1] 0.0
      %848 = vst [vmem:[#allocation3 + $0x68f] sm:$0x1] 0.0
      %849 = vst [vmem:[#allocation3 + $0x71f] sm:$0x1] 0.0
      %850 = vst [vmem:[#allocation3 + $0x7af] sm:$0x1] 0.0
      %851 = vst [vmem:[#allocation3 + $0x83f] sm:$0x1] 0.0
      %852 = vst [vmem:[#allocation3 + $0x8cf] sm:$0x1] 0.0
      %v853 = vld [vmem:[#allocation2 + $0x1] sm:$0xff]
      %v854 = vld [vmem:[#allocation2 + $0x9] sm:$0x7f]
      %v855 = vld [vmem:[#allocation2 + $0x11] sm:$0xff]
      %v856 = vld [vmem:[#allocation2 + $0x19] sm:$0x7f]
      %v857 = vld [vmem:[#allocation2 + $0x21] sm:$0xff]
      %v858 = vld [vmem:[#allocation2 + $0x29] sm:$0x7f]
      %v859 = vld [vmem:[#allocation2 + $0x31] sm:$0xff]
      %v860 = vld [vmem:[#allocation2 + $0x39] sm:$0x7f]
      %v861 = vld [vmem:[#allocation2 + $0x41] sm:$0xff]
      %v862 = vld [vmem:[#allocation2 + $0x49] sm:$0x7f]
      %v863 = vld [vmem:[#allocation2 + $0x51] sm:$0xff]
      %v864 = vld [vmem:[#allocation2 + $0x59] sm:$0x7f]
      %v865 = vld [vmem:[#allocation2 + $0x61] sm:$0xff]
      %v866 = vld [vmem:[#allocation2 + $0x69] sm:$0x7f]
      %v867 = vld [vmem:[#allocation2 + $0x71] sm:$0xff]
      %v868 = vld [vmem:[#allocation2 + $0x79] sm:$0x7f]
      %v869 = vld [vmem:[#allocation2 + $0x81] sm:$0xff]
      %v870 = vld [vmem:[#allocation2 + $0x89] sm:$0x7f]
      %v871 = vld [vmem:[#allocation2 + $0x91] sm:$0xff]
      %v872 = vld [vmem:[#allocation2 + $0x99] sm:$0x7f]
      %v873 = vld [vmem:[#allocation2 + $0xa1] sm:$0xff]
      %v874 = vld [vmem:[#allocation2 + $0xa9] sm:$0x7f]
      %v875 = vld [vmem:[#allocation2 + $0xb1] sm:$0xff]
      %v876 = vld [vmem:[#allocation2 + $0xb9] sm:$0x7f]
      %v877 = vld [vmem:[#allocation2 + $0xc1] sm:$0xff]
      %v878 = vld [vmem:[#allocation2 + $0xc9] sm:$0x7f]
      %v879 = vld [vmem:[#allocation2 + $0xd1] sm:$0xff]
      %v880 = vld [vmem:[#allocation2 + $0xd9] sm:$0x7f]
      %v881 = vld [vmem:[#allocation2 + $0xe1] sm:$0xff]
      %v882 = vld [vmem:[#allocation2 + $0xe9] sm:$0x7f]
      %883 = vst [vmem:[%s742 + $0x10] sm:$0xff] %v853
      %884 = vst [vmem:[%s742 + $0x58] sm:$0x7f] %v854
      %885 = vst [vmem:[%s742 + $0xa0] sm:$0xff] %v855
      %886 = vst [vmem:[%s742 + $0xe8] sm:$0x7f] %v856
      %887 = vst [vmem:[%s742 + $0x130] sm:$0xff] %v857
      %888 = vst [vmem:[%s742 + $0x178] sm:$0x7f] %v858
      %889 = vst [vmem:[%s742 + $0x1c0] sm:$0xff] %v859
      %890 = vst [vmem:[%s742 + $0x208] sm:$0x7f] %v860
      %891 = vst [vmem:[%s742 + $0x250] sm:$0xff] %v861
      %892 = vst [vmem:[%s742 + $0x298] sm:$0x7f] %v862
      %893 = vst [vmem:[%s742 + $0x2e0] sm:$0xff] %v863
      %894 = vst [vmem:[%s742 + $0x328] sm:$0x7f] %v864
      %895 = vst [vmem:[%s742 + $0x370] sm:$0xff] %v865
      %896 = vst [vmem:[%s742 + $0x3b8] sm:$0x7f] %v866
      %897 = vst [vmem:[%s742 + $0x400] sm:$0xff] %v867
      %898 = vst [vmem:[%s742 + $0x448] sm:$0x7f] %v868
      %899 = vst [vmem:[%s742 + $0x490] sm:$0xff] %v869
      %900 = vst [vmem:[%s742 + $0x4d8] sm:$0x7f] %v870
      %901 = vst [vmem:[%s742 + $0x520] sm:$0xff] %v871
      %902 = vst [vmem:[%s742 + $0x568] sm:$0x7f] %v872
      %903 = vst [vmem:[%s742 + $0x5b0] sm:$0xff] %v873
      %904 = vst [vmem:[%s742 + $0x5f8] sm:$0x7f] %v874
      %905 = vst [vmem:[%s742 + $0x640] sm:$0xff] %v875
      %906 = vst [vmem:[%s742 + $0x688] sm:$0x7f] %v876
      %907 = vst [vmem:[%s742 + $0x6d0] sm:$0xff] %v877
      %908 = vst [vmem:[%s742 + $0x718] sm:$0x7f] %v878
      %909 = vst [vmem:[%s742 + $0x760] sm:$0xff] %v879
      %910 = vst [vmem:[%s742 + $0x7a8] sm:$0x7f] %v880
      %911 = vst [vmem:[%s742 + $0x7f0] sm:$0xff] %v881
      %912 = vst [vmem:[%s742 + $0x838] sm:$0x7f] %v882
      %913 = vst [vmem:[#allocation3 + $0x18] sm:$0x1] 0.0
      %914 = vst [vmem:[#allocation3 + $0xa8] sm:$0x1] 0.0
      %915 = vst [vmem:[#allocation3 + $0x138] sm:$0x1] 0.0
      %916 = vst [vmem:[#allocation3 + $0x1c8] sm:$0x1] 0.0
      %917 = vst [vmem:[#allocation3 + $0x258] sm:$0x1] 0.0
      %918 = vst [vmem:[#allocation3 + $0x2e8] sm:$0x1] 0.0
      %919 = vst [vmem:[#allocation3 + $0x378] sm:$0x1] 0.0
      %920 = vst [vmem:[#allocation3 + $0x408] sm:$0x1] 0.0
      %921 = vst [vmem:[#allocation3 + $0x498] sm:$0x1] 0.0
      %922 = vst [vmem:[#allocation3 + $0x528] sm:$0x1] 0.0
      %923 = vst [vmem:[#allocation3 + $0x5b8] sm:$0x1] 0.0
      %924 = vst [vmem:[#allocation3 + $0x648] sm:$0x1] 0.0
      %925 = vst [vmem:[#allocation3 + $0x6d8] sm:$0x1] 0.0
      %926 = vst [vmem:[#allocation3 + $0x768] sm:$0x1] 0.0
      %927 = vst [vmem:[#allocation3 + $0x7f8] sm:$0x1] 0.0
      %928 = vst [vmem:[#allocation3 + $0x888] sm:$0x1] 0.0
      %v929 = vld [vmem:[#allocation2] sm:$0xff]
      %v930 = vld [vmem:[#allocation2 + $0x8] sm:$0x7f]
      %v931 = vld [vmem:[#allocation2 + $0x10] sm:$0xff]
      %v932 = vld [vmem:[#allocation2 + $0x18] sm:$0x7f]
      %v933 = vld [vmem:[#allocation2 + $0x20] sm:$0xff]
      %v934 = vld [vmem:[#allocation2 + $0x28] sm:$0x7f]
      %v935 = vld [vmem:[#allocation2 + $0x30] sm:$0xff]
      %v936 = vld [vmem:[#allocation2 + $0x38] sm:$0x7f]
      %v937 = vld [vmem:[#allocation2 + $0x40] sm:$0xff]
      %v938 = vld [vmem:[#allocation2 + $0x48] sm:$0x7f]
      %v939 = vld [vmem:[#allocation2 + $0x50] sm:$0xff]
      %v940 = vld [vmem:[#allocation2 + $0x58] sm:$0x7f]
      %v941 = vld [vmem:[#allocation2 + $0x60] sm:$0xff]
      %v942 = vld [vmem:[#allocation2 + $0x68] sm:$0x7f]
      %v943 = vld [vmem:[#allocation2 + $0x70] sm:$0xff]
      %v944 = vld [vmem:[#allocation2 + $0x78] sm:$0x7f]
      %v945 = vld [vmem:[#allocation2 + $0x80] sm:$0xff]
      %v946 = vld [vmem:[#allocation2 + $0x88] sm:$0x7f]
      %v947 = vld [vmem:[#allocation2 + $0x90] sm:$0xff]
      %v948 = vld [vmem:[#allocation2 + $0x98] sm:$0x7f]
      %v949 = vld [vmem:[#allocation2 + $0xa0] sm:$0xff]
      %v950 = vld [vmem:[#allocation2 + $0xa8] sm:$0x7f]
      %v951 = vld [vmem:[#allocation2 + $0xb0] sm:$0xff]
      %v952 = vld [vmem:[#allocation2 + $0xb8] sm:$0x7f]
      %v953 = vld [vmem:[#allocation2 + $0xc0] sm:$0xff]
      %v954 = vld [vmem:[#allocation2 + $0xc8] sm:$0x7f]
      %v955 = vld [vmem:[#allocation2 + $0xd0] sm:$0xff]
      %v956 = vld [vmem:[#allocation2 + $0xd8] sm:$0x7f]
      %v957 = vld [vmem:[#allocation2 + $0xe0] sm:$0xff]
      %v958 = vld [vmem:[#allocation2 + $0xe8] sm:$0x7f]
      %v959 = vld [vmem:[#allocation2 + $0xf0] sm:$0xff]
      %v960 = vld [vmem:[#allocation2 + $0xf8] sm:$0x7f]
      %v993 = vrot.slane %v929, 7
      %v994 = vrot.slane %v930, 7
      %v995 = vsel %vm394, %v993, %v994
      %v996 = vrot.slane %v931, 7
      %v997 = vrot.slane %v932, 7
      %v998 = vsel %vm394, %v996, %v997
      %v999 = vrot.slane %v933, 7
      %v1000 = vrot.slane %v934, 7
      %v1001 = vsel %vm394, %v999, %v1000
      %v1002 = vrot.slane %v935, 7
      %v1003 = vrot.slane %v936, 7
      %v1004 = vsel %vm394, %v1002, %v1003
      %v1005 = vrot.slane %v937, 7
      %v1006 = vrot.slane %v938, 7
      %v1007 = vsel %vm394, %v1005, %v1006
      %v1008 = vrot.slane %v939, 7
      %v1009 = vrot.slane %v940, 7
      %v1010 = vsel %vm394, %v1008, %v1009
      %v1011 = vrot.slane %v941, 7
      %v1012 = vrot.slane %v942, 7
      %v1013 = vsel %vm394, %v1011, %v1012
      %v1014 = vrot.slane %v943, 7
      %v1015 = vrot.slane %v944, 7
      %v1016 = vsel %vm394, %v1014, %v1015
      %v1017 = vrot.slane %v945, 7
      %v1018 = vrot.slane %v946, 7
      %v1019 = vsel %vm394, %v1017, %v1018
      %v1020 = vrot.slane %v947, 7
      %v1021 = vrot.slane %v948, 7
      %v1022 = vsel %vm394, %v1020, %v1021
      %v1023 = vrot.slane %v949, 7
      %v1024 = vrot.slane %v950, 7
      %v1025 = vsel %vm394, %v1023, %v1024
      %v1026 = vrot.slane %v951, 7
      %v1027 = vrot.slane %v952, 7
      %v1028 = vsel %vm394, %v1026, %v1027
      %v1029 = vrot.slane %v953, 7
      %v1030 = vrot.slane %v954, 7
      %v1031 = vsel %vm394, %v1029, %v1030
      %v1032 = vrot.slane %v955, 7
      %v1033 = vrot.slane %v956, 7
      %v1034 = vsel %vm394, %v1032, %v1033
      %v1035 = vrot.slane %v957, 7
      %v1036 = vrot.slane %v958, 7
      %v1037 = vsel %vm394, %v1035, %v1036
      %v1038 = vrot.slane %v959, 7
      %v1039 = vrot.slane %v960, 7
      %v1040 = vsel %vm394, %v1038, %v1039
      %1073 = vst [vmem:[#allocation3 + $0x18] sm:$0xfe] %v993
      %1074 = vst [vmem:[#allocation3 + $0x60] sm:$0xff] %v995
      %1075 = vst [vmem:[#allocation3 + $0xa8] sm:$0xfe] %v996
      %1076 = vst [vmem:[#allocation3 + $0xf0] sm:$0xff] %v998
      %1077 = vst [vmem:[#allocation3 + $0x138] sm:$0xfe] %v999
      %1078 = vst [vmem:[#allocation3 + $0x180] sm:$0xff] %v1001
      %1079 = vst [vmem:[#allocation3 + $0x1c8] sm:$0xfe] %v1002
      %1080 = vst [vmem:[#allocation3 + $0x210] sm:$0xff] %v1004
      %1081 = vst [vmem:[#allocation3 + $0x258] sm:$0xfe] %v1005
      %1082 = vst [vmem:[#allocation3 + $0x2a0] sm:$0xff] %v1007
      %1083 = vst [vmem:[#allocation3 + $0x2e8] sm:$0xfe] %v1008
      %1084 = vst [vmem:[#allocation3 + $0x330] sm:$0xff] %v1010
      %1085 = vst [vmem:[#allocation3 + $0x378] sm:$0xfe] %v1011
      %1086 = vst [vmem:[#allocation3 + $0x3c0] sm:$0xff] %v1013
      %1087 = vst [vmem:[#allocation3 + $0x408] sm:$0xfe] %v1014
      %1088 = vst [vmem:[#allocation3 + $0x450] sm:$0xff] %v1016
      %1089 = vst [vmem:[#allocation3 + $0x498] sm:$0xfe] %v1017
      %1090 = vst [vmem:[#allocation3 + $0x4e0] sm:$0xff] %v1019
      %1091 = vst [vmem:[#allocation3 + $0x528] sm:$0xfe] %v1020
      %1092 = vst [vmem:[#allocation3 + $0x570] sm:$0xff] %v1022
      %1093 = vst [vmem:[#allocation3 + $0x5b8] sm:$0xfe] %v1023
      %1094 = vst [vmem:[#allocation3 + $0x600] sm:$0xff] %v1025
      %1095 = vst [vmem:[#allocation3 + $0x648] sm:$0xfe] %v1026
      %1096 = vst [vmem:[#allocation3 + $0x690] sm:$0xff] %v1028
      %1097 = vst [vmem:[#allocation3 + $0x6d8] sm:$0xfe] %v1029
      %1098 = vst [vmem:[#allocation3 + $0x720] sm:$0xff] %v1031
      %1099 = vst [vmem:[#allocation3 + $0x768] sm:$0xfe] %v1032
      %1100 = vst [vmem:[#allocation3 + $0x7b0] sm:$0xff] %v1034
      %1101 = vst [vmem:[#allocation3 + $0x7f8] sm:$0xfe] %v1035
      %1102 = vst [vmem:[#allocation3 + $0x840] sm:$0xff] %v1037
      %1103 = vst [vmem:[#allocation3 + $0x888] sm:$0xfe] %v1038
      %1104 = vst [vmem:[#allocation3 + $0x8d0] sm:$0xff] %v1040
      %v1105 = vld [vmem:[#allocation2] sm:$0xff]
      %v1106 = vld [vmem:[#allocation2 + $0x8] sm:$0xff]
      %v1107 = vld [vmem:[#allocation2 + $0x10] sm:$0xff]
      %v1108 = vld [vmem:[#allocation2 + $0x18] sm:$0xff]
      %v1109 = vld [vmem:[#allocation2 + $0x20] sm:$0xff]
      %v1110 = vld [vmem:[#allocation2 + $0x28] sm:$0xff]
      %v1111 = vld [vmem:[#allocation2 + $0x30] sm:$0xff]
      %v1112 = vld [vmem:[#allocation2 + $0x38] sm:$0xff]
      %v1113 = vld [vmem:[#allocation2 + $0x40] sm:$0xff]
      %v1114 = vld [vmem:[#allocation2 + $0x48] sm:$0xff]
      %v1115 = vld [vmem:[#allocation2 + $0x50] sm:$0xff]
      %v1116 = vld [vmem:[#allocation2 + $0x58] sm:$0xff]
      %v1117 = vld [vmem:[#allocation2 + $0x60] sm:$0xff]
      %v1118 = vld [vmem:[#allocation2 + $0x68] sm:$0xff]
      %v1119 = vld [vmem:[#allocation2 + $0x70] sm:$0xff]
      %v1120 = vld [vmem:[#allocation2 + $0x78] sm:$0xff]
      %v1121 = vld [vmem:[#allocation2 + $0x80] sm:$0xff]
      %v1122 = vld [vmem:[#allocation2 + $0x88] sm:$0xff]
      %v1123 = vld [vmem:[#allocation2 + $0x90] sm:$0xff]
      %v1124 = vld [vmem:[#allocation2 + $0x98] sm:$0xff]
      %v1125 = vld [vmem:[#allocation2 + $0xa0] sm:$0xff]
      %v1126 = vld [vmem:[#allocation2 + $0xa8] sm:$0xff]
      %v1127 = vld [vmem:[#allocation2 + $0xb0] sm:$0xff]
      %v1128 = vld [vmem:[#allocation2 + $0xb8] sm:$0xff]
      %v1129 = vld [vmem:[#allocation2 + $0xc0] sm:$0xff]
      %v1130 = vld [vmem:[#allocation2 + $0xc8] sm:$0xff]
      %v1131 = vld [vmem:[#allocation2 + $0xd0] sm:$0xff]
      %v1132 = vld [vmem:[#allocation2 + $0xd8] sm:$0xff]
      %v1133 = vld [vmem:[#allocation2 + $0xe0] sm:$0xff]
      %v1134 = vld [vmem:[#allocation2 + $0xe8] sm:$0xff]
      %v1135 = vld [vmem:[#allocation2 + $0xf0] sm:$0xff]
      %v1136 = vld [vmem:[#allocation2 + $0xf8] sm:$0xff]
      %1137 = vst [vmem:[#allocation3 + $0x20] sm:$0xff] %v1105
      %1138 = vst [vmem:[#allocation3 + $0x68] sm:$0xff] %v1106
      %1139 = vst [vmem:[#allocation3 + $0xb0] sm:$0xff] %v1107
      %1140 = vst [vmem:[#allocation3 + $0xf8] sm:$0xff] %v1108
      %1141 = vst [vmem:[#allocation3 + $0x140] sm:$0xff] %v1109
      %1142 = vst [vmem:[#allocation3 + $0x188] sm:$0xff] %v1110
      %1143 = vst [vmem:[#allocation3 + $0x1d0] sm:$0xff] %v1111
      %1144 = vst [vmem:[#allocation3 + $0x218] sm:$0xff] %v1112
      %1145 = vst [vmem:[#allocation3 + $0x260] sm:$0xff] %v1113
      %1146 = vst [vmem:[#allocation3 + $0x2a8] sm:$0xff] %v1114
      %1147 = vst [vmem:[#allocation3 + $0x2f0] sm:$0xff] %v1115
      %1148 = vst [vmem:[#allocation3 + $0x338] sm:$0xff] %v1116
      %1149 = vst [vmem:[#allocation3 + $0x380] sm:$0xff] %v1117
      %1150 = vst [vmem:[#allocation3 + $0x3c8] sm:$0xff] %v1118
      %1151 = vst [vmem:[#allocation3 + $0x410] sm:$0xff] %v1119
      %1152 = vst [vmem:[#allocation3 + $0x458] sm:$0xff] %v1120
      %1153 = vst [vmem:[#allocation3 + $0x4a0] sm:$0xff] %v1121
      %1154 = vst [vmem:[#allocation3 + $0x4e8] sm:$0xff] %v1122
      %1155 = vst [vmem:[#allocation3 + $0x530] sm:$0xff] %v1123
      %1156 = vst [vmem:[#allocation3 + $0x578] sm:$0xff] %v1124
      %1157 = vst [vmem:[#allocation3 + $0x5c0] sm:$0xff] %v1125
      %1158 = vst [vmem:[#allocation3 + $0x608] sm:$0xff] %v1126
      %1159 = vst [vmem:[#allocation3 + $0x650] sm:$0xff] %v1127
      %1160 = vst [vmem:[#allocation3 + $0x698] sm:$0xff] %v1128
      %1161 = vst [vmem:[#allocation3 + $0x6e0] sm:$0xff] %v1129
      %1162 = vst [vmem:[#allocation3 + $0x728] sm:$0xff] %v1130
      %1163 = vst [vmem:[#allocation3 + $0x770] sm:$0xff] %v1131
      %1164 = vst [vmem:[#allocation3 + $0x7b8] sm:$0xff] %v1132
      %1165 = vst [vmem:[#allocation3 + $0x800] sm:$0xff] %v1133
      %1166 = vst [vmem:[#allocation3 + $0x848] sm:$0xff] %v1134
      %1167 = vst [vmem:[#allocation3 + $0x890] sm:$0xff] %v1135
      %1168 = vst [vmem:[#allocation3 + $0x8d8] sm:$0xff] %v1136
      %1169 = vst [vmem:[#allocation3 + $0x77] sm:$0x1] 0.0
      %1170 = vst [vmem:[#allocation3 + $0x107] sm:$0x1] 0.0
      %1171 = vst [vmem:[#allocation3 + $0x197] sm:$0x1] 0.0
      %1172 = vst [vmem:[#allocation3 + $0x227] sm:$0x1] 0.0
      %1173 = vst [vmem:[#allocation3 + $0x2b7] sm:$0x1] 0.0
      %1174 = vst [vmem:[#allocation3 + $0x347] sm:$0x1] 0.0
      %1175 = vst [vmem:[#allocation3 + $0x3d7] sm:$0x1] 0.0
      %1176 = vst [vmem:[#allocation3 + $0x467] sm:$0x1] 0.0
      %1177 = vst [vmem:[#allocation3 + $0x4f7] sm:$0x1] 0.0
      %1178 = vst [vmem:[#allocation3 + $0x587] sm:$0x1] 0.0
      %1179 = vst [vmem:[#allocation3 + $0x617] sm:$0x1] 0.0
      %1180 = vst [vmem:[#allocation3 + $0x6a7] sm:$0x1] 0.0
      %1181 = vst [vmem:[#allocation3 + $0x737] sm:$0x1] 0.0
      %1182 = vst [vmem:[#allocation3 + $0x7c7] sm:$0x1] 0.0
      %1183 = vst [vmem:[#allocation3 + $0x857] sm:$0x1] 0.0
      %1184 = vst [vmem:[#allocation3 + $0x8e7] sm:$0x1] 0.0
      %v1185 = vld [vmem:[#allocation2 + $0x1] sm:$0xff]
      %v1186 = vld [vmem:[#allocation2 + $0x9] sm:$0x7f]
      %v1187 = vld [vmem:[#allocation2 + $0x11] sm:$0xff]
      %v1188 = vld [vmem:[#allocation2 + $0x19] sm:$0x7f]
      %v1189 = vld [vmem:[#allocation2 + $0x21] sm:$0xff]
      %v1190 = vld [vmem:[#allocation2 + $0x29] sm:$0x7f]
      %v1191 = vld [vmem:[#allocation2 + $0x31] sm:$0xff]
      %v1192 = vld [vmem:[#allocation2 + $0x39] sm:$0x7f]
      %v1193 = vld [vmem:[#allocation2 + $0x41] sm:$0xff]
      %v1194 = vld [vmem:[#allocation2 + $0x49] sm:$0x7f]
      %v1195 = vld [vmem:[#allocation2 + $0x51] sm:$0xff]
      %v1196 = vld [vmem:[#allocation2 + $0x59] sm:$0x7f]
      %v1197 = vld [vmem:[#allocation2 + $0x61] sm:$0xff]
      %v1198 = vld [vmem:[#allocation2 + $0x69] sm:$0x7f]
      %v1199 = vld [vmem:[#allocation2 + $0x71] sm:$0xff]
      %v1200 = vld [vmem:[#allocation2 + $0x79] sm:$0x7f]
      %v1201 = vld [vmem:[#allocation2 + $0x81] sm:$0xff]
      %v1202 = vld [vmem:[#allocation2 + $0x89] sm:$0x7f]
      %v1203 = vld [vmem:[#allocation2 + $0x91] sm:$0xff]
      %v1204 = vld [vmem:[#allocation2 + $0x99] sm:$0x7f]
      %v1205 = vld [vmem:[#allocation2 + $0xa1] sm:$0xff]
      %v1206 = vld [vmem:[#allocation2 + $0xa9] sm:$0x7f]
      %v1207 = vld [vmem:[#allocation2 + $0xb1] sm:$0xff]
      %v1208 = vld [vmem:[#allocation2 + $0xb9] sm:$0x7f]
      %v1209 = vld [vmem:[#allocation2 + $0xc1] sm:$0xff]
      %v1210 = vld [vmem:[#allocation2 + $0xc9] sm:$0x7f]
      %v1211 = vld [vmem:[#allocation2 + $0xd1] sm:$0xff]
      %v1212 = vld [vmem:[#allocation2 + $0xd9] sm:$0x7f]
      %v1213 = vld [vmem:[#allocation2 + $0xe1] sm:$0xff]
      %v1214 = vld [vmem:[#allocation2 + $0xe9] sm:$0x7f]
      %v1215 = vld [vmem:[#allocation2 + $0xf1] sm:$0xff]
      %v1216 = vld [vmem:[#allocation2 + $0xf9] sm:$0x7f]
      %1217 = vst [vmem:[#allocation3 + $0x28] sm:$0xff] %v1185
      %1218 = vst [vmem:[#allocation3 + $0x70] sm:$0x7f] %v1186
      %1219 = vst [vmem:[#allocation3 + $0xb8] sm:$0xff] %v1187
      %1220 = vst [vmem:[#allocation3 + $0x100] sm:$0x7f] %v1188
      %1221 = vst [vmem:[#allocation3 + $0x148] sm:$0xff] %v1189
      %1222 = vst [vmem:[#allocation3 + $0x190] sm:$0x7f] %v1190
      %1223 = vst [vmem:[#allocation3 + $0x1d8] sm:$0xff] %v1191
      %1224 = vst [vmem:[#allocation3 + $0x220] sm:$0x7f] %v1192
      %1225 = vst [vmem:[#allocation3 + $0x268] sm:$0xff] %v1193
      %1226 = vst [vmem:[#allocation3 + $0x2b0] sm:$0x7f] %v1194
      %1227 = vst [vmem:[#allocation3 + $0x2f8] sm:$0xff] %v1195
      %1228 = vst [vmem:[#allocation3 + $0x340] sm:$0x7f] %v1196
      %1229 = vst [vmem:[#allocation3 + $0x388] sm:$0xff] %v1197
      %1230 = vst [vmem:[#allocation3 + $0x3d0] sm:$0x7f] %v1198
      %1231 = vst [vmem:[#allocation3 + $0x418] sm:$0xff] %v1199
      %1232 = vst [vmem:[#allocation3 + $0x460] sm:$0x7f] %v1200
      %1233 = vst [vmem:[#allocation3 + $0x4a8] sm:$0xff] %v1201
      %1234 = vst [vmem:[#allocation3 + $0x4f0] sm:$0x7f] %v1202
      %1235 = vst [vmem:[#allocation3 + $0x538] sm:$0xff] %v1203
      %1236 = vst [vmem:[#allocation3 + $0x580] sm:$0x7f] %v1204
      %1237 = vst [vmem:[#allocation3 + $0x5c8] sm:$0xff] %v1205
      %1238 = vst [vmem:[#allocation3 + $0x610] sm:$0x7f] %v1206
      %1239 = vst [vmem:[#allocation3 + $0x658] sm:$0xff] %v1207
      %1240 = vst [vmem:[#allocation3 + $0x6a0] sm:$0x7f] %v1208
      %1241 = vst [vmem:[#allocation3 + $0x6e8] sm:$0xff] %v1209
      %1242 = vst [vmem:[#allocation3 + $0x730] sm:$0x7f] %v1210
      %1243 = vst [vmem:[#allocation3 + $0x778] sm:$0xff] %v1211
      %1244 = vst [vmem:[#allocation3 + $0x7c0] sm:$0x7f] %v1212
      %1245 = vst [vmem:[#allocation3 + $0x808] sm:$0xff] %v1213
      %1246 = vst [vmem:[#allocation3 + $0x850] sm:$0x7f] %v1214
      %1247 = vst [vmem:[#allocation3 + $0x898] sm:$0xff] %v1215
      %1248 = vst [vmem:[#allocation3 + $0x8e0] sm:$0x7f] %v1216
      %s1249 = scalar_lea.vmem [#allocation3], 2160
      %1250 = vst [vmem:[%s1249 + $0x30] sm:$0xff] 0.0
      %1251 = vst [vmem:[%s1249 + $0x78] sm:$0xff] 0.0
      %1252 = vst [vmem:[#allocation3 + $0x30] sm:$0x1] 0.0
      %1253 = vst [vmem:[#allocation3 + $0xc0] sm:$0x1] 0.0
      %1254 = vst [vmem:[#allocation3 + $0x150] sm:$0x1] 0.0
      %1255 = vst [vmem:[#allocation3 + $0x1e0] sm:$0x1] 0.0
      %1256 = vst [vmem:[#allocation3 + $0x270] sm:$0x1] 0.0
      %1257 = vst [vmem:[#allocation3 + $0x300] sm:$0x1] 0.0
      %1258 = vst [vmem:[#allocation3 + $0x390] sm:$0x1] 0.0
      %1259 = vst [vmem:[#allocation3 + $0x420] sm:$0x1] 0.0
      %1260 = vst [vmem:[#allocation3 + $0x4b0] sm:$0x1] 0.0
      %1261 = vst [vmem:[#allocation3 + $0x540] sm:$0x1] 0.0
      %1262 = vst [vmem:[#allocation3 + $0x5d0] sm:$0x1] 0.0
      %1263 = vst [vmem:[#allocation3 + $0x660] sm:$0x1] 0.0
      %1264 = vst [vmem:[#allocation3 + $0x6f0] sm:$0x1] 0.0
      %1265 = vst [vmem:[#allocation3 + $0x780] sm:$0x1] 0.0
      %1266 = vst [vmem:[#allocation3 + $0x810] sm:$0x1] 0.0
      %1267 = vst [vmem:[#allocation3 + $0x8a0] sm:$0x1] 0.0
      %s1268 = scalar_lea.vmem [#allocation2], 16
      %v1269 = vld [vmem:[%s1268] sm:$0xff]
      %v1270 = vld [vmem:[%s1268 + $0x8] sm:$0x7f]
      %v1271 = vld [vmem:[%s1268 + $0x10] sm:$0xff]
      %v1272 = vld [vmem:[%s1268 + $0x18] sm:$0x7f]
      %v1273 = vld [vmem:[%s1268 + $0x20] sm:$0xff]
      %v1274 = vld [vmem:[%s1268 + $0x28] sm:$0x7f]
      %v1275 = vld [vmem:[%s1268 + $0x30] sm:$0xff]
      %v1276 = vld [vmem:[%s1268 + $0x38] sm:$0x7f]
      %v1277 = vld [vmem:[%s1268 + $0x40] sm:$0xff]
      %v1278 = vld [vmem:[%s1268 + $0x48] sm:$0x7f]
      %v1279 = vld [vmem:[%s1268 + $0x50] sm:$0xff]
      %v1280 = vld [vmem:[%s1268 + $0x58] sm:$0x7f]
      %v1281 = vld [vmem:[%s1268 + $0x60] sm:$0xff]
      %v1282 = vld [vmem:[%s1268 + $0x68] sm:$0x7f]
      %v1283 = vld [vmem:[%s1268 + $0x70] sm:$0xff]
      %v1284 = vld [vmem:[%s1268 + $0x78] sm:$0x7f]
      %v1285 = vld [vmem:[%s1268 + $0x80] sm:$0xff]
      %v1286 = vld [vmem:[%s1268 + $0x88] sm:$0x7f]
      %v1287 = vld [vmem:[%s1268 + $0x90] sm:$0xff]
      %v1288 = vld [vmem:[%s1268 + $0x98] sm:$0x7f]
      %v1289 = vld [vmem:[%s1268 + $0xa0] sm:$0xff]
      %v1290 = vld [vmem:[%s1268 + $0xa8] sm:$0x7f]
      %v1291 = vld [vmem:[%s1268 + $0xb0] sm:$0xff]
      %v1292 = vld [vmem:[%s1268 + $0xb8] sm:$0x7f]
      %v1293 = vld [vmem:[%s1268 + $0xc0] sm:$0xff]
      %v1294 = vld [vmem:[%s1268 + $0xc8] sm:$0x7f]
      %v1295 = vld [vmem:[%s1268 + $0xd0] sm:$0xff]
      %v1296 = vld [vmem:[%s1268 + $0xd8] sm:$0x7f]
      %v1297 = vld [vmem:[%s1268 + $0xe0] sm:$0xff]
      %v1298 = vld [vmem:[%s1268 + $0xe8] sm:$0x7f]
      %v1329 = vrot.slane %v1269, 7
      %v1330 = vrot.slane %v1270, 7
      %v1331 = vsel %vm394, %v1329, %v1330
      %v1332 = vrot.slane %v1271, 7
      %v1333 = vrot.slane %v1272, 7
      %v1334 = vsel %vm394, %v1332, %v1333
      %v1335 = vrot.slane %v1273, 7
      %v1336 = vrot.slane %v1274, 7
      %v1337 = vsel %vm394, %v1335, %v1336
      %v1338 = vrot.slane %v1275, 7
      %v1339 = vrot.slane %v1276, 7
      %v1340 = vsel %vm394, %v1338, %v1339
      %v1341 = vrot.slane %v1277, 7
      %v1342 = vrot.slane %v1278, 7
      %v1343 = vsel %vm394, %v1341, %v1342
      %v1344 = vrot.slane %v1279, 7
      %v1345 = vrot.slane %v1280, 7
      %v1346 = vsel %vm394, %v1344, %v1345
      %v1347 = vrot.slane %v1281, 7
      %v1348 = vrot.slane %v1282, 7
      %v1349 = vsel %vm394, %v1347, %v1348
      %v1350 = vrot.slane %v1283, 7
      %v1351 = vrot.slane %v1284, 7
      %v1352 = vsel %vm394, %v1350, %v1351
      %v1353 = vrot.slane %v1285, 7
      %v1354 = vrot.slane %v1286, 7
      %v1355 = vsel %vm394, %v1353, %v1354
      %v1356 = vrot.slane %v1287, 7
      %v1357 = vrot.slane %v1288, 7
      %v1358 = vsel %vm394, %v1356, %v1357
      %v1359 = vrot.slane %v1289, 7
      %v1360 = vrot.slane %v1290, 7
      %v1361 = vsel %vm394, %v1359, %v1360
      %v1362 = vrot.slane %v1291, 7
      %v1363 = vrot.slane %v1292, 7
      %v1364 = vsel %vm394, %v1362, %v1363
      %v1365 = vrot.slane %v1293, 7
      %v1366 = vrot.slane %v1294, 7
      %v1367 = vsel %vm394, %v1365, %v1366
      %v1368 = vrot.slane %v1295, 7
      %v1369 = vrot.slane %v1296, 7
      %v1370 = vsel %vm394, %v1368, %v1369
      %v1371 = vrot.slane %v1297, 7
      %v1372 = vrot.slane %v1298, 7
      %v1373 = vsel %vm394, %v1371, %v1372
      %1404 = vst [vmem:[#allocation3 + $0x30] sm:$0xfe] %v1329
      %1405 = vst [vmem:[#allocation3 + $0x78] sm:$0xff] %v1331
      %1406 = vst [vmem:[#allocation3 + $0xc0] sm:$0xfe] %v1332
      %1407 = vst [vmem:[#allocation3 + $0x108] sm:$0xff] %v1334
      %1408 = vst [vmem:[#allocation3 + $0x150] sm:$0xfe] %v1335
      %1409 = vst [vmem:[#allocation3 + $0x198] sm:$0xff] %v1337
      %1410 = vst [vmem:[#allocation3 + $0x1e0] sm:$0xfe] %v1338
      %1411 = vst [vmem:[#allocation3 + $0x228] sm:$0xff] %v1340
      %1412 = vst [vmem:[#allocation3 + $0x270] sm:$0xfe] %v1341
      %1413 = vst [vmem:[#allocation3 + $0x2b8] sm:$0xff] %v1343
      %1414 = vst [vmem:[#allocation3 + $0x300] sm:$0xfe] %v1344
      %1415 = vst [vmem:[#allocation3 + $0x348] sm:$0xff] %v1346
      %1416 = vst [vmem:[#allocation3 + $0x390] sm:$0xfe] %v1347
      %1417 = vst [vmem:[#allocation3 + $0x3d8] sm:$0xff] %v1349
      %1418 = vst [vmem:[#allocation3 + $0x420] sm:$0xfe] %v1350
      %1419 = vst [vmem:[#allocation3 + $0x468] sm:$0xff] %v1352
      %1420 = vst [vmem:[#allocation3 + $0x4b0] sm:$0xfe] %v1353
      %1421 = vst [vmem:[#allocation3 + $0x4f8] sm:$0xff] %v1355
      %1422 = vst [vmem:[#allocation3 + $0x540] sm:$0xfe] %v1356
      %1423 = vst [vmem:[#allocation3 + $0x588] sm:$0xff] %v1358
      %1424 = vst [vmem:[#allocation3 + $0x5d0] sm:$0xfe] %v1359
      %1425 = vst [vmem:[#allocation3 + $0x618] sm:$0xff] %v1361
      %1426 = vst [vmem:[#allocation3 + $0x660] sm:$0xfe] %v1362
      %1427 = vst [vmem:[#allocation3 + $0x6a8] sm:$0xff] %v1364
      %1428 = vst [vmem:[#allocation3 + $0x6f0] sm:$0xfe] %v1365
      %1429 = vst [vmem:[#allocation3 + $0x738] sm:$0xff] %v1367
      %1430 = vst [vmem:[#allocation3 + $0x780] sm:$0xfe] %v1368
      %1431 = vst [vmem:[#allocation3 + $0x7c8] sm:$0xff] %v1370
      %1432 = vst [vmem:[#allocation3 + $0x810] sm:$0xfe] %v1371
      %1433 = vst [vmem:[#allocation3 + $0x858] sm:$0xff] %v1373
      %1434 = vst [vmem:[%s1249 + $0x38] sm:$0xff] 0.0
      %1435 = vst [vmem:[%s1249 + $0x80] sm:$0xff] 0.0
      %v1436 = vld [vmem:[%s1268] sm:$0xff]
      %v1437 = vld [vmem:[%s1268 + $0x8] sm:$0xff]
      %v1438 = vld [vmem:[%s1268 + $0x10] sm:$0xff]
      %v1439 = vld [vmem:[%s1268 + $0x18] sm:$0xff]
      %v1440 = vld [vmem:[%s1268 + $0x20] sm:$0xff]
      %v1441 = vld [vmem:[%s1268 + $0x28] sm:$0xff]
      %v1442 = vld [vmem:[%s1268 + $0x30] sm:$0xff]
      %v1443 = vld [vmem:[%s1268 + $0x38] sm:$0xff]
      %v1444 = vld [vmem:[%s1268 + $0x40] sm:$0xff]
      %v1445 = vld [vmem:[%s1268 + $0x48] sm:$0xff]
      %v1446 = vld [vmem:[%s1268 + $0x50] sm:$0xff]
      %v1447 = vld [vmem:[%s1268 + $0x58] sm:$0xff]
      %v1448 = vld [vmem:[%s1268 + $0x60] sm:$0xff]
      %v1449 = vld [vmem:[%s1268 + $0x68] sm:$0xff]
      %v1450 = vld [vmem:[%s1268 + $0x70] sm:$0xff]
      %v1451 = vld [vmem:[%s1268 + $0x78] sm:$0xff]
      %v1452 = vld [vmem:[%s1268 + $0x80] sm:$0xff]
      %v1453 = vld [vmem:[%s1268 + $0x88] sm:$0xff]
      %v1454 = vld [vmem:[%s1268 + $0x90] sm:$0xff]
      %v1455 = vld [vmem:[%s1268 + $0x98] sm:$0xff]
      %v1456 = vld [vmem:[%s1268 + $0xa0] sm:$0xff]
      %v1457 = vld [vmem:[%s1268 + $0xa8] sm:$0xff]
      %v1458 = vld [vmem:[%s1268 + $0xb0] sm:$0xff]
      %v1459 = vld [vmem:[%s1268 + $0xb8] sm:$0xff]
      %v1460 = vld [vmem:[%s1268 + $0xc0] sm:$0xff]
      %v1461 = vld [vmem:[%s1268 + $0xc8] sm:$0xff]
      %v1462 = vld [vmem:[%s1268 + $0xd0] sm:$0xff]
      %v1463 = vld [vmem:[%s1268 + $0xd8] sm:$0xff]
      %v1464 = vld [vmem:[%s1268 + $0xe0] sm:$0xff]
      %v1465 = vld [vmem:[%s1268 + $0xe8] sm:$0xff]
      %1466 = vst [vmem:[#allocation3 + $0x38] sm:$0xff] %v1436
      %1467 = vst [vmem:[#allocation3 + $0x80] sm:$0xff] %v1437
      %1468 = vst [vmem:[#allocation3 + $0xc8] sm:$0xff] %v1438
      %1469 = vst [vmem:[#allocation3 + $0x110] sm:$0xff] %v1439
      %1470 = vst [vmem:[#allocation3 + $0x158] sm:$0xff] %v1440
      %1471 = vst [vmem:[#allocation3 + $0x1a0] sm:$0xff] %v1441
      %1472 = vst [vmem:[#allocation3 + $0x1e8] sm:$0xff] %v1442
      %1473 = vst [vmem:[#allocation3 + $0x230] sm:$0xff] %v1443
      %1474 = vst [vmem:[#allocation3 + $0x278] sm:$0xff] %v1444
      %1475 = vst [vmem:[#allocation3 + $0x2c0] sm:$0xff] %v1445
      %1476 = vst [vmem:[#allocation3 + $0x308] sm:$0xff] %v1446
      %1477 = vst [vmem:[#allocation3 + $0x350] sm:$0xff] %v1447
      %1478 = vst [vmem:[#allocation3 + $0x398] sm:$0xff] %v1448
      %1479 = vst [vmem:[#allocation3 + $0x3e0] sm:$0xff] %v1449
      %1480 = vst [vmem:[#allocation3 + $0x428] sm:$0xff] %v1450
      %1481 = vst [vmem:[#allocation3 + $0x470] sm:$0xff] %v1451
      %1482 = vst [vmem:[#allocation3 + $0x4b8] sm:$0xff] %v1452
      %1483 = vst [vmem:[#allocation3 + $0x500] sm:$0xff] %v1453
      %1484 = vst [vmem:[#allocation3 + $0x548] sm:$0xff] %v1454
      %1485 = vst [vmem:[#allocation3 + $0x590] sm:$0xff] %v1455
      %1486 = vst [vmem:[#allocation3 + $0x5d8] sm:$0xff] %v1456
      %1487 = vst [vmem:[#allocation3 + $0x620] sm:$0xff] %v1457
      %1488 = vst [vmem:[#allocation3 + $0x668] sm:$0xff] %v1458
      %1489 = vst [vmem:[#allocation3 + $0x6b0] sm:$0xff] %v1459
      %1490 = vst [vmem:[#allocation3 + $0x6f8] sm:$0xff] %v1460
      %1491 = vst [vmem:[#allocation3 + $0x740] sm:$0xff] %v1461
      %1492 = vst [vmem:[#allocation3 + $0x788] sm:$0xff] %v1462
      %1493 = vst [vmem:[#allocation3 + $0x7d0] sm:$0xff] %v1463
      %1494 = vst [vmem:[#allocation3 + $0x818] sm:$0xff] %v1464
      %1495 = vst [vmem:[#allocation3 + $0x860] sm:$0xff] %v1465
      %1496 = vst [vmem:[%s1249 + $0x40] sm:$0xff] 0.0
      %1497 = vst [vmem:[%s1249 + $0x88] sm:$0xff] 0.0
      %1498 = vst [vmem:[#allocation3 + $0x8f] sm:$0x1] 0.0
      %1499 = vst [vmem:[#allocation3 + $0x11f] sm:$0x1] 0.0
      %1500 = vst [vmem:[#allocation3 + $0x1af] sm:$0x1] 0.0
      %1501 = vst [vmem:[#allocation3 + $0x23f] sm:$0x1] 0.0
      %1502 = vst [vmem:[#allocation3 + $0x2cf] sm:$0x1] 0.0
      %1503 = vst [vmem:[#allocation3 + $0x35f] sm:$0x1] 0.0
      %1504 = vst [vmem:[#allocation3 + $0x3ef] sm:$0x1] 0.0
      %1505 = vst [vmem:[#allocation3 + $0x47f] sm:$0x1] 0.0
      %1506 = vst [vmem:[#allocation3 + $0x50f] sm:$0x1] 0.0
      %1507 = vst [vmem:[#allocation3 + $0x59f] sm:$0x1] 0.0
      %1508 = vst [vmem:[#allocation3 + $0x62f] sm:$0x1] 0.0
      %1509 = vst [vmem:[#allocation3 + $0x6bf] sm:$0x1] 0.0
      %1510 = vst [vmem:[#allocation3 + $0x74f] sm:$0x1] 0.0
      %1511 = vst [vmem:[#allocation3 + $0x7df] sm:$0x1] 0.0
      %1512 = vst [vmem:[#allocation3 + $0x86f] sm:$0x1] 0.0
      %1513 = vst [vmem:[#allocation3 + $0x8ff] sm:$0x1] 0.0
      %v1514 = vld [vmem:[%s1268 + $0x1] sm:$0xff]
      %v1515 = vld [vmem:[%s1268 + $0x9] sm:$0x7f]
      %v1516 = vld [vmem:[%s1268 + $0x11] sm:$0xff]
      %v1517 = vld [vmem:[%s1268 + $0x19] sm:$0x7f]
      %v1518 = vld [vmem:[%s1268 + $0x21] sm:$0xff]
      %v1519 = vld [vmem:[%s1268 + $0x29] sm:$0x7f]
      %v1520 = vld [vmem:[%s1268 + $0x31] sm:$0xff]
      %v1521 = vld [vmem:[%s1268 + $0x39] sm:$0x7f]
      %v1522 = vld [vmem:[%s1268 + $0x41] sm:$0xff]
      %v1523 = vld [vmem:[%s1268 + $0x49] sm:$0x7f]
      %v1524 = vld [vmem:[%s1268 + $0x51] sm:$0xff]
      %v1525 = vld [vmem:[%s1268 + $0x59] sm:$0x7f]
      %v1526 = vld [vmem:[%s1268 + $0x61] sm:$0xff]
      %v1527 = vld [vmem:[%s1268 + $0x69] sm:$0x7f]
      %v1528 = vld [vmem:[%s1268 + $0x71] sm:$0xff]
      %v1529 = vld [vmem:[%s1268 + $0x79] sm:$0x7f]
      %v1530 = vld [vmem:[%s1268 + $0x81] sm:$0xff]
      %v1531 = vld [vmem:[%s1268 + $0x89] sm:$0x7f]
      %v1532 = vld [vmem:[%s1268 + $0x91] sm:$0xff]
      %v1533 = vld [vmem:[%s1268 + $0x99] sm:$0x7f]
      %v1534 = vld [vmem:[%s1268 + $0xa1] sm:$0xff]
      %v1535 = vld [vmem:[%s1268 + $0xa9] sm:$0x7f]
      %v1536 = vld [vmem:[%s1268 + $0xb1] sm:$0xff]
      %v1537 = vld [vmem:[%s1268 + $0xb9] sm:$0x7f]
      %v1538 = vld [vmem:[%s1268 + $0xc1] sm:$0xff]
      %v1539 = vld [vmem:[%s1268 + $0xc9] sm:$0x7f]
      %v1540 = vld [vmem:[%s1268 + $0xd1] sm:$0xff]
      %v1541 = vld [vmem:[%s1268 + $0xd9] sm:$0x7f]
      %v1542 = vld [vmem:[%s1268 + $0xe1] sm:$0xff]
      %v1543 = vld [vmem:[%s1268 + $0xe9] sm:$0x7f]
      %1544 = vst [vmem:[#allocation3 + $0x40] sm:$0xff] %v1514
      %1545 = vst [vmem:[#allocation3 + $0x88] sm:$0x7f] %v1515
      %1546 = vst [vmem:[#allocation3 + $0xd0] sm:$0xff] %v1516
      %1547 = vst [vmem:[#allocation3 + $0x118] sm:$0x7f] %v1517
      %1548 = vst [vmem:[#allocation3 + $0x160] sm:$0xff] %v1518
      %1549 = vst [vmem:[#allocation3 + $0x1a8] sm:$0x7f] %v1519
      %1550 = vst [vmem:[#allocation3 + $0x1f0] sm:$0xff] %v1520
      %1551 = vst [vmem:[#allocation3 + $0x238] sm:$0x7f] %v1521
      %1552 = vst [vmem:[#allocation3 + $0x280] sm:$0xff] %v1522
      %1553 = vst [vmem:[#allocation3 + $0x2c8] sm:$0x7f] %v1523
      %1554 = vst [vmem:[#allocation3 + $0x310] sm:$0xff] %v1524
      %1555 = vst [vmem:[#allocation3 + $0x358] sm:$0x7f] %v1525
      %1556 = vst [vmem:[#allocation3 + $0x3a0] sm:$0xff] %v1526
      %1557 = vst [vmem:[#allocation3 + $0x3e8] sm:$0x7f] %v1527
      %1558 = vst [vmem:[#allocation3 + $0x430] sm:$0xff] %v1528
      %1559 = vst [vmem:[#allocation3 + $0x478] sm:$0x7f] %v1529
      %1560 = vst [vmem:[#allocation3 + $0x4c0] sm:$0xff] %v1530
      %1561 = vst [vmem:[#allocation3 + $0x508] sm:$0x7f] %v1531
      %1562 = vst [vmem:[#allocation3 + $0x550] sm:$0xff] %v1532
      %1563 = vst [vmem:[#allocation3 + $0x598] sm:$0x7f] %v1533
      %1564 = vst [vmem:[#allocation3 + $0x5e0] sm:$0xff] %v1534
      %1565 = vst [vmem:[#allocation3 + $0x628] sm:$0x7f] %v1535
      %1566 = vst [vmem:[#allocation3 + $0x670] sm:$0xff] %v1536
      %1567 = vst [vmem:[#allocation3 + $0x6b8] sm:$0x7f] %v1537
      %1568 = vst [vmem:[#allocation3 + $0x700] sm:$0xff] %v1538
      %1569 = vst [vmem:[#allocation3 + $0x748] sm:$0x7f] %v1539
      %1570 = vst [vmem:[#allocation3 + $0x790] sm:$0xff] %v1540
      %1571 = vst [vmem:[#allocation3 + $0x7d8] sm:$0x7f] %v1541
      %1572 = vst [vmem:[#allocation3 + $0x820] sm:$0xff] %v1542
      %1573 = vst [vmem:[#allocation3 + $0x868] sm:$0x7f] %v1543
      %v1574 = vld [vmem:[#allocation3] sm:$0xff]
      %v1575 = vld [vmem:[#allocation3 + $0x8] sm:$0xff]
      %v1576 = vld [vmem:[#allocation3 + $0x10] sm:$0xff]
      %v1577 = vld [vmem:[#allocation3 + $0x18] sm:$0xff]
      %v1578 = vld [vmem:[#allocation3 + $0x20] sm:$0xff]
      %v1579 = vld [vmem:[#allocation3 + $0x28] sm:$0xff]
      %v1580 = vld [vmem:[#allocation3 + $0x30] sm:$0xff]
      %v1581 = vld [vmem:[#allocation3 + $0x38] sm:$0xff]
      %v1582 = vld [vmem:[#allocation3 + $0x40] sm:$0xff]
      %v1583 = vld [vmem:[#allocation3 + $0x48] sm:$0xff]
      %v1584 = vld [vmem:[#allocation3 + $0x50] sm:$0xff]
      %v1585 = vld [vmem:[#allocation3 + $0x58] sm:$0xff]
      %v1586 = vld [vmem:[#allocation3 + $0x60] sm:$0xff]
      %v1587 = vld [vmem:[#allocation3 + $0x68] sm:$0xff]
      %v1588 = vld [vmem:[#allocation3 + $0x70] sm:$0xff]
      %v1589 = vld [vmem:[#allocation3 + $0x78] sm:$0xff]
      %v1590 = vld [vmem:[#allocation3 + $0x80] sm:$0xff]
      %v1591 = vld [vmem:[#allocation3 + $0x88] sm:$0xff]
      %v1592 = vld [vmem:[#allocation3 + $0x90] sm:$0xff]
      %v1593 = vld [vmem:[#allocation3 + $0x98] sm:$0xff]
      %v1594 = vld [vmem:[#allocation3 + $0xa0] sm:$0xff]
      %v1595 = vld [vmem:[#allocation3 + $0xa8] sm:$0xff]
      %v1596 = vld [vmem:[#allocation3 + $0xb0] sm:$0xff]
      %v1597 = vld [vmem:[#allocation3 + $0xb8] sm:$0xff]
      %v1598 = vld [vmem:[#allocation3 + $0xc0] sm:$0xff]
      %v1599 = vld [vmem:[#allocation3 + $0xc8] sm:$0xff]
      %v1600 = vld [vmem:[#allocation3 + $0xd0] sm:$0xff]
      %v1601 = vld [vmem:[#allocation3 + $0xd8] sm:$0xff]
      %v1602 = vld [vmem:[#allocation3 + $0xe0] sm:$0xff]
      %v1603 = vld [vmem:[#allocation3 + $0xe8] sm:$0xff]
      %v1604 = vld [vmem:[#allocation3 + $0xf0] sm:$0xff]
      %v1605 = vld [vmem:[#allocation3 + $0xf8] sm:$0xff]
      %v1606 = vld [vmem:[#allocation3 + $0x100] sm:$0xff]
      %v1607 = vld [vmem:[#allocation3 + $0x108] sm:$0xff]
      %v1608 = vld [vmem:[#allocation3 + $0x110] sm:$0xff]
      %v1609 = vld [vmem:[#allocation3 + $0x118] sm:$0xff]
      %v1610 = vld [vmem:[#allocation3 + $0x120] sm:$0xff]
      %v1611 = vld [vmem:[#allocation3 + $0x128] sm:$0xff]
      %v1612 = vld [vmem:[#allocation3 + $0x130] sm:$0xff]
      %v1613 = vld [vmem:[#allocation3 + $0x138] sm:$0xff]
      %v1614 = vld [vmem:[#allocation3 + $0x140] sm:$0xff]
      %v1615 = vld [vmem:[#allocation3 + $0x148] sm:$0xff]
      %v1616 = vld [vmem:[#allocation3 + $0x150] sm:$0xff]
      %v1617 = vld [vmem:[#allocation3 + $0x158] sm:$0xff]
      %v1618 = vld [vmem:[#allocation3 + $0x160] sm:$0xff]
      %v1619 = vld [vmem:[#allocation3 + $0x168] sm:$0xff]
      %v1620 = vld [vmem:[#allocation3 + $0x170] sm:$0xff]
      %v1621 = vld [vmem:[#allocation3 + $0x178] sm:$0xff]
      %v1622 = vld [vmem:[#allocation3 + $0x180] sm:$0xff]
      %v1623 = vld [vmem:[#allocation3 + $0x188] sm:$0xff]
      %v1624 = vld [vmem:[#allocation3 + $0x190] sm:$0xff]
      %v1625 = vld [vmem:[#allocation3 + $0x198] sm:$0xff]
      %v1626 = vld [vmem:[#allocation3 + $0x1a0] sm:$0xff]
      %v1627 = vld [vmem:[#allocation3 + $0x1a8] sm:$0xff]
      %v1628 = vld [vmem:[#allocation3 + $0x1b0] sm:$0xff]
      %v1629 = vld [vmem:[#allocation3 + $0x1b8] sm:$0xff]
      %v1630 = vld [vmem:[#allocation3 + $0x1c0] sm:$0xff]
      %v1631 = vld [vmem:[#allocation3 + $0x1c8] sm:$0xff]
      %v1632 = vld [vmem:[#allocation3 + $0x1d0] sm:$0xff]
      %v1633 = vld [vmem:[#allocation3 + $0x1d8] sm:$0xff]
      %v1634 = vld [vmem:[#allocation3 + $0x1e0] sm:$0xff]
      %v1635 = vld [vmem:[#allocation3 + $0x1e8] sm:$0xff]
      %v1636 = vld [vmem:[#allocation3 + $0x1f0] sm:$0xff]
      %v1637 = vld [vmem:[#allocation3 + $0x1f8] sm:$0xff]
      %v1638 = vld [vmem:[#allocation3 + $0x200] sm:$0xff]
      %v1639 = vld [vmem:[#allocation3 + $0x208] sm:$0xff]
      %v1640 = vld [vmem:[#allocation3 + $0x210] sm:$0xff]
      %v1641 = vld [vmem:[#allocation3 + $0x218] sm:$0xff]
      %v1642 = vld [vmem:[#allocation3 + $0x220] sm:$0xff]
      %v1643 = vld [vmem:[#allocation3 + $0x228] sm:$0xff]
      %v1644 = vld [vmem:[#allocation3 + $0x230] sm:$0xff]
      %v1645 = vld [vmem:[#allocation3 + $0x238] sm:$0xff]
      %v1646 = vld [vmem:[#allocation3 + $0x240] sm:$0xff]
      %v1647 = vld [vmem:[#allocation3 + $0x248] sm:$0xff]
      %v1648 = vld [vmem:[#allocation3 + $0x250] sm:$0xff]
      %v1649 = vld [vmem:[#allocation3 + $0x258] sm:$0xff]
      %v1650 = vld [vmem:[#allocation3 + $0x260] sm:$0xff]
      %v1651 = vld [vmem:[#allocation3 + $0x268] sm:$0xff]
      %v1652 = vld [vmem:[#allocation3 + $0x270] sm:$0xff]
      %v1653 = vld [vmem:[#allocation3 + $0x278] sm:$0xff]
      %v1654 = vld [vmem:[#allocation3 + $0x280] sm:$0xff]
      %v1655 = vld [vmem:[#allocation3 + $0x288] sm:$0xff]
      %v1656 = vld [vmem:[#allocation3 + $0x290] sm:$0xff]
      %v1657 = vld [vmem:[#allocation3 + $0x298] sm:$0xff]
      %v1658 = vld [vmem:[#allocation3 + $0x2a0] sm:$0xff]
      %v1659 = vld [vmem:[#allocation3 + $0x2a8] sm:$0xff]
      %v1660 = vld [vmem:[#allocation3 + $0x2b0] sm:$0xff]
      %v1661 = vld [vmem:[#allocation3 + $0x2b8] sm:$0xff]
      %v1662 = vld [vmem:[#allocation3 + $0x2c0] sm:$0xff]
      %v1663 = vld [vmem:[#allocation3 + $0x2c8] sm:$0xff]
      %v1664 = vld [vmem:[#allocation3 + $0x2d0] sm:$0xff]
      %v1665 = vld [vmem:[#allocation3 + $0x2d8] sm:$0xff]
      %v1666 = vld [vmem:[#allocation3 + $0x2e0] sm:$0xff]
      %v1667 = vld [vmem:[#allocation3 + $0x2e8] sm:$0xff]
      %v1668 = vld [vmem:[#allocation3 + $0x2f0] sm:$0xff]
      %v1669 = vld [vmem:[#allocation3 + $0x2f8] sm:$0xff]
      %v1670 = vld [vmem:[#allocation3 + $0x300] sm:$0xff]
      %v1671 = vld [vmem:[#allocation3 + $0x308] sm:$0xff]
      %v1672 = vld [vmem:[#allocation3 + $0x310] sm:$0xff]
      %v1673 = vld [vmem:[#allocation3 + $0x318] sm:$0xff]
      %v1674 = vld [vmem:[#allocation3 + $0x320] sm:$0xff]
      %v1675 = vld [vmem:[#allocation3 + $0x328] sm:$0xff]
      %v1676 = vld [vmem:[#allocation3 + $0x330] sm:$0xff]
      %v1677 = vld [vmem:[#allocation3 + $0x338] sm:$0xff]
      %v1678 = vld [vmem:[#allocation3 + $0x340] sm:$0xff]
      %v1679 = vld [vmem:[#allocation3 + $0x348] sm:$0xff]
      %v1680 = vld [vmem:[#allocation3 + $0x350] sm:$0xff]
      %v1681 = vld [vmem:[#allocation3 + $0x358] sm:$0xff]
      %v1682 = vld [vmem:[#allocation3 + $0x360] sm:$0xff]
      %v1683 = vld [vmem:[#allocation3 + $0x368] sm:$0xff]
      %v1684 = vld [vmem:[#allocation3 + $0x370] sm:$0xff]
      %v1685 = vld [vmem:[#allocation3 + $0x378] sm:$0xff]
      %v1686 = vld [vmem:[#allocation3 + $0x380] sm:$0xff]
      %v1687 = vld [vmem:[#allocation3 + $0x388] sm:$0xff]
      %v1688 = vld [vmem:[#allocation3 + $0x390] sm:$0xff]
      %v1689 = vld [vmem:[#allocation3 + $0x398] sm:$0xff]
      %v1690 = vld [vmem:[#allocation3 + $0x3a0] sm:$0xff]
      %v1691 = vld [vmem:[#allocation3 + $0x3a8] sm:$0xff]
      %v1692 = vld [vmem:[#allocation3 + $0x3b0] sm:$0xff]
      %v1693 = vld [vmem:[#allocation3 + $0x3b8] sm:$0xff]
      %v1694 = vld [vmem:[#allocation3 + $0x3c0] sm:$0xff]
      %v1695 = vld [vmem:[#allocation3 + $0x3c8] sm:$0xff]
      %v1696 = vld [vmem:[#allocation3 + $0x3d0] sm:$0xff]
      %v1697 = vld [vmem:[#allocation3 + $0x3d8] sm:$0xff]
      %v1698 = vld [vmem:[#allocation3 + $0x3e0] sm:$0xff]
      %v1699 = vld [vmem:[#allocation3 + $0x3e8] sm:$0xff]
      %v1700 = vld [vmem:[#allocation3 + $0x3f0] sm:$0xff]
      %v1701 = vld [vmem:[#allocation3 + $0x3f8] sm:$0xff]
      %v1702 = vld [vmem:[#allocation3 + $0x400] sm:$0xff]
      %v1703 = vld [vmem:[#allocation3 + $0x408] sm:$0xff]
      %v1704 = vld [vmem:[#allocation3 + $0x410] sm:$0xff]
      %v1705 = vld [vmem:[#allocation3 + $0x418] sm:$0xff]
      %v1706 = vld [vmem:[#allocation3 + $0x420] sm:$0xff]
      %v1707 = vld [vmem:[#allocation3 + $0x428] sm:$0xff]
      %v1708 = vld [vmem:[#allocation3 + $0x430] sm:$0xff]
      %v1709 = vld [vmem:[#allocation3 + $0x438] sm:$0xff]
      %v1710 = vld [vmem:[#allocation3 + $0x440] sm:$0xff]
      %v1711 = vld [vmem:[#allocation3 + $0x448] sm:$0xff]
      %v1712 = vld [vmem:[#allocation3 + $0x450] sm:$0xff]
      %v1713 = vld [vmem:[#allocation3 + $0x458] sm:$0xff]
      %v1714 = vld [vmem:[#allocation3 + $0x460] sm:$0xff]
      %v1715 = vld [vmem:[#allocation3 + $0x468] sm:$0xff]
      %v1716 = vld [vmem:[#allocation3 + $0x470] sm:$0xff]
      %v1717 = vld [vmem:[#allocation3 + $0x478] sm:$0xff]
      %v1718 = vld [vmem:[#allocation3 + $0x480] sm:$0xff]
      %v1719 = vld [vmem:[#allocation3 + $0x488] sm:$0xff]
      %v1720 = vld [vmem:[#allocation3 + $0x490] sm:$0xff]
      %v1721 = vld [vmem:[#allocation3 + $0x498] sm:$0xff]
      %v1722 = vld [vmem:[#allocation3 + $0x4a0] sm:$0xff]
      %v1723 = vld [vmem:[#allocation3 + $0x4a8] sm:$0xff]
      %v1724 = vld [vmem:[#allocation3 + $0x4b0] sm:$0xff]
      %v1725 = vld [vmem:[#allocation3 + $0x4b8] sm:$0xff]
      %v1726 = vld [vmem:[#allocation3 + $0x4c0] sm:$0xff]
      %v1727 = vld [vmem:[#allocation3 + $0x4c8] sm:$0xff]
      %v1728 = vld [vmem:[#allocation3 + $0x4d0] sm:$0xff]
      %v1729 = vld [vmem:[#allocation3 + $0x4d8] sm:$0xff]
      %v1730 = vld [vmem:[#allocation3 + $0x4e0] sm:$0xff]
      %v1731 = vld [vmem:[#allocation3 + $0x4e8] sm:$0xff]
      %v1732 = vld [vmem:[#allocation3 + $0x4f0] sm:$0xff]
      %v1733 = vld [vmem:[#allocation3 + $0x4f8] sm:$0xff]
      %v1734 = vld [vmem:[#allocation3 + $0x500] sm:$0xff]
      %v1735 = vld [vmem:[#allocation3 + $0x508] sm:$0xff]
      %v1736 = vld [vmem:[#allocation3 + $0x510] sm:$0xff]
      %v1737 = vld [vmem:[#allocation3 + $0x518] sm:$0xff]
      %v1738 = vld [vmem:[#allocation3 + $0x520] sm:$0xff]
      %v1739 = vld [vmem:[#allocation3 + $0x528] sm:$0xff]
      %v1740 = vld [vmem:[#allocation3 + $0x530] sm:$0xff]
      %v1741 = vld [vmem:[#allocation3 + $0x538] sm:$0xff]
      %v1742 = vld [vmem:[#allocation3 + $0x540] sm:$0xff]
      %v1743 = vld [vmem:[#allocation3 + $0x548] sm:$0xff]
      %v1744 = vld [vmem:[#allocation3 + $0x550] sm:$0xff]
      %v1745 = vld [vmem:[#allocation3 + $0x558] sm:$0xff]
      %v1746 = vld [vmem:[#allocation3 + $0x560] sm:$0xff]
      %v1747 = vld [vmem:[#allocation3 + $0x568] sm:$0xff]
      %v1748 = vld [vmem:[#allocation3 + $0x570] sm:$0xff]
      %v1749 = vld [vmem:[#allocation3 + $0x578] sm:$0xff]
      %v1750 = vld [vmem:[#allocation3 + $0x580] sm:$0xff]
      %v1751 = vld [vmem:[#allocation3 + $0x588] sm:$0xff]
      %v1752 = vld [vmem:[#allocation3 + $0x590] sm:$0xff]
      %v1753 = vld [vmem:[#allocation3 + $0x598] sm:$0xff]
      %v1754 = vld [vmem:[#allocation3 + $0x5a0] sm:$0xff]
      %v1755 = vld [vmem:[#allocation3 + $0x5a8] sm:$0xff]
      %v1756 = vld [vmem:[#allocation3 + $0x5b0] sm:$0xff]
      %v1757 = vld [vmem:[#allocation3 + $0x5b8] sm:$0xff]
      %v1758 = vld [vmem:[#allocation3 + $0x5c0] sm:$0xff]
      %v1759 = vld [vmem:[#allocation3 + $0x5c8] sm:$0xff]
      %v1760 = vld [vmem:[#allocation3 + $0x5d0] sm:$0xff]
      %v1761 = vld [vmem:[#allocation3 + $0x5d8] sm:$0xff]
      %v1762 = vld [vmem:[#allocation3 + $0x5e0] sm:$0xff]
      %v1763 = vld [vmem:[#allocation3 + $0x5e8] sm:$0xff]
      %v1764 = vld [vmem:[#allocation3 + $0x5f0] sm:$0xff]
      %v1765 = vld [vmem:[#allocation3 + $0x5f8] sm:$0xff]
      %v1766 = vld [vmem:[#allocation3 + $0x600] sm:$0xff]
      %v1767 = vld [vmem:[#allocation3 + $0x608] sm:$0xff]
      %v1768 = vld [vmem:[#allocation3 + $0x610] sm:$0xff]
      %v1769 = vld [vmem:[#allocation3 + $0x618] sm:$0xff]
      %v1770 = vld [vmem:[#allocation3 + $0x620] sm:$0xff]
      %v1771 = vld [vmem:[#allocation3 + $0x628] sm:$0xff]
      %v1772 = vld [vmem:[#allocation3 + $0x630] sm:$0xff]
      %v1773 = vld [vmem:[#allocation3 + $0x638] sm:$0xff]
      %v1774 = vld [vmem:[#allocation3 + $0x640] sm:$0xff]
      %v1775 = vld [vmem:[#allocation3 + $0x648] sm:$0xff]
      %v1776 = vld [vmem:[#allocation3 + $0x650] sm:$0xff]
      %v1777 = vld [vmem:[#allocation3 + $0x658] sm:$0xff]
      %v1778 = vld [vmem:[#allocation3 + $0x660] sm:$0xff]
      %v1779 = vld [vmem:[#allocation3 + $0x668] sm:$0xff]
      %v1780 = vld [vmem:[#allocation3 + $0x670] sm:$0xff]
      %v1781 = vld [vmem:[#allocation3 + $0x678] sm:$0xff]
      %v1782 = vld [vmem:[#allocation3 + $0x680] sm:$0xff]
      %v1783 = vld [vmem:[#allocation3 + $0x688] sm:$0xff]
      %v1784 = vld [vmem:[#allocation3 + $0x690] sm:$0xff]
      %v1785 = vld [vmem:[#allocation3 + $0x698] sm:$0xff]
      %v1786 = vld [vmem:[#allocation3 + $0x6a0] sm:$0xff]
      %v1787 = vld [vmem:[#allocation3 + $0x6a8] sm:$0xff]
      %v1788 = vld [vmem:[#allocation3 + $0x6b0] sm:$0xff]
      %v1789 = vld [vmem:[#allocation3 + $0x6b8] sm:$0xff]
      %v1790 = vld [vmem:[#allocation3 + $0x6c0] sm:$0xff]
      %v1791 = vld [vmem:[#allocation3 + $0x6c8] sm:$0xff]
      %v1792 = vld [vmem:[#allocation3 + $0x6d0] sm:$0xff]
      %v1793 = vld [vmem:[#allocation3 + $0x6d8] sm:$0xff]
      %v1794 = vld [vmem:[#allocation3 + $0x6e0] sm:$0xff]
      %v1795 = vld [vmem:[#allocation3 + $0x6e8] sm:$0xff]
      %v1796 = vld [vmem:[#allocation3 + $0x6f0] sm:$0xff]
      %v1797 = vld [vmem:[#allocation3 + $0x6f8] sm:$0xff]
      %v1798 = vld [vmem:[#allocation3 + $0x700] sm:$0xff]
      %v1799 = vld [vmem:[#allocation3 + $0x708] sm:$0xff]
      %v1800 = vld [vmem:[#allocation3 + $0x710] sm:$0xff]
      %v1801 = vld [vmem:[#allocation3 + $0x718] sm:$0xff]
      %v1802 = vld [vmem:[#allocation3 + $0x720] sm:$0xff]
      %v1803 = vld [vmem:[#allocation3 + $0x728] sm:$0xff]
      %v1804 = vld [vmem:[#allocation3 + $0x730] sm:$0xff]
      %v1805 = vld [vmem:[#allocation3 + $0x738] sm:$0xff]
      %v1806 = vld [vmem:[#allocation3 + $0x740] sm:$0xff]
      %v1807 = vld [vmem:[#allocation3 + $0x748] sm:$0xff]
      %v1808 = vld [vmem:[#allocation3 + $0x750] sm:$0xff]
      %v1809 = vld [vmem:[#allocation3 + $0x758] sm:$0xff]
      %v1810 = vld [vmem:[#allocation3 + $0x760] sm:$0xff]
      %v1811 = vld [vmem:[#allocation3 + $0x768] sm:$0xff]
      %v1812 = vld [vmem:[#allocation3 + $0x770] sm:$0xff]
      %v1813 = vld [vmem:[#allocation3 + $0x778] sm:$0xff]
      %v1814 = vld [vmem:[#allocation3 + $0x780] sm:$0xff]
      %v1815 = vld [vmem:[#allocation3 + $0x788] sm:$0xff]
      %v1816 = vld [vmem:[#allocation3 + $0x790] sm:$0xff]
      %v1817 = vld [vmem:[#allocation3 + $0x798] sm:$0xff]
      %v1818 = vld [vmem:[#allocation3 + $0x7a0] sm:$0xff]
      %v1819 = vld [vmem:[#allocation3 + $0x7a8] sm:$0xff]
      %v1820 = vld [vmem:[#allocation3 + $0x7b0] sm:$0xff]
      %v1821 = vld [vmem:[#allocation3 + $0x7b8] sm:$0xff]
      %v1822 = vld [vmem:[#allocation3 + $0x7c0] sm:$0xff]
      %v1823 = vld [vmem:[#allocation3 + $0x7c8] sm:$0xff]
      %v1824 = vld [vmem:[#allocation3 + $0x7d0] sm:$0xff]
      %v1825 = vld [vmem:[#allocation3 + $0x7d8] sm:$0xff]
      %v1826 = vld [vmem:[#allocation3 + $0x7e0] sm:$0xff]
      %v1827 = vld [vmem:[#allocation3 + $0x7e8] sm:$0xff]
      %v1828 = vld [vmem:[#allocation3 + $0x7f0] sm:$0xff]
      %v1829 = vld [vmem:[#allocation3 + $0x7f8] sm:$0xff]
      %v1830 = vld [vmem:[#allocation3 + $0x800] sm:$0xff]
      %v1831 = vld [vmem:[#allocation3 + $0x808] sm:$0xff]
      %v1832 = vld [vmem:[#allocation3 + $0x810] sm:$0xff]
      %v1833 = vld [vmem:[#allocation3 + $0x818] sm:$0xff]
      %v1834 = vld [vmem:[#allocation3 + $0x820] sm:$0xff]
      %v1835 = vld [vmem:[#allocation3 + $0x828] sm:$0xff]
      %v1836 = vld [vmem:[#allocation3 + $0x830] sm:$0xff]
      %v1837 = vld [vmem:[#allocation3 + $0x838] sm:$0xff]
      %v1838 = vld [vmem:[#allocation3 + $0x840] sm:$0xff]
      %v1839 = vld [vmem:[#allocation3 + $0x848] sm:$0xff]
      %v1840 = vld [vmem:[#allocation3 + $0x850] sm:$0xff]
      %v1841 = vld [vmem:[#allocation3 + $0x858] sm:$0xff]
      %v1842 = vld [vmem:[#allocation3 + $0x860] sm:$0xff]
      %v1843 = vld [vmem:[#allocation3 + $0x868] sm:$0xff]
      %v1844 = vld [vmem:[#allocation3 + $0x870] sm:$0xff]
      %v1845 = vld [vmem:[#allocation3 + $0x878] sm:$0xff]
      %v1846 = vld [vmem:[#allocation3 + $0x880] sm:$0xff]
      %v1847 = vld [vmem:[#allocation3 + $0x888] sm:$0xff]
      %v1848 = vld [vmem:[#allocation3 + $0x890] sm:$0xff]
      %v1849 = vld [vmem:[#allocation3 + $0x898] sm:$0xff]
      %v1850 = vld [vmem:[#allocation3 + $0x8a0] sm:$0xff]
      %v1851 = vld [vmem:[#allocation3 + $0x8a8] sm:$0xff]
      %v1852 = vld [vmem:[#allocation3 + $0x8b0] sm:$0xff]
      %v1853 = vld [vmem:[#allocation3 + $0x8b8] sm:$0xff]
      %v1854 = vld [vmem:[#allocation3 + $0x8c0] sm:$0xff]
      %v1855 = vld [vmem:[#allocation3 + $0x8c8] sm:$0xff]
      %v1856 = vld [vmem:[#allocation3 + $0x8d0] sm:$0xff]
      %v1857 = vld [vmem:[#allocation3 + $0x8d8] sm:$0xff]
      %v1858 = vld [vmem:[#allocation3 + $0x8e0] sm:$0xff]
      %v1859 = vld [vmem:[#allocation3 + $0x8e8] sm:$0xff]
      %v1860 = vld [vmem:[#allocation3 + $0x8f0] sm:$0xff]
      %v1861 = vld [vmem:[#allocation3 + $0x8f8] sm:$0xff]
      %v1862 = vpack.c.bf16 %v1583, %v1574
      %v1863 = vpack.c.bf16 %v1584, %v1575
      %v1864 = vpack.c.bf16 %v1585, %v1576
      %v1865 = vpack.c.bf16 %v1586, %v1577
      %v1866 = vpack.c.bf16 %v1587, %v1578
      %v1867 = vpack.c.bf16 %v1588, %v1579
      %v1868 = vpack.c.bf16 %v1589, %v1580
      %v1869 = vpack.c.bf16 %v1590, %v1581
      %v1870 = vpack.c.bf16 %v1591, %v1582
      %v1871 = vpack.c.bf16 %v1601, %v1592
      %v1872 = vpack.c.bf16 %v1602, %v1593
      %v1873 = vpack.c.bf16 %v1603, %v1594
      %v1874 = vpack.c.bf16 %v1604, %v1595
      %v1875 = vpack.c.bf16 %v1605, %v1596
      %v1876 = vpack.c.bf16 %v1606, %v1597
      %v1877 = vpack.c.bf16 %v1607, %v1598
      %v1878 = vpack.c.bf16 %v1608, %v1599
      %v1879 = vpack.c.bf16 %v1609, %v1600
      %v1880 = vpack.c.bf16 %v1619, %v1610
      %v1881 = vpack.c.bf16 %v1620, %v1611
      %v1882 = vpack.c.bf16 %v1621, %v1612
      %v1883 = vpack.c.bf16 %v1622, %v1613
      %v1884 = vpack.c.bf16 %v1623, %v1614
      %v1885 = vpack.c.bf16 %v1624, %v1615
      %v1886 = vpack.c.bf16 %v1625, %v1616
      %v1887 = vpack.c.bf16 %v1626, %v1617
      %v1888 = vpack.c.bf16 %v1627, %v1618
      %v1889 = vpack.c.bf16 %v1637, %v1628
      %v1890 = vpack.c.bf16 %v1638, %v1629
      %v1891 = vpack.c.bf16 %v1639, %v1630
      %v1892 = vpack.c.bf16 %v1640, %v1631
      %v1893 = vpack.c.bf16 %v1641, %v1632
      %v1894 = vpack.c.bf16 %v1642, %v1633
      %v1895 = vpack.c.bf16 %v1643, %v1634
      %v1896 = vpack.c.bf16 %v1644, %v1635
      %v1897 = vpack.c.bf16 %v1645, %v1636
      %v1898 = vpack.c.bf16 %v1655, %v1646
      %v1899 = vpack.c.bf16 %v1656, %v1647
      %v1900 = vpack.c.bf16 %v1657, %v1648
      %v1901 = vpack.c.bf16 %v1658, %v1649
      %v1902 = vpack.c.bf16 %v1659, %v1650
      %v1903 = vpack.c.bf16 %v1660, %v1651
      %v1904 = vpack.c.bf16 %v1661, %v1652
      %v1905 = vpack.c.bf16 %v1662, %v1653
      %v1906 = vpack.c.bf16 %v1663, %v1654
      %v1907 = vpack.c.bf16 %v1673, %v1664
      %v1908 = vpack.c.bf16 %v1674, %v1665
      %v1909 = vpack.c.bf16 %v1675, %v1666
      %v1910 = vpack.c.bf16 %v1676, %v1667
      %v1911 = vpack.c.bf16 %v1677, %v1668
      %v1912 = vpack.c.bf16 %v1678, %v1669
      %v1913 = vpack.c.bf16 %v1679, %v1670
      %v1914 = vpack.c.bf16 %v1680, %v1671
      %v1915 = vpack.c.bf16 %v1681, %v1672
      %v1916 = vpack.c.bf16 %v1691, %v1682
      %v1917 = vpack.c.bf16 %v1692, %v1683
      %v1918 = vpack.c.bf16 %v1693, %v1684
      %v1919 = vpack.c.bf16 %v1694, %v1685
      %v1920 = vpack.c.bf16 %v1695, %v1686
      %v1921 = vpack.c.bf16 %v1696, %v1687
      %v1922 = vpack.c.bf16 %v1697, %v1688
      %v1923 = vpack.c.bf16 %v1698, %v1689
      %v1924 = vpack.c.bf16 %v1699, %v1690
      %v1925 = vpack.c.bf16 %v1709, %v1700
      %v1926 = vpack.c.bf16 %v1710, %v1701
      %v1927 = vpack.c.bf16 %v1711, %v1702
      %v1928 = vpack.c.bf16 %v1712, %v1703
      %v1929 = vpack.c.bf16 %v1713, %v1704
      %v1930 = vpack.c.bf16 %v1714, %v1705
      %v1931 = vpack.c.bf16 %v1715, %v1706
      %v1932 = vpack.c.bf16 %v1716, %v1707
      %v1933 = vpack.c.bf16 %v1717, %v1708
      %v1934 = vpack.c.bf16 %v1727, %v1718
      %v1935 = vpack.c.bf16 %v1728, %v1719
      %v1936 = vpack.c.bf16 %v1729, %v1720
      %v1937 = vpack.c.bf16 %v1730, %v1721
      %v1938 = vpack.c.bf16 %v1731, %v1722
      %v1939 = vpack.c.bf16 %v1732, %v1723
      %v1940 = vpack.c.bf16 %v1733, %v1724
      %v1941 = vpack.c.bf16 %v1734, %v1725
      %v1942 = vpack.c.bf16 %v1735, %v1726
      %v1943 = vpack.c.bf16 %v1745, %v1736
      %v1944 = vpack.c.bf16 %v1746, %v1737
      %v1945 = vpack.c.bf16 %v1747, %v1738
      %v1946 = vpack.c.bf16 %v1748, %v1739
      %v1947 = vpack.c.bf16 %v1749, %v1740
      %v1948 = vpack.c.bf16 %v1750, %v1741
      %v1949 = vpack.c.bf16 %v1751, %v1742
      %v1950 = vpack.c.bf16 %v1752, %v1743
      %v1951 = vpack.c.bf16 %v1753, %v1744
      %v1952 = vpack.c.bf16 %v1763, %v1754
      %v1953 = vpack.c.bf16 %v1764, %v1755
      %v1954 = vpack.c.bf16 %v1765, %v1756
      %v1955 = vpack.c.bf16 %v1766, %v1757
      %v1956 = vpack.c.bf16 %v1767, %v1758
      %v1957 = vpack.c.bf16 %v1768, %v1759
      %v1958 = vpack.c.bf16 %v1769, %v1760
      %v1959 = vpack.c.bf16 %v1770, %v1761
      %v1960 = vpack.c.bf16 %v1771, %v1762
      %v1961 = vpack.c.bf16 %v1781, %v1772
      %v1962 = vpack.c.bf16 %v1782, %v1773
      %v1963 = vpack.c.bf16 %v1783, %v1774
      %v1964 = vpack.c.bf16 %v1784, %v1775
      %v1965 = vpack.c.bf16 %v1785, %v1776
      %v1966 = vpack.c.bf16 %v1786, %v1777
      %v1967 = vpack.c.bf16 %v1787, %v1778
      %v1968 = vpack.c.bf16 %v1788, %v1779
      %v1969 = vpack.c.bf16 %v1789, %v1780
      %v1970 = vpack.c.bf16 %v1799, %v1790
      %v1971 = vpack.c.bf16 %v1800, %v1791
      %v1972 = vpack.c.bf16 %v1801, %v1792
      %v1973 = vpack.c.bf16 %v1802, %v1793
      %v1974 = vpack.c.bf16 %v1803, %v1794
      %v1975 = vpack.c.bf16 %v1804, %v1795
      %v1976 = vpack.c.bf16 %v1805, %v1796
      %v1977 = vpack.c.bf16 %v1806, %v1797
      %v1978 = vpack.c.bf16 %v1807, %v1798
      %v1979 = vpack.c.bf16 %v1817, %v1808
      %v1980 = vpack.c.bf16 %v1818, %v1809
      %v1981 = vpack.c.bf16 %v1819, %v1810
      %v1982 = vpack.c.bf16 %v1820, %v1811
      %v1983 = vpack.c.bf16 %v1821, %v1812
      %v1984 = vpack.c.bf16 %v1822, %v1813
      %v1985 = vpack.c.bf16 %v1823, %v1814
      %v1986 = vpack.c.bf16 %v1824, %v1815
      %v1987 = vpack.c.bf16 %v1825, %v1816
      %v1988 = vpack.c.bf16 %v1835, %v1826
      %v1989 = vpack.c.bf16 %v1836, %v1827
      %v1990 = vpack.c.bf16 %v1837, %v1828
      %v1991 = vpack.c.bf16 %v1838, %v1829
      %v1992 = vpack.c.bf16 %v1839, %v1830
      %v1993 = vpack.c.bf16 %v1840, %v1831
      %v1994 = vpack.c.bf16 %v1841, %v1832
      %v1995 = vpack.c.bf16 %v1842, %v1833
      %v1996 = vpack.c.bf16 %v1843, %v1834
      %v1997 = vpack.c.bf16 %v1853, %v1844
      %v1998 = vpack.c.bf16 %v1854, %v1845
      %v1999 = vpack.c.bf16 %v1855, %v1846
      %v2000 = vpack.c.bf16 %v1856, %v1847
      %v2001 = vpack.c.bf16 %v1857, %v1848
      %v2002 = vpack.c.bf16 %v1858, %v1849
      %v2003 = vpack.c.bf16 %v1859, %v1850
      %v2004 = vpack.c.bf16 %v1860, %v1851
      %v2005 = vpack.c.bf16 %v1861, %v1852
      %v2006 = vld [vmem:[%s6] sm:$0xf]
      %v2007 = vld [vmem:[%s6 + $0x4] sm:$0xf]
      %v2008 = vld [vmem:[%s6 + $0x8] sm:$0xf]
      %v2009 = vld [vmem:[%s6 + $0xc] sm:$0xf]
      %v2010 = vld [vmem:[%s6 + $0x10] sm:$0xf]
      %v2011 = vld [vmem:[%s6 + $0x14] sm:$0xf]
      %v2012 = vld [vmem:[%s6 + $0x18] sm:$0xf]
      %v2013 = vld [vmem:[%s6 + $0x1c] sm:$0xf]
      %v2014 = vld [vmem:[%s6 + $0x20] sm:$0xf]
      %v2015 = vld [vmem:[%s6 + $0x24] sm:$0xf]
      %v2016 = vld [vmem:[%s6 + $0x28] sm:$0xf]
      %v2017 = vld [vmem:[%s6 + $0x2c] sm:$0xf]
      %v2018 = vld [vmem:[%s6 + $0x30] sm:$0xf]
      %v2019 = vld [vmem:[%s6 + $0x34] sm:$0xf]
      %v2020 = vld [vmem:[%s6 + $0x38] sm:$0xf]
      %v2021 = vld [vmem:[%s6 + $0x3c] sm:$0xf]
      %v2022 = vld [vmem:[%s6 + $0x40] sm:$0xf]
      %v2023 = vld [vmem:[%s6 + $0x44] sm:$0xf]
      %v2024 = vld [vmem:[%s6 + $0x48] sm:$0xf]
      %v2025 = vld [vmem:[%s6 + $0x4c] sm:$0xf]
      %v2026 = vld [vmem:[%s6 + $0x50] sm:$0xf]
      %v2027 = vld [vmem:[%s6 + $0x54] sm:$0xf]
      %v2028 = vld [vmem:[%s6 + $0x58] sm:$0xf]
      %v2029 = vld [vmem:[%s6 + $0x5c] sm:$0xf]
      %v2030 = vld [vmem:[%s6 + $0x60] sm:$0xf]
      %v2031 = vld [vmem:[%s6 + $0x64] sm:$0xf]
      %v2032 = vld [vmem:[%s6 + $0x68] sm:$0xf]
      %v2033 = vld [vmem:[%s6 + $0x6c] sm:$0xf]
      %v2034 = vld [vmem:[%s6 + $0x70] sm:$0xf]
      %v2035 = vld [vmem:[%s6 + $0x74] sm:$0xf]
      %v2036 = vld [vmem:[%s6 + $0x78] sm:$0xf]
      %v2037 = vld [vmem:[%s6 + $0x7c] sm:$0xf]
      %v2038 = vld [vmem:[%s6 + $0x80] sm:$0xf]
      %v2039 = vld [vmem:[%s6 + $0x84] sm:$0xf]
      %v2040 = vld [vmem:[%s6 + $0x88] sm:$0xf]
      %v2041 = vld [vmem:[%s6 + $0x8c] sm:$0xf]
      %v2042 = vld [vmem:[%s6 + $0x90] sm:$0xf]
      %v2043 = vld [vmem:[%s6 + $0x94] sm:$0xf]
      %v2044 = vld [vmem:[%s6 + $0x98] sm:$0xf]
      %v2045 = vld [vmem:[%s6 + $0x9c] sm:$0xf]
      %v2046 = vld [vmem:[%s6 + $0xa0] sm:$0xf]
      %v2047 = vld [vmem:[%s6 + $0xa4] sm:$0xf]
      %v2048 = vld [vmem:[%s6 + $0xa8] sm:$0xf]
      %v2049 = vld [vmem:[%s6 + $0xac] sm:$0xf]
      %v2050 = vld [vmem:[%s6 + $0xb0] sm:$0xf]
      %v2051 = vld [vmem:[%s6 + $0xb4] sm:$0xf]
      %v2052 = vld [vmem:[%s6 + $0xb8] sm:$0xf]
      %v2053 = vld [vmem:[%s6 + $0xbc] sm:$0xf]
      %v2054 = vld [vmem:[%s6 + $0xc0] sm:$0xf]
      %v2055 = vld [vmem:[%s6 + $0xc4] sm:$0xf]
      %v2056 = vld [vmem:[%s6 + $0xc8] sm:$0xf]
      %v2057 = vld [vmem:[%s6 + $0xcc] sm:$0xf]
      %v2058 = vld [vmem:[%s6 + $0xd0] sm:$0xf]
      %v2059 = vld [vmem:[%s6 + $0xd4] sm:$0xf]
      %v2060 = vld [vmem:[%s6 + $0xd8] sm:$0xf]
      %v2061 = vld [vmem:[%s6 + $0xdc] sm:$0xf]
      %v2062 = vld [vmem:[%s6 + $0xe0] sm:$0xf]
      %v2063 = vld [vmem:[%s6 + $0xe4] sm:$0xf]
      %v2064 = vld [vmem:[%s6 + $0xe8] sm:$0xf]
      %v2065 = vld [vmem:[%s6 + $0xec] sm:$0xf]
      %v2066 = vld [vmem:[%s6 + $0xf0] sm:$0xf]
      %v2067 = vld [vmem:[%s6 + $0xf4] sm:$0xf]
      %v2068 = vld [vmem:[%s6 + $0xf8] sm:$0xf]
      %v2069 = vld [vmem:[%s6 + $0xfc] sm:$0xf]
      %v2070 = vld [vmem:[%s6 + $0x100] sm:$0xf]
      %v2071 = vld [vmem:[%s6 + $0x104] sm:$0xf]
      %v2072 = vld [vmem:[%s6 + $0x108] sm:$0xf]
      %v2073 = vld [vmem:[%s6 + $0x10c] sm:$0xf]
      %v2074 = vld [vmem:[%s6 + $0x110] sm:$0xf]
      %v2075 = vld [vmem:[%s6 + $0x114] sm:$0xf]
      %v2076 = vld [vmem:[%s6 + $0x118] sm:$0xf]
      %v2077 = vld [vmem:[%s6 + $0x11c] sm:$0xf]
      %v2078 = vld [vmem:[%s6 + $0x120] sm:$0xf]
      %v2079 = vld [vmem:[%s6 + $0x124] sm:$0xf]
      %v2080 = vld [vmem:[%s6 + $0x128] sm:$0xf]
      %v2081 = vld [vmem:[%s6 + $0x12c] sm:$0xf]
      %v2082 = vld [vmem:[%s6 + $0x130] sm:$0xf]
      %v2083 = vld [vmem:[%s6 + $0x134] sm:$0xf]
      %v2084 = vld [vmem:[%s6 + $0x138] sm:$0xf]
      %v2085 = vld [vmem:[%s6 + $0x13c] sm:$0xf]
      %v2086 = vld [vmem:[%s6 + $0x140] sm:$0xf]
      %v2087 = vld [vmem:[%s6 + $0x144] sm:$0xf]
      %v2088 = vld [vmem:[%s6 + $0x148] sm:$0xf]
      %v2089 = vld [vmem:[%s6 + $0x14c] sm:$0xf]
      %v2090 = vld [vmem:[%s6 + $0x150] sm:$0xf]
      %v2091 = vld [vmem:[%s6 + $0x154] sm:$0xf]
      %v2092 = vld [vmem:[%s6 + $0x158] sm:$0xf]
      %v2093 = vld [vmem:[%s6 + $0x15c] sm:$0xf]
      %v2094 = vld [vmem:[%s6 + $0x160] sm:$0xf]
      %v2095 = vld [vmem:[%s6 + $0x164] sm:$0xf]
      %v2096 = vld [vmem:[%s6 + $0x168] sm:$0xf]
      %v2097 = vld [vmem:[%s6 + $0x16c] sm:$0xf]
      %v2098 = vld [vmem:[%s6 + $0x170] sm:$0xf]
      %v2099 = vld [vmem:[%s6 + $0x174] sm:$0xf]
      %v2100 = vld [vmem:[%s6 + $0x178] sm:$0xf]
      %v2101 = vld [vmem:[%s6 + $0x17c] sm:$0xf]
      %v2102 = vld [vmem:[%s6 + $0x180] sm:$0xf]
      %v2103 = vld [vmem:[%s6 + $0x184] sm:$0xf]
      %v2104 = vld [vmem:[%s6 + $0x188] sm:$0xf]
      %v2105 = vld [vmem:[%s6 + $0x18c] sm:$0xf]
      %v2106 = vld [vmem:[%s6 + $0x190] sm:$0xf]
      %v2107 = vld [vmem:[%s6 + $0x194] sm:$0xf]
      %v2108 = vld [vmem:[%s6 + $0x198] sm:$0xf]
      %v2109 = vld [vmem:[%s6 + $0x19c] sm:$0xf]
      %v2110 = vld [vmem:[%s6 + $0x1a0] sm:$0xf]
      %v2111 = vld [vmem:[%s6 + $0x1a4] sm:$0xf]
      %v2112 = vld [vmem:[%s6 + $0x1a8] sm:$0xf]
      %v2113 = vld [vmem:[%s6 + $0x1ac] sm:$0xf]
      %v2114 = vld [vmem:[%s6 + $0x1b0] sm:$0xf]
      %v2115 = vld [vmem:[%s6 + $0x1b4] sm:$0xf]
      %v2116 = vld [vmem:[%s6 + $0x1b8] sm:$0xf]
      %v2117 = vld [vmem:[%s6 + $0x1bc] sm:$0xf]
      %v2118 = vld [vmem:[%s6 + $0x1c0] sm:$0xf]
      %v2119 = vld [vmem:[%s6 + $0x1c4] sm:$0xf]
      %v2120 = vld [vmem:[%s6 + $0x1c8] sm:$0xf]
      %v2121 = vld [vmem:[%s6 + $0x1cc] sm:$0xf]
      %v2122 = vld [vmem:[%s6 + $0x1d0] sm:$0xf]
      %v2123 = vld [vmem:[%s6 + $0x1d4] sm:$0xf]
      %v2124 = vld [vmem:[%s6 + $0x1d8] sm:$0xf]
      %v2125 = vld [vmem:[%s6 + $0x1dc] sm:$0xf]
      %v2126 = vld [vmem:[%s6 + $0x1e0] sm:$0xf]
      %v2127 = vld [vmem:[%s6 + $0x1e4] sm:$0xf]
      %v2128 = vld [vmem:[%s6 + $0x1e8] sm:$0xf]
      %v2129 = vld [vmem:[%s6 + $0x1ec] sm:$0xf]
      %v2130 = vld [vmem:[%s6 + $0x1f0] sm:$0xf]
      %v2131 = vld [vmem:[%s6 + $0x1f4] sm:$0xf]
      %v2132 = vld [vmem:[%s6 + $0x1f8] sm:$0xf]
      %v2133 = vld [vmem:[%s6 + $0x1fc] sm:$0xf]
      %v2134 = vld [vmem:[%s6 + $0x200] sm:$0xf]
      %v2135 = vld [vmem:[%s6 + $0x204] sm:$0xf]
      %v2136 = vld [vmem:[%s6 + $0x208] sm:$0xf]
      %v2137 = vld [vmem:[%s6 + $0x20c] sm:$0xf]
      %v2138 = vld [vmem:[%s6 + $0x210] sm:$0xf]
      %v2139 = vld [vmem:[%s6 + $0x214] sm:$0xf]
      %v2140 = vld [vmem:[%s6 + $0x218] sm:$0xf]
      %v2141 = vld [vmem:[%s6 + $0x21c] sm:$0xf]
      %v2142 = vld [vmem:[%s6 + $0x220] sm:$0xf]
      %v2143 = vld [vmem:[%s6 + $0x224] sm:$0xf]
      %v2144 = vld [vmem:[%s6 + $0x228] sm:$0xf]
      %v2145 = vld [vmem:[%s6 + $0x22c] sm:$0xf]
      %v2146 = vld [vmem:[%s6 + $0x230] sm:$0xf]
      %v2147 = vld [vmem:[%s6 + $0x234] sm:$0xf]
      %v2148 = vld [vmem:[%s6 + $0x238] sm:$0xf]
      %v2149 = vld [vmem:[%s6 + $0x23c] sm:$0xf]
      %v2150 = vld [vmem:[%s7] sm:$0x1]
      %v2152 = vlaneseq
      %v2153 = vshrl.u32 %v2152, 7
      %v2154 = vsub.s32 0, %v2153
      %v2155 = vrot.slane %v2150, %v2154
      %v2301 = vunpack.c.l.b16 %v2006
      %v2302 = vunpack.c.l.b16 %v2007
      %v2303 = vunpack.c.l.b16 %v2008
      %v2304 = vunpack.c.l.b16 %v2009
      %v2305 = vunpack.c.l.b16 %v2010
      %v2306 = vunpack.c.l.b16 %v2011
      %v2307 = vunpack.c.l.b16 %v2012
      %v2308 = vunpack.c.l.b16 %v2013
      %v2309 = vunpack.c.l.b16 %v2014
      %v2310 = vunpack.c.l.b16 %v2015
      %v2311 = vunpack.c.l.b16 %v2016
      %v2312 = vunpack.c.l.b16 %v2017
      %v2313 = vunpack.c.l.b16 %v2018
      %v2314 = vunpack.c.l.b16 %v2019
      %v2315 = vunpack.c.l.b16 %v2020
      %v2316 = vunpack.c.l.b16 %v2021
      %v2317 = vunpack.c.l.b16 %v2022
      %v2318 = vunpack.c.l.b16 %v2023
      %v2319 = vunpack.c.l.b16 %v2024
      %v2320 = vunpack.c.l.b16 %v2025
      %v2321 = vunpack.c.l.b16 %v2026
      %v2322 = vunpack.c.l.b16 %v2027
      %v2323 = vunpack.c.l.b16 %v2028
      %v2324 = vunpack.c.l.b16 %v2029
      %v2325 = vunpack.c.l.b16 %v2030
      %v2326 = vunpack.c.l.b16 %v2031
      %v2327 = vunpack.c.l.b16 %v2032
      %v2328 = vunpack.c.l.b16 %v2033
      %v2329 = vunpack.c.l.b16 %v2034
      %v2330 = vunpack.c.l.b16 %v2035
      %v2331 = vunpack.c.l.b16 %v2036
      %v2332 = vunpack.c.l.b16 %v2037
      %v2333 = vunpack.c.l.b16 %v2038
      %v2334 = vunpack.c.l.b16 %v2039
      %v2335 = vunpack.c.l.b16 %v2040
      %v2336 = vunpack.c.l.b16 %v2041
      %v2337 = vunpack.c.l.b16 %v2042
      %v2338 = vunpack.c.l.b16 %v2043
      %v2339 = vunpack.c.l.b16 %v2044
      %v2340 = vunpack.c.l.b16 %v2045
      %v2341 = vunpack.c.l.b16 %v2046
      %v2342 = vunpack.c.l.b16 %v2047
      %v2343 = vunpack.c.l.b16 %v2048
      %v2344 = vunpack.c.l.b16 %v2049
      %v2345 = vunpack.c.l.b16 %v2050
      %v2346 = vunpack.c.l.b16 %v2051
      %v2347 = vunpack.c.l.b16 %v2052
      %v2348 = vunpack.c.l.b16 %v2053
      %v2349 = vunpack.c.l.b16 %v2054
      %v2350 = vunpack.c.l.b16 %v2055
      %v2351 = vunpack.c.l.b16 %v2056
      %v2352 = vunpack.c.l.b16 %v2057
      %v2353 = vunpack.c.l.b16 %v2058
      %v2354 = vunpack.c.l.b16 %v2059
      %v2355 = vunpack.c.l.b16 %v2060
      %v2356 = vunpack.c.l.b16 %v2061
      %v2357 = vunpack.c.l.b16 %v2062
      %v2358 = vunpack.c.l.b16 %v2063
      %v2359 = vunpack.c.l.b16 %v2064
      %v2360 = vunpack.c.l.b16 %v2065
      %v2361 = vunpack.c.l.b16 %v2066
      %v2362 = vunpack.c.l.b16 %v2067
      %v2363 = vunpack.c.l.b16 %v2068
      %v2364 = vunpack.c.l.b16 %v2069
      %v2365 = vunpack.c.l.b16 %v2070
      %v2366 = vunpack.c.l.b16 %v2071
      %v2367 = vunpack.c.l.b16 %v2072
      %v2368 = vunpack.c.l.b16 %v2073
      %v2369 = vunpack.c.l.b16 %v2074
      %v2370 = vunpack.c.l.b16 %v2075
      %v2371 = vunpack.c.l.b16 %v2076
      %v2372 = vunpack.c.l.b16 %v2077
      %v2373 = vunpack.c.l.b16 %v2078
      %v2374 = vunpack.c.l.b16 %v2079
      %v2375 = vunpack.c.l.b16 %v2080
      %v2376 = vunpack.c.l.b16 %v2081
      %v2377 = vunpack.c.l.b16 %v2082
      %v2378 = vunpack.c.l.b16 %v2083
      %v2379 = vunpack.c.l.b16 %v2084
      %v2380 = vunpack.c.l.b16 %v2085
      %v2381 = vunpack.c.l.b16 %v2086
      %v2382 = vunpack.c.l.b16 %v2087
      %v2383 = vunpack.c.l.b16 %v2088
      %v2384 = vunpack.c.l.b16 %v2089
      %v2385 = vunpack.c.l.b16 %v2090
      %v2386 = vunpack.c.l.b16 %v2091
      %v2387 = vunpack.c.l.b16 %v2092
      %v2388 = vunpack.c.l.b16 %v2093
      %v2389 = vunpack.c.l.b16 %v2094
      %v2390 = vunpack.c.l.b16 %v2095
      %v2391 = vunpack.c.l.b16 %v2096
      %v2392 = vunpack.c.l.b16 %v2097
      %v2393 = vunpack.c.l.b16 %v2098
      %v2394 = vunpack.c.l.b16 %v2099
      %v2395 = vunpack.c.l.b16 %v2100
      %v2396 = vunpack.c.l.b16 %v2101
      %v2397 = vunpack.c.l.b16 %v2102
      %v2398 = vunpack.c.l.b16 %v2103
      %v2399 = vunpack.c.l.b16 %v2104
      %v2400 = vunpack.c.l.b16 %v2105
      %v2401 = vunpack.c.l.b16 %v2106
      %v2402 = vunpack.c.l.b16 %v2107
      %v2403 = vunpack.c.l.b16 %v2108
      %v2404 = vunpack.c.l.b16 %v2109
      %v2405 = vunpack.c.l.b16 %v2110
      %v2406 = vunpack.c.l.b16 %v2111
      %v2407 = vunpack.c.l.b16 %v2112
      %v2408 = vunpack.c.l.b16 %v2113
      %v2409 = vunpack.c.l.b16 %v2114
      %v2410 = vunpack.c.l.b16 %v2115
      %v2411 = vunpack.c.l.b16 %v2116
      %v2412 = vunpack.c.l.b16 %v2117
      %v2413 = vunpack.c.l.b16 %v2118
      %v2414 = vunpack.c.l.b16 %v2119
      %v2415 = vunpack.c.l.b16 %v2120
      %v2416 = vunpack.c.l.b16 %v2121
      %v2417 = vunpack.c.l.b16 %v2122
      %v2418 = vunpack.c.l.b16 %v2123
      %v2419 = vunpack.c.l.b16 %v2124
      %v2420 = vunpack.c.l.b16 %v2125
      %v2421 = vunpack.c.l.b16 %v2126
      %v2422 = vunpack.c.l.b16 %v2127
      %v2423 = vunpack.c.l.b16 %v2128
      %v2424 = vunpack.c.l.b16 %v2129
      %v2425 = vunpack.c.l.b16 %v2130
      %v2426 = vunpack.c.l.b16 %v2131
      %v2427 = vunpack.c.l.b16 %v2132
      %v2428 = vunpack.c.l.b16 %v2133
      %v2429 = vunpack.c.l.b16 %v2134
      %v2430 = vunpack.c.l.b16 %v2135
      %v2431 = vunpack.c.l.b16 %v2136
      %v2432 = vunpack.c.l.b16 %v2137
      %v2433 = vunpack.c.l.b16 %v2138
      %v2434 = vunpack.c.l.b16 %v2139
      %v2435 = vunpack.c.l.b16 %v2140
      %v2436 = vunpack.c.l.b16 %v2141
      %v2437 = vunpack.c.l.b16 %v2142
      %v2438 = vunpack.c.l.b16 %v2143
      %v2439 = vunpack.c.l.b16 %v2144
      %v2440 = vunpack.c.l.b16 %v2145
      %v2441 = vunpack.c.l.b16 %v2146
      %v2442 = vunpack.c.l.b16 %v2147
      %v2443 = vunpack.c.l.b16 %v2148
      %v2444 = vunpack.c.l.b16 %v2149
      %v2445 = vpack.c.b16 %v2302, %v2301
      %v2446 = vpack.c.b16 %v2304, %v2303
      %v2447 = vpack.c.b16 %v2306, %v2305
      %v2448 = vpack.c.b16 %v2308, %v2307
      %v2449 = vpack.c.b16 %v2310, %v2309
      %v2450 = vpack.c.b16 %v2312, %v2311
      %v2451 = vpack.c.b16 %v2314, %v2313
      %v2452 = vpack.c.b16 %v2316, %v2315
      %v2453 = vpack.c.b16 %v2318, %v2317
      %v2454 = vpack.c.b16 %v2320, %v2319
      %v2455 = vpack.c.b16 %v2322, %v2321
      %v2456 = vpack.c.b16 %v2324, %v2323
      %v2457 = vpack.c.b16 %v2326, %v2325
      %v2458 = vpack.c.b16 %v2328, %v2327
      %v2459 = vpack.c.b16 %v2330, %v2329
      %v2460 = vpack.c.b16 %v2332, %v2331
      %v2461 = vpack.c.b16 %v2334, %v2333
      %v2462 = vpack.c.b16 %v2336, %v2335
      %v2463 = vpack.c.b16 %v2338, %v2337
      %v2464 = vpack.c.b16 %v2340, %v2339
      %v2465 = vpack.c.b16 %v2342, %v2341
      %v2466 = vpack.c.b16 %v2344, %v2343
      %v2467 = vpack.c.b16 %v2346, %v2345
      %v2468 = vpack.c.b16 %v2348, %v2347
      %v2469 = vpack.c.b16 %v2350, %v2349
      %v2470 = vpack.c.b16 %v2352, %v2351
      %v2471 = vpack.c.b16 %v2354, %v2353
      %v2472 = vpack.c.b16 %v2356, %v2355
      %v2473 = vpack.c.b16 %v2358, %v2357
      %v2474 = vpack.c.b16 %v2360, %v2359
      %v2475 = vpack.c.b16 %v2362, %v2361
      %v2476 = vpack.c.b16 %v2364, %v2363
      %v2477 = vpack.c.b16 %v2366, %v2365
      %v2478 = vpack.c.b16 %v2368, %v2367
      %v2479 = vpack.c.b16 %v2370, %v2369
      %v2480 = vpack.c.b16 %v2372, %v2371
      %v2481 = vpack.c.b16 %v2374, %v2373
      %v2482 = vpack.c.b16 %v2376, %v2375
      %v2483 = vpack.c.b16 %v2378, %v2377
      %v2484 = vpack.c.b16 %v2380, %v2379
      %v2485 = vpack.c.b16 %v2382, %v2381
      %v2486 = vpack.c.b16 %v2384, %v2383
      %v2487 = vpack.c.b16 %v2386, %v2385
      %v2488 = vpack.c.b16 %v2388, %v2387
      %v2489 = vpack.c.b16 %v2390, %v2389
      %v2490 = vpack.c.b16 %v2392, %v2391
      %v2491 = vpack.c.b16 %v2394, %v2393
      %v2492 = vpack.c.b16 %v2396, %v2395
      %v2493 = vpack.c.b16 %v2398, %v2397
      %v2494 = vpack.c.b16 %v2400, %v2399
      %v2495 = vpack.c.b16 %v2402, %v2401
      %v2496 = vpack.c.b16 %v2404, %v2403
      %v2497 = vpack.c.b16 %v2406, %v2405
      %v2498 = vpack.c.b16 %v2408, %v2407
      %v2499 = vpack.c.b16 %v2410, %v2409
      %v2500 = vpack.c.b16 %v2412, %v2411
      %v2501 = vpack.c.b16 %v2414, %v2413
      %v2502 = vpack.c.b16 %v2416, %v2415
      %v2503 = vpack.c.b16 %v2418, %v2417
      %v2504 = vpack.c.b16 %v2420, %v2419
      %v2505 = vpack.c.b16 %v2422, %v2421
      %v2506 = vpack.c.b16 %v2424, %v2423
      %v2507 = vpack.c.b16 %v2426, %v2425
      %v2508 = vpack.c.b16 %v2428, %v2427
      %v2509 = vpack.c.b16 %v2430, %v2429
      %v2510 = vpack.c.b16 %v2432, %v2431
      %v2511 = vpack.c.b16 %v2434, %v2433
      %v2512 = vpack.c.b16 %v2436, %v2435
      %v2513 = vpack.c.b16 %v2438, %v2437
      %v2514 = vpack.c.b16 %v2440, %v2439
      %v2515 = vpack.c.b16 %v2442, %v2441
      %v2516 = vpack.c.b16 %v2444, %v2443
      %2589 = vmatprep.subr.bf16.mxu0 0
      %2590 = vmatpush1.bf16.msra.mxu0 %v2452
      %2591 = vmatprep.subr.bf16.mxu0 0
      %2592 = vmatpush1.bf16.msra.mxu0 %v2451
      %2593 = vmatprep.subr.bf16.mxu0 0
      %2594 = vmatpush1.bf16.msra.mxu0 %v2450
      %2595 = vmatprep.subr.bf16.mxu0 0
      %2596 = vmatpush1.bf16.msra.mxu0 %v2449
      %2597 = vmatprep.subr.bf16.mxu0 0
      %2598 = vmatpush1.bf16.msra.mxu0 %v2448
      %2599 = vmatprep.subr.bf16.mxu0 0
      %2600 = vmatpush1.bf16.msra.mxu0 %v2447
      %2601 = vmatprep.subr.bf16.mxu0 0
      %2602 = vmatpush1.bf16.msra.mxu0 %v2446
      %2603 = vmatprep.subr.bf16.mxu0 0
      %2604 = vmatpush1.bf16.msra.mxu0 %v2445
      %2605 = vmatprep.subr.bf16.mxu0 0
      %2606 = vmatpush2.bf16.msra.mxu0 %v2460
      %2607 = vmatprep.subr.bf16.mxu0 0
      %2608 = vmatpush2.bf16.msra.mxu0 %v2459
      %2609 = vmatprep.subr.bf16.mxu0 0
      %2610 = vmatpush2.bf16.msra.mxu0 %v2458
      %2611 = vmatprep.subr.bf16.mxu0 0
      %2612 = vmatpush2.bf16.msra.mxu0 %v2457
      %2613 = vmatprep.subr.bf16.mxu0 0
      %2614 = vmatpush2.bf16.msra.mxu0 %v2456
      %2615 = vmatprep.subr.bf16.mxu0 0
      %2616 = vmatpush2.bf16.msra.mxu0 %v2455
      %2617 = vmatprep.subr.bf16.mxu0 0
      %2618 = vmatpush2.bf16.msra.mxu0 %v2454
      %2619 = vmatprep.subr.bf16.mxu0 0
      %2620 = vmatpush2.bf16.msra.mxu0 %v2453
      %2621 = vmatprep.mubr.bf16.mxu0 %v1863
      %2622 = vmatmul.mubr.bf16.gmra.mxu0 %v1862
      %v2623 = vpop.f32.mrf.mxu0
      %v2624 = vadd.f32 %v2155, %v2623
      %v2625 = vpop.f32.mrf.mxu0
      %v2626 = vpop.f32.mrf.mxu0
      %v2627 = vadd.f32 %v2155, %v2626
      %v2628 = vpop.f32.mrf.mxu0
      %2629 = vmatprep.mubr.bf16.mxu0 %v1872
      %2630 = vmatmul.mubr.bf16.gmra.mxu0 %v1871
      %v2631 = vpop.f32.mrf.mxu0
      %v2632 = vadd.f32 %v2155, %v2631
      %v2633 = vpop.f32.mrf.mxu0
      %v2634 = vpop.f32.mrf.mxu0
      %v2635 = vadd.f32 %v2155, %v2634
      %v2636 = vpop.f32.mrf.mxu0
      %2637 = vmatprep.mubr.bf16.mxu0 %v1881
      %2638 = vmatmul.mubr.bf16.gmra.mxu0 %v1880
      %v2639 = vpop.f32.mrf.mxu0
      %v2640 = vadd.f32 %v2155, %v2639
      %v2641 = vpop.f32.mrf.mxu0
      %v2642 = vpop.f32.mrf.mxu0
      %v2643 = vadd.f32 %v2155, %v2642
      %v2644 = vpop.f32.mrf.mxu0
      %2645 = vmatprep.mubr.bf16.mxu0 %v1890
      %2646 = vmatmul.mubr.bf16.gmra.mxu0 %v1889
      %v2647 = vpop.f32.mrf.mxu0
      %v2648 = vadd.f32 %v2155, %v2647
      %v2649 = vpop.f32.mrf.mxu0
      %v2650 = vpop.f32.mrf.mxu0
      %v2651 = vadd.f32 %v2155, %v2650
      %v2652 = vpop.f32.mrf.mxu0
      %2653 = vmatprep.mubr.bf16.mxu0 %v1899
      %2654 = vmatmul.mubr.bf16.gmra.mxu0 %v1898
      %v2655 = vpop.f32.mrf.mxu0
      %v2656 = vadd.f32 %v2155, %v2655
      %v2657 = vpop.f32.mrf.mxu0
      %v2658 = vpop.f32.mrf.mxu0
      %v2659 = vadd.f32 %v2155, %v2658
      %v2660 = vpop.f32.mrf.mxu0
      %2661 = vmatprep.mubr.bf16.mxu0 %v1908
      %2662 = vmatmul.mubr.bf16.gmra.mxu0 %v1907
      %v2663 = vpop.f32.mrf.mxu0
      %v2664 = vadd.f32 %v2155, %v2663
      %v2665 = vpop.f32.mrf.mxu0
      %v2666 = vpop.f32.mrf.mxu0
      %v2667 = vadd.f32 %v2155, %v2666
      %v2668 = vpop.f32.mrf.mxu0
      %2669 = vmatprep.mubr.bf16.mxu0 %v1917
      %2670 = vmatmul.mubr.bf16.gmra.mxu0 %v1916
      %v2671 = vpop.f32.mrf.mxu0
      %v2672 = vadd.f32 %v2155, %v2671
      %v2673 = vpop.f32.mrf.mxu0
      %v2674 = vpop.f32.mrf.mxu0
      %v2675 = vadd.f32 %v2155, %v2674
      %v2676 = vpop.f32.mrf.mxu0
      %2677 = vmatprep.mubr.bf16.mxu0 %v1926
      %2678 = vmatmul.mubr.bf16.gmra.mxu0 %v1925
      %v2679 = vpop.f32.mrf.mxu0
      %v2680 = vadd.f32 %v2155, %v2679
      %v2681 = vpop.f32.mrf.mxu0
      %v2682 = vpop.f32.mrf.mxu0
      %v2683 = vadd.f32 %v2155, %v2682
      %v2684 = vpop.f32.mrf.mxu0
      %2685 = vmatprep.mubr.bf16.mxu0 %v1935
      %2686 = vmatmul.mubr.bf16.gmra.mxu0 %v1934
      %v2687 = vpop.f32.mrf.mxu0
      %v2688 = vadd.f32 %v2155, %v2687
      %v2689 = vpop.f32.mrf.mxu0
      %v2690 = vpop.f32.mrf.mxu0
      %v2691 = vadd.f32 %v2155, %v2690
      %v2692 = vpop.f32.mrf.mxu0
      %2693 = vmatprep.mubr.bf16.mxu0 %v1944
      %2694 = vmatmul.mubr.bf16.gmra.mxu0 %v1943
      %v2695 = vpop.f32.mrf.mxu0
      %v2696 = vadd.f32 %v2155, %v2695
      %v2697 = vpop.f32.mrf.mxu0
      %v2698 = vpop.f32.mrf.mxu0
      %v2699 = vadd.f32 %v2155, %v2698
      %v2700 = vpop.f32.mrf.mxu0
      %2701 = vmatprep.mubr.bf16.mxu0 %v1953
      %2702 = vmatmul.mubr.bf16.gmra.mxu0 %v1952
      %v2703 = vpop.f32.mrf.mxu0
      %v2704 = vadd.f32 %v2155, %v2703
      %v2705 = vpop.f32.mrf.mxu0
      %v2706 = vpop.f32.mrf.mxu0
      %v2707 = vadd.f32 %v2155, %v2706
      %v2708 = vpop.f32.mrf.mxu0
      %2709 = vmatprep.mubr.bf16.mxu0 %v1962
      %2710 = vmatmul.mubr.bf16.gmra.mxu0 %v1961
      %v2711 = vpop.f32.mrf.mxu0
      %v2712 = vadd.f32 %v2155, %v2711
      %v2713 = vpop.f32.mrf.mxu0
      %v2714 = vpop.f32.mrf.mxu0
      %v2715 = vadd.f32 %v2155, %v2714
      %v2716 = vpop.f32.mrf.mxu0
      %2717 = vmatprep.mubr.bf16.mxu0 %v1971
      %2718 = vmatmul.mubr.bf16.gmra.mxu0 %v1970
      %v2719 = vpop.f32.mrf.mxu0
      %v2720 = vadd.f32 %v2155, %v2719
      %v2721 = vpop.f32.mrf.mxu0
      %v2722 = vpop.f32.mrf.mxu0
      %v2723 = vadd.f32 %v2155, %v2722
      %v2724 = vpop.f32.mrf.mxu0
      %2725 = vmatprep.mubr.bf16.mxu0 %v1980
      %2726 = vmatmul.mubr.bf16.gmra.mxu0 %v1979
      %v2727 = vpop.f32.mrf.mxu0
      %v2728 = vadd.f32 %v2155, %v2727
      %v2729 = vpop.f32.mrf.mxu0
      %v2730 = vpop.f32.mrf.mxu0
      %v2731 = vadd.f32 %v2155, %v2730
      %v2732 = vpop.f32.mrf.mxu0
      %2733 = vmatprep.mubr.bf16.mxu0 %v1989
      %2734 = vmatmul.mubr.bf16.gmra.mxu0 %v1988
      %v2735 = vpop.f32.mrf.mxu0
      %v2736 = vadd.f32 %v2155, %v2735
      %v2737 = vpop.f32.mrf.mxu0
      %v2738 = vpop.f32.mrf.mxu0
      %v2739 = vadd.f32 %v2155, %v2738
      %v2740 = vpop.f32.mrf.mxu0
      %2741 = vmatprep.mubr.bf16.mxu0 %v1998
      %2742 = vmatmul.mubr.bf16.gmra.mxu0 %v1997
      %v2743 = vpop.f32.mrf.mxu0
      %v2744 = vadd.f32 %v2155, %v2743
      %v2745 = vpop.f32.mrf.mxu0
      %v2746 = vpop.f32.mrf.mxu0
      %v2747 = vadd.f32 %v2155, %v2746
      %v2748 = vpop.f32.mrf.mxu0
      %2749 = vdwg.mxu0
      %2750 = vmatprep.subr.bf16.mxu0 0
      %2751 = vmatpush1.bf16.msra.mxu0 %v2468
      %2752 = vmatprep.subr.bf16.mxu0 0
      %2753 = vmatpush1.bf16.msra.mxu0 %v2467
      %2754 = vmatprep.subr.bf16.mxu0 0
      %2755 = vmatpush1.bf16.msra.mxu0 %v2466
      %2756 = vmatprep.subr.bf16.mxu0 0
      %2757 = vmatpush1.bf16.msra.mxu0 %v2465
      %2758 = vmatprep.subr.bf16.mxu0 0
      %2759 = vmatpush1.bf16.msra.mxu0 %v2464
      %2760 = vmatprep.subr.bf16.mxu0 0
      %2761 = vmatpush1.bf16.msra.mxu0 %v2463
      %2762 = vmatprep.subr.bf16.mxu0 0
      %2763 = vmatpush1.bf16.msra.mxu0 %v2462
      %2764 = vmatprep.subr.bf16.mxu0 0
      %2765 = vmatpush1.bf16.msra.mxu0 %v2461
      %2766 = vmatprep.subr.bf16.mxu0 0
      %2767 = vmatpush2.bf16.msra.mxu0 %v2476
      %2768 = vmatprep.subr.bf16.mxu0 0
      %2769 = vmatpush2.bf16.msra.mxu0 %v2475
      %2770 = vmatprep.subr.bf16.mxu0 0
      %2771 = vmatpush2.bf16.msra.mxu0 %v2474
      %2772 = vmatprep.subr.bf16.mxu0 0
      %2773 = vmatpush2.bf16.msra.mxu0 %v2473
      %2774 = vmatprep.subr.bf16.mxu0 0
      %2775 = vmatpush2.bf16.msra.mxu0 %v2472
      %2776 = vmatprep.subr.bf16.mxu0 0
      %2777 = vmatpush2.bf16.msra.mxu0 %v2471
      %2778 = vmatprep.subr.bf16.mxu0 0
      %2779 = vmatpush2.bf16.msra.mxu0 %v2470
      %2780 = vmatprep.subr.bf16.mxu0 0
      %2781 = vmatpush2.bf16.msra.mxu0 %v2469
      %2782 = vmatprep.mubr.bf16.mxu0 %v1865
      %2783 = vmatmul.mubr.bf16.gmra.mxu0 %v1864
      %v2784 = vpop.f32.mrf.mxu0
      %v2785 = vadd.f32 %v2624, %v2784
      %v2786 = vpop.f32.mrf.mxu0
      %v2787 = vpop.f32.mrf.mxu0
      %v2788 = vadd.f32 %v2627, %v2787
      %v2789 = vpop.f32.mrf.mxu0
      %2790 = vmatprep.mubr.bf16.mxu0 %v1874
      %2791 = vmatmul.mubr.bf16.gmra.mxu0 %v1873
      %v2792 = vpop.f32.mrf.mxu0
      %v2793 = vadd.f32 %v2632, %v2792
      %v2794 = vpop.f32.mrf.mxu0
      %v2795 = vpop.f32.mrf.mxu0
      %v2796 = vadd.f32 %v2635, %v2795
      %v2797 = vpop.f32.mrf.mxu0
      %2798 = vmatprep.mubr.bf16.mxu0 %v1883
      %2799 = vmatmul.mubr.bf16.gmra.mxu0 %v1882
      %v2800 = vpop.f32.mrf.mxu0
      %v2801 = vadd.f32 %v2640, %v2800
      %v2802 = vpop.f32.mrf.mxu0
      %v2803 = vpop.f32.mrf.mxu0
      %v2804 = vadd.f32 %v2643, %v2803
      %v2805 = vpop.f32.mrf.mxu0
      %2806 = vmatprep.mubr.bf16.mxu0 %v1892
      %2807 = vmatmul.mubr.bf16.gmra.mxu0 %v1891
      %v2808 = vpop.f32.mrf.mxu0
      %v2809 = vadd.f32 %v2648, %v2808
      %v2810 = vpop.f32.mrf.mxu0
      %v2811 = vpop.f32.mrf.mxu0
      %v2812 = vadd.f32 %v2651, %v2811
      %v2813 = vpop.f32.mrf.mxu0
      %2814 = vmatprep.mubr.bf16.mxu0 %v1901
      %2815 = vmatmul.mubr.bf16.gmra.mxu0 %v1900
      %v2816 = vpop.f32.mrf.mxu0
      %v2817 = vadd.f32 %v2656, %v2816
      %v2818 = vpop.f32.mrf.mxu0
      %v2819 = vpop.f32.mrf.mxu0
      %v2820 = vadd.f32 %v2659, %v2819
      %v2821 = vpop.f32.mrf.mxu0
      %2822 = vmatprep.mubr.bf16.mxu0 %v1910
      %2823 = vmatmul.mubr.bf16.gmra.mxu0 %v1909
      %v2824 = vpop.f32.mrf.mxu0
      %v2825 = vadd.f32 %v2664, %v2824
      %v2826 = vpop.f32.mrf.mxu0
      %v2827 = vpop.f32.mrf.mxu0
      %v2828 = vadd.f32 %v2667, %v2827
      %v2829 = vpop.f32.mrf.mxu0
      %2830 = vmatprep.mubr.bf16.mxu0 %v1919
      %2831 = vmatmul.mubr.bf16.gmra.mxu0 %v1918
      %v2832 = vpop.f32.mrf.mxu0
      %v2833 = vadd.f32 %v2672, %v2832
      %v2834 = vpop.f32.mrf.mxu0
      %v2835 = vpop.f32.mrf.mxu0
      %v2836 = vadd.f32 %v2675, %v2835
      %v2837 = vpop.f32.mrf.mxu0
      %2838 = vmatprep.mubr.bf16.mxu0 %v1928
      %2839 = vmatmul.mubr.bf16.gmra.mxu0 %v1927
      %v2840 = vpop.f32.mrf.mxu0
      %v2841 = vadd.f32 %v2680, %v2840
      %v2842 = vpop.f32.mrf.mxu0
      %v2843 = vpop.f32.mrf.mxu0
      %v2844 = vadd.f32 %v2683, %v2843
      %v2845 = vpop.f32.mrf.mxu0
      %2846 = vmatprep.mubr.bf16.mxu0 %v1937
      %2847 = vmatmul.mubr.bf16.gmra.mxu0 %v1936
      %v2848 = vpop.f32.mrf.mxu0
      %v2849 = vadd.f32 %v2688, %v2848
      %v2850 = vpop.f32.mrf.mxu0
      %v2851 = vpop.f32.mrf.mxu0
      %v2852 = vadd.f32 %v2691, %v2851
      %v2853 = vpop.f32.mrf.mxu0
      %2854 = vmatprep.mubr.bf16.mxu0 %v1946
      %2855 = vmatmul.mubr.bf16.gmra.mxu0 %v1945
      %v2856 = vpop.f32.mrf.mxu0
      %v2857 = vadd.f32 %v2696, %v2856
      %v2858 = vpop.f32.mrf.mxu0
      %v2859 = vpop.f32.mrf.mxu0
      %v2860 = vadd.f32 %v2699, %v2859
      %v2861 = vpop.f32.mrf.mxu0
      %2862 = vmatprep.mubr.bf16.mxu0 %v1955
      %2863 = vmatmul.mubr.bf16.gmra.mxu0 %v1954
      %v2864 = vpop.f32.mrf.mxu0
      %v2865 = vadd.f32 %v2704, %v2864
      %v2866 = vpop.f32.mrf.mxu0
      %v2867 = vpop.f32.mrf.mxu0
      %v2868 = vadd.f32 %v2707, %v2867
      %v2869 = vpop.f32.mrf.mxu0
      %2870 = vmatprep.mubr.bf16.mxu0 %v1964
      %2871 = vmatmul.mubr.bf16.gmra.mxu0 %v1963
      %v2872 = vpop.f32.mrf.mxu0
      %v2873 = vadd.f32 %v2712, %v2872
      %v2874 = vpop.f32.mrf.mxu0
      %v2875 = vpop.f32.mrf.mxu0
      %v2876 = vadd.f32 %v2715, %v2875
      %v2877 = vpop.f32.mrf.mxu0
      %2878 = vmatprep.mubr.bf16.mxu0 %v1973
      %2879 = vmatmul.mubr.bf16.gmra.mxu0 %v1972
      %v2880 = vpop.f32.mrf.mxu0
      %v2881 = vadd.f32 %v2720, %v2880
      %v2882 = vpop.f32.mrf.mxu0
      %v2883 = vpop.f32.mrf.mxu0
      %v2884 = vadd.f32 %v2723, %v2883
      %v2885 = vpop.f32.mrf.mxu0
      %2886 = vmatprep.mubr.bf16.mxu0 %v1982
      %2887 = vmatmul.mubr.bf16.gmra.mxu0 %v1981
      %v2888 = vpop.f32.mrf.mxu0
      %v2889 = vadd.f32 %v2728, %v2888
      %v2890 = vpop.f32.mrf.mxu0
      %v2891 = vpop.f32.mrf.mxu0
      %v2892 = vadd.f32 %v2731, %v2891
      %v2893 = vpop.f32.mrf.mxu0
      %2894 = vmatprep.mubr.bf16.mxu0 %v1991
      %2895 = vmatmul.mubr.bf16.gmra.mxu0 %v1990
      %v2896 = vpop.f32.mrf.mxu0
      %v2897 = vadd.f32 %v2736, %v2896
      %v2898 = vpop.f32.mrf.mxu0
      %v2899 = vpop.f32.mrf.mxu0
      %v2900 = vadd.f32 %v2739, %v2899
      %v2901 = vpop.f32.mrf.mxu0
      %2902 = vmatprep.mubr.bf16.mxu0 %v2000
      %2903 = vmatmul.mubr.bf16.gmra.mxu0 %v1999
      %v2904 = vpop.f32.mrf.mxu0
      %v2905 = vadd.f32 %v2744, %v2904
      %v2906 = vpop.f32.mrf.mxu0
      %v2907 = vpop.f32.mrf.mxu0
      %v2908 = vadd.f32 %v2747, %v2907
      %v2909 = vpop.f32.mrf.mxu0
      %2910 = vdwg.mxu0
      %2911 = vmatprep.subr.bf16.mxu0 0
      %2912 = vmatpush1.bf16.msra.mxu0 %v2484
      %2913 = vmatprep.subr.bf16.mxu0 0
      %2914 = vmatpush1.bf16.msra.mxu0 %v2483
      %2915 = vmatprep.subr.bf16.mxu0 0
      %2916 = vmatpush1.bf16.msra.mxu0 %v2482
      %2917 = vmatprep.subr.bf16.mxu0 0
      %2918 = vmatpush1.bf16.msra.mxu0 %v2481
      %2919 = vmatprep.subr.bf16.mxu0 0
      %2920 = vmatpush1.bf16.msra.mxu0 %v2480
      %2921 = vmatprep.subr.bf16.mxu0 0
      %2922 = vmatpush1.bf16.msra.mxu0 %v2479
      %2923 = vmatprep.subr.bf16.mxu0 0
      %2924 = vmatpush1.bf16.msra.mxu0 %v2478
      %2925 = vmatprep.subr.bf16.mxu0 0
      %2926 = vmatpush1.bf16.msra.mxu0 %v2477
      %2927 = vmatprep.subr.bf16.mxu0 0
      %2928 = vmatpush2.bf16.msra.mxu0 %v2492
      %2929 = vmatprep.subr.bf16.mxu0 0
      %2930 = vmatpush2.bf16.msra.mxu0 %v2491
      %2931 = vmatprep.subr.bf16.mxu0 0
      %2932 = vmatpush2.bf16.msra.mxu0 %v2490
      %2933 = vmatprep.subr.bf16.mxu0 0
      %2934 = vmatpush2.bf16.msra.mxu0 %v2489
      %2935 = vmatprep.subr.bf16.mxu0 0
      %2936 = vmatpush2.bf16.msra.mxu0 %v2488
      %2937 = vmatprep.subr.bf16.mxu0 0
      %2938 = vmatpush2.bf16.msra.mxu0 %v2487
      %2939 = vmatprep.subr.bf16.mxu0 0
      %2940 = vmatpush2.bf16.msra.mxu0 %v2486
      %2941 = vmatprep.subr.bf16.mxu0 0
      %2942 = vmatpush2.bf16.msra.mxu0 %v2485
      %2943 = vmatprep.mubr.bf16.mxu0 %v1867
      %2944 = vmatmul.mubr.bf16.gmra.mxu0 %v1866
      %v2945 = vpop.f32.mrf.mxu0
      %v2946 = vadd.f32 %v2785, %v2945
      %v2947 = vpop.f32.mrf.mxu0
      %v2948 = vpop.f32.mrf.mxu0
      %v2949 = vadd.f32 %v2788, %v2948
      %v2950 = vpop.f32.mrf.mxu0
      %2951 = vmatprep.mubr.bf16.mxu0 %v1876
      %2952 = vmatmul.mubr.bf16.gmra.mxu0 %v1875
      %v2953 = vpop.f32.mrf.mxu0
      %v2954 = vadd.f32 %v2793, %v2953
      %v2955 = vpop.f32.mrf.mxu0
      %v2956 = vpop.f32.mrf.mxu0
      %v2957 = vadd.f32 %v2796, %v2956
      %v2958 = vpop.f32.mrf.mxu0
      %2959 = vmatprep.mubr.bf16.mxu0 %v1885
      %2960 = vmatmul.mubr.bf16.gmra.mxu0 %v1884
      %v2961 = vpop.f32.mrf.mxu0
      %v2962 = vadd.f32 %v2801, %v2961
      %v2963 = vpop.f32.mrf.mxu0
      %v2964 = vpop.f32.mrf.mxu0
      %v2965 = vadd.f32 %v2804, %v2964
      %v2966 = vpop.f32.mrf.mxu0
      %2967 = vmatprep.mubr.bf16.mxu0 %v1894
      %2968 = vmatmul.mubr.bf16.gmra.mxu0 %v1893
      %v2969 = vpop.f32.mrf.mxu0
      %v2970 = vadd.f32 %v2809, %v2969
      %v2971 = vpop.f32.mrf.mxu0
      %v2972 = vpop.f32.mrf.mxu0
      %v2973 = vadd.f32 %v2812, %v2972
      %v2974 = vpop.f32.mrf.mxu0
      %2975 = vmatprep.mubr.bf16.mxu0 %v1903
      %2976 = vmatmul.mubr.bf16.gmra.mxu0 %v1902
      %v2977 = vpop.f32.mrf.mxu0
      %v2978 = vadd.f32 %v2817, %v2977
      %v2979 = vpop.f32.mrf.mxu0
      %v2980 = vpop.f32.mrf.mxu0
      %v2981 = vadd.f32 %v2820, %v2980
      %v2982 = vpop.f32.mrf.mxu0
      %2983 = vmatprep.mubr.bf16.mxu0 %v1912
      %2984 = vmatmul.mubr.bf16.gmra.mxu0 %v1911
      %v2985 = vpop.f32.mrf.mxu0
      %v2986 = vadd.f32 %v2825, %v2985
      %v2987 = vpop.f32.mrf.mxu0
      %v2988 = vpop.f32.mrf.mxu0
      %v2989 = vadd.f32 %v2828, %v2988
      %v2990 = vpop.f32.mrf.mxu0
      %2991 = vmatprep.mubr.bf16.mxu0 %v1921
      %2992 = vmatmul.mubr.bf16.gmra.mxu0 %v1920
      %v2993 = vpop.f32.mrf.mxu0
      %v2994 = vadd.f32 %v2833, %v2993
      %v2995 = vpop.f32.mrf.mxu0
      %v2996 = vpop.f32.mrf.mxu0
      %v2997 = vadd.f32 %v2836, %v2996
      %v2998 = vpop.f32.mrf.mxu0
      %2999 = vmatprep.mubr.bf16.mxu0 %v1930
      %3000 = vmatmul.mubr.bf16.gmra.mxu0 %v1929
      %v3001 = vpop.f32.mrf.mxu0
      %v3002 = vadd.f32 %v2841, %v3001
      %v3003 = vpop.f32.mrf.mxu0
      %v3004 = vpop.f32.mrf.mxu0
      %v3005 = vadd.f32 %v2844, %v3004
      %v3006 = vpop.f32.mrf.mxu0
      %3007 = vmatprep.mubr.bf16.mxu0 %v1939
      %3008 = vmatmul.mubr.bf16.gmra.mxu0 %v1938
      %v3009 = vpop.f32.mrf.mxu0
      %v3010 = vadd.f32 %v2849, %v3009
      %v3011 = vpop.f32.mrf.mxu0
      %v3012 = vpop.f32.mrf.mxu0
      %v3013 = vadd.f32 %v2852, %v3012
      %v3014 = vpop.f32.mrf.mxu0
      %3015 = vmatprep.mubr.bf16.mxu0 %v1948
      %3016 = vmatmul.mubr.bf16.gmra.mxu0 %v1947
      %v3017 = vpop.f32.mrf.mxu0
      %v3018 = vadd.f32 %v2857, %v3017
      %v3019 = vpop.f32.mrf.mxu0
      %v3020 = vpop.f32.mrf.mxu0
      %v3021 = vadd.f32 %v2860, %v3020
      %v3022 = vpop.f32.mrf.mxu0
      %3023 = vmatprep.mubr.bf16.mxu0 %v1957
      %3024 = vmatmul.mubr.bf16.gmra.mxu0 %v1956
      %v3025 = vpop.f32.mrf.mxu0
      %v3026 = vadd.f32 %v2865, %v3025
      %v3027 = vpop.f32.mrf.mxu0
      %v3028 = vpop.f32.mrf.mxu0
      %v3029 = vadd.f32 %v2868, %v3028
      %v3030 = vpop.f32.mrf.mxu0
      %3031 = vmatprep.mubr.bf16.mxu0 %v1966
      %3032 = vmatmul.mubr.bf16.gmra.mxu0 %v1965
      %v3033 = vpop.f32.mrf.mxu0
      %v3034 = vadd.f32 %v2873, %v3033
      %v3035 = vpop.f32.mrf.mxu0
      %v3036 = vpop.f32.mrf.mxu0
      %v3037 = vadd.f32 %v2876, %v3036
      %v3038 = vpop.f32.mrf.mxu0
      %3039 = vmatprep.mubr.bf16.mxu0 %v1975
      %3040 = vmatmul.mubr.bf16.gmra.mxu0 %v1974
      %v3041 = vpop.f32.mrf.mxu0
      %v3042 = vadd.f32 %v2881, %v3041
      %v3043 = vpop.f32.mrf.mxu0
      %v3044 = vpop.f32.mrf.mxu0
      %v3045 = vadd.f32 %v2884, %v3044
      %v3046 = vpop.f32.mrf.mxu0
      %3047 = vmatprep.mubr.bf16.mxu0 %v1984
      %3048 = vmatmul.mubr.bf16.gmra.mxu0 %v1983
      %v3049 = vpop.f32.mrf.mxu0
      %v3050 = vadd.f32 %v2889, %v3049
      %v3051 = vpop.f32.mrf.mxu0
      %v3052 = vpop.f32.mrf.mxu0
      %v3053 = vadd.f32 %v2892, %v3052
      %v3054 = vpop.f32.mrf.mxu0
      %3055 = vmatprep.mubr.bf16.mxu0 %v1993
      %3056 = vmatmul.mubr.bf16.gmra.mxu0 %v1992
      %v3057 = vpop.f32.mrf.mxu0
      %v3058 = vadd.f32 %v2897, %v3057
      %v3059 = vpop.f32.mrf.mxu0
      %v3060 = vpop.f32.mrf.mxu0
      %v3061 = vadd.f32 %v2900, %v3060
      %v3062 = vpop.f32.mrf.mxu0
      %3063 = vmatprep.mubr.bf16.mxu0 %v2002
      %3064 = vmatmul.mubr.bf16.gmra.mxu0 %v2001
      %v3065 = vpop.f32.mrf.mxu0
      %v3066 = vadd.f32 %v2905, %v3065
      %v3067 = vpop.f32.mrf.mxu0
      %v3068 = vpop.f32.mrf.mxu0
      %v3069 = vadd.f32 %v2908, %v3068
      %v3070 = vpop.f32.mrf.mxu0
      %3071 = vdwg.mxu0
      %3072 = vmatprep.subr.bf16.mxu0 0
      %3073 = vmatpush1.bf16.msra.mxu0 %v2500
      %3074 = vmatprep.subr.bf16.mxu0 0
      %3075 = vmatpush1.bf16.msra.mxu0 %v2499
      %3076 = vmatprep.subr.bf16.mxu0 0
      %3077 = vmatpush1.bf16.msra.mxu0 %v2498
      %3078 = vmatprep.subr.bf16.mxu0 0
      %3079 = vmatpush1.bf16.msra.mxu0 %v2497
      %3080 = vmatprep.subr.bf16.mxu0 0
      %3081 = vmatpush1.bf16.msra.mxu0 %v2496
      %3082 = vmatprep.subr.bf16.mxu0 0
      %3083 = vmatpush1.bf16.msra.mxu0 %v2495
      %3084 = vmatprep.subr.bf16.mxu0 0
      %3085 = vmatpush1.bf16.msra.mxu0 %v2494
      %3086 = vmatprep.subr.bf16.mxu0 0
      %3087 = vmatpush1.bf16.msra.mxu0 %v2493
      %3088 = vmatprep.subr.bf16.mxu0 0
      %3089 = vmatpush2.bf16.msra.mxu0 %v2508
      %3090 = vmatprep.subr.bf16.mxu0 0
      %3091 = vmatpush2.bf16.msra.mxu0 %v2507
      %3092 = vmatprep.subr.bf16.mxu0 0
      %3093 = vmatpush2.bf16.msra.mxu0 %v2506
      %3094 = vmatprep.subr.bf16.mxu0 0
      %3095 = vmatpush2.bf16.msra.mxu0 %v2505
      %3096 = vmatprep.subr.bf16.mxu0 0
      %3097 = vmatpush2.bf16.msra.mxu0 %v2504
      %3098 = vmatprep.subr.bf16.mxu0 0
      %3099 = vmatpush2.bf16.msra.mxu0 %v2503
      %3100 = vmatprep.subr.bf16.mxu0 0
      %3101 = vmatpush2.bf16.msra.mxu0 %v2502
      %3102 = vmatprep.subr.bf16.mxu0 0
      %3103 = vmatpush2.bf16.msra.mxu0 %v2501
      %3104 = vmatprep.mubr.bf16.mxu0 %v1869
      %3105 = vmatmul.mubr.bf16.gmra.mxu0 %v1868
      %v3106 = vpop.f32.mrf.mxu0
      %v3107 = vadd.f32 %v2946, %v3106
      %v3108 = vpop.f32.mrf.mxu0
      %v3109 = vpop.f32.mrf.mxu0
      %v3110 = vadd.f32 %v2949, %v3109
      %v3111 = vpop.f32.mrf.mxu0
      %3112 = vmatprep.mubr.bf16.mxu0 %v1878
      %3113 = vmatmul.mubr.bf16.gmra.mxu0 %v1877
      %v3114 = vpop.f32.mrf.mxu0
      %v3115 = vadd.f32 %v2954, %v3114
      %v3116 = vpop.f32.mrf.mxu0
      %v3117 = vpop.f32.mrf.mxu0
      %v3118 = vadd.f32 %v2957, %v3117
      %v3119 = vpop.f32.mrf.mxu0
      %3120 = vmatprep.mubr.bf16.mxu0 %v1887
      %3121 = vmatmul.mubr.bf16.gmra.mxu0 %v1886
      %v3122 = vpop.f32.mrf.mxu0
      %v3123 = vadd.f32 %v2962, %v3122
      %v3124 = vpop.f32.mrf.mxu0
      %v3125 = vpop.f32.mrf.mxu0
      %v3126 = vadd.f32 %v2965, %v3125
      %v3127 = vpop.f32.mrf.mxu0
      %3128 = vmatprep.mubr.bf16.mxu0 %v1896
      %3129 = vmatmul.mubr.bf16.gmra.mxu0 %v1895
      %v3130 = vpop.f32.mrf.mxu0
      %v3131 = vadd.f32 %v2970, %v3130
      %v3132 = vpop.f32.mrf.mxu0
      %v3133 = vpop.f32.mrf.mxu0
      %v3134 = vadd.f32 %v2973, %v3133
      %v3135 = vpop.f32.mrf.mxu0
      %3136 = vmatprep.mubr.bf16.mxu0 %v1905
      %3137 = vmatmul.mubr.bf16.gmra.mxu0 %v1904
      %v3138 = vpop.f32.mrf.mxu0
      %v3139 = vadd.f32 %v2978, %v3138
      %v3140 = vpop.f32.mrf.mxu0
      %v3141 = vpop.f32.mrf.mxu0
      %v3142 = vadd.f32 %v2981, %v3141
      %v3143 = vpop.f32.mrf.mxu0
      %3144 = vmatprep.mubr.bf16.mxu0 %v1914
      %3145 = vmatmul.mubr.bf16.gmra.mxu0 %v1913
      %v3146 = vpop.f32.mrf.mxu0
      %v3147 = vadd.f32 %v2986, %v3146
      %v3148 = vpop.f32.mrf.mxu0
      %v3149 = vpop.f32.mrf.mxu0
      %v3150 = vadd.f32 %v2989, %v3149
      %v3151 = vpop.f32.mrf.mxu0
      %3152 = vmatprep.mubr.bf16.mxu0 %v1923
      %3153 = vmatmul.mubr.bf16.gmra.mxu0 %v1922
      %v3154 = vpop.f32.mrf.mxu0
      %v3155 = vadd.f32 %v2994, %v3154
      %v3156 = vpop.f32.mrf.mxu0
      %v3157 = vpop.f32.mrf.mxu0
      %v3158 = vadd.f32 %v2997, %v3157
      %v3159 = vpop.f32.mrf.mxu0
      %3160 = vmatprep.mubr.bf16.mxu0 %v1932
      %3161 = vmatmul.mubr.bf16.gmra.mxu0 %v1931
      %v3162 = vpop.f32.mrf.mxu0
      %v3163 = vadd.f32 %v3002, %v3162
      %v3164 = vpop.f32.mrf.mxu0
      %v3165 = vpop.f32.mrf.mxu0
      %v3166 = vadd.f32 %v3005, %v3165
      %v3167 = vpop.f32.mrf.mxu0
      %3168 = vmatprep.mubr.bf16.mxu0 %v1941
      %3169 = vmatmul.mubr.bf16.gmra.mxu0 %v1940
      %v3170 = vpop.f32.mrf.mxu0
      %v3171 = vadd.f32 %v3010, %v3170
      %v3172 = vpop.f32.mrf.mxu0
      %v3173 = vpop.f32.mrf.mxu0
      %v3174 = vadd.f32 %v3013, %v3173
      %v3175 = vpop.f32.mrf.mxu0
      %3176 = vmatprep.mubr.bf16.mxu0 %v1950
      %3177 = vmatmul.mubr.bf16.gmra.mxu0 %v1949
      %v3178 = vpop.f32.mrf.mxu0
      %v3179 = vadd.f32 %v3018, %v3178
      %v3180 = vpop.f32.mrf.mxu0
      %v3181 = vpop.f32.mrf.mxu0
      %v3182 = vadd.f32 %v3021, %v3181
      %v3183 = vpop.f32.mrf.mxu0
      %3184 = vmatprep.mubr.bf16.mxu0 %v1959
      %3185 = vmatmul.mubr.bf16.gmra.mxu0 %v1958
      %v3186 = vpop.f32.mrf.mxu0
      %v3187 = vadd.f32 %v3026, %v3186
      %v3188 = vpop.f32.mrf.mxu0
      %v3189 = vpop.f32.mrf.mxu0
      %v3190 = vadd.f32 %v3029, %v3189
      %v3191 = vpop.f32.mrf.mxu0
      %3192 = vmatprep.mubr.bf16.mxu0 %v1968
      %3193 = vmatmul.mubr.bf16.gmra.mxu0 %v1967
      %v3194 = vpop.f32.mrf.mxu0
      %v3195 = vadd.f32 %v3034, %v3194
      %v3196 = vpop.f32.mrf.mxu0
      %v3197 = vpop.f32.mrf.mxu0
      %v3198 = vadd.f32 %v3037, %v3197
      %v3199 = vpop.f32.mrf.mxu0
      %3200 = vmatprep.mubr.bf16.mxu0 %v1977
      %3201 = vmatmul.mubr.bf16.gmra.mxu0 %v1976
      %v3202 = vpop.f32.mrf.mxu0
      %v3203 = vadd.f32 %v3042, %v3202
      %v3204 = vpop.f32.mrf.mxu0
      %v3205 = vpop.f32.mrf.mxu0
      %v3206 = vadd.f32 %v3045, %v3205
      %v3207 = vpop.f32.mrf.mxu0
      %3208 = vmatprep.mubr.bf16.mxu0 %v1986
      %3209 = vmatmul.mubr.bf16.gmra.mxu0 %v1985
      %v3210 = vpop.f32.mrf.mxu0
      %v3211 = vadd.f32 %v3050, %v3210
      %v3212 = vpop.f32.mrf.mxu0
      %v3213 = vpop.f32.mrf.mxu0
      %v3214 = vadd.f32 %v3053, %v3213
      %v3215 = vpop.f32.mrf.mxu0
      %3216 = vmatprep.mubr.bf16.mxu0 %v1995
      %3217 = vmatmul.mubr.bf16.gmra.mxu0 %v1994
      %v3218 = vpop.f32.mrf.mxu0
      %v3219 = vadd.f32 %v3058, %v3218
      %v3220 = vpop.f32.mrf.mxu0
      %v3221 = vpop.f32.mrf.mxu0
      %v3222 = vadd.f32 %v3061, %v3221
      %v3223 = vpop.f32.mrf.mxu0
      %3224 = vmatprep.mubr.bf16.mxu0 %v2004
      %3225 = vmatmul.mubr.bf16.gmra.mxu0 %v2003
      %v3226 = vpop.f32.mrf.mxu0
      %v3227 = vadd.f32 %v3066, %v3226
      %v3228 = vpop.f32.mrf.mxu0
      %v3229 = vpop.f32.mrf.mxu0
      %v3230 = vadd.f32 %v3069, %v3229
      %v3231 = vpop.f32.mrf.mxu0
      %3232 = vdwg.mxu0
      %3233 = vmatprep.subr.bf16.mxu0 0
      %3234 = vmatpush1.bf16.msra.mxu0 %v2516
      %3235 = vmatprep.subr.bf16.mxu0 0
      %3236 = vmatpush1.bf16.msra.mxu0 %v2515
      %3237 = vmatprep.subr.bf16.mxu0 0
      %3238 = vmatpush1.bf16.msra.mxu0 %v2514
      %3239 = vmatprep.subr.bf16.mxu0 0
      %3240 = vmatpush1.bf16.msra.mxu0 %v2513
      %3241 = vmatprep.subr.bf16.mxu0 0
      %3242 = vmatpush1.bf16.msra.mxu0 %v2512
      %3243 = vmatprep.subr.bf16.mxu0 0
      %3244 = vmatpush1.bf16.msra.mxu0 %v2511
      %3245 = vmatprep.subr.bf16.mxu0 0
      %3246 = vmatpush1.bf16.msra.mxu0 %v2510
      %3247 = vmatprep.subr.bf16.mxu0 0
      %3248 = vmatpush1.bf16.msra.mxu0 %v2509
      %3249 = vmatprep.subr.bf16.mxu0 0
      %3250 = vmatpush2.bf16.msra.mxu0 0
      %3251 = vmatprep.subr.bf16.mxu0 0
      %3252 = vmatpush2.bf16.msra.mxu0 0
      %3253 = vmatprep.subr.bf16.mxu0 0
      %3254 = vmatpush2.bf16.msra.mxu0 0
      %3255 = vmatprep.subr.bf16.mxu0 0
      %3256 = vmatpush2.bf16.msra.mxu0 0
      %3257 = vmatprep.subr.bf16.mxu0 0
      %3258 = vmatpush2.bf16.msra.mxu0 0
      %3259 = vmatprep.subr.bf16.mxu0 0
      %3260 = vmatpush2.bf16.msra.mxu0 0
      %3261 = vmatprep.subr.bf16.mxu0 0
      %3262 = vmatpush2.bf16.msra.mxu0 0
      %3263 = vmatprep.subr.bf16.mxu0 0
      %3264 = vmatpush2.bf16.msra.mxu0 0
      %3265 = vmatprep.mubr.bf16.mxu0 0
      %3266 = vmatmul.mubr.bf16.gmra.mxu0 %v1870
      %v3267 = vpop.f32.mrf.mxu0
      %v3268 = vadd.f32 %v3107, %v3267
      %v3269 = vpop.f32.mrf.mxu0
      %v3270 = vpop.f32.mrf.mxu0
      %v3271 = vadd.f32 %v3110, %v3270
      %v3272 = vpop.f32.mrf.mxu0
      %3273 = vmatprep.mubr.bf16.mxu0 0
      %3274 = vmatmul.mubr.bf16.gmra.mxu0 %v1879
      %v3275 = vpop.f32.mrf.mxu0
      %v3276 = vadd.f32 %v3115, %v3275
      %v3277 = vpop.f32.mrf.mxu0
      %v3278 = vpop.f32.mrf.mxu0
      %v3279 = vadd.f32 %v3118, %v3278
      %v3280 = vpop.f32.mrf.mxu0
      %3281 = vmatprep.mubr.bf16.mxu0 0
      %3282 = vmatmul.mubr.bf16.gmra.mxu0 %v1888
      %v3283 = vpop.f32.mrf.mxu0
      %v3284 = vadd.f32 %v3123, %v3283
      %v3285 = vpop.f32.mrf.mxu0
      %v3286 = vpop.f32.mrf.mxu0
      %v3287 = vadd.f32 %v3126, %v3286
      %v3288 = vpop.f32.mrf.mxu0
      %3289 = vmatprep.mubr.bf16.mxu0 0
      %3290 = vmatmul.mubr.bf16.gmra.mxu0 %v1897
      %v3291 = vpop.f32.mrf.mxu0
      %v3292 = vadd.f32 %v3131, %v3291
      %v3293 = vpop.f32.mrf.mxu0
      %v3294 = vpop.f32.mrf.mxu0
      %v3295 = vadd.f32 %v3134, %v3294
      %v3296 = vpop.f32.mrf.mxu0
      %3297 = vmatprep.mubr.bf16.mxu0 0
      %3298 = vmatmul.mubr.bf16.gmra.mxu0 %v1906
      %v3299 = vpop.f32.mrf.mxu0
      %v3300 = vadd.f32 %v3139, %v3299
      %v3301 = vpop.f32.mrf.mxu0
      %v3302 = vpop.f32.mrf.mxu0
      %v3303 = vadd.f32 %v3142, %v3302
      %v3304 = vpop.f32.mrf.mxu0
      %3305 = vmatprep.mubr.bf16.mxu0 0
      %3306 = vmatmul.mubr.bf16.gmra.mxu0 %v1915
      %v3307 = vpop.f32.mrf.mxu0
      %v3308 = vadd.f32 %v3147, %v3307
      %v3309 = vpop.f32.mrf.mxu0
      %v3310 = vpop.f32.mrf.mxu0
      %v3311 = vadd.f32 %v3150, %v3310
      %v3312 = vpop.f32.mrf.mxu0
      %3313 = vmatprep.mubr.bf16.mxu0 0
      %3314 = vmatmul.mubr.bf16.gmra.mxu0 %v1924
      %v3315 = vpop.f32.mrf.mxu0
      %v3316 = vadd.f32 %v3155, %v3315
      %v3317 = vpop.f32.mrf.mxu0
      %v3318 = vpop.f32.mrf.mxu0
      %v3319 = vadd.f32 %v3158, %v3318
      %v3320 = vpop.f32.mrf.mxu0
      %3321 = vmatprep.mubr.bf16.mxu0 0
      %3322 = vmatmul.mubr.bf16.gmra.mxu0 %v1933
      %v3323 = vpop.f32.mrf.mxu0
      %v3324 = vadd.f32 %v3163, %v3323
      %v3325 = vpop.f32.mrf.mxu0
      %v3326 = vpop.f32.mrf.mxu0
      %v3327 = vadd.f32 %v3166, %v3326
      %v3328 = vpop.f32.mrf.mxu0
      %3329 = vmatprep.mubr.bf16.mxu0 0
      %3330 = vmatmul.mubr.bf16.gmra.mxu0 %v1942
      %v3331 = vpop.f32.mrf.mxu0
      %v3332 = vadd.f32 %v3171, %v3331
      %v3333 = vpop.f32.mrf.mxu0
      %v3334 = vpop.f32.mrf.mxu0
      %v3335 = vadd.f32 %v3174, %v3334
      %v3336 = vpop.f32.mrf.mxu0
      %3337 = vmatprep.mubr.bf16.mxu0 0
      %3338 = vmatmul.mubr.bf16.gmra.mxu0 %v1951
      %v3339 = vpop.f32.mrf.mxu0
      %v3340 = vadd.f32 %v3179, %v3339
      %v3341 = vpop.f32.mrf.mxu0
      %v3342 = vpop.f32.mrf.mxu0
      %v3343 = vadd.f32 %v3182, %v3342
      %v3344 = vpop.f32.mrf.mxu0
      %3345 = vmatprep.mubr.bf16.mxu0 0
      %3346 = vmatmul.mubr.bf16.gmra.mxu0 %v1960
      %v3347 = vpop.f32.mrf.mxu0
      %v3348 = vadd.f32 %v3187, %v3347
      %v3349 = vpop.f32.mrf.mxu0
      %v3350 = vpop.f32.mrf.mxu0
      %v3351 = vadd.f32 %v3190, %v3350
      %v3352 = vpop.f32.mrf.mxu0
      %3353 = vmatprep.mubr.bf16.mxu0 0
      %3354 = vmatmul.mubr.bf16.gmra.mxu0 %v1969
      %v3355 = vpop.f32.mrf.mxu0
      %v3356 = vadd.f32 %v3195, %v3355
      %v3357 = vpop.f32.mrf.mxu0
      %v3358 = vpop.f32.mrf.mxu0
      %v3359 = vadd.f32 %v3198, %v3358
      %v3360 = vpop.f32.mrf.mxu0
      %3361 = vmatprep.mubr.bf16.mxu0 0
      %3362 = vmatmul.mubr.bf16.gmra.mxu0 %v1978
      %v3363 = vpop.f32.mrf.mxu0
      %v3364 = vadd.f32 %v3203, %v3363
      %v3365 = vpop.f32.mrf.mxu0
      %v3366 = vpop.f32.mrf.mxu0
      %v3367 = vadd.f32 %v3206, %v3366
      %v3368 = vpop.f32.mrf.mxu0
      %3369 = vmatprep.mubr.bf16.mxu0 0
      %3370 = vmatmul.mubr.bf16.gmra.mxu0 %v1987
      %v3371 = vpop.f32.mrf.mxu0
      %v3372 = vadd.f32 %v3211, %v3371
      %v3373 = vpop.f32.mrf.mxu0
      %v3374 = vpop.f32.mrf.mxu0
      %v3375 = vadd.f32 %v3214, %v3374
      %v3376 = vpop.f32.mrf.mxu0
      %3377 = vmatprep.mubr.bf16.mxu0 0
      %3378 = vmatmul.mubr.bf16.gmra.mxu0 %v1996
      %v3379 = vpop.f32.mrf.mxu0
      %v3380 = vadd.f32 %v3219, %v3379
      %v3381 = vpop.f32.mrf.mxu0
      %v3382 = vpop.f32.mrf.mxu0
      %v3383 = vadd.f32 %v3222, %v3382
      %v3384 = vpop.f32.mrf.mxu0
      %3385 = vmatprep.mubr.bf16.mxu0 0
      %3386 = vmatmul.mubr.bf16.gmra.mxu0 %v2005
      %v3387 = vpop.f32.mrf.mxu0
      %v3388 = vadd.f32 %v3227, %v3387
      %v3389 = vpop.f32.mrf.mxu0
      %v3390 = vpop.f32.mrf.mxu0
      %v3391 = vadd.f32 %v3230, %v3390
      %v3392 = vpop.f32.mrf.mxu0
      %3393 = vdwg.mxu0
      %v3394 = vmax.f32 %v3268, 0.0
      %v3395 = vmax.f32 %v3271, 0.0
      %v3396 = vmax.f32 %v3276, 0.0
      %v3397 = vmax.f32 %v3279, 0.0
      %v3398 = vmax.f32 %v3284, 0.0
      %v3399 = vmax.f32 %v3287, 0.0
      %v3400 = vmax.f32 %v3292, 0.0
      %v3401 = vmax.f32 %v3295, 0.0
      %v3402 = vmax.f32 %v3300, 0.0
      %v3403 = vmax.f32 %v3303, 0.0
      %v3404 = vmax.f32 %v3308, 0.0
      %v3405 = vmax.f32 %v3311, 0.0
      %v3406 = vmax.f32 %v3316, 0.0
      %v3407 = vmax.f32 %v3319, 0.0
      %v3408 = vmax.f32 %v3324, 0.0
      %v3409 = vmax.f32 %v3327, 0.0
      %v3410 = vmax.f32 %v3332, 0.0
      %v3411 = vmax.f32 %v3335, 0.0
      %v3412 = vmax.f32 %v3340, 0.0
      %v3413 = vmax.f32 %v3343, 0.0
      %v3414 = vmax.f32 %v3348, 0.0
      %v3415 = vmax.f32 %v3351, 0.0
      %v3416 = vmax.f32 %v3356, 0.0
      %v3417 = vmax.f32 %v3359, 0.0
      %v3418 = vmax.f32 %v3364, 0.0
      %v3419 = vmax.f32 %v3367, 0.0
      %v3420 = vmax.f32 %v3372, 0.0
      %v3421 = vmax.f32 %v3375, 0.0
      %v3422 = vmax.f32 %v3380, 0.0
      %v3423 = vmax.f32 %v3383, 0.0
      %v3424 = vmax.f32 %v3388, 0.0
      %v3425 = vmax.f32 %v3391, 0.0
      %v3426 = vpack.c.bf16 %v3395, %v3394
      %v3427 = vpack.c.bf16 %v3397, %v3396
      %v3428 = vpack.c.bf16 %v3399, %v3398
      %v3429 = vpack.c.bf16 %v3401, %v3400
      %v3430 = vpack.c.bf16 %v3403, %v3402
      %v3431 = vpack.c.bf16 %v3405, %v3404
      %v3432 = vpack.c.bf16 %v3407, %v3406
      %v3433 = vpack.c.bf16 %v3409, %v3408
      %v3434 = vpack.c.bf16 %v3411, %v3410
      %v3435 = vpack.c.bf16 %v3413, %v3412
      %v3436 = vpack.c.bf16 %v3415, %v3414
      %v3437 = vpack.c.bf16 %v3417, %v3416
      %v3438 = vpack.c.bf16 %v3419, %v3418
      %v3439 = vpack.c.bf16 %v3421, %v3420
      %v3440 = vpack.c.bf16 %v3423, %v3422
      %v3441 = vpack.c.bf16 %v3425, %v3424
      %v3458 = vunpack.c.l.b16 %v3426
      %v3459 = vunpack.c.h.b16 %v3426
      %v3460 = vunpack.c.l.b16 %v3427
      %v3461 = vunpack.c.h.b16 %v3427
      %v3462 = vunpack.c.l.b16 %v3428
      %v3463 = vunpack.c.h.b16 %v3428
      %v3464 = vunpack.c.l.b16 %v3429
      %v3465 = vunpack.c.h.b16 %v3429
      %v3466 = vunpack.c.l.b16 %v3430
      %v3467 = vunpack.c.h.b16 %v3430
      %v3468 = vunpack.c.l.b16 %v3431
      %v3469 = vunpack.c.h.b16 %v3431
      %v3470 = vunpack.c.l.b16 %v3432
      %v3471 = vunpack.c.h.b16 %v3432
      %v3472 = vunpack.c.l.b16 %v3433
      %v3473 = vunpack.c.h.b16 %v3433
      %v3474 = vunpack.c.l.b16 %v3434
      %v3475 = vunpack.c.h.b16 %v3434
      %v3476 = vunpack.c.l.b16 %v3435
      %v3477 = vunpack.c.h.b16 %v3435
      %v3478 = vunpack.c.l.b16 %v3436
      %v3479 = vunpack.c.h.b16 %v3436
      %v3480 = vunpack.c.l.b16 %v3437
      %v3481 = vunpack.c.h.b16 %v3437
      %v3482 = vunpack.c.l.b16 %v3438
      %v3483 = vunpack.c.h.b16 %v3438
      %v3484 = vunpack.c.l.b16 %v3439
      %v3485 = vunpack.c.h.b16 %v3439
      %v3486 = vunpack.c.l.b16 %v3440
      %v3487 = vunpack.c.h.b16 %v3440
      %v3488 = vunpack.c.l.b16 %v3441
      %v3489 = vunpack.c.h.b16 %v3441
      %v3490 = vpack.c.b16 %v3458, %v3458
      %v3491 = vpack.c.b16 %v3459, %v3459
      %v3492 = vpack.c.b16 %v3460, %v3460
      %v3493 = vpack.c.b16 %v3461, %v3461
      %v3494 = vpack.c.b16 %v3462, %v3462
      %v3495 = vpack.c.b16 %v3463, %v3463
      %v3496 = vpack.c.b16 %v3464, %v3464
      %v3497 = vpack.c.b16 %v3465, %v3465
      %v3498 = vpack.c.b16 %v3466, %v3466
      %v3499 = vpack.c.b16 %v3467, %v3467
      %v3500 = vpack.c.b16 %v3468, %v3468
      %v3501 = vpack.c.b16 %v3469, %v3469
      %v3502 = vpack.c.b16 %v3470, %v3470
      %v3503 = vpack.c.b16 %v3471, %v3471
      %v3504 = vpack.c.b16 %v3472, %v3472
      %v3505 = vpack.c.b16 %v3473, %v3473
      %v3506 = vpack.c.b16 %v3474, %v3474
      %v3507 = vpack.c.b16 %v3475, %v3475
      %v3508 = vpack.c.b16 %v3476, %v3476
      %v3509 = vpack.c.b16 %v3477, %v3477
      %v3510 = vpack.c.b16 %v3478, %v3478
      %v3511 = vpack.c.b16 %v3479, %v3479
      %v3512 = vpack.c.b16 %v3480, %v3480
      %v3513 = vpack.c.b16 %v3481, %v3481
      %v3514 = vpack.c.b16 %v3482, %v3482
      %v3515 = vpack.c.b16 %v3483, %v3483
      %v3516 = vpack.c.b16 %v3484, %v3484
      %v3517 = vpack.c.b16 %v3485, %v3485
      %v3518 = vpack.c.b16 %v3486, %v3486
      %v3519 = vpack.c.b16 %v3487, %v3487
      %v3520 = vpack.c.b16 %v3488, %v3488
      %v3521 = vpack.c.b16 %v3489, %v3489
      %3554 = vst [vmem:[%s384] sm:$0xf] %v3490
      %3555 = vst [vmem:[%s384 + $0x4] sm:$0xf] %v3491
      %3556 = vst [vmem:[%s384 + $0x8] sm:$0xf] %v3492
      %3557 = vst [vmem:[%s384 + $0xc] sm:$0xf] %v3493
      %3558 = vst [vmem:[%s384 + $0x10] sm:$0xf] %v3494
      %3559 = vst [vmem:[%s384 + $0x14] sm:$0xf] %v3495
      %3560 = vst [vmem:[%s384 + $0x18] sm:$0xf] %v3496
      %3561 = vst [vmem:[%s384 + $0x1c] sm:$0xf] %v3497
      %3562 = vst [vmem:[%s384 + $0x20] sm:$0xf] %v3498
      %3563 = vst [vmem:[%s384 + $0x24] sm:$0xf] %v3499
      %3564 = vst [vmem:[%s384 + $0x28] sm:$0xf] %v3500
      %3565 = vst [vmem:[%s384 + $0x2c] sm:$0xf] %v3501
      %3566 = vst [vmem:[%s384 + $0x30] sm:$0xf] %v3502
      %3567 = vst [vmem:[%s384 + $0x34] sm:$0xf] %v3503
      %3568 = vst [vmem:[%s384 + $0x38] sm:$0xf] %v3504
      %3569 = vst [vmem:[%s384 + $0x3c] sm:$0xf] %v3505
      %3570 = vst [vmem:[%s384 + $0x40] sm:$0xf] %v3506
      %3571 = vst [vmem:[%s384 + $0x44] sm:$0xf] %v3507
      %3572 = vst [vmem:[%s384 + $0x48] sm:$0xf] %v3508
      %3573 = vst [vmem:[%s384 + $0x4c] sm:$0xf] %v3509
      %3574 = vst [vmem:[%s384 + $0x50] sm:$0xf] %v3510
      %3575 = vst [vmem:[%s384 + $0x54] sm:$0xf] %v3511
      %3576 = vst [vmem:[%s384 + $0x58] sm:$0xf] %v3512
      %3577 = vst [vmem:[%s384 + $0x5c] sm:$0xf] %v3513
      %3578 = vst [vmem:[%s384 + $0x60] sm:$0xf] %v3514
      %3579 = vst [vmem:[%s384 + $0x64] sm:$0xf] %v3515
      %3580 = vst [vmem:[%s384 + $0x68] sm:$0xf] %v3516
      %3581 = vst [vmem:[%s384 + $0x6c] sm:$0xf] %v3517
      %3582 = vst [vmem:[%s384 + $0x70] sm:$0xf] %v3518
      %3583 = vst [vmem:[%s384 + $0x74] sm:$0xf] %v3519
      %3584 = vst [vmem:[%s384 + $0x78] sm:$0xf] %v3520
      %3585 = vst [vmem:[%s384 + $0x7c] sm:$0xf] %v3521
      %v3586 = vadd.f32 %v3394, %v3395
      %v3587 = vadd.f32 %v3586, %v3396
      %v3588 = vadd.f32 %v3587, %v3397
      %v3589 = vadd.f32 %v3588, %v3398
      %v3590 = vadd.f32 %v3589, %v3399
      %v3591 = vadd.f32 %v3590, %v3400
      %v3592 = vadd.f32 %v3591, %v3401
      %v3593 = vadd.f32 %v3592, %v3402
      %v3594 = vadd.f32 %v3593, %v3403
      %v3595 = vadd.f32 %v3594, %v3404
      %v3596 = vadd.f32 %v3595, %v3405
      %v3597 = vadd.f32 %v3596, %v3406
      %v3598 = vadd.f32 %v3597, %v3407
      %v3599 = vadd.f32 %v3598, %v3408
      %v3600 = vadd.f32 %v3599, %v3409
      %v3601 = vadd.f32 %v3600, %v3410
      %v3602 = vadd.f32 %v3601, %v3411
      %v3603 = vadd.f32 %v3602, %v3412
      %v3604 = vadd.f32 %v3603, %v3413
      %v3605 = vadd.f32 %v3604, %v3414
      %v3606 = vadd.f32 %v3605, %v3415
      %v3607 = vadd.f32 %v3606, %v3416
      %v3608 = vadd.f32 %v3607, %v3417
      %v3609 = vadd.f32 %v3608, %v3418
      %v3610 = vadd.f32 %v3609, %v3419
      %v3611 = vadd.f32 %v3610, %v3420
      %v3612 = vadd.f32 %v3611, %v3421
      %v3613 = vadd.f32 %v3612, %v3422
      %v3614 = vadd.f32 %v3613, %v3423
      %v3615 = vadd.f32 %v3614, %v3424
      %v3616 = vadd.f32 %v3615, %v3425
      %v3617 = vrot.slane %v3616, 4
      %v3618 = vadd.f32 %v3616, %v3617
      %v3619 = vrot.slane %v3618, 2
      %v3620 = vadd.f32 %v3618, %v3619
      %v3621 = vrot.slane %v3620, 1
      %v3622 = vadd.f32 %v3620, %v3621
      %3623 = vst [vmem:[%s387] sm:$0x1] %v3622
      %v3624 = vmul.f32 %v3394, %v3394
      %v3625 = vmul.f32 %v3395, %v3395
      %v3626 = vmul.f32 %v3396, %v3396
      %v3627 = vmul.f32 %v3397, %v3397
      %v3628 = vmul.f32 %v3398, %v3398
      %v3629 = vmul.f32 %v3399, %v3399
      %v3630 = vmul.f32 %v3400, %v3400
      %v3631 = vmul.f32 %v3401, %v3401
      %v3632 = vmul.f32 %v3402, %v3402
      %v3633 = vmul.f32 %v3403, %v3403
      %v3634 = vmul.f32 %v3404, %v3404
      %v3635 = vmul.f32 %v3405, %v3405
      %v3636 = vmul.f32 %v3406, %v3406
      %v3637 = vmul.f32 %v3407, %v3407
      %v3638 = vmul.f32 %v3408, %v3408
      %v3639 = vmul.f32 %v3409, %v3409
      %v3640 = vmul.f32 %v3410, %v3410
      %v3641 = vmul.f32 %v3411, %v3411
      %v3642 = vmul.f32 %v3412, %v3412
      %v3643 = vmul.f32 %v3413, %v3413
      %v3644 = vmul.f32 %v3414, %v3414
      %v3645 = vmul.f32 %v3415, %v3415
      %v3646 = vmul.f32 %v3416, %v3416
      %v3647 = vmul.f32 %v3417, %v3417
      %v3648 = vmul.f32 %v3418, %v3418
      %v3649 = vmul.f32 %v3419, %v3419
      %v3650 = vmul.f32 %v3420, %v3420
      %v3651 = vmul.f32 %v3421, %v3421
      %v3652 = vmul.f32 %v3422, %v3422
      %v3653 = vmul.f32 %v3423, %v3423
      %v3654 = vmul.f32 %v3424, %v3424
      %v3655 = vmul.f32 %v3425, %v3425
      %v3656 = vadd.f32 %v3624, %v3625
      %v3657 = vadd.f32 %v3656, %v3626
      %v3658 = vadd.f32 %v3657, %v3627
      %v3659 = vadd.f32 %v3658, %v3628
      %v3660 = vadd.f32 %v3659, %v3629
      %v3661 = vadd.f32 %v3660, %v3630
      %v3662 = vadd.f32 %v3661, %v3631
      %v3663 = vadd.f32 %v3662, %v3632
      %v3664 = vadd.f32 %v3663, %v3633
      %v3665 = vadd.f32 %v3664, %v3634
      %v3666 = vadd.f32 %v3665, %v3635
      %v3667 = vadd.f32 %v3666, %v3636
      %v3668 = vadd.f32 %v3667, %v3637
      %v3669 = vadd.f32 %v3668, %v3638
      %v3670 = vadd.f32 %v3669, %v3639
      %v3671 = vadd.f32 %v3670, %v3640
      %v3672 = vadd.f32 %v3671, %v3641
      %v3673 = vadd.f32 %v3672, %v3642
      %v3674 = vadd.f32 %v3673, %v3643
      %v3675 = vadd.f32 %v3674, %v3644
      %v3676 = vadd.f32 %v3675, %v3645
      %v3677 = vadd.f32 %v3676, %v3646
      %v3678 = vadd.f32 %v3677, %v3647
      %v3679 = vadd.f32 %v3678, %v3648
      %v3680 = vadd.f32 %v3679, %v3649
      %v3681 = vadd.f32 %v3680, %v3650
      %v3682 = vadd.f32 %v3681, %v3651
      %v3683 = vadd.f32 %v3682, %v3652
      %v3684 = vadd.f32 %v3683, %v3653
      %v3685 = vadd.f32 %v3684, %v3654
      %v3686 = vadd.f32 %v3685, %v3655
      %v3687 = vrot.slane %v3686, 4
      %v3688 = vadd.f32 %v3686, %v3687
      %v3689 = vrot.slane %v3688, 2
      %v3690 = vadd.f32 %v3688, %v3689
      %v3691 = vrot.slane %v3690, 1
      %v3692 = vadd.f32 %v3690, %v3691
      %3693 = vst [vmem:[%s390] sm:$0x1] %v3692
      %p3694 = scmp.lt.s32.totalorder %s22, 1
      %s3695 = scalar_select %p3694, %s22, 1
      %s3696 = smul.addr %s3695, 32
      %s3697 = smul.addr %s3696, 4
      %s3698 = scalar_lea.vmem %s8, %s3697
      %p3699 = scmp.lt.s32.totalorder %s22, 1
      %s3700 = scalar_select %p3699, %s22, 1
      %s3701 = scalar_lea.vmem %s9, %s3700
      %p3702 = scmp.lt.s32.totalorder %s22, 1
      %s3703 = scalar_select %p3702, %s22, 1
      %s3704 = scalar_lea.vmem %s10, %s3703
      // Predicated region
      $region53: #{block_forward.4} parent=51 // pred_check
        %p3705 = pneg %p218
      $region54: #{block_forward.4} parent=51 // pred_check_branch
        %3707 = sbr.rel (%p3705) target = $region56
      $region55: #{block_forward.4} parent=51 // pred_region
        _
      $region56: #{block_forward.4} parent=51 // pred_fallthru
        _
      // Predicated region
      $region57: #{block_forward.4} parent=51 // pred_check
        %p3708 = pneg %p244
      $region58: #{block_forward.4} parent=51 // pred_check_branch
        %3710 = sbr.rel (%p3708) target = $region60
      $region59: #{block_forward.4} parent=51 // pred_region
        _
      $region60: #{block_forward.4} parent=51 // pred_fallthru
        _
      // Predicated region
      $region61: #{block_forward.4} parent=51 // pred_check
        %p3711 = pneg %p270
      $region62: #{block_forward.4} parent=51 // pred_check_branch
        %3713 = sbr.rel (%p3711) target = $region64
      $region63: #{block_forward.4} parent=51 // pred_region
        _
      $region64: #{block_forward.4} parent=51 // pred_fallthru
        _
    $region52: #{block_forward.4} parent=5 // pred_fallthru
      _
    %p3714 = scmp.le.s32.totalorder 2, %s17
    // Predicated region
    $region65: #{block_forward.4} parent=5 // pred_check
      %p3715 = pneg %p3714
    $region66: #{block_forward.4} parent=5 // pred_check_branch
      %3717 = sbr.rel (%p3715) target = $region68
    $region67: #{block_forward.4} parent=5 // pred_region
      %s3718 = ssub.s32 %s17, 2
      // Predicated region
      $region69: #{block_forward.4} parent=67 // pred_check
        %p3719 = pneg %p224
      $region70: #{block_forward.4} parent=67 // pred_check_branch
        %3721 = sbr.rel (%p3719) target = $region72
      $region71: #{block_forward.4} parent=67 // pred_region
        %p3722 = scmp.lt.s32.totalorder %s23, 1
        %s3723 = scalar_select %p3722, %s23, 1
        %s3724 = smul.addr %s3723, 32
        %s3725 = smul.addr %s3724, 4
        %s3726 = scalar_lea.vmem %s8, %s3725
      $region72: #{block_forward.4} parent=67 // pred_fallthru
        _
      // Predicated region
      $region73: #{block_forward.4} parent=67 // pred_check
        %p3727 = pneg %p250
      $region74: #{block_forward.4} parent=67 // pred_check_branch
        %3729 = sbr.rel (%p3727) target = $region76
      $region75: #{block_forward.4} parent=67 // pred_region
        %p3730 = scmp.lt.s32.totalorder %s23, 1
        %s3731 = scalar_select %p3730, %s23, 1
        %s3732 = scalar_lea.vmem %s9, %s3731
      $region76: #{block_forward.4} parent=67 // pred_fallthru
        _
      // Predicated region
      $region77: #{block_forward.4} parent=67 // pred_check
        %p3733 = pneg %p276
      $region78: #{block_forward.4} parent=67 // pred_check_branch
        %3735 = sbr.rel (%p3733) target = $region80
      $region79: #{block_forward.4} parent=67 // pred_region
        %p3736 = scmp.lt.s32.totalorder %s23, 1
        %s3737 = scalar_select %p3736, %s23, 1
        %s3738 = scalar_lea.vmem %s10, %s3737
      $region80: #{block_forward.4} parent=67 // pred_fallthru
        _
    $region68: #{block_forward.4} parent=5 // pred_fallthru
      _
  $region6: #{block_forward.4} parent=0 // loop_footer
    %s21 = sadd.s32 1, %s17
  $region7: #{block_forward.4} parent=0 // loop_footer_branch
    %16 = sbr.rel target = $region3
  $region8: #{block_forward.4} parent=0 // loop_exit
    _

// kernel: block_forward.3
$region0: #{block_forward.3}
  #allocation0 [shape = 'u32[]', space=smem, size = 0x4, offset = 0x4, fixed_abs, tag = 'smem constant byte address 0x4 - core index']
  #allocation1 [shape = 'u32[144,128]{1,0:T(1,128)}', space=vmem, size = 0x12000, scoped, tag = 'internal scratch']
  #allocation2 [shape = 'f32[16,16,1152]{2,1,0:T(8,128)}', space=vmem, size = 0x120000, scoped, tag = 'scratch operand']
  %s0 = inlined_call_operand.vmem [shape: f32[2,16,16,128], index: 0, kind: input, shape index: {}]
  %s1 = inlined_call_operand.vmem [shape: bf16[1152,128], index: 1, kind: input, shape index: {}]
  %s2 = inlined_call_operand.vmem [shape: f32[1,128], index: 2, kind: input, shape index: {}]
  %s3 = inlined_call_operand.vmem [shape: bf16[2,16,16,128], index: 3, kind: output, shape index: {0}]
  %s4 = inlined_call_operand.vmem [shape: f32[2,1,128], index: 4, kind: output, shape index: {1}]
  %s5 = inlined_call_operand.vmem [shape: f32[2,1,128], index: 5, kind: output, shape index: {2}]
  %6 = xla_tuple %s3, %s4, %s5
  %s7 = sld [smem:[#allocation0]]
  $region61: #{block_forward.3} parent=0
    _
  %s9 = ssub.s32 1, %s7
  %s10 = scalar_select 0, %s9, %s7
  loop: start=0, step=1, limit=4
  $region2: #{block_forward.3} parent=0 // loop_pre_header
    _
  $region3: #{block_forward.3} parent=0 // loop_header
    %s12 = sphi 0, %s16
    %p13 = scmp.ge.s32.totalorder %s12, 4
    %s22 = sphi 0, %s24
    %s25 = sphi 0, %s22
    %s26 = sphi 0, %s25
    %s42 = sphi 0, %s26
    %s46 = sphi 0, %s46
    %s48 = sphi 0, %s46
    %s49 = sphi 0, %s48
    %s63 = sphi 0, %s49
    %s67 = sphi 0, %s67
    %s69 = sphi 0, %s67
    %s70 = sphi 0, %s69
    %s84 = sphi 0, %s70
    %s90 = sphi 0, %s92
    %s93 = sphi 0, %s90
    %s94 = sphi 0, %s93
    %s110 = sphi 0, %s94
    %s116 = sphi 0, %s118
    %s119 = sphi 0, %s116
    %s120 = sphi 0, %s119
    %s136 = sphi 0, %s120
    %s142 = sphi 0, %s144
    %s145 = sphi 0, %s142
    %s146 = sphi 0, %s145
    %s162 = sphi 0, %s146
  $region4: #{block_forward.3} parent=0 // loop_header_branch
    %15 = sbr.rel (%p13) target = $region8
  $region5: #{block_forward.3} parent=0 // loop_body
    %s17 = ssub.s32 %s12, 1
    %s18 = ssub.s32 %s12, 2
    %s19 = sadd.s32 %s12, 1
    %s20 = ssub.s32 %s12, %s19
    %p21 = scmp.eq.s32.totalorder %s20, 0
    %s23 = sadd.s32 %s22, 1
    %s24 = scalar_select %p21, %s22, %s23
    %p27 = pneg %p21
    %p28 = scmp.eq.s32.totalorder %s12, 1
    %p29 = por %p27, %p28
    %p30 = scmp.ne.s32.totalorder %s22, %s25
    %p31 = scmp.eq.s32.totalorder %s12, 0
    %p32 = por %p30, %p31
    %p33 = scmp.ne.s32.totalorder %s22, %s25
    %p34 = scmp.eq.s32.totalorder %s17, 1
    %p35 = por %p33, %p34
    %p36 = scmp.ne.s32.totalorder %s25, %s26
    %p37 = scmp.eq.s32.totalorder %s17, 0
    %p38 = por %p36, %p37
    %p39 = scmp.ne.s32.totalorder %s25, %s26
    %p40 = scmp.eq.s32.totalorder %s18, 1
    %p41 = por %p39, %p40
    %p43 = scmp.ne.s32.totalorder %s26, %s42
    %p44 = scmp.eq.s32.totalorder %s18, 0
    %p45 = por %p43, %p44
    %s47 = sadd.s32 %s46, 1
    %p50 = scmp.eq.s32.totalorder %s12, 1
    %p51 = scmp.ne.s32.totalorder %s46, %s48
    %p52 = scmp.eq.s32.totalorder %s12, 0
    %p53 = por %p51, %p52
    %p54 = scmp.ne.s32.totalorder %s46, %s48
    %p55 = scmp.eq.s32.totalorder %s17, 1
    %p56 = por %p54, %p55
    %p57 = scmp.ne.s32.totalorder %s48, %s49
    %p58 = scmp.eq.s32.totalorder %s17, 0
    %p59 = por %p57, %p58
    %p60 = scmp.ne.s32.totalorder %s48, %s49
    %p61 = scmp.eq.s32.totalorder %s18, 1
    %p62 = por %p60, %p61
    %p64 = scmp.ne.s32.totalorder %s49, %s63
    %p65 = scmp.eq.s32.totalorder %s18, 0
    %p66 = por %p64, %p65
    %s68 = sadd.s32 %s67, 1
    %p71 = scmp.eq.s32.totalorder %s12, 1
    %p72 = scmp.ne.s32.totalorder %s67, %s69
    %p73 = scmp.eq.s32.totalorder %s12, 0
    %p74 = por %p72, %p73
    %p75 = scmp.ne.s32.totalorder %s67, %s69
    %p76 = scmp.eq.s32.totalorder %s17, 1
    %p77 = por %p75, %p76
    %p78 = scmp.ne.s32.totalorder %s69, %s70
    %p79 = scmp.eq.s32.totalorder %s17, 0
    %p80 = por %p78, %p79
    %p81 = scmp.ne.s32.totalorder %s69, %s70
    %p82 = scmp.eq.s32.totalorder %s18, 1
    %p83 = por %p81, %p82
    %p85 = scmp.ne.s32.totalorder %s70, %s84
    %p86 = scmp.eq.s32.totalorder %s18, 0
    %p87 = por %p85, %p86
    %s88 = ssub.s32 %s12, %s19
    %p89 = scmp.eq.s32.totalorder %s88, 0
    %s91 = sadd.s32 %s90, 1
    %s92 = scalar_select %p89, %s90, %s91
    %p95 = pneg %p89
    %p96 = scmp.eq.s32.totalorder %s12, 1
    %p97 = por %p95, %p96
    %p98 = scmp.ne.s32.totalorder %s90, %s93
    %p99 = scmp.eq.s32.totalorder %s12, 0
    %p100 = por %p98, %p99
    %p101 = scmp.ne.s32.totalorder %s90, %s93
    %p102 = scmp.eq.s32.totalorder %s17, 1
    %p103 = por %p101, %p102
    %p104 = scmp.ne.s32.totalorder %s93, %s94
    %p105 = scmp.eq.s32.totalorder %s17, 0
    %p106 = por %p104, %p105
    %p107 = scmp.ne.s32.totalorder %s93, %s94
    %p108 = scmp.eq.s32.totalorder %s18, 1
    %p109 = por %p107, %p108
    %p111 = scmp.ne.s32.totalorder %s94, %s110
    %p112 = scmp.eq.s32.totalorder %s18, 0
    %p113 = por %p111, %p112
    %s114 = ssub.s32 %s12, %s19
    %p115 = scmp.eq.s32.totalorder %s114, 0
    %s117 = sadd.s32 %s116, 1
    %s118 = scalar_select %p115, %s116, %s117
    %p121 = pneg %p115
    %p122 = scmp.eq.s32.totalorder %s12, 1
    %p123 = por %p121, %p122
    %p124 = scmp.ne.s32.totalorder %s116, %s119
    %p125 = scmp.eq.s32.totalorder %s12, 0
    %p126 = por %p124, %p125
    %p127 = scmp.ne.s32.totalorder %s116, %s119
    %p128 = scmp.eq.s32.totalorder %s17, 1
    %p129 = por %p127, %p128
    %p130 = scmp.ne.s32.totalorder %s119, %s120
    %p131 = scmp.eq.s32.totalorder %s17, 0
    %p132 = por %p130, %p131
    %p133 = scmp.ne.s32.totalorder %s119, %s120
    %p134 = scmp.eq.s32.totalorder %s18, 1
    %p135 = por %p133, %p134
    %p137 = scmp.ne.s32.totalorder %s120, %s136
    %p138 = scmp.eq.s32.totalorder %s18, 0
    %p139 = por %p137, %p138
    %s140 = ssub.s32 %s12, %s19
    %p141 = scmp.eq.s32.totalorder %s140, 0
    %s143 = sadd.s32 %s142, 1
    %s144 = scalar_select %p141, %s142, %s143
    %p147 = pneg %p141
    %p148 = scmp.eq.s32.totalorder %s12, 1
    %p149 = por %p147, %p148
    %p150 = scmp.ne.s32.totalorder %s142, %s145
    %p151 = scmp.eq.s32.totalorder %s12, 0
    %p152 = por %p150, %p151
    %p153 = scmp.ne.s32.totalorder %s142, %s145
    %p154 = scmp.eq.s32.totalorder %s17, 1
    %p155 = por %p153, %p154
    %p156 = scmp.ne.s32.totalorder %s145, %s146
    %p157 = scmp.eq.s32.totalorder %s17, 0
    %p158 = por %p156, %p157
    %p159 = scmp.ne.s32.totalorder %s145, %s146
    %p160 = scmp.eq.s32.totalorder %s18, 1
    %p161 = por %p159, %p160
    %p163 = scmp.ne.s32.totalorder %s146, %s162
    %p164 = scmp.eq.s32.totalorder %s18, 0
    %p165 = por %p163, %p164
    %p166 = scmp.le.s32.totalorder 1, %s12
    %p167 = scmp.lt.s32.totalorder %s12, 3
    %p168 = pnand %p166, %p167
    %p169 = pneg %p168
    // Predicated region
    $region9: #{block_forward.3} parent=5 // pred_check
      _
    $region10: #{block_forward.3} parent=5 // pred_check_branch
      %171 = sbr.rel (%p168) target = $region12
    $region11: #{block_forward.3} parent=5 // pred_region
      %s172 = ssub.s32 %s12, 1
      // Predicated region
      $region13: #{block_forward.3} parent=11 // pred_check
        %p173 = pneg %p59
      $region14: #{block_forward.3} parent=11 // pred_check_branch
        %175 = sbr.rel (%p173) target = $region16
      $region15: #{block_forward.3} parent=11 // pred_region
        _
      $region16: #{block_forward.3} parent=11 // pred_fallthru
        _
      // Predicated region
      $region17: #{block_forward.3} parent=11 // pred_check
        %p176 = pneg %p80
      $region18: #{block_forward.3} parent=11 // pred_check_branch
        %178 = sbr.rel (%p176) target = $region20
      $region19: #{block_forward.3} parent=11 // pred_region
        _
      $region20: #{block_forward.3} parent=11 // pred_fallthru
        _
    $region12: #{block_forward.3} parent=5 // pred_fallthru
      _
    %p179 = scmp.lt.s32.totalorder %s12, 2
    // Predicated region
    $region21: #{block_forward.3} parent=5 // pred_check
      %p180 = pneg %p179
    $region22: #{block_forward.3} parent=5 // pred_check_branch
      %182 = sbr.rel (%p180) target = $region24
    $region23: #{block_forward.3} parent=5 // pred_region
      // Predicated region
      $region25: #{block_forward.3} parent=23 // pred_check
        %p183 = pneg %p32
      $region26: #{block_forward.3} parent=23 // pred_check_branch
        %185 = sbr.rel (%p183) target = $region28
      $region27: #{block_forward.3} parent=23 // pred_region
        %p186 = scmp.lt.s32.totalorder %s12, 1
        %s187 = scalar_select %p186, %s12, 1
        %s188 = smul.addr %s187, 32
        %s189 = smul.addr %s188, 8
        %s190 = scalar_lea.vmem %s0, %s189
      $region28: #{block_forward.3} parent=23 // pred_fallthru
        _
    $region24: #{block_forward.3} parent=5 // pred_fallthru
      _
    %p191 = scmp.le.s32.totalorder 1, %s12
    %p192 = scmp.lt.s32.totalorder %s12, 3
    %p193 = pnand %p191, %p192
    %p194 = pneg %p193
    // Predicated region
    $region29: #{block_forward.3} parent=5 // pred_check
      _
    $region30: #{block_forward.3} parent=5 // pred_check_branch
      %196 = sbr.rel (%p193) target = $region32
    $region31: #{block_forward.3} parent=5 // pred_region
      %s197 = ssub.s32 %s12, 1
      %p198 = scmp.lt.s32.totalorder %s17, 1
      %s199 = scalar_select %p198, %s17, 1
      %s200 = smul.addr %s199, 32
      %s201 = smul.addr %s200, 8
      %s202 = scalar_lea.vmem %s0, %s201
      %p203 = pneg %p38
      %p204 = pneg %p35
      %p205 = pneg %p59
      %p206 = pneg %p56
      %p207 = pneg %p80
      %p208 = pneg %p77
      %p209 = pneg %p106
      %p210 = pneg %p103
      %p211 = scmp.lt.s32.totalorder %s17, 1
      %s212 = scalar_select %p211, %s17, 1
      %s213 = smul.addr %s212, 32
      %s214 = smul.addr %s213, 4
      %s215 = scalar_lea.vmem %s3, %s214
      %p216 = pneg %p132
      %p217 = pneg %p129
      %p218 = scmp.lt.s32.totalorder %s17, 1
      %s219 = scalar_select %p218, %s17, 1
      %s220 = scalar_lea.vmem %s4, %s219
      %p221 = pneg %p158
      %p222 = pneg %p155
      %p223 = scmp.lt.s32.totalorder %s17, 1
      %s224 = scalar_select %p223, %s17, 1
      %s225 = scalar_lea.vmem %s5, %s224
      %p226 = scmp.lt.s32.totalorder %s17, 1
      %s227 = scalar_select %p226, %s17, 1
      %s228 = smul.addr %s227, 32
      %s229 = smul.addr %s228, 8
      %s230 = scalar_lea.vmem %s0, %s229
      %p231 = scmp.lt.s32.totalorder %s17, 1
      %s232 = scalar_select %p231, %s17, 1
      %s233 = smul.addr %s232, 32
      %s234 = smul.addr %s233, 4
      %s235 = scalar_lea.vmem %s3, %s234
      %p236 = scmp.lt.s32.totalorder %s17, 1
      %s237 = scalar_select %p236, %s17, 1
      %s238 = scalar_lea.vmem %s4, %s237
      %p239 = scmp.lt.s32.totalorder %s17, 1
      %s240 = scalar_select %p239, %s17, 1
      %s241 = scalar_lea.vmem %s5, %s240
      %243 = vst [vmem:[#allocation2] sm:$0xff] 0.0
      %244 = vst [vmem:[#allocation2 + $0x48] sm:$0xff] 0.0
      %245 = vst [vmem:[#allocation2] sm:$0x1] 0.0
      %246 = vst [vmem:[#allocation2 + $0x90] sm:$0x1] 0.0
      %247 = vst [vmem:[#allocation2 + $0x120] sm:$0x1] 0.0
      %248 = vst [vmem:[#allocation2 + $0x1b0] sm:$0x1] 0.0
      %249 = vst [vmem:[#allocation2 + $0x240] sm:$0x1] 0.0
      %250 = vst [vmem:[#allocation2 + $0x2d0] sm:$0x1] 0.0
      %251 = vst [vmem:[#allocation2 + $0x360] sm:$0x1] 0.0
      %252 = vst [vmem:[#allocation2 + $0x3f0] sm:$0x1] 0.0
      %253 = vst [vmem:[#allocation2 + $0x480] sm:$0x1] 0.0
      %254 = vst [vmem:[#allocation2 + $0x510] sm:$0x1] 0.0
      %255 = vst [vmem:[#allocation2 + $0x5a0] sm:$0x1] 0.0
      %256 = vst [vmem:[#allocation2 + $0x630] sm:$0x1] 0.0
      %257 = vst [vmem:[#allocation2 + $0x6c0] sm:$0x1] 0.0
      %258 = vst [vmem:[#allocation2 + $0x750] sm:$0x1] 0.0
      %259 = vst [vmem:[#allocation2 + $0x7e0] sm:$0x1] 0.0
      %260 = vst [vmem:[#allocation2 + $0x870] sm:$0x1] 0.0
      %v261 = vld [vmem:[%s230] sm:$0xff]
      %v262 = vld [vmem:[%s230 + $0x8] sm:$0x7f]
      %v263 = vld [vmem:[%s230 + $0x10] sm:$0xff]
      %v264 = vld [vmem:[%s230 + $0x18] sm:$0x7f]
      %v265 = vld [vmem:[%s230 + $0x20] sm:$0xff]
      %v266 = vld [vmem:[%s230 + $0x28] sm:$0x7f]
      %v267 = vld [vmem:[%s230 + $0x30] sm:$0xff]
      %v268 = vld [vmem:[%s230 + $0x38] sm:$0x7f]
      %v269 = vld [vmem:[%s230 + $0x40] sm:$0xff]
      %v270 = vld [vmem:[%s230 + $0x48] sm:$0x7f]
      %v271 = vld [vmem:[%s230 + $0x50] sm:$0xff]
      %v272 = vld [vmem:[%s230 + $0x58] sm:$0x7f]
      %v273 = vld [vmem:[%s230 + $0x60] sm:$0xff]
      %v274 = vld [vmem:[%s230 + $0x68] sm:$0x7f]
      %v275 = vld [vmem:[%s230 + $0x70] sm:$0xff]
      %v276 = vld [vmem:[%s230 + $0x78] sm:$0x7f]
      %v277 = vld [vmem:[%s230 + $0x80] sm:$0xff]
      %v278 = vld [vmem:[%s230 + $0x88] sm:$0x7f]
      %v279 = vld [vmem:[%s230 + $0x90] sm:$0xff]
      %v280 = vld [vmem:[%s230 + $0x98] sm:$0x7f]
      %v281 = vld [vmem:[%s230 + $0xa0] sm:$0xff]
      %v282 = vld [vmem:[%s230 + $0xa8] sm:$0x7f]
      %v283 = vld [vmem:[%s230 + $0xb0] sm:$0xff]
      %v284 = vld [vmem:[%s230 + $0xb8] sm:$0x7f]
      %v285 = vld [vmem:[%s230 + $0xc0] sm:$0xff]
      %v286 = vld [vmem:[%s230 + $0xc8] sm:$0x7f]
      %v287 = vld [vmem:[%s230 + $0xd0] sm:$0xff]
      %v288 = vld [vmem:[%s230 + $0xd8] sm:$0x7f]
      %v289 = vld [vmem:[%s230 + $0xe0] sm:$0xff]
      %v290 = vld [vmem:[%s230 + $0xe8] sm:$0x7f]
      %vm321 = vcmask 1040384
      %v322 = vrot.slane %v261, 7
      %v323 = vrot.slane %v262, 7
      %v324 = vsel %vm321, %v322, %v323
      %v325 = vrot.slane %v263, 7
      %v326 = vrot.slane %v264, 7
      %v327 = vsel %vm321, %v325, %v326
      %v328 = vrot.slane %v265, 7
      %v329 = vrot.slane %v266, 7
      %v330 = vsel %vm321, %v328, %v329
      %v331 = vrot.slane %v267, 7
      %v332 = vrot.slane %v268, 7
      %v333 = vsel %vm321, %v331, %v332
      %v334 = vrot.slane %v269, 7
      %v335 = vrot.slane %v270, 7
      %v336 = vsel %vm321, %v334, %v335
      %v337 = vrot.slane %v271, 7
      %v338 = vrot.slane %v272, 7
      %v339 = vsel %vm321, %v337, %v338
      %v340 = vrot.slane %v273, 7
      %v341 = vrot.slane %v274, 7
      %v342 = vsel %vm321, %v340, %v341
      %v343 = vrot.slane %v275, 7
      %v344 = vrot.slane %v276, 7
      %v345 = vsel %vm321, %v343, %v344
      %v346 = vrot.slane %v277, 7
      %v347 = vrot.slane %v278, 7
      %v348 = vsel %vm321, %v346, %v347
      %v349 = vrot.slane %v279, 7
      %v350 = vrot.slane %v280, 7
      %v351 = vsel %vm321, %v349, %v350
      %v352 = vrot.slane %v281, 7
      %v353 = vrot.slane %v282, 7
      %v354 = vsel %vm321, %v352, %v353
      %v355 = vrot.slane %v283, 7
      %v356 = vrot.slane %v284, 7
      %v357 = vsel %vm321, %v355, %v356
      %v358 = vrot.slane %v285, 7
      %v359 = vrot.slane %v286, 7
      %v360 = vsel %vm321, %v358, %v359
      %v361 = vrot.slane %v287, 7
      %v362 = vrot.slane %v288, 7
      %v363 = vsel %vm321, %v361, %v362
      %v364 = vrot.slane %v289, 7
      %v365 = vrot.slane %v290, 7
      %v366 = vsel %vm321, %v364, %v365
      %s397 = scalar_lea.vmem [#allocation2], 144
      %398 = vst [vmem:[%s397] sm:$0xfe] %v322
      %399 = vst [vmem:[%s397 + $0x48] sm:$0xff] %v324
      %400 = vst [vmem:[%s397 + $0x90] sm:$0xfe] %v325
      %401 = vst [vmem:[%s397 + $0xd8] sm:$0xff] %v327
      %402 = vst [vmem:[%s397 + $0x120] sm:$0xfe] %v328
      %403 = vst [vmem:[%s397 + $0x168] sm:$0xff] %v330
      %404 = vst [vmem:[%s397 + $0x1b0] sm:$0xfe] %v331
      %405 = vst [vmem:[%s397 + $0x1f8] sm:$0xff] %v333
      %406 = vst [vmem:[%s397 + $0x240] sm:$0xfe] %v334
      %407 = vst [vmem:[%s397 + $0x288] sm:$0xff] %v336
      %408 = vst [vmem:[%s397 + $0x2d0] sm:$0xfe] %v337
      %409 = vst [vmem:[%s397 + $0x318] sm:$0xff] %v339
      %410 = vst [vmem:[%s397 + $0x360] sm:$0xfe] %v340
      %411 = vst [vmem:[%s397 + $0x3a8] sm:$0xff] %v342
      %412 = vst [vmem:[%s397 + $0x3f0] sm:$0xfe] %v343
      %413 = vst [vmem:[%s397 + $0x438] sm:$0xff] %v345
      %414 = vst [vmem:[%s397 + $0x480] sm:$0xfe] %v346
      %415 = vst [vmem:[%s397 + $0x4c8] sm:$0xff] %v348
      %416 = vst [vmem:[%s397 + $0x510] sm:$0xfe] %v349
      %417 = vst [vmem:[%s397 + $0x558] sm:$0xff] %v351
      %418 = vst [vmem:[%s397 + $0x5a0] sm:$0xfe] %v352
      %419 = vst [vmem:[%s397 + $0x5e8] sm:$0xff] %v354
      %420 = vst [vmem:[%s397 + $0x630] sm:$0xfe] %v355
      %421 = vst [vmem:[%s397 + $0x678] sm:$0xff] %v357
      %422 = vst [vmem:[%s397 + $0x6c0] sm:$0xfe] %v358
      %423 = vst [vmem:[%s397 + $0x708] sm:$0xff] %v360
      %424 = vst [vmem:[%s397 + $0x750] sm:$0xfe] %v361
      %425 = vst [vmem:[%s397 + $0x798] sm:$0xff] %v363
      %426 = vst [vmem:[%s397 + $0x7e0] sm:$0xfe] %v364
      %427 = vst [vmem:[%s397 + $0x828] sm:$0xff] %v366
      %428 = vst [vmem:[#allocation2 + $0x8] sm:$0xff] 0.0
      %429 = vst [vmem:[#allocation2 + $0x50] sm:$0xff] 0.0
      %v430 = vld [vmem:[%s230] sm:$0xff]
      %v431 = vld [vmem:[%s230 + $0x8] sm:$0xff]
      %v432 = vld [vmem:[%s230 + $0x10] sm:$0xff]
      %v433 = vld [vmem:[%s230 + $0x18] sm:$0xff]
      %v434 = vld [vmem:[%s230 + $0x20] sm:$0xff]
      %v435 = vld [vmem:[%s230 + $0x28] sm:$0xff]
      %v436 = vld [vmem:[%s230 + $0x30] sm:$0xff]
      %v437 = vld [vmem:[%s230 + $0x38] sm:$0xff]
      %v438 = vld [vmem:[%s230 + $0x40] sm:$0xff]
      %v439 = vld [vmem:[%s230 + $0x48] sm:$0xff]
      %v440 = vld [vmem:[%s230 + $0x50] sm:$0xff]
      %v441 = vld [vmem:[%s230 + $0x58] sm:$0xff]
      %v442 = vld [vmem:[%s230 + $0x60] sm:$0xff]
      %v443 = vld [vmem:[%s230 + $0x68] sm:$0xff]
      %v444 = vld [vmem:[%s230 + $0x70] sm:$0xff]
      %v445 = vld [vmem:[%s230 + $0x78] sm:$0xff]
      %v446 = vld [vmem:[%s230 + $0x80] sm:$0xff]
      %v447 = vld [vmem:[%s230 + $0x88] sm:$0xff]
      %v448 = vld [vmem:[%s230 + $0x90] sm:$0xff]
      %v449 = vld [vmem:[%s230 + $0x98] sm:$0xff]
      %v450 = vld [vmem:[%s230 + $0xa0] sm:$0xff]
      %v451 = vld [vmem:[%s230 + $0xa8] sm:$0xff]
      %v452 = vld [vmem:[%s230 + $0xb0] sm:$0xff]
      %v453 = vld [vmem:[%s230 + $0xb8] sm:$0xff]
      %v454 = vld [vmem:[%s230 + $0xc0] sm:$0xff]
      %v455 = vld [vmem:[%s230 + $0xc8] sm:$0xff]
      %v456 = vld [vmem:[%s230 + $0xd0] sm:$0xff]
      %v457 = vld [vmem:[%s230 + $0xd8] sm:$0xff]
      %v458 = vld [vmem:[%s230 + $0xe0] sm:$0xff]
      %v459 = vld [vmem:[%s230 + $0xe8] sm:$0xff]
      %460 = vst [vmem:[%s397 + $0x8] sm:$0xff] %v430
      %461 = vst [vmem:[%s397 + $0x50] sm:$0xff] %v431
      %462 = vst [vmem:[%s397 + $0x98] sm:$0xff] %v432
      %463 = vst [vmem:[%s397 + $0xe0] sm:$0xff] %v433
      %464 = vst [vmem:[%s397 + $0x128] sm:$0xff] %v434
      %465 = vst [vmem:[%s397 + $0x170] sm:$0xff] %v435
      %466 = vst [vmem:[%s397 + $0x1b8] sm:$0xff] %v436
      %467 = vst [vmem:[%s397 + $0x200] sm:$0xff] %v437
      %468 = vst [vmem:[%s397 + $0x248] sm:$0xff] %v438
      %469 = vst [vmem:[%s397 + $0x290] sm:$0xff] %v439
      %470 = vst [vmem:[%s397 + $0x2d8] sm:$0xff] %v440
      %471 = vst [vmem:[%s397 + $0x320] sm:$0xff] %v441
      %472 = vst [vmem:[%s397 + $0x368] sm:$0xff] %v442
      %473 = vst [vmem:[%s397 + $0x3b0] sm:$0xff] %v443
      %474 = vst [vmem:[%s397 + $0x3f8] sm:$0xff] %v444
      %475 = vst [vmem:[%s397 + $0x440] sm:$0xff] %v445
      %476 = vst [vmem:[%s397 + $0x488] sm:$0xff] %v446
      %477 = vst [vmem:[%s397 + $0x4d0] sm:$0xff] %v447
      %478 = vst [vmem:[%s397 + $0x518] sm:$0xff] %v448
      %479 = vst [vmem:[%s397 + $0x560] sm:$0xff] %v449
      %480 = vst [vmem:[%s397 + $0x5a8] sm:$0xff] %v450
      %481 = vst [vmem:[%s397 + $0x5f0] sm:$0xff] %v451
      %482 = vst [vmem:[%s397 + $0x638] sm:$0xff] %v452
      %483 = vst [vmem:[%s397 + $0x680] sm:$0xff] %v453
      %484 = vst [vmem:[%s397 + $0x6c8] sm:$0xff] %v454
      %485 = vst [vmem:[%s397 + $0x710] sm:$0xff] %v455
      %486 = vst [vmem:[%s397 + $0x758] sm:$0xff] %v456
      %487 = vst [vmem:[%s397 + $0x7a0] sm:$0xff] %v457
      %488 = vst [vmem:[%s397 + $0x7e8] sm:$0xff] %v458
      %489 = vst [vmem:[%s397 + $0x830] sm:$0xff] %v459
      %490 = vst [vmem:[#allocation2 + $0x10] sm:$0xff] 0.0
      %491 = vst [vmem:[#allocation2 + $0x58] sm:$0xff] 0.0
      %492 = vst [vmem:[#allocation2 + $0x5f] sm:$0x1] 0.0
      %493 = vst [vmem:[#allocation2 + $0xef] sm:$0x1] 0.0
      %494 = vst [vmem:[#allocation2 + $0x17f] sm:$0x1] 0.0
      %495 = vst [vmem:[#allocation2 + $0x20f] sm:$0x1] 0.0
      %496 = vst [vmem:[#allocation2 + $0x29f] sm:$0x1] 0.0
      %497 = vst [vmem:[#allocation2 + $0x32f] sm:$0x1] 0.0
      %498 = vst [vmem:[#allocation2 + $0x3bf] sm:$0x1] 0.0
      %499 = vst [vmem:[#allocation2 + $0x44f] sm:$0x1] 0.0
      %500 = vst [vmem:[#allocation2 + $0x4df] sm:$0x1] 0.0
      %501 = vst [vmem:[#allocation2 + $0x56f] sm:$0x1] 0.0
      %502 = vst [vmem:[#allocation2 + $0x5ff] sm:$0x1] 0.0
      %503 = vst [vmem:[#allocation2 + $0x68f] sm:$0x1] 0.0
      %504 = vst [vmem:[#allocation2 + $0x71f] sm:$0x1] 0.0
      %505 = vst [vmem:[#allocation2 + $0x7af] sm:$0x1] 0.0
      %506 = vst [vmem:[#allocation2 + $0x83f] sm:$0x1] 0.0
      %507 = vst [vmem:[#allocation2 + $0x8cf] sm:$0x1] 0.0
      %v508 = vld [vmem:[%s230 + $0x1] sm:$0xff]
      %v509 = vld [vmem:[%s230 + $0x9] sm:$0x7f]
      %v510 = vld [vmem:[%s230 + $0x11] sm:$0xff]
      %v511 = vld [vmem:[%s230 + $0x19] sm:$0x7f]
      %v512 = vld [vmem:[%s230 + $0x21] sm:$0xff]
      %v513 = vld [vmem:[%s230 + $0x29] sm:$0x7f]
      %v514 = vld [vmem:[%s230 + $0x31] sm:$0xff]
      %v515 = vld [vmem:[%s230 + $0x39] sm:$0x7f]
      %v516 = vld [vmem:[%s230 + $0x41] sm:$0xff]
      %v517 = vld [vmem:[%s230 + $0x49] sm:$0x7f]
      %v518 = vld [vmem:[%s230 + $0x51] sm:$0xff]
      %v519 = vld [vmem:[%s230 + $0x59] sm:$0x7f]
      %v520 = vld [vmem:[%s230 + $0x61] sm:$0xff]
      %v521 = vld [vmem:[%s230 + $0x69] sm:$0x7f]
      %v522 = vld [vmem:[%s230 + $0x71] sm:$0xff]
      %v523 = vld [vmem:[%s230 + $0x79] sm:$0x7f]
      %v524 = vld [vmem:[%s230 + $0x81] sm:$0xff]
      %v525 = vld [vmem:[%s230 + $0x89] sm:$0x7f]
      %v526 = vld [vmem:[%s230 + $0x91] sm:$0xff]
      %v527 = vld [vmem:[%s230 + $0x99] sm:$0x7f]
      %v528 = vld [vmem:[%s230 + $0xa1] sm:$0xff]
      %v529 = vld [vmem:[%s230 + $0xa9] sm:$0x7f]
      %v530 = vld [vmem:[%s230 + $0xb1] sm:$0xff]
      %v531 = vld [vmem:[%s230 + $0xb9] sm:$0x7f]
      %v532 = vld [vmem:[%s230 + $0xc1] sm:$0xff]
      %v533 = vld [vmem:[%s230 + $0xc9] sm:$0x7f]
      %v534 = vld [vmem:[%s230 + $0xd1] sm:$0xff]
      %v535 = vld [vmem:[%s230 + $0xd9] sm:$0x7f]
      %v536 = vld [vmem:[%s230 + $0xe1] sm:$0xff]
      %v537 = vld [vmem:[%s230 + $0xe9] sm:$0x7f]
      %538 = vst [vmem:[%s397 + $0x10] sm:$0xff] %v508
      %539 = vst [vmem:[%s397 + $0x58] sm:$0x7f] %v509
      %540 = vst [vmem:[%s397 + $0xa0] sm:$0xff] %v510
      %541 = vst [vmem:[%s397 + $0xe8] sm:$0x7f] %v511
      %542 = vst [vmem:[%s397 + $0x130] sm:$0xff] %v512
      %543 = vst [vmem:[%s397 + $0x178] sm:$0x7f] %v513
      %544 = vst [vmem:[%s397 + $0x1c0] sm:$0xff] %v514
      %545 = vst [vmem:[%s397 + $0x208] sm:$0x7f] %v515
      %546 = vst [vmem:[%s397 + $0x250] sm:$0xff] %v516
      %547 = vst [vmem:[%s397 + $0x298] sm:$0x7f] %v517
      %548 = vst [vmem:[%s397 + $0x2e0] sm:$0xff] %v518
      %549 = vst [vmem:[%s397 + $0x328] sm:$0x7f] %v519
      %550 = vst [vmem:[%s397 + $0x370] sm:$0xff] %v520
      %551 = vst [vmem:[%s397 + $0x3b8] sm:$0x7f] %v521
      %552 = vst [vmem:[%s397 + $0x400] sm:$0xff] %v522
      %553 = vst [vmem:[%s397 + $0x448] sm:$0x7f] %v523
      %554 = vst [vmem:[%s397 + $0x490] sm:$0xff] %v524
      %555 = vst [vmem:[%s397 + $0x4d8] sm:$0x7f] %v525
      %556 = vst [vmem:[%s397 + $0x520] sm:$0xff] %v526
      %557 = vst [vmem:[%s397 + $0x568] sm:$0x7f] %v527
      %558 = vst [vmem:[%s397 + $0x5b0] sm:$0xff] %v528
      %559 = vst [vmem:[%s397 + $0x5f8] sm:$0x7f] %v529
      %560 = vst [vmem:[%s397 + $0x640] sm:$0xff] %v530
      %561 = vst [vmem:[%s397 + $0x688] sm:$0x7f] %v531
      %562 = vst [vmem:[%s397 + $0x6d0] sm:$0xff] %v532
      %563 = vst [vmem:[%s397 + $0x718] sm:$0x7f] %v533
      %564 = vst [vmem:[%s397 + $0x760] sm:$0xff] %v534
      %565 = vst [vmem:[%s397 + $0x7a8] sm:$0x7f] %v535
      %566 = vst [vmem:[%s397 + $0x7f0] sm:$0xff] %v536
      %567 = vst [vmem:[%s397 + $0x838] sm:$0x7f] %v537
      %568 = vst [vmem:[#allocation2 + $0x18] sm:$0x1] 0.0
      %569 = vst [vmem:[#allocation2 + $0xa8] sm:$0x1] 0.0
      %570 = vst [vmem:[#allocation2 + $0x138] sm:$0x1] 0.0
      %571 = vst [vmem:[#allocation2 + $0x1c8] sm:$0x1] 0.0
      %572 = vst [vmem:[#allocation2 + $0x258] sm:$0x1] 0.0
      %573 = vst [vmem:[#allocation2 + $0x2e8] sm:$0x1] 0.0
      %574 = vst [vmem:[#allocation2 + $0x378] sm:$0x1] 0.0
      %575 = vst [vmem:[#allocation2 + $0x408] sm:$0x1] 0.0
      %576 = vst [vmem:[#allocation2 + $0x498] sm:$0x1] 0.0
      %577 = vst [vmem:[#allocation2 + $0x528] sm:$0x1] 0.0
      %578 = vst [vmem:[#allocation2 + $0x5b8] sm:$0x1] 0.0
      %579 = vst [vmem:[#allocation2 + $0x648] sm:$0x1] 0.0
      %580 = vst [vmem:[#allocation2 + $0x6d8] sm:$0x1] 0.0
      %581 = vst [vmem:[#allocation2 + $0x768] sm:$0x1] 0.0
      %582 = vst [vmem:[#allocation2 + $0x7f8] sm:$0x1] 0.0
      %583 = vst [vmem:[#allocation2 + $0x888] sm:$0x1] 0.0
      %v584 = vld [vmem:[%s230] sm:$0xff]
      %v585 = vld [vmem:[%s230 + $0x8] sm:$0x7f]
      %v586 = vld [vmem:[%s230 + $0x10] sm:$0xff]
      %v587 = vld [vmem:[%s230 + $0x18] sm:$0x7f]
      %v588 = vld [vmem:[%s230 + $0x20] sm:$0xff]
      %v589 = vld [vmem:[%s230 + $0x28] sm:$0x7f]
      %v590 = vld [vmem:[%s230 + $0x30] sm:$0xff]
      %v591 = vld [vmem:[%s230 + $0x38] sm:$0x7f]
      %v592 = vld [vmem:[%s230 + $0x40] sm:$0xff]
      %v593 = vld [vmem:[%s230 + $0x48] sm:$0x7f]
      %v594 = vld [vmem:[%s230 + $0x50] sm:$0xff]
      %v595 = vld [vmem:[%s230 + $0x58] sm:$0x7f]
      %v596 = vld [vmem:[%s230 + $0x60] sm:$0xff]
      %v597 = vld [vmem:[%s230 + $0x68] sm:$0x7f]
      %v598 = vld [vmem:[%s230 + $0x70] sm:$0xff]
      %v599 = vld [vmem:[%s230 + $0x78] sm:$0x7f]
      %v600 = vld [vmem:[%s230 + $0x80] sm:$0xff]
      %v601 = vld [vmem:[%s230 + $0x88] sm:$0x7f]
      %v602 = vld [vmem:[%s230 + $0x90] sm:$0xff]
      %v603 = vld [vmem:[%s230 + $0x98] sm:$0x7f]
      %v604 = vld [vmem:[%s230 + $0xa0] sm:$0xff]
      %v605 = vld [vmem:[%s230 + $0xa8] sm:$0x7f]
      %v606 = vld [vmem:[%s230 + $0xb0] sm:$0xff]
      %v607 = vld [vmem:[%s230 + $0xb8] sm:$0x7f]
      %v608 = vld [vmem:[%s230 + $0xc0] sm:$0xff]
      %v609 = vld [vmem:[%s230 + $0xc8] sm:$0x7f]
      %v610 = vld [vmem:[%s230 + $0xd0] sm:$0xff]
      %v611 = vld [vmem:[%s230 + $0xd8] sm:$0x7f]
      %v612 = vld [vmem:[%s230 + $0xe0] sm:$0xff]
      %v613 = vld [vmem:[%s230 + $0xe8] sm:$0x7f]
      %v614 = vld [vmem:[%s230 + $0xf0] sm:$0xff]
      %v615 = vld [vmem:[%s230 + $0xf8] sm:$0x7f]
      %v648 = vrot.slane %v584, 7
      %v649 = vrot.slane %v585, 7
      %v650 = vsel %vm321, %v648, %v649
      %v651 = vrot.slane %v586, 7
      %v652 = vrot.slane %v587, 7
      %v653 = vsel %vm321, %v651, %v652
      %v654 = vrot.slane %v588, 7
      %v655 = vrot.slane %v589, 7
      %v656 = vsel %vm321, %v654, %v655
      %v657 = vrot.slane %v590, 7
      %v658 = vrot.slane %v591, 7
      %v659 = vsel %vm321, %v657, %v658
      %v660 = vrot.slane %v592, 7
      %v661 = vrot.slane %v593, 7
      %v662 = vsel %vm321, %v660, %v661
      %v663 = vrot.slane %v594, 7
      %v664 = vrot.slane %v595, 7
      %v665 = vsel %vm321, %v663, %v664
      %v666 = vrot.slane %v596, 7
      %v667 = vrot.slane %v597, 7
      %v668 = vsel %vm321, %v666, %v667
      %v669 = vrot.slane %v598, 7
      %v670 = vrot.slane %v599, 7
      %v671 = vsel %vm321, %v669, %v670
      %v672 = vrot.slane %v600, 7
      %v673 = vrot.slane %v601, 7
      %v674 = vsel %vm321, %v672, %v673
      %v675 = vrot.slane %v602, 7
      %v676 = vrot.slane %v603, 7
      %v677 = vsel %vm321, %v675, %v676
      %v678 = vrot.slane %v604, 7
      %v679 = vrot.slane %v605, 7
      %v680 = vsel %vm321, %v678, %v679
      %v681 = vrot.slane %v606, 7
      %v682 = vrot.slane %v607, 7
      %v683 = vsel %vm321, %v681, %v682
      %v684 = vrot.slane %v608, 7
      %v685 = vrot.slane %v609, 7
      %v686 = vsel %vm321, %v684, %v685
      %v687 = vrot.slane %v610, 7
      %v688 = vrot.slane %v611, 7
      %v689 = vsel %vm321, %v687, %v688
      %v690 = vrot.slane %v612, 7
      %v691 = vrot.slane %v613, 7
      %v692 = vsel %vm321, %v690, %v691
      %v693 = vrot.slane %v614, 7
      %v694 = vrot.slane %v615, 7
      %v695 = vsel %vm321, %v693, %v694
      %728 = vst [vmem:[#allocation2 + $0x18] sm:$0xfe] %v648
      %729 = vst [vmem:[#allocation2 + $0x60] sm:$0xff] %v650
      %730 = vst [vmem:[#allocation2 + $0xa8] sm:$0xfe] %v651
      %731 = vst [vmem:[#allocation2 + $0xf0] sm:$0xff] %v653
      %732 = vst [vmem:[#allocation2 + $0x138] sm:$0xfe] %v654
      %733 = vst [vmem:[#allocation2 + $0x180] sm:$0xff] %v656
      %734 = vst [vmem:[#allocation2 + $0x1c8] sm:$0xfe] %v657
      %735 = vst [vmem:[#allocation2 + $0x210] sm:$0xff] %v659
      %736 = vst [vmem:[#allocation2 + $0x258] sm:$0xfe] %v660
      %737 = vst [vmem:[#allocation2 + $0x2a0] sm:$0xff] %v662
      %738 = vst [vmem:[#allocation2 + $0x2e8] sm:$0xfe] %v663
      %739 = vst [vmem:[#allocation2 + $0x330] sm:$0xff] %v665
      %740 = vst [vmem:[#allocation2 + $0x378] sm:$0xfe] %v666
      %741 = vst [vmem:[#allocation2 + $0x3c0] sm:$0xff] %v668
      %742 = vst [vmem:[#allocation2 + $0x408] sm:$0xfe] %v669
      %743 = vst [vmem:[#allocation2 + $0x450] sm:$0xff] %v671
      %744 = vst [vmem:[#allocation2 + $0x498] sm:$0xfe] %v672
      %745 = vst [vmem:[#allocation2 + $0x4e0] sm:$0xff] %v674
      %746 = vst [vmem:[#allocation2 + $0x528] sm:$0xfe] %v675
      %747 = vst [vmem:[#allocation2 + $0x570] sm:$0xff] %v677
      %748 = vst [vmem:[#allocation2 + $0x5b8] sm:$0xfe] %v678
      %749 = vst [vmem:[#allocation2 + $0x600] sm:$0xff] %v680
      %750 = vst [vmem:[#allocation2 + $0x648] sm:$0xfe] %v681
      %751 = vst [vmem:[#allocation2 + $0x690] sm:$0xff] %v683
      %752 = vst [vmem:[#allocation2 + $0x6d8] sm:$0xfe] %v684
      %753 = vst [vmem:[#allocation2 + $0x720] sm:$0xff] %v686
      %754 = vst [vmem:[#allocation2 + $0x768] sm:$0xfe] %v687
      %755 = vst [vmem:[#allocation2 + $0x7b0] sm:$0xff] %v689
      %756 = vst [vmem:[#allocation2 + $0x7f8] sm:$0xfe] %v690
      %757 = vst [vmem:[#allocation2 + $0x840] sm:$0xff] %v692
      %758 = vst [vmem:[#allocation2 + $0x888] sm:$0xfe] %v693
      %759 = vst [vmem:[#allocation2 + $0x8d0] sm:$0xff] %v695
      %v760 = vld [vmem:[%s230] sm:$0xff]
      %v761 = vld [vmem:[%s230 + $0x8] sm:$0xff]
      %v762 = vld [vmem:[%s230 + $0x10] sm:$0xff]
      %v763 = vld [vmem:[%s230 + $0x18] sm:$0xff]
      %v764 = vld [vmem:[%s230 + $0x20] sm:$0xff]
      %v765 = vld [vmem:[%s230 + $0x28] sm:$0xff]
      %v766 = vld [vmem:[%s230 + $0x30] sm:$0xff]
      %v767 = vld [vmem:[%s230 + $0x38] sm:$0xff]
      %v768 = vld [vmem:[%s230 + $0x40] sm:$0xff]
      %v769 = vld [vmem:[%s230 + $0x48] sm:$0xff]
      %v770 = vld [vmem:[%s230 + $0x50] sm:$0xff]
      %v771 = vld [vmem:[%s230 + $0x58] sm:$0xff]
      %v772 = vld [vmem:[%s230 + $0x60] sm:$0xff]
      %v773 = vld [vmem:[%s230 + $0x68] sm:$0xff]
      %v774 = vld [vmem:[%s230 + $0x70] sm:$0xff]
      %v775 = vld [vmem:[%s230 + $0x78] sm:$0xff]
      %v776 = vld [vmem:[%s230 + $0x80] sm:$0xff]
      %v777 = vld [vmem:[%s230 + $0x88] sm:$0xff]
      %v778 = vld [vmem:[%s230 + $0x90] sm:$0xff]
      %v779 = vld [vmem:[%s230 + $0x98] sm:$0xff]
      %v780 = vld [vmem:[%s230 + $0xa0] sm:$0xff]
      %v781 = vld [vmem:[%s230 + $0xa8] sm:$0xff]
      %v782 = vld [vmem:[%s230 + $0xb0] sm:$0xff]
      %v783 = vld [vmem:[%s230 + $0xb8] sm:$0xff]
      %v784 = vld [vmem:[%s230 + $0xc0] sm:$0xff]
      %v785 = vld [vmem:[%s230 + $0xc8] sm:$0xff]
      %v786 = vld [vmem:[%s230 + $0xd0] sm:$0xff]
      %v787 = vld [vmem:[%s230 + $0xd8] sm:$0xff]
      %v788 = vld [vmem:[%s230 + $0xe0] sm:$0xff]
      %v789 = vld [vmem:[%s230 + $0xe8] sm:$0xff]
      %v790 = vld [vmem:[%s230 + $0xf0] sm:$0xff]
      %v791 = vld [vmem:[%s230 + $0xf8] sm:$0xff]
      %792 = vst [vmem:[#allocation2 + $0x20] sm:$0xff] %v760
      %793 = vst [vmem:[#allocation2 + $0x68] sm:$0xff] %v761
      %794 = vst [vmem:[#allocation2 + $0xb0] sm:$0xff] %v762
      %795 = vst [vmem:[#allocation2 + $0xf8] sm:$0xff] %v763
      %796 = vst [vmem:[#allocation2 + $0x140] sm:$0xff] %v764
      %797 = vst [vmem:[#allocation2 + $0x188] sm:$0xff] %v765
      %798 = vst [vmem:[#allocation2 + $0x1d0] sm:$0xff] %v766
      %799 = vst [vmem:[#allocation2 + $0x218] sm:$0xff] %v767
      %800 = vst [vmem:[#allocation2 + $0x260] sm:$0xff] %v768
      %801 = vst [vmem:[#allocation2 + $0x2a8] sm:$0xff] %v769
      %802 = vst [vmem:[#allocation2 + $0x2f0] sm:$0xff] %v770
      %803 = vst [vmem:[#allocation2 + $0x338] sm:$0xff] %v771
      %804 = vst [vmem:[#allocation2 + $0x380] sm:$0xff] %v772
      %805 = vst [vmem:[#allocation2 + $0x3c8] sm:$0xff] %v773
      %806 = vst [vmem:[#allocation2 + $0x410] sm:$0xff] %v774
      %807 = vst [vmem:[#allocation2 + $0x458] sm:$0xff] %v775
      %808 = vst [vmem:[#allocation2 + $0x4a0] sm:$0xff] %v776
      %809 = vst [vmem:[#allocation2 + $0x4e8] sm:$0xff] %v777
      %810 = vst [vmem:[#allocation2 + $0x530] sm:$0xff] %v778
      %811 = vst [vmem:[#allocation2 + $0x578] sm:$0xff] %v779
      %812 = vst [vmem:[#allocation2 + $0x5c0] sm:$0xff] %v780
      %813 = vst [vmem:[#allocation2 + $0x608] sm:$0xff] %v781
      %814 = vst [vmem:[#allocation2 + $0x650] sm:$0xff] %v782
      %815 = vst [vmem:[#allocation2 + $0x698] sm:$0xff] %v783
      %816 = vst [vmem:[#allocation2 + $0x6e0] sm:$0xff] %v784
      %817 = vst [vmem:[#allocation2 + $0x728] sm:$0xff] %v785
      %818 = vst [vmem:[#allocation2 + $0x770] sm:$0xff] %v786
      %819 = vst [vmem:[#allocation2 + $0x7b8] sm:$0xff] %v787
      %820 = vst [vmem:[#allocation2 + $0x800] sm:$0xff] %v788
      %821 = vst [vmem:[#allocation2 + $0x848] sm:$0xff] %v789
      %822 = vst [vmem:[#allocation2 + $0x890] sm:$0xff] %v790
      %823 = vst [vmem:[#allocation2 + $0x8d8] sm:$0xff] %v791
      %824 = vst [vmem:[#allocation2 + $0x77] sm:$0x1] 0.0
      %825 = vst [vmem:[#allocation2 + $0x107] sm:$0x1] 0.0
      %826 = vst [vmem:[#allocation2 + $0x197] sm:$0x1] 0.0
      %827 = vst [vmem:[#allocation2 + $0x227] sm:$0x1] 0.0
      %828 = vst [vmem:[#allocation2 + $0x2b7] sm:$0x1] 0.0
      %829 = vst [vmem:[#allocation2 + $0x347] sm:$0x1] 0.0
      %830 = vst [vmem:[#allocation2 + $0x3d7] sm:$0x1] 0.0
      %831 = vst [vmem:[#allocation2 + $0x467] sm:$0x1] 0.0
      %832 = vst [vmem:[#allocation2 + $0x4f7] sm:$0x1] 0.0
      %833 = vst [vmem:[#allocation2 + $0x587] sm:$0x1] 0.0
      %834 = vst [vmem:[#allocation2 + $0x617] sm:$0x1] 0.0
      %835 = vst [vmem:[#allocation2 + $0x6a7] sm:$0x1] 0.0
      %836 = vst [vmem:[#allocation2 + $0x737] sm:$0x1] 0.0
      %837 = vst [vmem:[#allocation2 + $0x7c7] sm:$0x1] 0.0
      %838 = vst [vmem:[#allocation2 + $0x857] sm:$0x1] 0.0
      %839 = vst [vmem:[#allocation2 + $0x8e7] sm:$0x1] 0.0
      %v840 = vld [vmem:[%s230 + $0x1] sm:$0xff]
      %v841 = vld [vmem:[%s230 + $0x9] sm:$0x7f]
      %v842 = vld [vmem:[%s230 + $0x11] sm:$0xff]
      %v843 = vld [vmem:[%s230 + $0x19] sm:$0x7f]
      %v844 = vld [vmem:[%s230 + $0x21] sm:$0xff]
      %v845 = vld [vmem:[%s230 + $0x29] sm:$0x7f]
      %v846 = vld [vmem:[%s230 + $0x31] sm:$0xff]
      %v847 = vld [vmem:[%s230 + $0x39] sm:$0x7f]
      %v848 = vld [vmem:[%s230 + $0x41] sm:$0xff]
      %v849 = vld [vmem:[%s230 + $0x49] sm:$0x7f]
      %v850 = vld [vmem:[%s230 + $0x51] sm:$0xff]
      %v851 = vld [vmem:[%s230 + $0x59] sm:$0x7f]
      %v852 = vld [vmem:[%s230 + $0x61] sm:$0xff]
      %v853 = vld [vmem:[%s230 + $0x69] sm:$0x7f]
      %v854 = vld [vmem:[%s230 + $0x71] sm:$0xff]
      %v855 = vld [vmem:[%s230 + $0x79] sm:$0x7f]
      %v856 = vld [vmem:[%s230 + $0x81] sm:$0xff]
      %v857 = vld [vmem:[%s230 + $0x89] sm:$0x7f]
      %v858 = vld [vmem:[%s230 + $0x91] sm:$0xff]
      %v859 = vld [vmem:[%s230 + $0x99] sm:$0x7f]
      %v860 = vld [vmem:[%s230 + $0xa1] sm:$0xff]
      %v861 = vld [vmem:[%s230 + $0xa9] sm:$0x7f]
      %v862 = vld [vmem:[%s230 + $0xb1] sm:$0xff]
      %v863 = vld [vmem:[%s230 + $0xb9] sm:$0x7f]
      %v864 = vld [vmem:[%s230 + $0xc1] sm:$0xff]
      %v865 = vld [vmem:[%s230 + $0xc9] sm:$0x7f]
      %v866 = vld [vmem:[%s230 + $0xd1] sm:$0xff]
      %v867 = vld [vmem:[%s230 + $0xd9] sm:$0x7f]
      %v868 = vld [vmem:[%s230 + $0xe1] sm:$0xff]
      %v869 = vld [vmem:[%s230 + $0xe9] sm:$0x7f]
      %v870 = vld [vmem:[%s230 + $0xf1] sm:$0xff]
      %v871 = vld [vmem:[%s230 + $0xf9] sm:$0x7f]
      %872 = vst [vmem:[#allocation2 + $0x28] sm:$0xff] %v840
      %873 = vst [vmem:[#allocation2 + $0x70] sm:$0x7f] %v841
      %874 = vst [vmem:[#allocation2 + $0xb8] sm:$0xff] %v842
      %875 = vst [vmem:[#allocation2 + $0x100] sm:$0x7f] %v843
      %876 = vst [vmem:[#allocation2 + $0x148] sm:$0xff] %v844
      %877 = vst [vmem:[#allocation2 + $0x190] sm:$0x7f] %v845
      %878 = vst [vmem:[#allocation2 + $0x1d8] sm:$0xff] %v846
      %879 = vst [vmem:[#allocation2 + $0x220] sm:$0x7f] %v847
      %880 = vst [vmem:[#allocation2 + $0x268] sm:$0xff] %v848
      %881 = vst [vmem:[#allocation2 + $0x2b0] sm:$0x7f] %v849
      %882 = vst [vmem:[#allocation2 + $0x2f8] sm:$0xff] %v850
      %883 = vst [vmem:[#allocation2 + $0x340] sm:$0x7f] %v851
      %884 = vst [vmem:[#allocation2 + $0x388] sm:$0xff] %v852
      %885 = vst [vmem:[#allocation2 + $0x3d0] sm:$0x7f] %v853
      %886 = vst [vmem:[#allocation2 + $0x418] sm:$0xff] %v854
      %887 = vst [vmem:[#allocation2 + $0x460] sm:$0x7f] %v855
      %888 = vst [vmem:[#allocation2 + $0x4a8] sm:$0xff] %v856
      %889 = vst [vmem:[#allocation2 + $0x4f0] sm:$0x7f] %v857
      %890 = vst [vmem:[#allocation2 + $0x538] sm:$0xff] %v858
      %891 = vst [vmem:[#allocation2 + $0x580] sm:$0x7f] %v859
      %892 = vst [vmem:[#allocation2 + $0x5c8] sm:$0xff] %v860
      %893 = vst [vmem:[#allocation2 + $0x610] sm:$0x7f] %v861
      %894 = vst [vmem:[#allocation2 + $0x658] sm:$0xff] %v862
      %895 = vst [vmem:[#allocation2 + $0x6a0] sm:$0x7f] %v863
      %896 = vst [vmem:[#allocation2 + $0x6e8] sm:$0xff] %v864
      %897 = vst [vmem:[#allocation2 + $0x730] sm:$0x7f] %v865
      %898 = vst [vmem:[#allocation2 + $0x778] sm:$0xff] %v866
      %899 = vst [vmem:[#allocation2 + $0x7c0] sm:$0x7f] %v867
      %900 = vst [vmem:[#allocation2 + $0x808] sm:$0xff] %v868
      %901 = vst [vmem:[#allocation2 + $0x850] sm:$0x7f] %v869
      %902 = vst [vmem:[#allocation2 + $0x898] sm:$0xff] %v870
      %903 = vst [vmem:[#allocation2 + $0x8e0] sm:$0x7f] %v871
      %s904 = scalar_lea.vmem [#allocation2], 2160
      %905 = vst [vmem:[%s904 + $0x30] sm:$0xff] 0.0
      %906 = vst [vmem:[%s904 + $0x78] sm:$0xff] 0.0
      %907 = vst [vmem:[#allocation2 + $0x30] sm:$0x1] 0.0
      %908 = vst [vmem:[#allocation2 + $0xc0] sm:$0x1] 0.0
      %909 = vst [vmem:[#allocation2 + $0x150] sm:$0x1] 0.0
      %910 = vst [vmem:[#allocation2 + $0x1e0] sm:$0x1] 0.0
      %911 = vst [vmem:[#allocation2 + $0x270] sm:$0x1] 0.0
      %912 = vst [vmem:[#allocation2 + $0x300] sm:$0x1] 0.0
      %913 = vst [vmem:[#allocation2 + $0x390] sm:$0x1] 0.0
      %914 = vst [vmem:[#allocation2 + $0x420] sm:$0x1] 0.0
      %915 = vst [vmem:[#allocation2 + $0x4b0] sm:$0x1] 0.0
      %916 = vst [vmem:[#allocation2 + $0x540] sm:$0x1] 0.0
      %917 = vst [vmem:[#allocation2 + $0x5d0] sm:$0x1] 0.0
      %918 = vst [vmem:[#allocation2 + $0x660] sm:$0x1] 0.0
      %919 = vst [vmem:[#allocation2 + $0x6f0] sm:$0x1] 0.0
      %920 = vst [vmem:[#allocation2 + $0x780] sm:$0x1] 0.0
      %921 = vst [vmem:[#allocation2 + $0x810] sm:$0x1] 0.0
      %922 = vst [vmem:[#allocation2 + $0x8a0] sm:$0x1] 0.0
      %s923 = scalar_lea.vmem %s230, 16
      %v924 = vld [vmem:[%s923] sm:$0xff]
      %v925 = vld [vmem:[%s923 + $0x8] sm:$0x7f]
      %v926 = vld [vmem:[%s923 + $0x10] sm:$0xff]
      %v927 = vld [vmem:[%s923 + $0x18] sm:$0x7f]
      %v928 = vld [vmem:[%s923 + $0x20] sm:$0xff]
      %v929 = vld [vmem:[%s923 + $0x28] sm:$0x7f]
      %v930 = vld [vmem:[%s923 + $0x30] sm:$0xff]
      %v931 = vld [vmem:[%s923 + $0x38] sm:$0x7f]
      %v932 = vld [vmem:[%s923 + $0x40] sm:$0xff]
      %v933 = vld [vmem:[%s923 + $0x48] sm:$0x7f]
      %v934 = vld [vmem:[%s923 + $0x50] sm:$0xff]
      %v935 = vld [vmem:[%s923 + $0x58] sm:$0x7f]
      %v936 = vld [vmem:[%s923 + $0x60] sm:$0xff]
      %v937 = vld [vmem:[%s923 + $0x68] sm:$0x7f]
      %v938 = vld [vmem:[%s923 + $0x70] sm:$0xff]
      %v939 = vld [vmem:[%s923 + $0x78] sm:$0x7f]
      %v940 = vld [vmem:[%s923 + $0x80] sm:$0xff]
      %v941 = vld [vmem:[%s923 + $0x88] sm:$0x7f]
      %v942 = vld [vmem:[%s923 + $0x90] sm:$0xff]
      %v943 = vld [vmem:[%s923 + $0x98] sm:$0x7f]
      %v944 = vld [vmem:[%s923 + $0xa0] sm:$0xff]
      %v945 = vld [vmem:[%s923 + $0xa8] sm:$0x7f]
      %v946 = vld [vmem:[%s923 + $0xb0] sm:$0xff]
      %v947 = vld [vmem:[%s923 + $0xb8] sm:$0x7f]
      %v948 = vld [vmem:[%s923 + $0xc0] sm:$0xff]
      %v949 = vld [vmem:[%s923 + $0xc8] sm:$0x7f]
      %v950 = vld [vmem:[%s923 + $0xd0] sm:$0xff]
      %v951 = vld [vmem:[%s923 + $0xd8] sm:$0x7f]
      %v952 = vld [vmem:[%s923 + $0xe0] sm:$0xff]
      %v953 = vld [vmem:[%s923 + $0xe8] sm:$0x7f]
      %v984 = vrot.slane %v924, 7
      %v985 = vrot.slane %v925, 7
      %v986 = vsel %vm321, %v984, %v985
      %v987 = vrot.slane %v926, 7
      %v988 = vrot.slane %v927, 7
      %v989 = vsel %vm321, %v987, %v988
      %v990 = vrot.slane %v928, 7
      %v991 = vrot.slane %v929, 7
      %v992 = vsel %vm321, %v990, %v991
      %v993 = vrot.slane %v930, 7
      %v994 = vrot.slane %v931, 7
      %v995 = vsel %vm321, %v993, %v994
      %v996 = vrot.slane %v932, 7
      %v997 = vrot.slane %v933, 7
      %v998 = vsel %vm321, %v996, %v997
      %v999 = vrot.slane %v934, 7
      %v1000 = vrot.slane %v935, 7
      %v1001 = vsel %vm321, %v999, %v1000
      %v1002 = vrot.slane %v936, 7
      %v1003 = vrot.slane %v937, 7
      %v1004 = vsel %vm321, %v1002, %v1003
      %v1005 = vrot.slane %v938, 7
      %v1006 = vrot.slane %v939, 7
      %v1007 = vsel %vm321, %v1005, %v1006
      %v1008 = vrot.slane %v940, 7
      %v1009 = vrot.slane %v941, 7
      %v1010 = vsel %vm321, %v1008, %v1009
      %v1011 = vrot.slane %v942, 7
      %v1012 = vrot.slane %v943, 7
      %v1013 = vsel %vm321, %v1011, %v1012
      %v1014 = vrot.slane %v944, 7
      %v1015 = vrot.slane %v945, 7
      %v1016 = vsel %vm321, %v1014, %v1015
      %v1017 = vrot.slane %v946, 7
      %v1018 = vrot.slane %v947, 7
      %v1019 = vsel %vm321, %v1017, %v1018
      %v1020 = vrot.slane %v948, 7
      %v1021 = vrot.slane %v949, 7
      %v1022 = vsel %vm321, %v1020, %v1021
      %v1023 = vrot.slane %v950, 7
      %v1024 = vrot.slane %v951, 7
      %v1025 = vsel %vm321, %v1023, %v1024
      %v1026 = vrot.slane %v952, 7
      %v1027 = vrot.slane %v953, 7
      %v1028 = vsel %vm321, %v1026, %v1027
      %1059 = vst [vmem:[#allocation2 + $0x30] sm:$0xfe] %v984
      %1060 = vst [vmem:[#allocation2 + $0x78] sm:$0xff] %v986
      %1061 = vst [vmem:[#allocation2 + $0xc0] sm:$0xfe] %v987
      %1062 = vst [vmem:[#allocation2 + $0x108] sm:$0xff] %v989
      %1063 = vst [vmem:[#allocation2 + $0x150] sm:$0xfe] %v990
      %1064 = vst [vmem:[#allocation2 + $0x198] sm:$0xff] %v992
      %1065 = vst [vmem:[#allocation2 + $0x1e0] sm:$0xfe] %v993
      %1066 = vst [vmem:[#allocation2 + $0x228] sm:$0xff] %v995
      %1067 = vst [vmem:[#allocation2 + $0x270] sm:$0xfe] %v996
      %1068 = vst [vmem:[#allocation2 + $0x2b8] sm:$0xff] %v998
      %1069 = vst [vmem:[#allocation2 + $0x300] sm:$0xfe] %v999
      %1070 = vst [vmem:[#allocation2 + $0x348] sm:$0xff] %v1001
      %1071 = vst [vmem:[#allocation2 + $0x390] sm:$0xfe] %v1002
      %1072 = vst [vmem:[#allocation2 + $0x3d8] sm:$0xff] %v1004
      %1073 = vst [vmem:[#allocation2 + $0x420] sm:$0xfe] %v1005
      %1074 = vst [vmem:[#allocation2 + $0x468] sm:$0xff] %v1007
      %1075 = vst [vmem:[#allocation2 + $0x4b0] sm:$0xfe] %v1008
      %1076 = vst [vmem:[#allocation2 + $0x4f8] sm:$0xff] %v1010
      %1077 = vst [vmem:[#allocation2 + $0x540] sm:$0xfe] %v1011
      %1078 = vst [vmem:[#allocation2 + $0x588] sm:$0xff] %v1013
      %1079 = vst [vmem:[#allocation2 + $0x5d0] sm:$0xfe] %v1014
      %1080 = vst [vmem:[#allocation2 + $0x618] sm:$0xff] %v1016
      %1081 = vst [vmem:[#allocation2 + $0x660] sm:$0xfe] %v1017
      %1082 = vst [vmem:[#allocation2 + $0x6a8] sm:$0xff] %v1019
      %1083 = vst [vmem:[#allocation2 + $0x6f0] sm:$0xfe] %v1020
      %1084 = vst [vmem:[#allocation2 + $0x738] sm:$0xff] %v1022
      %1085 = vst [vmem:[#allocation2 + $0x780] sm:$0xfe] %v1023
      %1086 = vst [vmem:[#allocation2 + $0x7c8] sm:$0xff] %v1025
      %1087 = vst [vmem:[#allocation2 + $0x810] sm:$0xfe] %v1026
      %1088 = vst [vmem:[#allocation2 + $0x858] sm:$0xff] %v1028
      %1089 = vst [vmem:[%s904 + $0x38] sm:$0xff] 0.0
      %1090 = vst [vmem:[%s904 + $0x80] sm:$0xff] 0.0
      %v1091 = vld [vmem:[%s923] sm:$0xff]
      %v1092 = vld [vmem:[%s923 + $0x8] sm:$0xff]
      %v1093 = vld [vmem:[%s923 + $0x10] sm:$0xff]
      %v1094 = vld [vmem:[%s923 + $0x18] sm:$0xff]
      %v1095 = vld [vmem:[%s923 + $0x20] sm:$0xff]
      %v1096 = vld [vmem:[%s923 + $0x28] sm:$0xff]
      %v1097 = vld [vmem:[%s923 + $0x30] sm:$0xff]
      %v1098 = vld [vmem:[%s923 + $0x38] sm:$0xff]
      %v1099 = vld [vmem:[%s923 + $0x40] sm:$0xff]
      %v1100 = vld [vmem:[%s923 + $0x48] sm:$0xff]
      %v1101 = vld [vmem:[%s923 + $0x50] sm:$0xff]
      %v1102 = vld [vmem:[%s923 + $0x58] sm:$0xff]
      %v1103 = vld [vmem:[%s923 + $0x60] sm:$0xff]
      %v1104 = vld [vmem:[%s923 + $0x68] sm:$0xff]
      %v1105 = vld [vmem:[%s923 + $0x70] sm:$0xff]
      %v1106 = vld [vmem:[%s923 + $0x78] sm:$0xff]
      %v1107 = vld [vmem:[%s923 + $0x80] sm:$0xff]
      %v1108 = vld [vmem:[%s923 + $0x88] sm:$0xff]
      %v1109 = vld [vmem:[%s923 + $0x90] sm:$0xff]
      %v1110 = vld [vmem:[%s923 + $0x98] sm:$0xff]
      %v1111 = vld [vmem:[%s923 + $0xa0] sm:$0xff]
      %v1112 = vld [vmem:[%s923 + $0xa8] sm:$0xff]
      %v1113 = vld [vmem:[%s923 + $0xb0] sm:$0xff]
      %v1114 = vld [vmem:[%s923 + $0xb8] sm:$0xff]
      %v1115 = vld [vmem:[%s923 + $0xc0] sm:$0xff]
      %v1116 = vld [vmem:[%s923 + $0xc8] sm:$0xff]
      %v1117 = vld [vmem:[%s923 + $0xd0] sm:$0xff]
      %v1118 = vld [vmem:[%s923 + $0xd8] sm:$0xff]
      %v1119 = vld [vmem:[%s923 + $0xe0] sm:$0xff]
      %v1120 = vld [vmem:[%s923 + $0xe8] sm:$0xff]
      %1121 = vst [vmem:[#allocation2 + $0x38] sm:$0xff] %v1091
      %1122 = vst [vmem:[#allocation2 + $0x80] sm:$0xff] %v1092
      %1123 = vst [vmem:[#allocation2 + $0xc8] sm:$0xff] %v1093
      %1124 = vst [vmem:[#allocation2 + $0x110] sm:$0xff] %v1094
      %1125 = vst [vmem:[#allocation2 + $0x158] sm:$0xff] %v1095
      %1126 = vst [vmem:[#allocation2 + $0x1a0] sm:$0xff] %v1096
      %1127 = vst [vmem:[#allocation2 + $0x1e8] sm:$0xff] %v1097
      %1128 = vst [vmem:[#allocation2 + $0x230] sm:$0xff] %v1098
      %1129 = vst [vmem:[#allocation2 + $0x278] sm:$0xff] %v1099
      %1130 = vst [vmem:[#allocation2 + $0x2c0] sm:$0xff] %v1100
      %1131 = vst [vmem:[#allocation2 + $0x308] sm:$0xff] %v1101
      %1132 = vst [vmem:[#allocation2 + $0x350] sm:$0xff] %v1102
      %1133 = vst [vmem:[#allocation2 + $0x398] sm:$0xff] %v1103
      %1134 = vst [vmem:[#allocation2 + $0x3e0] sm:$0xff] %v1104
      %1135 = vst [vmem:[#allocation2 + $0x428] sm:$0xff] %v1105
      %1136 = vst [vmem:[#allocation2 + $0x470] sm:$0xff] %v1106
      %1137 = vst [vmem:[#allocation2 + $0x4b8] sm:$0xff] %v1107
      %1138 = vst [vmem:[#allocation2 + $0x500] sm:$0xff] %v1108
      %1139 = vst [vmem:[#allocation2 + $0x548] sm:$0xff] %v1109
      %1140 = vst [vmem:[#allocation2 + $0x590] sm:$0xff] %v1110
      %1141 = vst [vmem:[#allocation2 + $0x5d8] sm:$0xff] %v1111
      %1142 = vst [vmem:[#allocation2 + $0x620] sm:$0xff] %v1112
      %1143 = vst [vmem:[#allocation2 + $0x668] sm:$0xff] %v1113
      %1144 = vst [vmem:[#allocation2 + $0x6b0] sm:$0xff] %v1114
      %1145 = vst [vmem:[#allocation2 + $0x6f8] sm:$0xff] %v1115
      %1146 = vst [vmem:[#allocation2 + $0x740] sm:$0xff] %v1116
      %1147 = vst [vmem:[#allocation2 + $0x788] sm:$0xff] %v1117
      %1148 = vst [vmem:[#allocation2 + $0x7d0] sm:$0xff] %v1118
      %1149 = vst [vmem:[#allocation2 + $0x818] sm:$0xff] %v1119
      %1150 = vst [vmem:[#allocation2 + $0x860] sm:$0xff] %v1120
      %1151 = vst [vmem:[%s904 + $0x40] sm:$0xff] 0.0
      %1152 = vst [vmem:[%s904 + $0x88] sm:$0xff] 0.0
      %1153 = vst [vmem:[#allocation2 + $0x8f] sm:$0x1] 0.0
      %1154 = vst [vmem:[#allocation2 + $0x11f] sm:$0x1] 0.0
      %1155 = vst [vmem:[#allocation2 + $0x1af] sm:$0x1] 0.0
      %1156 = vst [vmem:[#allocation2 + $0x23f] sm:$0x1] 0.0
      %1157 = vst [vmem:[#allocation2 + $0x2cf] sm:$0x1] 0.0
      %1158 = vst [vmem:[#allocation2 + $0x35f] sm:$0x1] 0.0
      %1159 = vst [vmem:[#allocation2 + $0x3ef] sm:$0x1] 0.0
      %1160 = vst [vmem:[#allocation2 + $0x47f] sm:$0x1] 0.0
      %1161 = vst [vmem:[#allocation2 + $0x50f] sm:$0x1] 0.0
      %1162 = vst [vmem:[#allocation2 + $0x59f] sm:$0x1] 0.0
      %1163 = vst [vmem:[#allocation2 + $0x62f] sm:$0x1] 0.0
      %1164 = vst [vmem:[#allocation2 + $0x6bf] sm:$0x1] 0.0
      %1165 = vst [vmem:[#allocation2 + $0x74f] sm:$0x1] 0.0
      %1166 = vst [vmem:[#allocation2 + $0x7df] sm:$0x1] 0.0
      %1167 = vst [vmem:[#allocation2 + $0x86f] sm:$0x1] 0.0
      %1168 = vst [vmem:[#allocation2 + $0x8ff] sm:$0x1] 0.0
      %v1169 = vld [vmem:[%s923 + $0x1] sm:$0xff]
      %v1170 = vld [vmem:[%s923 + $0x9] sm:$0x7f]
      %v1171 = vld [vmem:[%s923 + $0x11] sm:$0xff]
      %v1172 = vld [vmem:[%s923 + $0x19] sm:$0x7f]
      %v1173 = vld [vmem:[%s923 + $0x21] sm:$0xff]
      %v1174 = vld [vmem:[%s923 + $0x29] sm:$0x7f]
      %v1175 = vld [vmem:[%s923 + $0x31] sm:$0xff]
      %v1176 = vld [vmem:[%s923 + $0x39] sm:$0x7f]
      %v1177 = vld [vmem:[%s923 + $0x41] sm:$0xff]
      %v1178 = vld [vmem:[%s923 + $0x49] sm:$0x7f]
      %v1179 = vld [vmem:[%s923 + $0x51] sm:$0xff]
      %v1180 = vld [vmem:[%s923 + $0x59] sm:$0x7f]
      %v1181 = vld [vmem:[%s923 + $0x61] sm:$0xff]
      %v1182 = vld [vmem:[%s923 + $0x69] sm:$0x7f]
      %v1183 = vld [vmem:[%s923 + $0x71] sm:$0xff]
      %v1184 = vld [vmem:[%s923 + $0x79] sm:$0x7f]
      %v1185 = vld [vmem:[%s923 + $0x81] sm:$0xff]
      %v1186 = vld [vmem:[%s923 + $0x89] sm:$0x7f]
      %v1187 = vld [vmem:[%s923 + $0x91] sm:$0xff]
      %v1188 = vld [vmem:[%s923 + $0x99] sm:$0x7f]
      %v1189 = vld [vmem:[%s923 + $0xa1] sm:$0xff]
      %v1190 = vld [vmem:[%s923 + $0xa9] sm:$0x7f]
      %v1191 = vld [vmem:[%s923 + $0xb1] sm:$0xff]
      %v1192 = vld [vmem:[%s923 + $0xb9] sm:$0x7f]
      %v1193 = vld [vmem:[%s923 + $0xc1] sm:$0xff]
      %v1194 = vld [vmem:[%s923 + $0xc9] sm:$0x7f]
      %v1195 = vld [vmem:[%s923 + $0xd1] sm:$0xff]
      %v1196 = vld [vmem:[%s923 + $0xd9] sm:$0x7f]
      %v1197 = vld [vmem:[%s923 + $0xe1] sm:$0xff]
      %v1198 = vld [vmem:[%s923 + $0xe9] sm:$0x7f]
      %1199 = vst [vmem:[#allocation2 + $0x40] sm:$0xff] %v1169
      %1200 = vst [vmem:[#allocation2 + $0x88] sm:$0x7f] %v1170
      %1201 = vst [vmem:[#allocation2 + $0xd0] sm:$0xff] %v1171
      %1202 = vst [vmem:[#allocation2 + $0x118] sm:$0x7f] %v1172
      %1203 = vst [vmem:[#allocation2 + $0x160] sm:$0xff] %v1173
      %1204 = vst [vmem:[#allocation2 + $0x1a8] sm:$0x7f] %v1174
      %1205 = vst [vmem:[#allocation2 + $0x1f0] sm:$0xff] %v1175
      %1206 = vst [vmem:[#allocation2 + $0x238] sm:$0x7f] %v1176
      %1207 = vst [vmem:[#allocation2 + $0x280] sm:$0xff] %v1177
      %1208 = vst [vmem:[#allocation2 + $0x2c8] sm:$0x7f] %v1178
      %1209 = vst [vmem:[#allocation2 + $0x310] sm:$0xff] %v1179
      %1210 = vst [vmem:[#allocation2 + $0x358] sm:$0x7f] %v1180
      %1211 = vst [vmem:[#allocation2 + $0x3a0] sm:$0xff] %v1181
      %1212 = vst [vmem:[#allocation2 + $0x3e8] sm:$0x7f] %v1182
      %1213 = vst [vmem:[#allocation2 + $0x430] sm:$0xff] %v1183
      %1214 = vst [vmem:[#allocation2 + $0x478] sm:$0x7f] %v1184
      %1215 = vst [vmem:[#allocation2 + $0x4c0] sm:$0xff] %v1185
      %1216 = vst [vmem:[#allocation2 + $0x508] sm:$0x7f] %v1186
      %1217 = vst [vmem:[#allocation2 + $0x550] sm:$0xff] %v1187
      %1218 = vst [vmem:[#allocation2 + $0x598] sm:$0x7f] %v1188
      %1219 = vst [vmem:[#allocation2 + $0x5e0] sm:$0xff] %v1189
      %1220 = vst [vmem:[#allocation2 + $0x628] sm:$0x7f] %v1190
      %1221 = vst [vmem:[#allocation2 + $0x670] sm:$0xff] %v1191
      %1222 = vst [vmem:[#allocation2 + $0x6b8] sm:$0x7f] %v1192
      %1223 = vst [vmem:[#allocation2 + $0x700] sm:$0xff] %v1193
      %1224 = vst [vmem:[#allocation2 + $0x748] sm:$0x7f] %v1194
      %1225 = vst [vmem:[#allocation2 + $0x790] sm:$0xff] %v1195
      %1226 = vst [vmem:[#allocation2 + $0x7d8] sm:$0x7f] %v1196
      %1227 = vst [vmem:[#allocation2 + $0x820] sm:$0xff] %v1197
      %1228 = vst [vmem:[#allocation2 + $0x868] sm:$0x7f] %v1198
      %v1229 = vld [vmem:[#allocation2] sm:$0xff]
      %v1230 = vld [vmem:[#allocation2 + $0x8] sm:$0xff]
      %v1231 = vld [vmem:[#allocation2 + $0x10] sm:$0xff]
      %v1232 = vld [vmem:[#allocation2 + $0x18] sm:$0xff]
      %v1233 = vld [vmem:[#allocation2 + $0x20] sm:$0xff]
      %v1234 = vld [vmem:[#allocation2 + $0x28] sm:$0xff]
      %v1235 = vld [vmem:[#allocation2 + $0x30] sm:$0xff]
      %v1236 = vld [vmem:[#allocation2 + $0x38] sm:$0xff]
      %v1237 = vld [vmem:[#allocation2 + $0x40] sm:$0xff]
      %v1238 = vld [vmem:[#allocation2 + $0x48] sm:$0xff]
      %v1239 = vld [vmem:[#allocation2 + $0x50] sm:$0xff]
      %v1240 = vld [vmem:[#allocation2 + $0x58] sm:$0xff]
      %v1241 = vld [vmem:[#allocation2 + $0x60] sm:$0xff]
      %v1242 = vld [vmem:[#allocation2 + $0x68] sm:$0xff]
      %v1243 = vld [vmem:[#allocation2 + $0x70] sm:$0xff]
      %v1244 = vld [vmem:[#allocation2 + $0x78] sm:$0xff]
      %v1245 = vld [vmem:[#allocation2 + $0x80] sm:$0xff]
      %v1246 = vld [vmem:[#allocation2 + $0x88] sm:$0xff]
      %v1247 = vld [vmem:[#allocation2 + $0x90] sm:$0xff]
      %v1248 = vld [vmem:[#allocation2 + $0x98] sm:$0xff]
      %v1249 = vld [vmem:[#allocation2 + $0xa0] sm:$0xff]
      %v1250 = vld [vmem:[#allocation2 + $0xa8] sm:$0xff]
      %v1251 = vld [vmem:[#allocation2 + $0xb0] sm:$0xff]
      %v1252 = vld [vmem:[#allocation2 + $0xb8] sm:$0xff]
      %v1253 = vld [vmem:[#allocation2 + $0xc0] sm:$0xff]
      %v1254 = vld [vmem:[#allocation2 + $0xc8] sm:$0xff]
      %v1255 = vld [vmem:[#allocation2 + $0xd0] sm:$0xff]
      %v1256 = vld [vmem:[#allocation2 + $0xd8] sm:$0xff]
      %v1257 = vld [vmem:[#allocation2 + $0xe0] sm:$0xff]
      %v1258 = vld [vmem:[#allocation2 + $0xe8] sm:$0xff]
      %v1259 = vld [vmem:[#allocation2 + $0xf0] sm:$0xff]
      %v1260 = vld [vmem:[#allocation2 + $0xf8] sm:$0xff]
      %v1261 = vld [vmem:[#allocation2 + $0x100] sm:$0xff]
      %v1262 = vld [vmem:[#allocation2 + $0x108] sm:$0xff]
      %v1263 = vld [vmem:[#allocation2 + $0x110] sm:$0xff]
      %v1264 = vld [vmem:[#allocation2 + $0x118] sm:$0xff]
      %v1265 = vld [vmem:[#allocation2 + $0x120] sm:$0xff]
      %v1266 = vld [vmem:[#allocation2 + $0x128] sm:$0xff]
      %v1267 = vld [vmem:[#allocation2 + $0x130] sm:$0xff]
      %v1268 = vld [vmem:[#allocation2 + $0x138] sm:$0xff]
      %v1269 = vld [vmem:[#allocation2 + $0x140] sm:$0xff]
      %v1270 = vld [vmem:[#allocation2 + $0x148] sm:$0xff]
      %v1271 = vld [vmem:[#allocation2 + $0x150] sm:$0xff]
      %v1272 = vld [vmem:[#allocation2 + $0x158] sm:$0xff]
      %v1273 = vld [vmem:[#allocation2 + $0x160] sm:$0xff]
      %v1274 = vld [vmem:[#allocation2 + $0x168] sm:$0xff]
      %v1275 = vld [vmem:[#allocation2 + $0x170] sm:$0xff]
      %v1276 = vld [vmem:[#allocation2 + $0x178] sm:$0xff]
      %v1277 = vld [vmem:[#allocation2 + $0x180] sm:$0xff]
      %v1278 = vld [vmem:[#allocation2 + $0x188] sm:$0xff]
      %v1279 = vld [vmem:[#allocation2 + $0x190] sm:$0xff]
      %v1280 = vld [vmem:[#allocation2 + $0x198] sm:$0xff]
      %v1281 = vld [vmem:[#allocation2 + $0x1a0] sm:$0xff]
      %v1282 = vld [vmem:[#allocation2 + $0x1a8] sm:$0xff]
      %v1283 = vld [vmem:[#allocation2 + $0x1b0] sm:$0xff]
      %v1284 = vld [vmem:[#allocation2 + $0x1b8] sm:$0xff]
      %v1285 = vld [vmem:[#allocation2 + $0x1c0] sm:$0xff]
      %v1286 = vld [vmem:[#allocation2 + $0x1c8] sm:$0xff]
      %v1287 = vld [vmem:[#allocation2 + $0x1d0] sm:$0xff]
      %v1288 = vld [vmem:[#allocation2 + $0x1d8] sm:$0xff]
      %v1289 = vld [vmem:[#allocation2 + $0x1e0] sm:$0xff]
      %v1290 = vld [vmem:[#allocation2 + $0x1e8] sm:$0xff]
      %v1291 = vld [vmem:[#allocation2 + $0x1f0] sm:$0xff]
      %v1292 = vld [vmem:[#allocation2 + $0x1f8] sm:$0xff]
      %v1293 = vld [vmem:[#allocation2 + $0x200] sm:$0xff]
      %v1294 = vld [vmem:[#allocation2 + $0x208] sm:$0xff]
      %v1295 = vld [vmem:[#allocation2 + $0x210] sm:$0xff]
      %v1296 = vld [vmem:[#allocation2 + $0x218] sm:$0xff]
      %v1297 = vld [vmem:[#allocation2 + $0x220] sm:$0xff]
      %v1298 = vld [vmem:[#allocation2 + $0x228] sm:$0xff]
      %v1299 = vld [vmem:[#allocation2 + $0x230] sm:$0xff]
      %v1300 = vld [vmem:[#allocation2 + $0x238] sm:$0xff]
      %v1301 = vld [vmem:[#allocation2 + $0x240] sm:$0xff]
      %v1302 = vld [vmem:[#allocation2 + $0x248] sm:$0xff]
      %v1303 = vld [vmem:[#allocation2 + $0x250] sm:$0xff]
      %v1304 = vld [vmem:[#allocation2 + $0x258] sm:$0xff]
      %v1305 = vld [vmem:[#allocation2 + $0x260] sm:$0xff]
      %v1306 = vld [vmem:[#allocation2 + $0x268] sm:$0xff]
      %v1307 = vld [vmem:[#allocation2 + $0x270] sm:$0xff]
      %v1308 = vld [vmem:[#allocation2 + $0x278] sm:$0xff]
      %v1309 = vld [vmem:[#allocation2 + $0x280] sm:$0xff]
      %v1310 = vld [vmem:[#allocation2 + $0x288] sm:$0xff]
      %v1311 = vld [vmem:[#allocation2 + $0x290] sm:$0xff]
      %v1312 = vld [vmem:[#allocation2 + $0x298] sm:$0xff]
      %v1313 = vld [vmem:[#allocation2 + $0x2a0] sm:$0xff]
      %v1314 = vld [vmem:[#allocation2 + $0x2a8] sm:$0xff]
      %v1315 = vld [vmem:[#allocation2 + $0x2b0] sm:$0xff]
      %v1316 = vld [vmem:[#allocation2 + $0x2b8] sm:$0xff]
      %v1317 = vld [vmem:[#allocation2 + $0x2c0] sm:$0xff]
      %v1318 = vld [vmem:[#allocation2 + $0x2c8] sm:$0xff]
      %v1319 = vld [vmem:[#allocation2 + $0x2d0] sm:$0xff]
      %v1320 = vld [vmem:[#allocation2 + $0x2d8] sm:$0xff]
      %v1321 = vld [vmem:[#allocation2 + $0x2e0] sm:$0xff]
      %v1322 = vld [vmem:[#allocation2 + $0x2e8] sm:$0xff]
      %v1323 = vld [vmem:[#allocation2 + $0x2f0] sm:$0xff]
      %v1324 = vld [vmem:[#allocation2 + $0x2f8] sm:$0xff]
      %v1325 = vld [vmem:[#allocation2 + $0x300] sm:$0xff]
      %v1326 = vld [vmem:[#allocation2 + $0x308] sm:$0xff]
      %v1327 = vld [vmem:[#allocation2 + $0x310] sm:$0xff]
      %v1328 = vld [vmem:[#allocation2 + $0x318] sm:$0xff]
      %v1329 = vld [vmem:[#allocation2 + $0x320] sm:$0xff]
      %v1330 = vld [vmem:[#allocation2 + $0x328] sm:$0xff]
      %v1331 = vld [vmem:[#allocation2 + $0x330] sm:$0xff]
      %v1332 = vld [vmem:[#allocation2 + $0x338] sm:$0xff]
      %v1333 = vld [vmem:[#allocation2 + $0x340] sm:$0xff]
      %v1334 = vld [vmem:[#allocation2 + $0x348] sm:$0xff]
      %v1335 = vld [vmem:[#allocation2 + $0x350] sm:$0xff]
      %v1336 = vld [vmem:[#allocation2 + $0x358] sm:$0xff]
      %v1337 = vld [vmem:[#allocation2 + $0x360] sm:$0xff]
      %v1338 = vld [vmem:[#allocation2 + $0x368] sm:$0xff]
      %v1339 = vld [vmem:[#allocation2 + $0x370] sm:$0xff]
      %v1340 = vld [vmem:[#allocation2 + $0x378] sm:$0xff]
      %v1341 = vld [vmem:[#allocation2 + $0x380] sm:$0xff]
      %v1342 = vld [vmem:[#allocation2 + $0x388] sm:$0xff]
      %v1343 = vld [vmem:[#allocation2 + $0x390] sm:$0xff]
      %v1344 = vld [vmem:[#allocation2 + $0x398] sm:$0xff]
      %v1345 = vld [vmem:[#allocation2 + $0x3a0] sm:$0xff]
      %v1346 = vld [vmem:[#allocation2 + $0x3a8] sm:$0xff]
      %v1347 = vld [vmem:[#allocation2 + $0x3b0] sm:$0xff]
      %v1348 = vld [vmem:[#allocation2 + $0x3b8] sm:$0xff]
      %v1349 = vld [vmem:[#allocation2 + $0x3c0] sm:$0xff]
      %v1350 = vld [vmem:[#allocation2 + $0x3c8] sm:$0xff]
      %v1351 = vld [vmem:[#allocation2 + $0x3d0] sm:$0xff]
      %v1352 = vld [vmem:[#allocation2 + $0x3d8] sm:$0xff]
      %v1353 = vld [vmem:[#allocation2 + $0x3e0] sm:$0xff]
      %v1354 = vld [vmem:[#allocation2 + $0x3e8] sm:$0xff]
      %v1355 = vld [vmem:[#allocation2 + $0x3f0] sm:$0xff]
      %v1356 = vld [vmem:[#allocation2 + $0x3f8] sm:$0xff]
      %v1357 = vld [vmem:[#allocation2 + $0x400] sm:$0xff]
      %v1358 = vld [vmem:[#allocation2 + $0x408] sm:$0xff]
      %v1359 = vld [vmem:[#allocation2 + $0x410] sm:$0xff]
      %v1360 = vld [vmem:[#allocation2 + $0x418] sm:$0xff]
      %v1361 = vld [vmem:[#allocation2 + $0x420] sm:$0xff]
      %v1362 = vld [vmem:[#allocation2 + $0x428] sm:$0xff]
      %v1363 = vld [vmem:[#allocation2 + $0x430] sm:$0xff]
      %v1364 = vld [vmem:[#allocation2 + $0x438] sm:$0xff]
      %v1365 = vld [vmem:[#allocation2 + $0x440] sm:$0xff]
      %v1366 = vld [vmem:[#allocation2 + $0x448] sm:$0xff]
      %v1367 = vld [vmem:[#allocation2 + $0x450] sm:$0xff]
      %v1368 = vld [vmem:[#allocation2 + $0x458] sm:$0xff]
      %v1369 = vld [vmem:[#allocation2 + $0x460] sm:$0xff]
      %v1370 = vld [vmem:[#allocation2 + $0x468] sm:$0xff]
      %v1371 = vld [vmem:[#allocation2 + $0x470] sm:$0xff]
      %v1372 = vld [vmem:[#allocation2 + $0x478] sm:$0xff]
      %v1373 = vld [vmem:[#allocation2 + $0x480] sm:$0xff]
      %v1374 = vld [vmem:[#allocation2 + $0x488] sm:$0xff]
      %v1375 = vld [vmem:[#allocation2 + $0x490] sm:$0xff]
      %v1376 = vld [vmem:[#allocation2 + $0x498] sm:$0xff]
      %v1377 = vld [vmem:[#allocation2 + $0x4a0] sm:$0xff]
      %v1378 = vld [vmem:[#allocation2 + $0x4a8] sm:$0xff]
      %v1379 = vld [vmem:[#allocation2 + $0x4b0] sm:$0xff]
      %v1380 = vld [vmem:[#allocation2 + $0x4b8] sm:$0xff]
      %v1381 = vld [vmem:[#allocation2 + $0x4c0] sm:$0xff]
      %v1382 = vld [vmem:[#allocation2 + $0x4c8] sm:$0xff]
      %v1383 = vld [vmem:[#allocation2 + $0x4d0] sm:$0xff]
      %v1384 = vld [vmem:[#allocation2 + $0x4d8] sm:$0xff]
      %v1385 = vld [vmem:[#allocation2 + $0x4e0] sm:$0xff]
      %v1386 = vld [vmem:[#allocation2 + $0x4e8] sm:$0xff]
      %v1387 = vld [vmem:[#allocation2 + $0x4f0] sm:$0xff]
      %v1388 = vld [vmem:[#allocation2 + $0x4f8] sm:$0xff]
      %v1389 = vld [vmem:[#allocation2 + $0x500] sm:$0xff]
      %v1390 = vld [vmem:[#allocation2 + $0x508] sm:$0xff]
      %v1391 = vld [vmem:[#allocation2 + $0x510] sm:$0xff]
      %v1392 = vld [vmem:[#allocation2 + $0x518] sm:$0xff]
      %v1393 = vld [vmem:[#allocation2 + $0x520] sm:$0xff]
      %v1394 = vld [vmem:[#allocation2 + $0x528] sm:$0xff]
      %v1395 = vld [vmem:[#allocation2 + $0x530] sm:$0xff]
      %v1396 = vld [vmem:[#allocation2 + $0x538] sm:$0xff]
      %v1397 = vld [vmem:[#allocation2 + $0x540] sm:$0xff]
      %v1398 = vld [vmem:[#allocation2 + $0x548] sm:$0xff]
      %v1399 = vld [vmem:[#allocation2 + $0x550] sm:$0xff]
      %v1400 = vld [vmem:[#allocation2 + $0x558] sm:$0xff]
      %v1401 = vld [vmem:[#allocation2 + $0x560] sm:$0xff]
      %v1402 = vld [vmem:[#allocation2 + $0x568] sm:$0xff]
      %v1403 = vld [vmem:[#allocation2 + $0x570] sm:$0xff]
      %v1404 = vld [vmem:[#allocation2 + $0x578] sm:$0xff]
      %v1405 = vld [vmem:[#allocation2 + $0x580] sm:$0xff]
      %v1406 = vld [vmem:[#allocation2 + $0x588] sm:$0xff]
      %v1407 = vld [vmem:[#allocation2 + $0x590] sm:$0xff]
      %v1408 = vld [vmem:[#allocation2 + $0x598] sm:$0xff]
      %v1409 = vld [vmem:[#allocation2 + $0x5a0] sm:$0xff]
      %v1410 = vld [vmem:[#allocation2 + $0x5a8] sm:$0xff]
      %v1411 = vld [vmem:[#allocation2 + $0x5b0] sm:$0xff]
      %v1412 = vld [vmem:[#allocation2 + $0x5b8] sm:$0xff]
      %v1413 = vld [vmem:[#allocation2 + $0x5c0] sm:$0xff]
      %v1414 = vld [vmem:[#allocation2 + $0x5c8] sm:$0xff]
      %v1415 = vld [vmem:[#allocation2 + $0x5d0] sm:$0xff]
      %v1416 = vld [vmem:[#allocation2 + $0x5d8] sm:$0xff]
      %v1417 = vld [vmem:[#allocation2 + $0x5e0] sm:$0xff]
      %v1418 = vld [vmem:[#allocation2 + $0x5e8] sm:$0xff]
      %v1419 = vld [vmem:[#allocation2 + $0x5f0] sm:$0xff]
      %v1420 = vld [vmem:[#allocation2 + $0x5f8] sm:$0xff]
      %v1421 = vld [vmem:[#allocation2 + $0x600] sm:$0xff]
      %v1422 = vld [vmem:[#allocation2 + $0x608] sm:$0xff]
      %v1423 = vld [vmem:[#allocation2 + $0x610] sm:$0xff]
      %v1424 = vld [vmem:[#allocation2 + $0x618] sm:$0xff]
      %v1425 = vld [vmem:[#allocation2 + $0x620] sm:$0xff]
      %v1426 = vld [vmem:[#allocation2 + $0x628] sm:$0xff]
      %v1427 = vld [vmem:[#allocation2 + $0x630] sm:$0xff]
      %v1428 = vld [vmem:[#allocation2 + $0x638] sm:$0xff]
      %v1429 = vld [vmem:[#allocation2 + $0x640] sm:$0xff]
      %v1430 = vld [vmem:[#allocation2 + $0x648] sm:$0xff]
      %v1431 = vld [vmem:[#allocation2 + $0x650] sm:$0xff]
      %v1432 = vld [vmem:[#allocation2 + $0x658] sm:$0xff]
      %v1433 = vld [vmem:[#allocation2 + $0x660] sm:$0xff]
      %v1434 = vld [vmem:[#allocation2 + $0x668] sm:$0xff]
      %v1435 = vld [vmem:[#allocation2 + $0x670] sm:$0xff]
      %v1436 = vld [vmem:[#allocation2 + $0x678] sm:$0xff]
      %v1437 = vld [vmem:[#allocation2 + $0x680] sm:$0xff]
      %v1438 = vld [vmem:[#allocation2 + $0x688] sm:$0xff]
      %v1439 = vld [vmem:[#allocation2 + $0x690] sm:$0xff]
      %v1440 = vld [vmem:[#allocation2 + $0x698] sm:$0xff]
      %v1441 = vld [vmem:[#allocation2 + $0x6a0] sm:$0xff]
      %v1442 = vld [vmem:[#allocation2 + $0x6a8] sm:$0xff]
      %v1443 = vld [vmem:[#allocation2 + $0x6b0] sm:$0xff]
      %v1444 = vld [vmem:[#allocation2 + $0x6b8] sm:$0xff]
      %v1445 = vld [vmem:[#allocation2 + $0x6c0] sm:$0xff]
      %v1446 = vld [vmem:[#allocation2 + $0x6c8] sm:$0xff]
      %v1447 = vld [vmem:[#allocation2 + $0x6d0] sm:$0xff]
      %v1448 = vld [vmem:[#allocation2 + $0x6d8] sm:$0xff]
      %v1449 = vld [vmem:[#allocation2 + $0x6e0] sm:$0xff]
      %v1450 = vld [vmem:[#allocation2 + $0x6e8] sm:$0xff]
      %v1451 = vld [vmem:[#allocation2 + $0x6f0] sm:$0xff]
      %v1452 = vld [vmem:[#allocation2 + $0x6f8] sm:$0xff]
      %v1453 = vld [vmem:[#allocation2 + $0x700] sm:$0xff]
      %v1454 = vld [vmem:[#allocation2 + $0x708] sm:$0xff]
      %v1455 = vld [vmem:[#allocation2 + $0x710] sm:$0xff]
      %v1456 = vld [vmem:[#allocation2 + $0x718] sm:$0xff]
      %v1457 = vld [vmem:[#allocation2 + $0x720] sm:$0xff]
      %v1458 = vld [vmem:[#allocation2 + $0x728] sm:$0xff]
      %v1459 = vld [vmem:[#allocation2 + $0x730] sm:$0xff]
      %v1460 = vld [vmem:[#allocation2 + $0x738] sm:$0xff]
      %v1461 = vld [vmem:[#allocation2 + $0x740] sm:$0xff]
      %v1462 = vld [vmem:[#allocation2 + $0x748] sm:$0xff]
      %v1463 = vld [vmem:[#allocation2 + $0x750] sm:$0xff]
      %v1464 = vld [vmem:[#allocation2 + $0x758] sm:$0xff]
      %v1465 = vld [vmem:[#allocation2 + $0x760] sm:$0xff]
      %v1466 = vld [vmem:[#allocation2 + $0x768] sm:$0xff]
      %v1467 = vld [vmem:[#allocation2 + $0x770] sm:$0xff]
      %v1468 = vld [vmem:[#allocation2 + $0x778] sm:$0xff]
      %v1469 = vld [vmem:[#allocation2 + $0x780] sm:$0xff]
      %v1470 = vld [vmem:[#allocation2 + $0x788] sm:$0xff]
      %v1471 = vld [vmem:[#allocation2 + $0x790] sm:$0xff]
      %v1472 = vld [vmem:[#allocation2 + $0x798] sm:$0xff]
      %v1473 = vld [vmem:[#allocation2 + $0x7a0] sm:$0xff]
      %v1474 = vld [vmem:[#allocation2 + $0x7a8] sm:$0xff]
      %v1475 = vld [vmem:[#allocation2 + $0x7b0] sm:$0xff]
      %v1476 = vld [vmem:[#allocation2 + $0x7b8] sm:$0xff]
      %v1477 = vld [vmem:[#allocation2 + $0x7c0] sm:$0xff]
      %v1478 = vld [vmem:[#allocation2 + $0x7c8] sm:$0xff]
      %v1479 = vld [vmem:[#allocation2 + $0x7d0] sm:$0xff]
      %v1480 = vld [vmem:[#allocation2 + $0x7d8] sm:$0xff]
      %v1481 = vld [vmem:[#allocation2 + $0x7e0] sm:$0xff]
      %v1482 = vld [vmem:[#allocation2 + $0x7e8] sm:$0xff]
      %v1483 = vld [vmem:[#allocation2 + $0x7f0] sm:$0xff]
      %v1484 = vld [vmem:[#allocation2 + $0x7f8] sm:$0xff]
      %v1485 = vld [vmem:[#allocation2 + $0x800] sm:$0xff]
      %v1486 = vld [vmem:[#allocation2 + $0x808] sm:$0xff]
      %v1487 = vld [vmem:[#allocation2 + $0x810] sm:$0xff]
      %v1488 = vld [vmem:[#allocation2 + $0x818] sm:$0xff]
      %v1489 = vld [vmem:[#allocation2 + $0x820] sm:$0xff]
      %v1490 = vld [vmem:[#allocation2 + $0x828] sm:$0xff]
      %v1491 = vld [vmem:[#allocation2 + $0x830] sm:$0xff]
      %v1492 = vld [vmem:[#allocation2 + $0x838] sm:$0xff]
      %v1493 = vld [vmem:[#allocation2 + $0x840] sm:$0xff]
      %v1494 = vld [vmem:[#allocation2 + $0x848] sm:$0xff]
      %v1495 = vld [vmem:[#allocation2 + $0x850] sm:$0xff]
      %v1496 = vld [vmem:[#allocation2 + $0x858] sm:$0xff]
      %v1497 = vld [vmem:[#allocation2 + $0x860] sm:$0xff]
      %v1498 = vld [vmem:[#allocation2 + $0x868] sm:$0xff]
      %v1499 = vld [vmem:[#allocation2 + $0x870] sm:$0xff]
      %v1500 = vld [vmem:[#allocation2 + $0x878] sm:$0xff]
      %v1501 = vld [vmem:[#allocation2 + $0x880] sm:$0xff]
      %v1502 = vld [vmem:[#allocation2 + $0x888] sm:$0xff]
      %v1503 = vld [vmem:[#allocation2 + $0x890] sm:$0xff]
      %v1504 = vld [vmem:[#allocation2 + $0x898] sm:$0xff]
      %v1505 = vld [vmem:[#allocation2 + $0x8a0] sm:$0xff]
      %v1506 = vld [vmem:[#allocation2 + $0x8a8] sm:$0xff]
      %v1507 = vld [vmem:[#allocation2 + $0x8b0] sm:$0xff]
      %v1508 = vld [vmem:[#allocation2 + $0x8b8] sm:$0xff]
      %v1509 = vld [vmem:[#allocation2 + $0x8c0] sm:$0xff]
      %v1510 = vld [vmem:[#allocation2 + $0x8c8] sm:$0xff]
      %v1511 = vld [vmem:[#allocation2 + $0x8d0] sm:$0xff]
      %v1512 = vld [vmem:[#allocation2 + $0x8d8] sm:$0xff]
      %v1513 = vld [vmem:[#allocation2 + $0x8e0] sm:$0xff]
      %v1514 = vld [vmem:[#allocation2 + $0x8e8] sm:$0xff]
      %v1515 = vld [vmem:[#allocation2 + $0x8f0] sm:$0xff]
      %v1516 = vld [vmem:[#allocation2 + $0x8f8] sm:$0xff]
      %v1517 = vpack.c.bf16 %v1238, %v1229
      %v1518 = vpack.c.bf16 %v1239, %v1230
      %v1519 = vpack.c.bf16 %v1240, %v1231
      %v1520 = vpack.c.bf16 %v1241, %v1232
      %v1521 = vpack.c.bf16 %v1242, %v1233
      %v1522 = vpack.c.bf16 %v1243, %v1234
      %v1523 = vpack.c.bf16 %v1244, %v1235
      %v1524 = vpack.c.bf16 %v1245, %v1236
      %v1525 = vpack.c.bf16 %v1246, %v1237
      %v1526 = vpack.c.bf16 %v1256, %v1247
      %v1527 = vpack.c.bf16 %v1257, %v1248
      %v1528 = vpack.c.bf16 %v1258, %v1249
      %v1529 = vpack.c.bf16 %v1259, %v1250
      %v1530 = vpack.c.bf16 %v1260, %v1251
      %v1531 = vpack.c.bf16 %v1261, %v1252
      %v1532 = vpack.c.bf16 %v1262, %v1253
      %v1533 = vpack.c.bf16 %v1263, %v1254
      %v1534 = vpack.c.bf16 %v1264, %v1255
      %v1535 = vpack.c.bf16 %v1274, %v1265
      %v1536 = vpack.c.bf16 %v1275, %v1266
      %v1537 = vpack.c.bf16 %v1276, %v1267
      %v1538 = vpack.c.bf16 %v1277, %v1268
      %v1539 = vpack.c.bf16 %v1278, %v1269
      %v1540 = vpack.c.bf16 %v1279, %v1270
      %v1541 = vpack.c.bf16 %v1280, %v1271
      %v1542 = vpack.c.bf16 %v1281, %v1272
      %v1543 = vpack.c.bf16 %v1282, %v1273
      %v1544 = vpack.c.bf16 %v1292, %v1283
      %v1545 = vpack.c.bf16 %v1293, %v1284
      %v1546 = vpack.c.bf16 %v1294, %v1285
      %v1547 = vpack.c.bf16 %v1295, %v1286
      %v1548 = vpack.c.bf16 %v1296, %v1287
      %v1549 = vpack.c.bf16 %v1297, %v1288
      %v1550 = vpack.c.bf16 %v1298, %v1289
      %v1551 = vpack.c.bf16 %v1299, %v1290
      %v1552 = vpack.c.bf16 %v1300, %v1291
      %v1553 = vpack.c.bf16 %v1310, %v1301
      %v1554 = vpack.c.bf16 %v1311, %v1302
      %v1555 = vpack.c.bf16 %v1312, %v1303
      %v1556 = vpack.c.bf16 %v1313, %v1304
      %v1557 = vpack.c.bf16 %v1314, %v1305
      %v1558 = vpack.c.bf16 %v1315, %v1306
      %v1559 = vpack.c.bf16 %v1316, %v1307
      %v1560 = vpack.c.bf16 %v1317, %v1308
      %v1561 = vpack.c.bf16 %v1318, %v1309
      %v1562 = vpack.c.bf16 %v1328, %v1319
      %v1563 = vpack.c.bf16 %v1329, %v1320
      %v1564 = vpack.c.bf16 %v1330, %v1321
      %v1565 = vpack.c.bf16 %v1331, %v1322
      %v1566 = vpack.c.bf16 %v1332, %v1323
      %v1567 = vpack.c.bf16 %v1333, %v1324
      %v1568 = vpack.c.bf16 %v1334, %v1325
      %v1569 = vpack.c.bf16 %v1335, %v1326
      %v1570 = vpack.c.bf16 %v1336, %v1327
      %v1571 = vpack.c.bf16 %v1346, %v1337
      %v1572 = vpack.c.bf16 %v1347, %v1338
      %v1573 = vpack.c.bf16 %v1348, %v1339
      %v1574 = vpack.c.bf16 %v1349, %v1340
      %v1575 = vpack.c.bf16 %v1350, %v1341
      %v1576 = vpack.c.bf16 %v1351, %v1342
      %v1577 = vpack.c.bf16 %v1352, %v1343
      %v1578 = vpack.c.bf16 %v1353, %v1344
      %v1579 = vpack.c.bf16 %v1354, %v1345
      %v1580 = vpack.c.bf16 %v1364, %v1355
      %v1581 = vpack.c.bf16 %v1365, %v1356
      %v1582 = vpack.c.bf16 %v1366, %v1357
      %v1583 = vpack.c.bf16 %v1367, %v1358
      %v1584 = vpack.c.bf16 %v1368, %v1359
      %v1585 = vpack.c.bf16 %v1369, %v1360
      %v1586 = vpack.c.bf16 %v1370, %v1361
      %v1587 = vpack.c.bf16 %v1371, %v1362
      %v1588 = vpack.c.bf16 %v1372, %v1363
      %v1589 = vpack.c.bf16 %v1382, %v1373
      %v1590 = vpack.c.bf16 %v1383, %v1374
      %v1591 = vpack.c.bf16 %v1384, %v1375
      %v1592 = vpack.c.bf16 %v1385, %v1376
      %v1593 = vpack.c.bf16 %v1386, %v1377
      %v1594 = vpack.c.bf16 %v1387, %v1378
      %v1595 = vpack.c.bf16 %v1388, %v1379
      %v1596 = vpack.c.bf16 %v1389, %v1380
      %v1597 = vpack.c.bf16 %v1390, %v1381
      %v1598 = vpack.c.bf16 %v1400, %v1391
      %v1599 = vpack.c.bf16 %v1401, %v1392
      %v1600 = vpack.c.bf16 %v1402, %v1393
      %v1601 = vpack.c.bf16 %v1403, %v1394
      %v1602 = vpack.c.bf16 %v1404, %v1395
      %v1603 = vpack.c.bf16 %v1405, %v1396
      %v1604 = vpack.c.bf16 %v1406, %v1397
      %v1605 = vpack.c.bf16 %v1407, %v1398
      %v1606 = vpack.c.bf16 %v1408, %v1399
      %v1607 = vpack.c.bf16 %v1418, %v1409
      %v1608 = vpack.c.bf16 %v1419, %v1410
      %v1609 = vpack.c.bf16 %v1420, %v1411
      %v1610 = vpack.c.bf16 %v1421, %v1412
      %v1611 = vpack.c.bf16 %v1422, %v1413
      %v1612 = vpack.c.bf16 %v1423, %v1414
      %v1613 = vpack.c.bf16 %v1424, %v1415
      %v1614 = vpack.c.bf16 %v1425, %v1416
      %v1615 = vpack.c.bf16 %v1426, %v1417
      %v1616 = vpack.c.bf16 %v1436, %v1427
      %v1617 = vpack.c.bf16 %v1437, %v1428
      %v1618 = vpack.c.bf16 %v1438, %v1429
      %v1619 = vpack.c.bf16 %v1439, %v1430
      %v1620 = vpack.c.bf16 %v1440, %v1431
      %v1621 = vpack.c.bf16 %v1441, %v1432
      %v1622 = vpack.c.bf16 %v1442, %v1433
      %v1623 = vpack.c.bf16 %v1443, %v1434
      %v1624 = vpack.c.bf16 %v1444, %v1435
      %v1625 = vpack.c.bf16 %v1454, %v1445
      %v1626 = vpack.c.bf16 %v1455, %v1446
      %v1627 = vpack.c.bf16 %v1456, %v1447
      %v1628 = vpack.c.bf16 %v1457, %v1448
      %v1629 = vpack.c.bf16 %v1458, %v1449
      %v1630 = vpack.c.bf16 %v1459, %v1450
      %v1631 = vpack.c.bf16 %v1460, %v1451
      %v1632 = vpack.c.bf16 %v1461, %v1452
      %v1633 = vpack.c.bf16 %v1462, %v1453
      %v1634 = vpack.c.bf16 %v1472, %v1463
      %v1635 = vpack.c.bf16 %v1473, %v1464
      %v1636 = vpack.c.bf16 %v1474, %v1465
      %v1637 = vpack.c.bf16 %v1475, %v1466
      %v1638 = vpack.c.bf16 %v1476, %v1467
      %v1639 = vpack.c.bf16 %v1477, %v1468
      %v1640 = vpack.c.bf16 %v1478, %v1469
      %v1641 = vpack.c.bf16 %v1479, %v1470
      %v1642 = vpack.c.bf16 %v1480, %v1471
      %v1643 = vpack.c.bf16 %v1490, %v1481
      %v1644 = vpack.c.bf16 %v1491, %v1482
      %v1645 = vpack.c.bf16 %v1492, %v1483
      %v1646 = vpack.c.bf16 %v1493, %v1484
      %v1647 = vpack.c.bf16 %v1494, %v1485
      %v1648 = vpack.c.bf16 %v1495, %v1486
      %v1649 = vpack.c.bf16 %v1496, %v1487
      %v1650 = vpack.c.bf16 %v1497, %v1488
      %v1651 = vpack.c.bf16 %v1498, %v1489
      %v1652 = vpack.c.bf16 %v1508, %v1499
      %v1653 = vpack.c.bf16 %v1509, %v1500
      %v1654 = vpack.c.bf16 %v1510, %v1501
      %v1655 = vpack.c.bf16 %v1511, %v1502
      %v1656 = vpack.c.bf16 %v1512, %v1503
      %v1657 = vpack.c.bf16 %v1513, %v1504
      %v1658 = vpack.c.bf16 %v1514, %v1505
      %v1659 = vpack.c.bf16 %v1515, %v1506
      %v1660 = vpack.c.bf16 %v1516, %v1507
      %v1661 = vld [vmem:[%s1] sm:$0xf]
      %v1662 = vld [vmem:[%s1 + $0x4] sm:$0xf]
      %v1663 = vld [vmem:[%s1 + $0x8] sm:$0xf]
      %v1664 = vld [vmem:[%s1 + $0xc] sm:$0xf]
      %v1665 = vld [vmem:[%s1 + $0x10] sm:$0xf]
      %v1666 = vld [vmem:[%s1 + $0x14] sm:$0xf]
      %v1667 = vld [vmem:[%s1 + $0x18] sm:$0xf]
      %v1668 = vld [vmem:[%s1 + $0x1c] sm:$0xf]
      %v1669 = vld [vmem:[%s1 + $0x20] sm:$0xf]
      %v1670 = vld [vmem:[%s1 + $0x24] sm:$0xf]
      %v1671 = vld [vmem:[%s1 + $0x28] sm:$0xf]
      %v1672 = vld [vmem:[%s1 + $0x2c] sm:$0xf]
      %v1673 = vld [vmem:[%s1 + $0x30] sm:$0xf]
      %v1674 = vld [vmem:[%s1 + $0x34] sm:$0xf]
      %v1675 = vld [vmem:[%s1 + $0x38] sm:$0xf]
      %v1676 = vld [vmem:[%s1 + $0x3c] sm:$0xf]
      %v1677 = vld [vmem:[%s1 + $0x40] sm:$0xf]
      %v1678 = vld [vmem:[%s1 + $0x44] sm:$0xf]
      %v1679 = vld [vmem:[%s1 + $0x48] sm:$0xf]
      %v1680 = vld [vmem:[%s1 + $0x4c] sm:$0xf]
      %v1681 = vld [vmem:[%s1 + $0x50] sm:$0xf]
      %v1682 = vld [vmem:[%s1 + $0x54] sm:$0xf]
      %v1683 = vld [vmem:[%s1 + $0x58] sm:$0xf]
      %v1684 = vld [vmem:[%s1 + $0x5c] sm:$0xf]
      %v1685 = vld [vmem:[%s1 + $0x60] sm:$0xf]
      %v1686 = vld [vmem:[%s1 + $0x64] sm:$0xf]
      %v1687 = vld [vmem:[%s1 + $0x68] sm:$0xf]
      %v1688 = vld [vmem:[%s1 + $0x6c] sm:$0xf]
      %v1689 = vld [vmem:[%s1 + $0x70] sm:$0xf]
      %v1690 = vld [vmem:[%s1 + $0x74] sm:$0xf]
      %v1691 = vld [vmem:[%s1 + $0x78] sm:$0xf]
      %v1692 = vld [vmem:[%s1 + $0x7c] sm:$0xf]
      %v1693 = vld [vmem:[%s1 + $0x80] sm:$0xf]
      %v1694 = vld [vmem:[%s1 + $0x84] sm:$0xf]
      %v1695 = vld [vmem:[%s1 + $0x88] sm:$0xf]
      %v1696 = vld [vmem:[%s1 + $0x8c] sm:$0xf]
      %v1697 = vld [vmem:[%s1 + $0x90] sm:$0xf]
      %v1698 = vld [vmem:[%s1 + $0x94] sm:$0xf]
      %v1699 = vld [vmem:[%s1 + $0x98] sm:$0xf]
      %v1700 = vld [vmem:[%s1 + $0x9c] sm:$0xf]
      %v1701 = vld [vmem:[%s1 + $0xa0] sm:$0xf]
      %v1702 = vld [vmem:[%s1 + $0xa4] sm:$0xf]
      %v1703 = vld [vmem:[%s1 + $0xa8] sm:$0xf]
      %v1704 = vld [vmem:[%s1 + $0xac] sm:$0xf]
      %v1705 = vld [vmem:[%s1 + $0xb0] sm:$0xf]
      %v1706 = vld [vmem:[%s1 + $0xb4] sm:$0xf]
      %v1707 = vld [vmem:[%s1 + $0xb8] sm:$0xf]
      %v1708 = vld [vmem:[%s1 + $0xbc] sm:$0xf]
      %v1709 = vld [vmem:[%s1 + $0xc0] sm:$0xf]
      %v1710 = vld [vmem:[%s1 + $0xc4] sm:$0xf]
      %v1711 = vld [vmem:[%s1 + $0xc8] sm:$0xf]
      %v1712 = vld [vmem:[%s1 + $0xcc] sm:$0xf]
      %v1713 = vld [vmem:[%s1 + $0xd0] sm:$0xf]
      %v1714 = vld [vmem:[%s1 + $0xd4] sm:$0xf]
      %v1715 = vld [vmem:[%s1 + $0xd8] sm:$0xf]
      %v1716 = vld [vmem:[%s1 + $0xdc] sm:$0xf]
      %v1717 = vld [vmem:[%s1 + $0xe0] sm:$0xf]
      %v1718 = vld [vmem:[%s1 + $0xe4] sm:$0xf]
      %v1719 = vld [vmem:[%s1 + $0xe8] sm:$0xf]
      %v1720 = vld [vmem:[%s1 + $0xec] sm:$0xf]
      %v1721 = vld [vmem:[%s1 + $0xf0] sm:$0xf]
      %v1722 = vld [vmem:[%s1 + $0xf4] sm:$0xf]
      %v1723 = vld [vmem:[%s1 + $0xf8] sm:$0xf]
      %v1724 = vld [vmem:[%s1 + $0xfc] sm:$0xf]
      %v1725 = vld [vmem:[%s1 + $0x100] sm:$0xf]
      %v1726 = vld [vmem:[%s1 + $0x104] sm:$0xf]
      %v1727 = vld [vmem:[%s1 + $0x108] sm:$0xf]
      %v1728 = vld [vmem:[%s1 + $0x10c] sm:$0xf]
      %v1729 = vld [vmem:[%s1 + $0x110] sm:$0xf]
      %v1730 = vld [vmem:[%s1 + $0x114] sm:$0xf]
      %v1731 = vld [vmem:[%s1 + $0x118] sm:$0xf]
      %v1732 = vld [vmem:[%s1 + $0x11c] sm:$0xf]
      %v1733 = vld [vmem:[%s1 + $0x120] sm:$0xf]
      %v1734 = vld [vmem:[%s1 + $0x124] sm:$0xf]
      %v1735 = vld [vmem:[%s1 + $0x128] sm:$0xf]
      %v1736 = vld [vmem:[%s1 + $0x12c] sm:$0xf]
      %v1737 = vld [vmem:[%s1 + $0x130] sm:$0xf]
      %v1738 = vld [vmem:[%s1 + $0x134] sm:$0xf]
      %v1739 = vld [vmem:[%s1 + $0x138] sm:$0xf]
      %v1740 = vld [vmem:[%s1 + $0x13c] sm:$0xf]
      %v1741 = vld [vmem:[%s1 + $0x140] sm:$0xf]
      %v1742 = vld [vmem:[%s1 + $0x144] sm:$0xf]
      %v1743 = vld [vmem:[%s1 + $0x148] sm:$0xf]
      %v1744 = vld [vmem:[%s1 + $0x14c] sm:$0xf]
      %v1745 = vld [vmem:[%s1 + $0x150] sm:$0xf]
      %v1746 = vld [vmem:[%s1 + $0x154] sm:$0xf]
      %v1747 = vld [vmem:[%s1 + $0x158] sm:$0xf]
      %v1748 = vld [vmem:[%s1 + $0x15c] sm:$0xf]
      %v1749 = vld [vmem:[%s1 + $0x160] sm:$0xf]
      %v1750 = vld [vmem:[%s1 + $0x164] sm:$0xf]
      %v1751 = vld [vmem:[%s1 + $0x168] sm:$0xf]
      %v1752 = vld [vmem:[%s1 + $0x16c] sm:$0xf]
      %v1753 = vld [vmem:[%s1 + $0x170] sm:$0xf]
      %v1754 = vld [vmem:[%s1 + $0x174] sm:$0xf]
      %v1755 = vld [vmem:[%s1 + $0x178] sm:$0xf]
      %v1756 = vld [vmem:[%s1 + $0x17c] sm:$0xf]
      %v1757 = vld [vmem:[%s1 + $0x180] sm:$0xf]
      %v1758 = vld [vmem:[%s1 + $0x184] sm:$0xf]
      %v1759 = vld [vmem:[%s1 + $0x188] sm:$0xf]
      %v1760 = vld [vmem:[%s1 + $0x18c] sm:$0xf]
      %v1761 = vld [vmem:[%s1 + $0x190] sm:$0xf]
      %v1762 = vld [vmem:[%s1 + $0x194] sm:$0xf]
      %v1763 = vld [vmem:[%s1 + $0x198] sm:$0xf]
      %v1764 = vld [vmem:[%s1 + $0x19c] sm:$0xf]
      %v1765 = vld [vmem:[%s1 + $0x1a0] sm:$0xf]
      %v1766 = vld [vmem:[%s1 + $0x1a4] sm:$0xf]
      %v1767 = vld [vmem:[%s1 + $0x1a8] sm:$0xf]
      %v1768 = vld [vmem:[%s1 + $0x1ac] sm:$0xf]
      %v1769 = vld [vmem:[%s1 + $0x1b0] sm:$0xf]
      %v1770 = vld [vmem:[%s1 + $0x1b4] sm:$0xf]
      %v1771 = vld [vmem:[%s1 + $0x1b8] sm:$0xf]
      %v1772 = vld [vmem:[%s1 + $0x1bc] sm:$0xf]
      %v1773 = vld [vmem:[%s1 + $0x1c0] sm:$0xf]
      %v1774 = vld [vmem:[%s1 + $0x1c4] sm:$0xf]
      %v1775 = vld [vmem:[%s1 + $0x1c8] sm:$0xf]
      %v1776 = vld [vmem:[%s1 + $0x1cc] sm:$0xf]
      %v1777 = vld [vmem:[%s1 + $0x1d0] sm:$0xf]
      %v1778 = vld [vmem:[%s1 + $0x1d4] sm:$0xf]
      %v1779 = vld [vmem:[%s1 + $0x1d8] sm:$0xf]
      %v1780 = vld [vmem:[%s1 + $0x1dc] sm:$0xf]
      %v1781 = vld [vmem:[%s1 + $0x1e0] sm:$0xf]
      %v1782 = vld [vmem:[%s1 + $0x1e4] sm:$0xf]
      %v1783 = vld [vmem:[%s1 + $0x1e8] sm:$0xf]
      %v1784 = vld [vmem:[%s1 + $0x1ec] sm:$0xf]
      %v1785 = vld [vmem:[%s1 + $0x1f0] sm:$0xf]
      %v1786 = vld [vmem:[%s1 + $0x1f4] sm:$0xf]
      %v1787 = vld [vmem:[%s1 + $0x1f8] sm:$0xf]
      %v1788 = vld [vmem:[%s1 + $0x1fc] sm:$0xf]
      %v1789 = vld [vmem:[%s1 + $0x200] sm:$0xf]
      %v1790 = vld [vmem:[%s1 + $0x204] sm:$0xf]
      %v1791 = vld [vmem:[%s1 + $0x208] sm:$0xf]
      %v1792 = vld [vmem:[%s1 + $0x20c] sm:$0xf]
      %v1793 = vld [vmem:[%s1 + $0x210] sm:$0xf]
      %v1794 = vld [vmem:[%s1 + $0x214] sm:$0xf]
      %v1795 = vld [vmem:[%s1 + $0x218] sm:$0xf]
      %v1796 = vld [vmem:[%s1 + $0x21c] sm:$0xf]
      %v1797 = vld [vmem:[%s1 + $0x220] sm:$0xf]
      %v1798 = vld [vmem:[%s1 + $0x224] sm:$0xf]
      %v1799 = vld [vmem:[%s1 + $0x228] sm:$0xf]
      %v1800 = vld [vmem:[%s1 + $0x22c] sm:$0xf]
      %v1801 = vld [vmem:[%s1 + $0x230] sm:$0xf]
      %v1802 = vld [vmem:[%s1 + $0x234] sm:$0xf]
      %v1803 = vld [vmem:[%s1 + $0x238] sm:$0xf]
      %v1804 = vld [vmem:[%s1 + $0x23c] sm:$0xf]
      %v1805 = vld [vmem:[%s2] sm:$0x1]
      %v1807 = vlaneseq
      %v1808 = vshrl.u32 %v1807, 7
      %v1809 = vsub.s32 0, %v1808
      %v1810 = vrot.slane %v1805, %v1809
      %v1956 = vunpack.c.l.b16 %v1661
      %v1957 = vunpack.c.l.b16 %v1662
      %v1958 = vunpack.c.l.b16 %v1663
      %v1959 = vunpack.c.l.b16 %v1664
      %v1960 = vunpack.c.l.b16 %v1665
      %v1961 = vunpack.c.l.b16 %v1666
      %v1962 = vunpack.c.l.b16 %v1667
      %v1963 = vunpack.c.l.b16 %v1668
      %v1964 = vunpack.c.l.b16 %v1669
      %v1965 = vunpack.c.l.b16 %v1670
      %v1966 = vunpack.c.l.b16 %v1671
      %v1967 = vunpack.c.l.b16 %v1672
      %v1968 = vunpack.c.l.b16 %v1673
      %v1969 = vunpack.c.l.b16 %v1674
      %v1970 = vunpack.c.l.b16 %v1675
      %v1971 = vunpack.c.l.b16 %v1676
      %v1972 = vunpack.c.l.b16 %v1677
      %v1973 = vunpack.c.l.b16 %v1678
      %v1974 = vunpack.c.l.b16 %v1679
      %v1975 = vunpack.c.l.b16 %v1680
      %v1976 = vunpack.c.l.b16 %v1681
      %v1977 = vunpack.c.l.b16 %v1682
      %v1978 = vunpack.c.l.b16 %v1683
      %v1979 = vunpack.c.l.b16 %v1684
      %v1980 = vunpack.c.l.b16 %v1685
      %v1981 = vunpack.c.l.b16 %v1686
      %v1982 = vunpack.c.l.b16 %v1687
      %v1983 = vunpack.c.l.b16 %v1688
      %v1984 = vunpack.c.l.b16 %v1689
      %v1985 = vunpack.c.l.b16 %v1690
      %v1986 = vunpack.c.l.b16 %v1691
      %v1987 = vunpack.c.l.b16 %v1692
      %v1988 = vunpack.c.l.b16 %v1693
      %v1989 = vunpack.c.l.b16 %v1694
      %v1990 = vunpack.c.l.b16 %v1695
      %v1991 = vunpack.c.l.b16 %v1696
      %v1992 = vunpack.c.l.b16 %v1697
      %v1993 = vunpack.c.l.b16 %v1698
      %v1994 = vunpack.c.l.b16 %v1699
      %v1995 = vunpack.c.l.b16 %v1700
      %v1996 = vunpack.c.l.b16 %v1701
      %v1997 = vunpack.c.l.b16 %v1702
      %v1998 = vunpack.c.l.b16 %v1703
      %v1999 = vunpack.c.l.b16 %v1704
      %v2000 = vunpack.c.l.b16 %v1705
      %v2001 = vunpack.c.l.b16 %v1706
      %v2002 = vunpack.c.l.b16 %v1707
      %v2003 = vunpack.c.l.b16 %v1708
      %v2004 = vunpack.c.l.b16 %v1709
      %v2005 = vunpack.c.l.b16 %v1710
      %v2006 = vunpack.c.l.b16 %v1711
      %v2007 = vunpack.c.l.b16 %v1712
      %v2008 = vunpack.c.l.b16 %v1713
      %v2009 = vunpack.c.l.b16 %v1714
      %v2010 = vunpack.c.l.b16 %v1715
      %v2011 = vunpack.c.l.b16 %v1716
      %v2012 = vunpack.c.l.b16 %v1717
      %v2013 = vunpack.c.l.b16 %v1718
      %v2014 = vunpack.c.l.b16 %v1719
      %v2015 = vunpack.c.l.b16 %v1720
      %v2016 = vunpack.c.l.b16 %v1721
      %v2017 = vunpack.c.l.b16 %v1722
      %v2018 = vunpack.c.l.b16 %v1723
      %v2019 = vunpack.c.l.b16 %v1724
      %v2020 = vunpack.c.l.b16 %v1725
      %v2021 = vunpack.c.l.b16 %v1726
      %v2022 = vunpack.c.l.b16 %v1727
      %v2023 = vunpack.c.l.b16 %v1728
      %v2024 = vunpack.c.l.b16 %v1729
      %v2025 = vunpack.c.l.b16 %v1730
      %v2026 = vunpack.c.l.b16 %v1731
      %v2027 = vunpack.c.l.b16 %v1732
      %v2028 = vunpack.c.l.b16 %v1733
      %v2029 = vunpack.c.l.b16 %v1734
      %v2030 = vunpack.c.l.b16 %v1735
      %v2031 = vunpack.c.l.b16 %v1736
      %v2032 = vunpack.c.l.b16 %v1737
      %v2033 = vunpack.c.l.b16 %v1738
      %v2034 = vunpack.c.l.b16 %v1739
      %v2035 = vunpack.c.l.b16 %v1740
      %v2036 = vunpack.c.l.b16 %v1741
      %v2037 = vunpack.c.l.b16 %v1742
      %v2038 = vunpack.c.l.b16 %v1743
      %v2039 = vunpack.c.l.b16 %v1744
      %v2040 = vunpack.c.l.b16 %v1745
      %v2041 = vunpack.c.l.b16 %v1746
      %v2042 = vunpack.c.l.b16 %v1747
      %v2043 = vunpack.c.l.b16 %v1748
      %v2044 = vunpack.c.l.b16 %v1749
      %v2045 = vunpack.c.l.b16 %v1750
      %v2046 = vunpack.c.l.b16 %v1751
      %v2047 = vunpack.c.l.b16 %v1752
      %v2048 = vunpack.c.l.b16 %v1753
      %v2049 = vunpack.c.l.b16 %v1754
      %v2050 = vunpack.c.l.b16 %v1755
      %v2051 = vunpack.c.l.b16 %v1756
      %v2052 = vunpack.c.l.b16 %v1757
      %v2053 = vunpack.c.l.b16 %v1758
      %v2054 = vunpack.c.l.b16 %v1759
      %v2055 = vunpack.c.l.b16 %v1760
      %v2056 = vunpack.c.l.b16 %v1761
      %v2057 = vunpack.c.l.b16 %v1762
      %v2058 = vunpack.c.l.b16 %v1763
      %v2059 = vunpack.c.l.b16 %v1764
      %v2060 = vunpack.c.l.b16 %v1765
      %v2061 = vunpack.c.l.b16 %v1766
      %v2062 = vunpack.c.l.b16 %v1767
      %v2063 = vunpack.c.l.b16 %v1768
      %v2064 = vunpack.c.l.b16 %v1769
      %v2065 = vunpack.c.l.b16 %v1770
      %v2066 = vunpack.c.l.b16 %v1771
      %v2067 = vunpack.c.l.b16 %v1772
      %v2068 = vunpack.c.l.b16 %v1773
      %v2069 = vunpack.c.l.b16 %v1774
      %v2070 = vunpack.c.l.b16 %v1775
      %v2071 = vunpack.c.l.b16 %v1776
      %v2072 = vunpack.c.l.b16 %v1777
      %v2073 = vunpack.c.l.b16 %v1778
      %v2074 = vunpack.c.l.b16 %v1779
      %v2075 = vunpack.c.l.b16 %v1780
      %v2076 = vunpack.c.l.b16 %v1781
      %v2077 = vunpack.c.l.b16 %v1782
      %v2078 = vunpack.c.l.b16 %v1783
      %v2079 = vunpack.c.l.b16 %v1784
      %v2080 = vunpack.c.l.b16 %v1785
      %v2081 = vunpack.c.l.b16 %v1786
      %v2082 = vunpack.c.l.b16 %v1787
      %v2083 = vunpack.c.l.b16 %v1788
      %v2084 = vunpack.c.l.b16 %v1789
      %v2085 = vunpack.c.l.b16 %v1790
      %v2086 = vunpack.c.l.b16 %v1791
      %v2087 = vunpack.c.l.b16 %v1792
      %v2088 = vunpack.c.l.b16 %v1793
      %v2089 = vunpack.c.l.b16 %v1794
      %v2090 = vunpack.c.l.b16 %v1795
      %v2091 = vunpack.c.l.b16 %v1796
      %v2092 = vunpack.c.l.b16 %v1797
      %v2093 = vunpack.c.l.b16 %v1798
      %v2094 = vunpack.c.l.b16 %v1799
      %v2095 = vunpack.c.l.b16 %v1800
      %v2096 = vunpack.c.l.b16 %v1801
      %v2097 = vunpack.c.l.b16 %v1802
      %v2098 = vunpack.c.l.b16 %v1803
      %v2099 = vunpack.c.l.b16 %v1804
      %v2100 = vpack.c.b16 %v1957, %v1956
      %v2101 = vpack.c.b16 %v1959, %v1958
      %v2102 = vpack.c.b16 %v1961, %v1960
      %v2103 = vpack.c.b16 %v1963, %v1962
      %v2104 = vpack.c.b16 %v1965, %v1964
      %v2105 = vpack.c.b16 %v1967, %v1966
      %v2106 = vpack.c.b16 %v1969, %v1968
      %v2107 = vpack.c.b16 %v1971, %v1970
      %v2108 = vpack.c.b16 %v1973, %v1972
      %v2109 = vpack.c.b16 %v1975, %v1974
      %v2110 = vpack.c.b16 %v1977, %v1976
      %v2111 = vpack.c.b16 %v1979, %v1978
      %v2112 = vpack.c.b16 %v1981, %v1980
      %v2113 = vpack.c.b16 %v1983, %v1982
      %v2114 = vpack.c.b16 %v1985, %v1984
      %v2115 = vpack.c.b16 %v1987, %v1986
      %v2116 = vpack.c.b16 %v1989, %v1988
      %v2117 = vpack.c.b16 %v1991, %v1990
      %v2118 = vpack.c.b16 %v1993, %v1992
      %v2119 = vpack.c.b16 %v1995, %v1994
      %v2120 = vpack.c.b16 %v1997, %v1996
      %v2121 = vpack.c.b16 %v1999, %v1998
      %v2122 = vpack.c.b16 %v2001, %v2000
      %v2123 = vpack.c.b16 %v2003, %v2002
      %v2124 = vpack.c.b16 %v2005, %v2004
      %v2125 = vpack.c.b16 %v2007, %v2006
      %v2126 = vpack.c.b16 %v2009, %v2008
      %v2127 = vpack.c.b16 %v2011, %v2010
      %v2128 = vpack.c.b16 %v2013, %v2012
      %v2129 = vpack.c.b16 %v2015, %v2014
      %v2130 = vpack.c.b16 %v2017, %v2016
      %v2131 = vpack.c.b16 %v2019, %v2018
      %v2132 = vpack.c.b16 %v2021, %v2020
      %v2133 = vpack.c.b16 %v2023, %v2022
      %v2134 = vpack.c.b16 %v2025, %v2024
      %v2135 = vpack.c.b16 %v2027, %v2026
      %v2136 = vpack.c.b16 %v2029, %v2028
      %v2137 = vpack.c.b16 %v2031, %v2030
      %v2138 = vpack.c.b16 %v2033, %v2032
      %v2139 = vpack.c.b16 %v2035, %v2034
      %v2140 = vpack.c.b16 %v2037, %v2036
      %v2141 = vpack.c.b16 %v2039, %v2038
      %v2142 = vpack.c.b16 %v2041, %v2040
      %v2143 = vpack.c.b16 %v2043, %v2042
      %v2144 = vpack.c.b16 %v2045, %v2044
      %v2145 = vpack.c.b16 %v2047, %v2046
      %v2146 = vpack.c.b16 %v2049, %v2048
      %v2147 = vpack.c.b16 %v2051, %v2050
      %v2148 = vpack.c.b16 %v2053, %v2052
      %v2149 = vpack.c.b16 %v2055, %v2054
      %v2150 = vpack.c.b16 %v2057, %v2056
      %v2151 = vpack.c.b16 %v2059, %v2058
      %v2152 = vpack.c.b16 %v2061, %v2060
      %v2153 = vpack.c.b16 %v2063, %v2062
      %v2154 = vpack.c.b16 %v2065, %v2064
      %v2155 = vpack.c.b16 %v2067, %v2066
      %v2156 = vpack.c.b16 %v2069, %v2068
      %v2157 = vpack.c.b16 %v2071, %v2070
      %v2158 = vpack.c.b16 %v2073, %v2072
      %v2159 = vpack.c.b16 %v2075, %v2074
      %v2160 = vpack.c.b16 %v2077, %v2076
      %v2161 = vpack.c.b16 %v2079, %v2078
      %v2162 = vpack.c.b16 %v2081, %v2080
      %v2163 = vpack.c.b16 %v2083, %v2082
      %v2164 = vpack.c.b16 %v2085, %v2084
      %v2165 = vpack.c.b16 %v2087, %v2086
      %v2166 = vpack.c.b16 %v2089, %v2088
      %v2167 = vpack.c.b16 %v2091, %v2090
      %v2168 = vpack.c.b16 %v2093, %v2092
      %v2169 = vpack.c.b16 %v2095, %v2094
      %v2170 = vpack.c.b16 %v2097, %v2096
      %v2171 = vpack.c.b16 %v2099, %v2098
      %2244 = vmatprep.subr.bf16.mxu0 0
      %2245 = vmatpush1.bf16.msra.mxu0 %v2107
      %2246 = vmatprep.subr.bf16.mxu0 0
      %2247 = vmatpush1.bf16.msra.mxu0 %v2106
      %2248 = vmatprep.subr.bf16.mxu0 0
      %2249 = vmatpush1.bf16.msra.mxu0 %v2105
      %2250 = vmatprep.subr.bf16.mxu0 0
      %2251 = vmatpush1.bf16.msra.mxu0 %v2104
      %2252 = vmatprep.subr.bf16.mxu0 0
      %2253 = vmatpush1.bf16.msra.mxu0 %v2103
      %2254 = vmatprep.subr.bf16.mxu0 0
      %2255 = vmatpush1.bf16.msra.mxu0 %v2102
      %2256 = vmatprep.subr.bf16.mxu0 0
      %2257 = vmatpush1.bf16.msra.mxu0 %v2101
      %2258 = vmatprep.subr.bf16.mxu0 0
      %2259 = vmatpush1.bf16.msra.mxu0 %v2100
      %2260 = vmatprep.subr.bf16.mxu0 0
      %2261 = vmatpush2.bf16.msra.mxu0 %v2115
      %2262 = vmatprep.subr.bf16.mxu0 0
      %2263 = vmatpush2.bf16.msra.mxu0 %v2114
      %2264 = vmatprep.subr.bf16.mxu0 0
      %2265 = vmatpush2.bf16.msra.mxu0 %v2113
      %2266 = vmatprep.subr.bf16.mxu0 0
      %2267 = vmatpush2.bf16.msra.mxu0 %v2112
      %2268 = vmatprep.subr.bf16.mxu0 0
      %2269 = vmatpush2.bf16.msra.mxu0 %v2111
      %2270 = vmatprep.subr.bf16.mxu0 0
      %2271 = vmatpush2.bf16.msra.mxu0 %v2110
      %2272 = vmatprep.subr.bf16.mxu0 0
      %2273 = vmatpush2.bf16.msra.mxu0 %v2109
      %2274 = vmatprep.subr.bf16.mxu0 0
      %2275 = vmatpush2.bf16.msra.mxu0 %v2108
      %2276 = vmatprep.mubr.bf16.mxu0 %v1518
      %2277 = vmatmul.mubr.bf16.gmra.mxu0 %v1517
      %v2278 = vpop.f32.mrf.mxu0
      %v2279 = vadd.f32 %v1810, %v2278
      %v2280 = vpop.f32.mrf.mxu0
      %v2281 = vpop.f32.mrf.mxu0
      %v2282 = vadd.f32 %v1810, %v2281
      %v2283 = vpop.f32.mrf.mxu0
      %2284 = vmatprep.mubr.bf16.mxu0 %v1527
      %2285 = vmatmul.mubr.bf16.gmra.mxu0 %v1526
      %v2286 = vpop.f32.mrf.mxu0
      %v2287 = vadd.f32 %v1810, %v2286
      %v2288 = vpop.f32.mrf.mxu0
      %v2289 = vpop.f32.mrf.mxu0
      %v2290 = vadd.f32 %v1810, %v2289
      %v2291 = vpop.f32.mrf.mxu0
      %2292 = vmatprep.mubr.bf16.mxu0 %v1536
      %2293 = vmatmul.mubr.bf16.gmra.mxu0 %v1535
      %v2294 = vpop.f32.mrf.mxu0
      %v2295 = vadd.f32 %v1810, %v2294
      %v2296 = vpop.f32.mrf.mxu0
      %v2297 = vpop.f32.mrf.mxu0
      %v2298 = vadd.f32 %v1810, %v2297
      %v2299 = vpop.f32.mrf.mxu0
      %2300 = vmatprep.mubr.bf16.mxu0 %v1545
      %2301 = vmatmul.mubr.bf16.gmra.mxu0 %v1544
      %v2302 = vpop.f32.mrf.mxu0
      %v2303 = vadd.f32 %v1810, %v2302
      %v2304 = vpop.f32.mrf.mxu0
      %v2305 = vpop.f32.mrf.mxu0
      %v2306 = vadd.f32 %v1810, %v2305
      %v2307 = vpop.f32.mrf.mxu0
      %2308 = vmatprep.mubr.bf16.mxu0 %v1554
      %2309 = vmatmul.mubr.bf16.gmra.mxu0 %v1553
      %v2310 = vpop.f32.mrf.mxu0
      %v2311 = vadd.f32 %v1810, %v2310
      %v2312 = vpop.f32.mrf.mxu0
      %v2313 = vpop.f32.mrf.mxu0
      %v2314 = vadd.f32 %v1810, %v2313
      %v2315 = vpop.f32.mrf.mxu0
      %2316 = vmatprep.mubr.bf16.mxu0 %v1563
      %2317 = vmatmul.mubr.bf16.gmra.mxu0 %v1562
      %v2318 = vpop.f32.mrf.mxu0
      %v2319 = vadd.f32 %v1810, %v2318
      %v2320 = vpop.f32.mrf.mxu0
      %v2321 = vpop.f32.mrf.mxu0
      %v2322 = vadd.f32 %v1810, %v2321
      %v2323 = vpop.f32.mrf.mxu0
      %2324 = vmatprep.mubr.bf16.mxu0 %v1572
      %2325 = vmatmul.mubr.bf16.gmra.mxu0 %v1571
      %v2326 = vpop.f32.mrf.mxu0
      %v2327 = vadd.f32 %v1810, %v2326
      %v2328 = vpop.f32.mrf.mxu0
      %v2329 = vpop.f32.mrf.mxu0
      %v2330 = vadd.f32 %v1810, %v2329
      %v2331 = vpop.f32.mrf.mxu0
      %2332 = vmatprep.mubr.bf16.mxu0 %v1581
      %2333 = vmatmul.mubr.bf16.gmra.mxu0 %v1580
      %v2334 = vpop.f32.mrf.mxu0
      %v2335 = vadd.f32 %v1810, %v2334
      %v2336 = vpop.f32.mrf.mxu0
      %v2337 = vpop.f32.mrf.mxu0
      %v2338 = vadd.f32 %v1810, %v2337
      %v2339 = vpop.f32.mrf.mxu0
      %2340 = vmatprep.mubr.bf16.mxu0 %v1590
      %2341 = vmatmul.mubr.bf16.gmra.mxu0 %v1589
      %v2342 = vpop.f32.mrf.mxu0
      %v2343 = vadd.f32 %v1810, %v2342
      %v2344 = vpop.f32.mrf.mxu0
      %v2345 = vpop.f32.mrf.mxu0
      %v2346 = vadd.f32 %v1810, %v2345
      %v2347 = vpop.f32.mrf.mxu0
      %2348 = vmatprep.mubr.bf16.mxu0 %v1599
      %2349 = vmatmul.mubr.bf16.gmra.mxu0 %v1598
      %v2350 = vpop.f32.mrf.mxu0
      %v2351 = vadd.f32 %v1810, %v2350
      %v2352 = vpop.f32.mrf.mxu0
      %v2353 = vpop.f32.mrf.mxu0
      %v2354 = vadd.f32 %v1810, %v2353
      %v2355 = vpop.f32.mrf.mxu0
      %2356 = vmatprep.mubr.bf16.mxu0 %v1608
      %2357 = vmatmul.mubr.bf16.gmra.mxu0 %v1607
      %v2358 = vpop.f32.mrf.mxu0
      %v2359 = vadd.f32 %v1810, %v2358
      %v2360 = vpop.f32.mrf.mxu0
      %v2361 = vpop.f32.mrf.mxu0
      %v2362 = vadd.f32 %v1810, %v2361
      %v2363 = vpop.f32.mrf.mxu0
      %2364 = vmatprep.mubr.bf16.mxu0 %v1617
      %2365 = vmatmul.mubr.bf16.gmra.mxu0 %v1616
      %v2366 = vpop.f32.mrf.mxu0
      %v2367 = vadd.f32 %v1810, %v2366
      %v2368 = vpop.f32.mrf.mxu0
      %v2369 = vpop.f32.mrf.mxu0
      %v2370 = vadd.f32 %v1810, %v2369
      %v2371 = vpop.f32.mrf.mxu0
      %2372 = vmatprep.mubr.bf16.mxu0 %v1626
      %2373 = vmatmul.mubr.bf16.gmra.mxu0 %v1625
      %v2374 = vpop.f32.mrf.mxu0
      %v2375 = vadd.f32 %v1810, %v2374
      %v2376 = vpop.f32.mrf.mxu0
      %v2377 = vpop.f32.mrf.mxu0
      %v2378 = vadd.f32 %v1810, %v2377
      %v2379 = vpop.f32.mrf.mxu0
      %2380 = vmatprep.mubr.bf16.mxu0 %v1635
      %2381 = vmatmul.mubr.bf16.gmra.mxu0 %v1634
      %v2382 = vpop.f32.mrf.mxu0
      %v2383 = vadd.f32 %v1810, %v2382
      %v2384 = vpop.f32.mrf.mxu0
      %v2385 = vpop.f32.mrf.mxu0
      %v2386 = vadd.f32 %v1810, %v2385
      %v2387 = vpop.f32.mrf.mxu0
      %2388 = vmatprep.mubr.bf16.mxu0 %v1644
      %2389 = vmatmul.mubr.bf16.gmra.mxu0 %v1643
      %v2390 = vpop.f32.mrf.mxu0
      %v2391 = vadd.f32 %v1810, %v2390
      %v2392 = vpop.f32.mrf.mxu0
      %v2393 = vpop.f32.mrf.mxu0
      %v2394 = vadd.f32 %v1810, %v2393
      %v2395 = vpop.f32.mrf.mxu0
      %2396 = vmatprep.mubr.bf16.mxu0 %v1653
      %2397 = vmatmul.mubr.bf16.gmra.mxu0 %v1652
      %v2398 = vpop.f32.mrf.mxu0
      %v2399 = vadd.f32 %v1810, %v2398
      %v2400 = vpop.f32.mrf.mxu0
      %v2401 = vpop.f32.mrf.mxu0
      %v2402 = vadd.f32 %v1810, %v2401
      %v2403 = vpop.f32.mrf.mxu0
      %2404 = vdwg.mxu0
      %2405 = vmatprep.subr.bf16.mxu0 0
      %2406 = vmatpush1.bf16.msra.mxu0 %v2123
      %2407 = vmatprep.subr.bf16.mxu0 0
      %2408 = vmatpush1.bf16.msra.mxu0 %v2122
      %2409 = vmatprep.subr.bf16.mxu0 0
      %2410 = vmatpush1.bf16.msra.mxu0 %v2121
      %2411 = vmatprep.subr.bf16.mxu0 0
      %2412 = vmatpush1.bf16.msra.mxu0 %v2120
      %2413 = vmatprep.subr.bf16.mxu0 0
      %2414 = vmatpush1.bf16.msra.mxu0 %v2119
      %2415 = vmatprep.subr.bf16.mxu0 0
      %2416 = vmatpush1.bf16.msra.mxu0 %v2118
      %2417 = vmatprep.subr.bf16.mxu0 0
      %2418 = vmatpush1.bf16.msra.mxu0 %v2117
      %2419 = vmatprep.subr.bf16.mxu0 0
      %2420 = vmatpush1.bf16.msra.mxu0 %v2116
      %2421 = vmatprep.subr.bf16.mxu0 0
      %2422 = vmatpush2.bf16.msra.mxu0 %v2131
      %2423 = vmatprep.subr.bf16.mxu0 0
      %2424 = vmatpush2.bf16.msra.mxu0 %v2130
      %2425 = vmatprep.subr.bf16.mxu0 0
      %2426 = vmatpush2.bf16.msra.mxu0 %v2129
      %2427 = vmatprep.subr.bf16.mxu0 0
      %2428 = vmatpush2.bf16.msra.mxu0 %v2128
      %2429 = vmatprep.subr.bf16.mxu0 0
      %2430 = vmatpush2.bf16.msra.mxu0 %v2127
      %2431 = vmatprep.subr.bf16.mxu0 0
      %2432 = vmatpush2.bf16.msra.mxu0 %v2126
      %2433 = vmatprep.subr.bf16.mxu0 0
      %2434 = vmatpush2.bf16.msra.mxu0 %v2125
      %2435 = vmatprep.subr.bf16.mxu0 0
      %2436 = vmatpush2.bf16.msra.mxu0 %v2124
      %2437 = vmatprep.mubr.bf16.mxu0 %v1520
      %2438 = vmatmul.mubr.bf16.gmra.mxu0 %v1519
      %v2439 = vpop.f32.mrf.mxu0
      %v2440 = vadd.f32 %v2279, %v2439
      %v2441 = vpop.f32.mrf.mxu0
      %v2442 = vpop.f32.mrf.mxu0
      %v2443 = vadd.f32 %v2282, %v2442
      %v2444 = vpop.f32.mrf.mxu0
      %2445 = vmatprep.mubr.bf16.mxu0 %v1529
      %2446 = vmatmul.mubr.bf16.gmra.mxu0 %v1528
      %v2447 = vpop.f32.mrf.mxu0
      %v2448 = vadd.f32 %v2287, %v2447
      %v2449 = vpop.f32.mrf.mxu0
      %v2450 = vpop.f32.mrf.mxu0
      %v2451 = vadd.f32 %v2290, %v2450
      %v2452 = vpop.f32.mrf.mxu0
      %2453 = vmatprep.mubr.bf16.mxu0 %v1538
      %2454 = vmatmul.mubr.bf16.gmra.mxu0 %v1537
      %v2455 = vpop.f32.mrf.mxu0
      %v2456 = vadd.f32 %v2295, %v2455
      %v2457 = vpop.f32.mrf.mxu0
      %v2458 = vpop.f32.mrf.mxu0
      %v2459 = vadd.f32 %v2298, %v2458
      %v2460 = vpop.f32.mrf.mxu0
      %2461 = vmatprep.mubr.bf16.mxu0 %v1547
      %2462 = vmatmul.mubr.bf16.gmra.mxu0 %v1546
      %v2463 = vpop.f32.mrf.mxu0
      %v2464 = vadd.f32 %v2303, %v2463
      %v2465 = vpop.f32.mrf.mxu0
      %v2466 = vpop.f32.mrf.mxu0
      %v2467 = vadd.f32 %v2306, %v2466
      %v2468 = vpop.f32.mrf.mxu0
      %2469 = vmatprep.mubr.bf16.mxu0 %v1556
      %2470 = vmatmul.mubr.bf16.gmra.mxu0 %v1555
      %v2471 = vpop.f32.mrf.mxu0
      %v2472 = vadd.f32 %v2311, %v2471
      %v2473 = vpop.f32.mrf.mxu0
      %v2474 = vpop.f32.mrf.mxu0
      %v2475 = vadd.f32 %v2314, %v2474
      %v2476 = vpop.f32.mrf.mxu0
      %2477 = vmatprep.mubr.bf16.mxu0 %v1565
      %2478 = vmatmul.mubr.bf16.gmra.mxu0 %v1564
      %v2479 = vpop.f32.mrf.mxu0
      %v2480 = vadd.f32 %v2319, %v2479
      %v2481 = vpop.f32.mrf.mxu0
      %v2482 = vpop.f32.mrf.mxu0
      %v2483 = vadd.f32 %v2322, %v2482
      %v2484 = vpop.f32.mrf.mxu0
      %2485 = vmatprep.mubr.bf16.mxu0 %v1574
      %2486 = vmatmul.mubr.bf16.gmra.mxu0 %v1573
      %v2487 = vpop.f32.mrf.mxu0
      %v2488 = vadd.f32 %v2327, %v2487
      %v2489 = vpop.f32.mrf.mxu0
      %v2490 = vpop.f32.mrf.mxu0
      %v2491 = vadd.f32 %v2330, %v2490
      %v2492 = vpop.f32.mrf.mxu0
      %2493 = vmatprep.mubr.bf16.mxu0 %v1583
      %2494 = vmatmul.mubr.bf16.gmra.mxu0 %v1582
      %v2495 = vpop.f32.mrf.mxu0
      %v2496 = vadd.f32 %v2335, %v2495
      %v2497 = vpop.f32.mrf.mxu0
      %v2498 = vpop.f32.mrf.mxu0
      %v2499 = vadd.f32 %v2338, %v2498
      %v2500 = vpop.f32.mrf.mxu0
      %2501 = vmatprep.mubr.bf16.mxu0 %v1592
      %2502 = vmatmul.mubr.bf16.gmra.mxu0 %v1591
      %v2503 = vpop.f32.mrf.mxu0
      %v2504 = vadd.f32 %v2343, %v2503
      %v2505 = vpop.f32.mrf.mxu0
      %v2506 = vpop.f32.mrf.mxu0
      %v2507 = vadd.f32 %v2346, %v2506
      %v2508 = vpop.f32.mrf.mxu0
      %2509 = vmatprep.mubr.bf16.mxu0 %v1601
      %2510 = vmatmul.mubr.bf16.gmra.mxu0 %v1600
      %v2511 = vpop.f32.mrf.mxu0
      %v2512 = vadd.f32 %v2351, %v2511
      %v2513 = vpop.f32.mrf.mxu0
      %v2514 = vpop.f32.mrf.mxu0
      %v2515 = vadd.f32 %v2354, %v2514
      %v2516 = vpop.f32.mrf.mxu0
      %2517 = vmatprep.mubr.bf16.mxu0 %v1610
      %2518 = vmatmul.mubr.bf16.gmra.mxu0 %v1609
      %v2519 = vpop.f32.mrf.mxu0
      %v2520 = vadd.f32 %v2359, %v2519
      %v2521 = vpop.f32.mrf.mxu0
      %v2522 = vpop.f32.mrf.mxu0
      %v2523 = vadd.f32 %v2362, %v2522
      %v2524 = vpop.f32.mrf.mxu0
      %2525 = vmatprep.mubr.bf16.mxu0 %v1619
      %2526 = vmatmul.mubr.bf16.gmra.mxu0 %v1618
      %v2527 = vpop.f32.mrf.mxu0
      %v2528 = vadd.f32 %v2367, %v2527
      %v2529 = vpop.f32.mrf.mxu0
      %v2530 = vpop.f32.mrf.mxu0
      %v2531 = vadd.f32 %v2370, %v2530
      %v2532 = vpop.f32.mrf.mxu0
      %2533 = vmatprep.mubr.bf16.mxu0 %v1628
      %2534 = vmatmul.mubr.bf16.gmra.mxu0 %v1627
      %v2535 = vpop.f32.mrf.mxu0
      %v2536 = vadd.f32 %v2375, %v2535
      %v2537 = vpop.f32.mrf.mxu0
      %v2538 = vpop.f32.mrf.mxu0
      %v2539 = vadd.f32 %v2378, %v2538
      %v2540 = vpop.f32.mrf.mxu0
      %2541 = vmatprep.mubr.bf16.mxu0 %v1637
      %2542 = vmatmul.mubr.bf16.gmra.mxu0 %v1636
      %v2543 = vpop.f32.mrf.mxu0
      %v2544 = vadd.f32 %v2383, %v2543
      %v2545 = vpop.f32.mrf.mxu0
      %v2546 = vpop.f32.mrf.mxu0
      %v2547 = vadd.f32 %v2386, %v2546
      %v2548 = vpop.f32.mrf.mxu0
      %2549 = vmatprep.mubr.bf16.mxu0 %v1646
      %2550 = vmatmul.mubr.bf16.gmra.mxu0 %v1645
      %v2551 = vpop.f32.mrf.mxu0
      %v2552 = vadd.f32 %v2391, %v2551
      %v2553 = vpop.f32.mrf.mxu0
      %v2554 = vpop.f32.mrf.mxu0
      %v2555 = vadd.f32 %v2394, %v2554
      %v2556 = vpop.f32.mrf.mxu0
      %2557 = vmatprep.mubr.bf16.mxu0 %v1655
      %2558 = vmatmul.mubr.bf16.gmra.mxu0 %v1654
      %v2559 = vpop.f32.mrf.mxu0
      %v2560 = vadd.f32 %v2399, %v2559
      %v2561 = vpop.f32.mrf.mxu0
      %v2562 = vpop.f32.mrf.mxu0
      %v2563 = vadd.f32 %v2402, %v2562
      %v2564 = vpop.f32.mrf.mxu0
      %2565 = vdwg.mxu0
      %2566 = vmatprep.subr.bf16.mxu0 0
      %2567 = vmatpush1.bf16.msra.mxu0 %v2139
      %2568 = vmatprep.subr.bf16.mxu0 0
      %2569 = vmatpush1.bf16.msra.mxu0 %v2138
      %2570 = vmatprep.subr.bf16.mxu0 0
      %2571 = vmatpush1.bf16.msra.mxu0 %v2137
      %2572 = vmatprep.subr.bf16.mxu0 0
      %2573 = vmatpush1.bf16.msra.mxu0 %v2136
      %2574 = vmatprep.subr.bf16.mxu0 0
      %2575 = vmatpush1.bf16.msra.mxu0 %v2135
      %2576 = vmatprep.subr.bf16.mxu0 0
      %2577 = vmatpush1.bf16.msra.mxu0 %v2134
      %2578 = vmatprep.subr.bf16.mxu0 0
      %2579 = vmatpush1.bf16.msra.mxu0 %v2133
      %2580 = vmatprep.subr.bf16.mxu0 0
      %2581 = vmatpush1.bf16.msra.mxu0 %v2132
      %2582 = vmatprep.subr.bf16.mxu0 0
      %2583 = vmatpush2.bf16.msra.mxu0 %v2147
      %2584 = vmatprep.subr.bf16.mxu0 0
      %2585 = vmatpush2.bf16.msra.mxu0 %v2146
      %2586 = vmatprep.subr.bf16.mxu0 0
      %2587 = vmatpush2.bf16.msra.mxu0 %v2145
      %2588 = vmatprep.subr.bf16.mxu0 0
      %2589 = vmatpush2.bf16.msra.mxu0 %v2144
      %2590 = vmatprep.subr.bf16.mxu0 0
      %2591 = vmatpush2.bf16.msra.mxu0 %v2143
      %2592 = vmatprep.subr.bf16.mxu0 0
      %2593 = vmatpush2.bf16.msra.mxu0 %v2142
      %2594 = vmatprep.subr.bf16.mxu0 0
      %2595 = vmatpush2.bf16.msra.mxu0 %v2141
      %2596 = vmatprep.subr.bf16.mxu0 0
      %2597 = vmatpush2.bf16.msra.mxu0 %v2140
      %2598 = vmatprep.mubr.bf16.mxu0 %v1522
      %2599 = vmatmul.mubr.bf16.gmra.mxu0 %v1521
      %v2600 = vpop.f32.mrf.mxu0
      %v2601 = vadd.f32 %v2440, %v2600
      %v2602 = vpop.f32.mrf.mxu0
      %v2603 = vpop.f32.mrf.mxu0
      %v2604 = vadd.f32 %v2443, %v2603
      %v2605 = vpop.f32.mrf.mxu0
      %2606 = vmatprep.mubr.bf16.mxu0 %v1531
      %2607 = vmatmul.mubr.bf16.gmra.mxu0 %v1530
      %v2608 = vpop.f32.mrf.mxu0
      %v2609 = vadd.f32 %v2448, %v2608
      %v2610 = vpop.f32.mrf.mxu0
      %v2611 = vpop.f32.mrf.mxu0
      %v2612 = vadd.f32 %v2451, %v2611
      %v2613 = vpop.f32.mrf.mxu0
      %2614 = vmatprep.mubr.bf16.mxu0 %v1540
      %2615 = vmatmul.mubr.bf16.gmra.mxu0 %v1539
      %v2616 = vpop.f32.mrf.mxu0
      %v2617 = vadd.f32 %v2456, %v2616
      %v2618 = vpop.f32.mrf.mxu0
      %v2619 = vpop.f32.mrf.mxu0
      %v2620 = vadd.f32 %v2459, %v2619
      %v2621 = vpop.f32.mrf.mxu0
      %2622 = vmatprep.mubr.bf16.mxu0 %v1549
      %2623 = vmatmul.mubr.bf16.gmra.mxu0 %v1548
      %v2624 = vpop.f32.mrf.mxu0
      %v2625 = vadd.f32 %v2464, %v2624
      %v2626 = vpop.f32.mrf.mxu0
      %v2627 = vpop.f32.mrf.mxu0
      %v2628 = vadd.f32 %v2467, %v2627
      %v2629 = vpop.f32.mrf.mxu0
      %2630 = vmatprep.mubr.bf16.mxu0 %v1558
      %2631 = vmatmul.mubr.bf16.gmra.mxu0 %v1557
      %v2632 = vpop.f32.mrf.mxu0
      %v2633 = vadd.f32 %v2472, %v2632
      %v2634 = vpop.f32.mrf.mxu0
      %v2635 = vpop.f32.mrf.mxu0
      %v2636 = vadd.f32 %v2475, %v2635
      %v2637 = vpop.f32.mrf.mxu0
      %2638 = vmatprep.mubr.bf16.mxu0 %v1567
      %2639 = vmatmul.mubr.bf16.gmra.mxu0 %v1566
      %v2640 = vpop.f32.mrf.mxu0
      %v2641 = vadd.f32 %v2480, %v2640
      %v2642 = vpop.f32.mrf.mxu0
      %v2643 = vpop.f32.mrf.mxu0
      %v2644 = vadd.f32 %v2483, %v2643
      %v2645 = vpop.f32.mrf.mxu0
      %2646 = vmatprep.mubr.bf16.mxu0 %v1576
      %2647 = vmatmul.mubr.bf16.gmra.mxu0 %v1575
      %v2648 = vpop.f32.mrf.mxu0
      %v2649 = vadd.f32 %v2488, %v2648
      %v2650 = vpop.f32.mrf.mxu0
      %v2651 = vpop.f32.mrf.mxu0
      %v2652 = vadd.f32 %v2491, %v2651
      %v2653 = vpop.f32.mrf.mxu0
      %2654 = vmatprep.mubr.bf16.mxu0 %v1585
      %2655 = vmatmul.mubr.bf16.gmra.mxu0 %v1584
      %v2656 = vpop.f32.mrf.mxu0
      %v2657 = vadd.f32 %v2496, %v2656
      %v2658 = vpop.f32.mrf.mxu0
      %v2659 = vpop.f32.mrf.mxu0
      %v2660 = vadd.f32 %v2499, %v2659
      %v2661 = vpop.f32.mrf.mxu0
      %2662 = vmatprep.mubr.bf16.mxu0 %v1594
      %2663 = vmatmul.mubr.bf16.gmra.mxu0 %v1593
      %v2664 = vpop.f32.mrf.mxu0
      %v2665 = vadd.f32 %v2504, %v2664
      %v2666 = vpop.f32.mrf.mxu0
      %v2667 = vpop.f32.mrf.mxu0
      %v2668 = vadd.f32 %v2507, %v2667
      %v2669 = vpop.f32.mrf.mxu0
      %2670 = vmatprep.mubr.bf16.mxu0 %v1603
      %2671 = vmatmul.mubr.bf16.gmra.mxu0 %v1602
      %v2672 = vpop.f32.mrf.mxu0
      %v2673 = vadd.f32 %v2512, %v2672
      %v2674 = vpop.f32.mrf.mxu0
      %v2675 = vpop.f32.mrf.mxu0
      %v2676 = vadd.f32 %v2515, %v2675
      %v2677 = vpop.f32.mrf.mxu0
      %2678 = vmatprep.mubr.bf16.mxu0 %v1612
      %2679 = vmatmul.mubr.bf16.gmra.mxu0 %v1611
      %v2680 = vpop.f32.mrf.mxu0
      %v2681 = vadd.f32 %v2520, %v2680
      %v2682 = vpop.f32.mrf.mxu0
      %v2683 = vpop.f32.mrf.mxu0
      %v2684 = vadd.f32 %v2523, %v2683
      %v2685 = vpop.f32.mrf.mxu0
      %2686 = vmatprep.mubr.bf16.mxu0 %v1621
      %2687 = vmatmul.mubr.bf16.gmra.mxu0 %v1620
      %v2688 = vpop.f32.mrf.mxu0
      %v2689 = vadd.f32 %v2528, %v2688
      %v2690 = vpop.f32.mrf.mxu0
      %v2691 = vpop.f32.mrf.mxu0
      %v2692 = vadd.f32 %v2531, %v2691
      %v2693 = vpop.f32.mrf.mxu0
      %2694 = vmatprep.mubr.bf16.mxu0 %v1630
      %2695 = vmatmul.mubr.bf16.gmra.mxu0 %v1629
      %v2696 = vpop.f32.mrf.mxu0
      %v2697 = vadd.f32 %v2536, %v2696
      %v2698 = vpop.f32.mrf.mxu0
      %v2699 = vpop.f32.mrf.mxu0
      %v2700 = vadd.f32 %v2539, %v2699
      %v2701 = vpop.f32.mrf.mxu0
      %2702 = vmatprep.mubr.bf16.mxu0 %v1639
      %2703 = vmatmul.mubr.bf16.gmra.mxu0 %v1638
      %v2704 = vpop.f32.mrf.mxu0
      %v2705 = vadd.f32 %v2544, %v2704
      %v2706 = vpop.f32.mrf.mxu0
      %v2707 = vpop.f32.mrf.mxu0
      %v2708 = vadd.f32 %v2547, %v2707
      %v2709 = vpop.f32.mrf.mxu0
      %2710 = vmatprep.mubr.bf16.mxu0 %v1648
      %2711 = vmatmul.mubr.bf16.gmra.mxu0 %v1647
      %v2712 = vpop.f32.mrf.mxu0
      %v2713 = vadd.f32 %v2552, %v2712
      %v2714 = vpop.f32.mrf.mxu0
      %v2715 = vpop.f32.mrf.mxu0
      %v2716 = vadd.f32 %v2555, %v2715
      %v2717 = vpop.f32.mrf.mxu0
      %2718 = vmatprep.mubr.bf16.mxu0 %v1657
      %2719 = vmatmul.mubr.bf16.gmra.mxu0 %v1656
      %v2720 = vpop.f32.mrf.mxu0
      %v2721 = vadd.f32 %v2560, %v2720
      %v2722 = vpop.f32.mrf.mxu0
      %v2723 = vpop.f32.mrf.mxu0
      %v2724 = vadd.f32 %v2563, %v2723
      %v2725 = vpop.f32.mrf.mxu0
      %2726 = vdwg.mxu0
      %2727 = vmatprep.subr.bf16.mxu0 0
      %2728 = vmatpush1.bf16.msra.mxu0 %v2155
      %2729 = vmatprep.subr.bf16.mxu0 0
      %2730 = vmatpush1.bf16.msra.mxu0 %v2154
      %2731 = vmatprep.subr.bf16.mxu0 0
      %2732 = vmatpush1.bf16.msra.mxu0 %v2153
      %2733 = vmatprep.subr.bf16.mxu0 0
      %2734 = vmatpush1.bf16.msra.mxu0 %v2152
      %2735 = vmatprep.subr.bf16.mxu0 0
      %2736 = vmatpush1.bf16.msra.mxu0 %v2151
      %2737 = vmatprep.subr.bf16.mxu0 0
      %2738 = vmatpush1.bf16.msra.mxu0 %v2150
      %2739 = vmatprep.subr.bf16.mxu0 0
      %2740 = vmatpush1.bf16.msra.mxu0 %v2149
      %2741 = vmatprep.subr.bf16.mxu0 0
      %2742 = vmatpush1.bf16.msra.mxu0 %v2148
      %2743 = vmatprep.subr.bf16.mxu0 0
      %2744 = vmatpush2.bf16.msra.mxu0 %v2163
      %2745 = vmatprep.subr.bf16.mxu0 0
      %2746 = vmatpush2.bf16.msra.mxu0 %v2162
      %2747 = vmatprep.subr.bf16.mxu0 0
      %2748 = vmatpush2.bf16.msra.mxu0 %v2161
      %2749 = vmatprep.subr.bf16.mxu0 0
      %2750 = vmatpush2.bf16.msra.mxu0 %v2160
      %2751 = vmatprep.subr.bf16.mxu0 0
      %2752 = vmatpush2.bf16.msra.mxu0 %v2159
      %2753 = vmatprep.subr.bf16.mxu0 0
      %2754 = vmatpush2.bf16.msra.mxu0 %v2158
      %2755 = vmatprep.subr.bf16.mxu0 0
      %2756 = vmatpush2.bf16.msra.mxu0 %v2157
      %2757 = vmatprep.subr.bf16.mxu0 0
      %2758 = vmatpush2.bf16.msra.mxu0 %v2156
      %2759 = vmatprep.mubr.bf16.mxu0 %v1524
      %2760 = vmatmul.mubr.bf16.gmra.mxu0 %v1523
      %v2761 = vpop.f32.mrf.mxu0
      %v2762 = vadd.f32 %v2601, %v2761
      %v2763 = vpop.f32.mrf.mxu0
      %v2764 = vpop.f32.mrf.mxu0
      %v2765 = vadd.f32 %v2604, %v2764
      %v2766 = vpop.f32.mrf.mxu0
      %2767 = vmatprep.mubr.bf16.mxu0 %v1533
      %2768 = vmatmul.mubr.bf16.gmra.mxu0 %v1532
      %v2769 = vpop.f32.mrf.mxu0
      %v2770 = vadd.f32 %v2609, %v2769
      %v2771 = vpop.f32.mrf.mxu0
      %v2772 = vpop.f32.mrf.mxu0
      %v2773 = vadd.f32 %v2612, %v2772
      %v2774 = vpop.f32.mrf.mxu0
      %2775 = vmatprep.mubr.bf16.mxu0 %v1542
      %2776 = vmatmul.mubr.bf16.gmra.mxu0 %v1541
      %v2777 = vpop.f32.mrf.mxu0
      %v2778 = vadd.f32 %v2617, %v2777
      %v2779 = vpop.f32.mrf.mxu0
      %v2780 = vpop.f32.mrf.mxu0
      %v2781 = vadd.f32 %v2620, %v2780
      %v2782 = vpop.f32.mrf.mxu0
      %2783 = vmatprep.mubr.bf16.mxu0 %v1551
      %2784 = vmatmul.mubr.bf16.gmra.mxu0 %v1550
      %v2785 = vpop.f32.mrf.mxu0
      %v2786 = vadd.f32 %v2625, %v2785
      %v2787 = vpop.f32.mrf.mxu0
      %v2788 = vpop.f32.mrf.mxu0
      %v2789 = vadd.f32 %v2628, %v2788
      %v2790 = vpop.f32.mrf.mxu0
      %2791 = vmatprep.mubr.bf16.mxu0 %v1560
      %2792 = vmatmul.mubr.bf16.gmra.mxu0 %v1559
      %v2793 = vpop.f32.mrf.mxu0
      %v2794 = vadd.f32 %v2633, %v2793
      %v2795 = vpop.f32.mrf.mxu0
      %v2796 = vpop.f32.mrf.mxu0
      %v2797 = vadd.f32 %v2636, %v2796
      %v2798 = vpop.f32.mrf.mxu0
      %2799 = vmatprep.mubr.bf16.mxu0 %v1569
      %2800 = vmatmul.mubr.bf16.gmra.mxu0 %v1568
      %v2801 = vpop.f32.mrf.mxu0
      %v2802 = vadd.f32 %v2641, %v2801
      %v2803 = vpop.f32.mrf.mxu0
      %v2804 = vpop.f32.mrf.mxu0
      %v2805 = vadd.f32 %v2644, %v2804
      %v2806 = vpop.f32.mrf.mxu0
      %2807 = vmatprep.mubr.bf16.mxu0 %v1578
      %2808 = vmatmul.mubr.bf16.gmra.mxu0 %v1577
      %v2809 = vpop.f32.mrf.mxu0
      %v2810 = vadd.f32 %v2649, %v2809
      %v2811 = vpop.f32.mrf.mxu0
      %v2812 = vpop.f32.mrf.mxu0
      %v2813 = vadd.f32 %v2652, %v2812
      %v2814 = vpop.f32.mrf.mxu0
      %2815 = vmatprep.mubr.bf16.mxu0 %v1587
      %2816 = vmatmul.mubr.bf16.gmra.mxu0 %v1586
      %v2817 = vpop.f32.mrf.mxu0
      %v2818 = vadd.f32 %v2657, %v2817
      %v2819 = vpop.f32.mrf.mxu0
      %v2820 = vpop.f32.mrf.mxu0
      %v2821 = vadd.f32 %v2660, %v2820
      %v2822 = vpop.f32.mrf.mxu0
      %2823 = vmatprep.mubr.bf16.mxu0 %v1596
      %2824 = vmatmul.mubr.bf16.gmra.mxu0 %v1595
      %v2825 = vpop.f32.mrf.mxu0
      %v2826 = vadd.f32 %v2665, %v2825
      %v2827 = vpop.f32.mrf.mxu0
      %v2828 = vpop.f32.mrf.mxu0
      %v2829 = vadd.f32 %v2668, %v2828
      %v2830 = vpop.f32.mrf.mxu0
      %2831 = vmatprep.mubr.bf16.mxu0 %v1605
      %2832 = vmatmul.mubr.bf16.gmra.mxu0 %v1604
      %v2833 = vpop.f32.mrf.mxu0
      %v2834 = vadd.f32 %v2673, %v2833
      %v2835 = vpop.f32.mrf.mxu0
      %v2836 = vpop.f32.mrf.mxu0
      %v2837 = vadd.f32 %v2676, %v2836
      %v2838 = vpop.f32.mrf.mxu0
      %2839 = vmatprep.mubr.bf16.mxu0 %v1614
      %2840 = vmatmul.mubr.bf16.gmra.mxu0 %v1613
      %v2841 = vpop.f32.mrf.mxu0
      %v2842 = vadd.f32 %v2681, %v2841
      %v2843 = vpop.f32.mrf.mxu0
      %v2844 = vpop.f32.mrf.mxu0
      %v2845 = vadd.f32 %v2684, %v2844
      %v2846 = vpop.f32.mrf.mxu0
      %2847 = vmatprep.mubr.bf16.mxu0 %v1623
      %2848 = vmatmul.mubr.bf16.gmra.mxu0 %v1622
      %v2849 = vpop.f32.mrf.mxu0
      %v2850 = vadd.f32 %v2689, %v2849
      %v2851 = vpop.f32.mrf.mxu0
      %v2852 = vpop.f32.mrf.mxu0
      %v2853 = vadd.f32 %v2692, %v2852
      %v2854 = vpop.f32.mrf.mxu0
      %2855 = vmatprep.mubr.bf16.mxu0 %v1632
      %2856 = vmatmul.mubr.bf16.gmra.mxu0 %v1631
      %v2857 = vpop.f32.mrf.mxu0
      %v2858 = vadd.f32 %v2697, %v2857
      %v2859 = vpop.f32.mrf.mxu0
      %v2860 = vpop.f32.mrf.mxu0
      %v2861 = vadd.f32 %v2700, %v2860
      %v2862 = vpop.f32.mrf.mxu0
      %2863 = vmatprep.mubr.bf16.mxu0 %v1641
      %2864 = vmatmul.mubr.bf16.gmra.mxu0 %v1640
      %v2865 = vpop.f32.mrf.mxu0
      %v2866 = vadd.f32 %v2705, %v2865
      %v2867 = vpop.f32.mrf.mxu0
      %v2868 = vpop.f32.mrf.mxu0
      %v2869 = vadd.f32 %v2708, %v2868
      %v2870 = vpop.f32.mrf.mxu0
      %2871 = vmatprep.mubr.bf16.mxu0 %v1650
      %2872 = vmatmul.mubr.bf16.gmra.mxu0 %v1649
      %v2873 = vpop.f32.mrf.mxu0
      %v2874 = vadd.f32 %v2713, %v2873
      %v2875 = vpop.f32.mrf.mxu0
      %v2876 = vpop.f32.mrf.mxu0
      %v2877 = vadd.f32 %v2716, %v2876
      %v2878 = vpop.f32.mrf.mxu0
      %2879 = vmatprep.mubr.bf16.mxu0 %v1659
      %2880 = vmatmul.mubr.bf16.gmra.mxu0 %v1658
      %v2881 = vpop.f32.mrf.mxu0
      %v2882 = vadd.f32 %v2721, %v2881
      %v2883 = vpop.f32.mrf.mxu0
      %v2884 = vpop.f32.mrf.mxu0
      %v2885 = vadd.f32 %v2724, %v2884
      %v2886 = vpop.f32.mrf.mxu0
      %2887 = vdwg.mxu0
      %2888 = vmatprep.subr.bf16.mxu0 0
      %2889 = vmatpush1.bf16.msra.mxu0 %v2171
      %2890 = vmatprep.subr.bf16.mxu0 0
      %2891 = vmatpush1.bf16.msra.mxu0 %v2170
      %2892 = vmatprep.subr.bf16.mxu0 0
      %2893 = vmatpush1.bf16.msra.mxu0 %v2169
      %2894 = vmatprep.subr.bf16.mxu0 0
      %2895 = vmatpush1.bf16.msra.mxu0 %v2168
      %2896 = vmatprep.subr.bf16.mxu0 0
      %2897 = vmatpush1.bf16.msra.mxu0 %v2167
      %2898 = vmatprep.subr.bf16.mxu0 0
      %2899 = vmatpush1.bf16.msra.mxu0 %v2166
      %2900 = vmatprep.subr.bf16.mxu0 0
      %2901 = vmatpush1.bf16.msra.mxu0 %v2165
      %2902 = vmatprep.subr.bf16.mxu0 0
      %2903 = vmatpush1.bf16.msra.mxu0 %v2164
      %2904 = vmatprep.subr.bf16.mxu0 0
      %2905 = vmatpush2.bf16.msra.mxu0 0
      %2906 = vmatprep.subr.bf16.mxu0 0
      %2907 = vmatpush2.bf16.msra.mxu0 0
      %2908 = vmatprep.subr.bf16.mxu0 0
      %2909 = vmatpush2.bf16.msra.mxu0 0
      %2910 = vmatprep.subr.bf16.mxu0 0
      %2911 = vmatpush2.bf16.msra.mxu0 0
      %2912 = vmatprep.subr.bf16.mxu0 0
      %2913 = vmatpush2.bf16.msra.mxu0 0
      %2914 = vmatprep.subr.bf16.mxu0 0
      %2915 = vmatpush2.bf16.msra.mxu0 0
      %2916 = vmatprep.subr.bf16.mxu0 0
      %2917 = vmatpush2.bf16.msra.mxu0 0
      %2918 = vmatprep.subr.bf16.mxu0 0
      %2919 = vmatpush2.bf16.msra.mxu0 0
      %2920 = vmatprep.mubr.bf16.mxu0 0
      %2921 = vmatmul.mubr.bf16.gmra.mxu0 %v1525
      %v2922 = vpop.f32.mrf.mxu0
      %v2923 = vadd.f32 %v2762, %v2922
      %v2924 = vpop.f32.mrf.mxu0
      %v2925 = vpop.f32.mrf.mxu0
      %v2926 = vadd.f32 %v2765, %v2925
      %v2927 = vpop.f32.mrf.mxu0
      %2928 = vmatprep.mubr.bf16.mxu0 0
      %2929 = vmatmul.mubr.bf16.gmra.mxu0 %v1534
      %v2930 = vpop.f32.mrf.mxu0
      %v2931 = vadd.f32 %v2770, %v2930
      %v2932 = vpop.f32.mrf.mxu0
      %v2933 = vpop.f32.mrf.mxu0
      %v2934 = vadd.f32 %v2773, %v2933
      %v2935 = vpop.f32.mrf.mxu0
      %2936 = vmatprep.mubr.bf16.mxu0 0
      %2937 = vmatmul.mubr.bf16.gmra.mxu0 %v1543
      %v2938 = vpop.f32.mrf.mxu0
      %v2939 = vadd.f32 %v2778, %v2938
      %v2940 = vpop.f32.mrf.mxu0
      %v2941 = vpop.f32.mrf.mxu0
      %v2942 = vadd.f32 %v2781, %v2941
      %v2943 = vpop.f32.mrf.mxu0
      %2944 = vmatprep.mubr.bf16.mxu0 0
      %2945 = vmatmul.mubr.bf16.gmra.mxu0 %v1552
      %v2946 = vpop.f32.mrf.mxu0
      %v2947 = vadd.f32 %v2786, %v2946
      %v2948 = vpop.f32.mrf.mxu0
      %v2949 = vpop.f32.mrf.mxu0
      %v2950 = vadd.f32 %v2789, %v2949
      %v2951 = vpop.f32.mrf.mxu0
      %2952 = vmatprep.mubr.bf16.mxu0 0
      %2953 = vmatmul.mubr.bf16.gmra.mxu0 %v1561
      %v2954 = vpop.f32.mrf.mxu0
      %v2955 = vadd.f32 %v2794, %v2954
      %v2956 = vpop.f32.mrf.mxu0
      %v2957 = vpop.f32.mrf.mxu0
      %v2958 = vadd.f32 %v2797, %v2957
      %v2959 = vpop.f32.mrf.mxu0
      %2960 = vmatprep.mubr.bf16.mxu0 0
      %2961 = vmatmul.mubr.bf16.gmra.mxu0 %v1570
      %v2962 = vpop.f32.mrf.mxu0
      %v2963 = vadd.f32 %v2802, %v2962
      %v2964 = vpop.f32.mrf.mxu0
      %v2965 = vpop.f32.mrf.mxu0
      %v2966 = vadd.f32 %v2805, %v2965
      %v2967 = vpop.f32.mrf.mxu0
      %2968 = vmatprep.mubr.bf16.mxu0 0
      %2969 = vmatmul.mubr.bf16.gmra.mxu0 %v1579
      %v2970 = vpop.f32.mrf.mxu0
      %v2971 = vadd.f32 %v2810, %v2970
      %v2972 = vpop.f32.mrf.mxu0
      %v2973 = vpop.f32.mrf.mxu0
      %v2974 = vadd.f32 %v2813, %v2973
      %v2975 = vpop.f32.mrf.mxu0
      %2976 = vmatprep.mubr.bf16.mxu0 0
      %2977 = vmatmul.mubr.bf16.gmra.mxu0 %v1588
      %v2978 = vpop.f32.mrf.mxu0
      %v2979 = vadd.f32 %v2818, %v2978
      %v2980 = vpop.f32.mrf.mxu0
      %v2981 = vpop.f32.mrf.mxu0
      %v2982 = vadd.f32 %v2821, %v2981
      %v2983 = vpop.f32.mrf.mxu0
      %2984 = vmatprep.mubr.bf16.mxu0 0
      %2985 = vmatmul.mubr.bf16.gmra.mxu0 %v1597
      %v2986 = vpop.f32.mrf.mxu0
      %v2987 = vadd.f32 %v2826, %v2986
      %v2988 = vpop.f32.mrf.mxu0
      %v2989 = vpop.f32.mrf.mxu0
      %v2990 = vadd.f32 %v2829, %v2989
      %v2991 = vpop.f32.mrf.mxu0
      %2992 = vmatprep.mubr.bf16.mxu0 0
      %2993 = vmatmul.mubr.bf16.gmra.mxu0 %v1606
      %v2994 = vpop.f32.mrf.mxu0
      %v2995 = vadd.f32 %v2834, %v2994
      %v2996 = vpop.f32.mrf.mxu0
      %v2997 = vpop.f32.mrf.mxu0
      %v2998 = vadd.f32 %v2837, %v2997
      %v2999 = vpop.f32.mrf.mxu0
      %3000 = vmatprep.mubr.bf16.mxu0 0
      %3001 = vmatmul.mubr.bf16.gmra.mxu0 %v1615
      %v3002 = vpop.f32.mrf.mxu0
      %v3003 = vadd.f32 %v2842, %v3002
      %v3004 = vpop.f32.mrf.mxu0
      %v3005 = vpop.f32.mrf.mxu0
      %v3006 = vadd.f32 %v2845, %v3005
      %v3007 = vpop.f32.mrf.mxu0
      %3008 = vmatprep.mubr.bf16.mxu0 0
      %3009 = vmatmul.mubr.bf16.gmra.mxu0 %v1624
      %v3010 = vpop.f32.mrf.mxu0
      %v3011 = vadd.f32 %v2850, %v3010
      %v3012 = vpop.f32.mrf.mxu0
      %v3013 = vpop.f32.mrf.mxu0
      %v3014 = vadd.f32 %v2853, %v3013
      %v3015 = vpop.f32.mrf.mxu0
      %3016 = vmatprep.mubr.bf16.mxu0 0
      %3017 = vmatmul.mubr.bf16.gmra.mxu0 %v1633
      %v3018 = vpop.f32.mrf.mxu0
      %v3019 = vadd.f32 %v2858, %v3018
      %v3020 = vpop.f32.mrf.mxu0
      %v3021 = vpop.f32.mrf.mxu0
      %v3022 = vadd.f32 %v2861, %v3021
      %v3023 = vpop.f32.mrf.mxu0
      %3024 = vmatprep.mubr.bf16.mxu0 0
      %3025 = vmatmul.mubr.bf16.gmra.mxu0 %v1642
      %v3026 = vpop.f32.mrf.mxu0
      %v3027 = vadd.f32 %v2866, %v3026
      %v3028 = vpop.f32.mrf.mxu0
      %v3029 = vpop.f32.mrf.mxu0
      %v3030 = vadd.f32 %v2869, %v3029
      %v3031 = vpop.f32.mrf.mxu0
      %3032 = vmatprep.mubr.bf16.mxu0 0
      %3033 = vmatmul.mubr.bf16.gmra.mxu0 %v1651
      %v3034 = vpop.f32.mrf.mxu0
      %v3035 = vadd.f32 %v2874, %v3034
      %v3036 = vpop.f32.mrf.mxu0
      %v3037 = vpop.f32.mrf.mxu0
      %v3038 = vadd.f32 %v2877, %v3037
      %v3039 = vpop.f32.mrf.mxu0
      %3040 = vmatprep.mubr.bf16.mxu0 0
      %3041 = vmatmul.mubr.bf16.gmra.mxu0 %v1660
      %v3042 = vpop.f32.mrf.mxu0
      %v3043 = vadd.f32 %v2882, %v3042
      %v3044 = vpop.f32.mrf.mxu0
      %v3045 = vpop.f32.mrf.mxu0
      %v3046 = vadd.f32 %v2885, %v3045
      %v3047 = vpop.f32.mrf.mxu0
      %3048 = vdwg.mxu0
      %v3049 = vmax.f32 %v2923, 0.0
      %v3050 = vmax.f32 %v2926, 0.0
      %v3051 = vmax.f32 %v2931, 0.0
      %v3052 = vmax.f32 %v2934, 0.0
      %v3053 = vmax.f32 %v2939, 0.0
      %v3054 = vmax.f32 %v2942, 0.0
      %v3055 = vmax.f32 %v2947, 0.0
      %v3056 = vmax.f32 %v2950, 0.0
      %v3057 = vmax.f32 %v2955, 0.0
      %v3058 = vmax.f32 %v2958, 0.0
      %v3059 = vmax.f32 %v2963, 0.0
      %v3060 = vmax.f32 %v2966, 0.0
      %v3061 = vmax.f32 %v2971, 0.0
      %v3062 = vmax.f32 %v2974, 0.0
      %v3063 = vmax.f32 %v2979, 0.0
      %v3064 = vmax.f32 %v2982, 0.0
      %v3065 = vmax.f32 %v2987, 0.0
      %v3066 = vmax.f32 %v2990, 0.0
      %v3067 = vmax.f32 %v2995, 0.0
      %v3068 = vmax.f32 %v2998, 0.0
      %v3069 = vmax.f32 %v3003, 0.0
      %v3070 = vmax.f32 %v3006, 0.0
      %v3071 = vmax.f32 %v3011, 0.0
      %v3072 = vmax.f32 %v3014, 0.0
      %v3073 = vmax.f32 %v3019, 0.0
      %v3074 = vmax.f32 %v3022, 0.0
      %v3075 = vmax.f32 %v3027, 0.0
      %v3076 = vmax.f32 %v3030, 0.0
      %v3077 = vmax.f32 %v3035, 0.0
      %v3078 = vmax.f32 %v3038, 0.0
      %v3079 = vmax.f32 %v3043, 0.0
      %v3080 = vmax.f32 %v3046, 0.0
      %v3081 = vpack.c.bf16 %v3050, %v3049
      %v3082 = vpack.c.bf16 %v3052, %v3051
      %v3083 = vpack.c.bf16 %v3054, %v3053
      %v3084 = vpack.c.bf16 %v3056, %v3055
      %v3085 = vpack.c.bf16 %v3058, %v3057
      %v3086 = vpack.c.bf16 %v3060, %v3059
      %v3087 = vpack.c.bf16 %v3062, %v3061
      %v3088 = vpack.c.bf16 %v3064, %v3063
      %v3089 = vpack.c.bf16 %v3066, %v3065
      %v3090 = vpack.c.bf16 %v3068, %v3067
      %v3091 = vpack.c.bf16 %v3070, %v3069
      %v3092 = vpack.c.bf16 %v3072, %v3071
      %v3093 = vpack.c.bf16 %v3074, %v3073
      %v3094 = vpack.c.bf16 %v3076, %v3075
      %v3095 = vpack.c.bf16 %v3078, %v3077
      %v3096 = vpack.c.bf16 %v3080, %v3079
      %v3113 = vunpack.c.l.b16 %v3081
      %v3114 = vunpack.c.h.b16 %v3081
      %v3115 = vunpack.c.l.b16 %v3082
      %v3116 = vunpack.c.h.b16 %v3082
      %v3117 = vunpack.c.l.b16 %v3083
      %v3118 = vunpack.c.h.b16 %v3083
      %v3119 = vunpack.c.l.b16 %v3084
      %v3120 = vunpack.c.h.b16 %v3084
      %v3121 = vunpack.c.l.b16 %v3085
      %v3122 = vunpack.c.h.b16 %v3085
      %v3123 = vunpack.c.l.b16 %v3086
      %v3124 = vunpack.c.h.b16 %v3086
      %v3125 = vunpack.c.l.b16 %v3087
      %v3126 = vunpack.c.h.b16 %v3087
      %v3127 = vunpack.c.l.b16 %v3088
      %v3128 = vunpack.c.h.b16 %v3088
      %v3129 = vunpack.c.l.b16 %v3089
      %v3130 = vunpack.c.h.b16 %v3089
      %v3131 = vunpack.c.l.b16 %v3090
      %v3132 = vunpack.c.h.b16 %v3090
      %v3133 = vunpack.c.l.b16 %v3091
      %v3134 = vunpack.c.h.b16 %v3091
      %v3135 = vunpack.c.l.b16 %v3092
      %v3136 = vunpack.c.h.b16 %v3092
      %v3137 = vunpack.c.l.b16 %v3093
      %v3138 = vunpack.c.h.b16 %v3093
      %v3139 = vunpack.c.l.b16 %v3094
      %v3140 = vunpack.c.h.b16 %v3094
      %v3141 = vunpack.c.l.b16 %v3095
      %v3142 = vunpack.c.h.b16 %v3095
      %v3143 = vunpack.c.l.b16 %v3096
      %v3144 = vunpack.c.h.b16 %v3096
      %v3145 = vpack.c.b16 %v3113, %v3113
      %v3146 = vpack.c.b16 %v3114, %v3114
      %v3147 = vpack.c.b16 %v3115, %v3115
      %v3148 = vpack.c.b16 %v3116, %v3116
      %v3149 = vpack.c.b16 %v3117, %v3117
      %v3150 = vpack.c.b16 %v3118, %v3118
      %v3151 = vpack.c.b16 %v3119, %v3119
      %v3152 = vpack.c.b16 %v3120, %v3120
      %v3153 = vpack.c.b16 %v3121, %v3121
      %v3154 = vpack.c.b16 %v3122, %v3122
      %v3155 = vpack.c.b16 %v3123, %v3123
      %v3156 = vpack.c.b16 %v3124, %v3124
      %v3157 = vpack.c.b16 %v3125, %v3125
      %v3158 = vpack.c.b16 %v3126, %v3126
      %v3159 = vpack.c.b16 %v3127, %v3127
      %v3160 = vpack.c.b16 %v3128, %v3128
      %v3161 = vpack.c.b16 %v3129, %v3129
      %v3162 = vpack.c.b16 %v3130, %v3130
      %v3163 = vpack.c.b16 %v3131, %v3131
      %v3164 = vpack.c.b16 %v3132, %v3132
      %v3165 = vpack.c.b16 %v3133, %v3133
      %v3166 = vpack.c.b16 %v3134, %v3134
      %v3167 = vpack.c.b16 %v3135, %v3135
      %v3168 = vpack.c.b16 %v3136, %v3136
      %v3169 = vpack.c.b16 %v3137, %v3137
      %v3170 = vpack.c.b16 %v3138, %v3138
      %v3171 = vpack.c.b16 %v3139, %v3139
      %v3172 = vpack.c.b16 %v3140, %v3140
      %v3173 = vpack.c.b16 %v3141, %v3141
      %v3174 = vpack.c.b16 %v3142, %v3142
      %v3175 = vpack.c.b16 %v3143, %v3143
      %v3176 = vpack.c.b16 %v3144, %v3144
      %3209 = vst [vmem:[%s235] sm:$0xf] %v3145
      %3210 = vst [vmem:[%s235 + $0x4] sm:$0xf] %v3146
      %3211 = vst [vmem:[%s235 + $0x8] sm:$0xf] %v3147
      %3212 = vst [vmem:[%s235 + $0xc] sm:$0xf] %v3148
      %3213 = vst [vmem:[%s235 + $0x10] sm:$0xf] %v3149
      %3214 = vst [vmem:[%s235 + $0x14] sm:$0xf] %v3150
      %3215 = vst [vmem:[%s235 + $0x18] sm:$0xf] %v3151
      %3216 = vst [vmem:[%s235 + $0x1c] sm:$0xf] %v3152
      %3217 = vst [vmem:[%s235 + $0x20] sm:$0xf] %v3153
      %3218 = vst [vmem:[%s235 + $0x24] sm:$0xf] %v3154
      %3219 = vst [vmem:[%s235 + $0x28] sm:$0xf] %v3155
      %3220 = vst [vmem:[%s235 + $0x2c] sm:$0xf] %v3156
      %3221 = vst [vmem:[%s235 + $0x30] sm:$0xf] %v3157
      %3222 = vst [vmem:[%s235 + $0x34] sm:$0xf] %v3158
      %3223 = vst [vmem:[%s235 + $0x38] sm:$0xf] %v3159
      %3224 = vst [vmem:[%s235 + $0x3c] sm:$0xf] %v3160
      %3225 = vst [vmem:[%s235 + $0x40] sm:$0xf] %v3161
      %3226 = vst [vmem:[%s235 + $0x44] sm:$0xf] %v3162
      %3227 = vst [vmem:[%s235 + $0x48] sm:$0xf] %v3163
      %3228 = vst [vmem:[%s235 + $0x4c] sm:$0xf] %v3164
      %3229 = vst [vmem:[%s235 + $0x50] sm:$0xf] %v3165
      %3230 = vst [vmem:[%s235 + $0x54] sm:$0xf] %v3166
      %3231 = vst [vmem:[%s235 + $0x58] sm:$0xf] %v3167
      %3232 = vst [vmem:[%s235 + $0x5c] sm:$0xf] %v3168
      %3233 = vst [vmem:[%s235 + $0x60] sm:$0xf] %v3169
      %3234 = vst [vmem:[%s235 + $0x64] sm:$0xf] %v3170
      %3235 = vst [vmem:[%s235 + $0x68] sm:$0xf] %v3171
      %3236 = vst [vmem:[%s235 + $0x6c] sm:$0xf] %v3172
      %3237 = vst [vmem:[%s235 + $0x70] sm:$0xf] %v3173
      %3238 = vst [vmem:[%s235 + $0x74] sm:$0xf] %v3174
      %3239 = vst [vmem:[%s235 + $0x78] sm:$0xf] %v3175
      %3240 = vst [vmem:[%s235 + $0x7c] sm:$0xf] %v3176
      %v3241 = vadd.f32 %v3049, %v3050
      %v3242 = vadd.f32 %v3241, %v3051
      %v3243 = vadd.f32 %v3242, %v3052
      %v3244 = vadd.f32 %v3243, %v3053
      %v3245 = vadd.f32 %v3244, %v3054
      %v3246 = vadd.f32 %v3245, %v3055
      %v3247 = vadd.f32 %v3246, %v3056
      %v3248 = vadd.f32 %v3247, %v3057
      %v3249 = vadd.f32 %v3248, %v3058
      %v3250 = vadd.f32 %v3249, %v3059
      %v3251 = vadd.f32 %v3250, %v3060
      %v3252 = vadd.f32 %v3251, %v3061
      %v3253 = vadd.f32 %v3252, %v3062
      %v3254 = vadd.f32 %v3253, %v3063
      %v3255 = vadd.f32 %v3254, %v3064
      %v3256 = vadd.f32 %v3255, %v3065
      %v3257 = vadd.f32 %v3256, %v3066
      %v3258 = vadd.f32 %v3257, %v3067
      %v3259 = vadd.f32 %v3258, %v3068
      %v3260 = vadd.f32 %v3259, %v3069
      %v3261 = vadd.f32 %v3260, %v3070
      %v3262 = vadd.f32 %v3261, %v3071
      %v3263 = vadd.f32 %v3262, %v3072
      %v3264 = vadd.f32 %v3263, %v3073
      %v3265 = vadd.f32 %v3264, %v3074
      %v3266 = vadd.f32 %v3265, %v3075
      %v3267 = vadd.f32 %v3266, %v3076
      %v3268 = vadd.f32 %v3267, %v3077
      %v3269 = vadd.f32 %v3268, %v3078
      %v3270 = vadd.f32 %v3269, %v3079
      %v3271 = vadd.f32 %v3270, %v3080
      %v3272 = vrot.slane %v3271, 4
      %v3273 = vadd.f32 %v3271, %v3272
      %v3274 = vrot.slane %v3273, 2
      %v3275 = vadd.f32 %v3273, %v3274
      %v3276 = vrot.slane %v3275, 1
      %v3277 = vadd.f32 %v3275, %v3276
      %3278 = vst [vmem:[%s238] sm:$0x1] %v3277
      %v3279 = vmul.f32 %v3049, %v3049
      %v3280 = vmul.f32 %v3050, %v3050
      %v3281 = vmul.f32 %v3051, %v3051
      %v3282 = vmul.f32 %v3052, %v3052
      %v3283 = vmul.f32 %v3053, %v3053
      %v3284 = vmul.f32 %v3054, %v3054
      %v3285 = vmul.f32 %v3055, %v3055
      %v3286 = vmul.f32 %v3056, %v3056
      %v3287 = vmul.f32 %v3057, %v3057
      %v3288 = vmul.f32 %v3058, %v3058
      %v3289 = vmul.f32 %v3059, %v3059
      %v3290 = vmul.f32 %v3060, %v3060
      %v3291 = vmul.f32 %v3061, %v3061
      %v3292 = vmul.f32 %v3062, %v3062
      %v3293 = vmul.f32 %v3063, %v3063
      %v3294 = vmul.f32 %v3064, %v3064
      %v3295 = vmul.f32 %v3065, %v3065
      %v3296 = vmul.f32 %v3066, %v3066
      %v3297 = vmul.f32 %v3067, %v3067
      %v3298 = vmul.f32 %v3068, %v3068
      %v3299 = vmul.f32 %v3069, %v3069
      %v3300 = vmul.f32 %v3070, %v3070
      %v3301 = vmul.f32 %v3071, %v3071
      %v3302 = vmul.f32 %v3072, %v3072
      %v3303 = vmul.f32 %v3073, %v3073
      %v3304 = vmul.f32 %v3074, %v3074
      %v3305 = vmul.f32 %v3075, %v3075
      %v3306 = vmul.f32 %v3076, %v3076
      %v3307 = vmul.f32 %v3077, %v3077
      %v3308 = vmul.f32 %v3078, %v3078
      %v3309 = vmul.f32 %v3079, %v3079
      %v3310 = vmul.f32 %v3080, %v3080
      %v3311 = vadd.f32 %v3279, %v3280
      %v3312 = vadd.f32 %v3311, %v3281
      %v3313 = vadd.f32 %v3312, %v3282
      %v3314 = vadd.f32 %v3313, %v3283
      %v3315 = vadd.f32 %v3314, %v3284
      %v3316 = vadd.f32 %v3315, %v3285
      %v3317 = vadd.f32 %v3316, %v3286
      %v3318 = vadd.f32 %v3317, %v3287
      %v3319 = vadd.f32 %v3318, %v3288
      %v3320 = vadd.f32 %v3319, %v3289
      %v3321 = vadd.f32 %v3320, %v3290
      %v3322 = vadd.f32 %v3321, %v3291
      %v3323 = vadd.f32 %v3322, %v3292
      %v3324 = vadd.f32 %v3323, %v3293
      %v3325 = vadd.f32 %v3324, %v3294
      %v3326 = vadd.f32 %v3325, %v3295
      %v3327 = vadd.f32 %v3326, %v3296
      %v3328 = vadd.f32 %v3327, %v3297
      %v3329 = vadd.f32 %v3328, %v3298
      %v3330 = vadd.f32 %v3329, %v3299
      %v3331 = vadd.f32 %v3330, %v3300
      %v3332 = vadd.f32 %v3331, %v3301
      %v3333 = vadd.f32 %v3332, %v3302
      %v3334 = vadd.f32 %v3333, %v3303
      %v3335 = vadd.f32 %v3334, %v3304
      %v3336 = vadd.f32 %v3335, %v3305
      %v3337 = vadd.f32 %v3336, %v3306
      %v3338 = vadd.f32 %v3337, %v3307
      %v3339 = vadd.f32 %v3338, %v3308
      %v3340 = vadd.f32 %v3339, %v3309
      %v3341 = vadd.f32 %v3340, %v3310
      %v3342 = vrot.slane %v3341, 4
      %v3343 = vadd.f32 %v3341, %v3342
      %v3344 = vrot.slane %v3343, 2
      %v3345 = vadd.f32 %v3343, %v3344
      %v3346 = vrot.slane %v3345, 1
      %v3347 = vadd.f32 %v3345, %v3346
      %3348 = vst [vmem:[%s241] sm:$0x1] %v3347
      %p3349 = scmp.lt.s32.totalorder %s17, 1
      %s3350 = scalar_select %p3349, %s17, 1
      %s3351 = smul.addr %s3350, 32
      %s3352 = smul.addr %s3351, 4
      %s3353 = scalar_lea.vmem %s3, %s3352
      %p3354 = scmp.lt.s32.totalorder %s17, 1
      %s3355 = scalar_select %p3354, %s17, 1
      %s3356 = scalar_lea.vmem %s4, %s3355
      %p3357 = scmp.lt.s32.totalorder %s17, 1
      %s3358 = scalar_select %p3357, %s17, 1
      %s3359 = scalar_lea.vmem %s5, %s3358
      // Predicated region
      $region33: #{block_forward.3} parent=31 // pred_check
        %p3360 = pneg %p103
      $region34: #{block_forward.3} parent=31 // pred_check_branch
        %3362 = sbr.rel (%p3360) target = $region36
      $region35: #{block_forward.3} parent=31 // pred_region
        _
      $region36: #{block_forward.3} parent=31 // pred_fallthru
        _
      // Predicated region
      $region37: #{block_forward.3} parent=31 // pred_check
        %p3363 = pneg %p129
      $region38: #{block_forward.3} parent=31 // pred_check_branch
        %3365 = sbr.rel (%p3363) target = $region40
      $region39: #{block_forward.3} parent=31 // pred_region
        _
      $region40: #{block_forward.3} parent=31 // pred_fallthru
        _
      // Predicated region
      $region41: #{block_forward.3} parent=31 // pred_check
        %p3366 = pneg %p155
      $region42: #{block_forward.3} parent=31 // pred_check_branch
        %3368 = sbr.rel (%p3366) target = $region44
      $region43: #{block_forward.3} parent=31 // pred_region
        _
      $region44: #{block_forward.3} parent=31 // pred_fallthru
        _
    $region32: #{block_forward.3} parent=5 // pred_fallthru
      _
    %p3369 = scmp.le.s32.totalorder 2, %s12
    // Predicated region
    $region45: #{block_forward.3} parent=5 // pred_check
      %p3370 = pneg %p3369
    $region46: #{block_forward.3} parent=5 // pred_check_branch
      %3372 = sbr.rel (%p3370) target = $region48
    $region47: #{block_forward.3} parent=5 // pred_region
      %s3373 = ssub.s32 %s12, 2
      // Predicated region
      $region49: #{block_forward.3} parent=47 // pred_check
        %p3374 = pneg %p109
      $region50: #{block_forward.3} parent=47 // pred_check_branch
        %3376 = sbr.rel (%p3374) target = $region52
      $region51: #{block_forward.3} parent=47 // pred_region
        %p3377 = scmp.lt.s32.totalorder %s18, 1
        %s3378 = scalar_select %p3377, %s18, 1
        %s3379 = smul.addr %s3378, 32
        %s3380 = smul.addr %s3379, 4
        %s3381 = scalar_lea.vmem %s3, %s3380
      $region52: #{block_forward.3} parent=47 // pred_fallthru
        _
      // Predicated region
      $region53: #{block_forward.3} parent=47 // pred_check
        %p3382 = pneg %p135
      $region54: #{block_forward.3} parent=47 // pred_check_branch
        %3384 = sbr.rel (%p3382) target = $region56
      $region55: #{block_forward.3} parent=47 // pred_region
        %p3385 = scmp.lt.s32.totalorder %s18, 1
        %s3386 = scalar_select %p3385, %s18, 1
        %s3387 = scalar_lea.vmem %s4, %s3386
      $region56: #{block_forward.3} parent=47 // pred_fallthru
        _
      // Predicated region
      $region57: #{block_forward.3} parent=47 // pred_check
        %p3388 = pneg %p161
      $region58: #{block_forward.3} parent=47 // pred_check_branch
        %3390 = sbr.rel (%p3388) target = $region60
      $region59: #{block_forward.3} parent=47 // pred_region
        %p3391 = scmp.lt.s32.totalorder %s18, 1
        %s3392 = scalar_select %p3391, %s18, 1
        %s3393 = scalar_lea.vmem %s5, %s3392
      $region60: #{block_forward.3} parent=47 // pred_fallthru
        _
    $region48: #{block_forward.3} parent=5 // pred_fallthru
      _
  $region6: #{block_forward.3} parent=0 // loop_footer
    %s16 = sadd.s32 1, %s12
  $region7: #{block_forward.3} parent=0 // loop_footer_branch
    %11 = sbr.rel target = $region3
  $region8: #{block_forward.3} parent=0 // loop_exit
    _

</llo_original>
